<compile_context>
chip_gen: v5e
topology: v5e:2x2
jax: 0.10.0
libtpu: 0.0.40
codegen_flags: <defaults>
</compile_context>

<pallas_src>
import math

import jax
import jax.numpy as jnp
from jax.experimental import pallas as pl
from jax.experimental.pallas import tpu as pltpu

BN_EPS = 1e-5
CIN_PAD = 16   # trunk input channels padded to one bf16 sublane tile (16) so every im2col
               # tap block lands at a tile-aligned sublane offset in the patch concat.


# ----------------------------------- fused kernel -----------------------------------

def _make_fused_kernel(W, N, n_blocks):
    """Whole MiniResNet forward (trunk + n_blocks residual blocks) in one kernel.

    Lane-dense working layout: activations are (C, N) with the flattened pixel index
    n = b*H*W + h*W + w on the lane axis.
    """

    def kernel(x_ref, masks_ref, wt_ref, wb_ref, gamma_ref, beta_ref, out_ref):
        # 9 boundary masks (1, N) f32 in {0,1}, hoisted once for all 7 convs.
        tap_mask = [masks_ref[t:t + 1, :] for t in range(9)]

        def conv3x3(act, w):
            """3x3 same-conv as ONE MXU matmul: w (Cout, 9*Cin) @ patches (9*Cin, N).

            act: (Cin, N) f32.  Tap (ky, kx) = lane roll of act by (ky-1)*W + (kx-1)
            (source pixel (h+ky-1, w+kx-1)); the precomputed mask zeros taps that fall
            outside the image (which also kills any wrap across batch images).
            """
            taps = []
            for ky in range(3):
                for kx in range(3):
                    t = 3 * ky + kx
                    d = (ky - 1) * W + (kx - 1)
                    if d == 0:
                        tap = act
                    else:
                        tap = pltpu.roll(act, shift=(-d) % N, axis=1) * tap_mask[t]
                    taps.append(tap.astype(jnp.bfloat16))
                # sublane-axis concat: piece heights are multiples of 16 -> tile aligned
            patches = jnp.concatenate(taps, axis=0)                      # (9*Cin, N) bf16
            return jnp.dot(w, patches, preferred_element_type=jnp.float32)  # (Cout, N) f32

        def bn_relu(acc, idx, residual=None):
            """Training-mode BatchNorm (biased var over all N pixels) + residual + ReLU."""
            mean = jnp.mean(acc, axis=1, keepdims=True)                  # (C, 1)
            cent = acc - mean
            var = jnp.mean(cent * cent, axis=1, keepdims=True)           # two-pass, centered
            y = cent * (gamma_ref[idx] * jax.lax.rsqrt(var + BN_EPS)) + beta_ref[idx]
            if residual is not None:
                y = y + residual
            return jnp.maximum(y, 0.0)

        # Trunk: Conv3x3(Cin->C) + BN + ReLU (patches built in-kernel, padded channels=0).
        h = bn_relu(conv3x3(x_ref[...], wt_ref[...]), 0)

        # Residual blocks (identity shortcut: stride 1, Cin == Cout under default config).
        for blk in range(n_blocks):
            pre = bn_relu(conv3x3(h, wb_ref[2 * blk]), 1 + 2 * blk)
            h = bn_relu(conv3x3(pre, wb_ref[2 * blk + 1]), 2 + 2 * blk, residual=h)

        out_ref[...] = h        # (C, N) f32: lane-dense -> full-width unmasked stores

    return kernel


def mini_resnet_fused(x_cn, masks, wt, wb, gamma, beta, *, W):
    C = wt.shape[0]
    N = x_cn.shape[1]
    kernel = _make_fused_kernel(W, N, wb.shape[0] // 2)
    vmem = pl.BlockSpec(memory_space=pltpu.MemorySpace.VMEM)
    return pl.pallas_call(
        kernel,
        out_shape=jax.ShapeDtypeStruct((C, N), jnp.float32),
        in_specs=[vmem] * 6,
        out_specs=vmem,
        # Footprint is <1 MiB; 16 MiB fits the scoped default on every generation
        # (re-derive before scaling the batch on 64 MiB-VMEM v7x).
        compiler_params=pltpu.CompilerParams(vmem_limit_bytes=16 * 1024 * 1024),
    )(x_cn, masks, wt, wb, gamma, beta)


# --------------------------- parameters (deterministic init) ------------------------

def _conv_weight(key, cout, cin, k=3):
    # PyTorch Conv2d default init: kaiming_uniform_(a=sqrt(5)) -> U(-1/sqrt(fan_in), +).
    bound = 1.0 / math.sqrt(cin * k * k)
    return jax.random.uniform(key, (cout, cin, k, k), jnp.float32, -bound, bound)


def _to_matmul_layout(w, cin_pad=None):
    # (Cout,Cin,kH,kW) -> (Cout, 9*cin_pad); column = (3*ky + kx)*cin_pad + ci, matching
    # the kernel's tap-major / channel-minor patch rows (padded channels get zero weight).
    cout, cin, kh, kw = w.shape
    cin_pad = cin if cin_pad is None else cin_pad
    wm = jnp.zeros((cout, kh * kw, cin_pad), jnp.float32)
    wm = wm.at[:, :, :cin].set(jnp.transpose(w, (0, 2, 3, 1)).reshape(cout, kh * kw, cin))
    return wm.reshape(cout, kh * kw * cin_pad)


def init_params(key, in_channels=4, dims=(32, 32), depths=(3,)):
    key, kt = jax.random.split(key)
    w_trunk = _conv_weight(kt, dims[0], in_channels)
    raw_blocks, block_ws = [], []
    gammas = [jnp.ones((dims[0], 1), jnp.float32)]        # BatchNorm default init
    betas = [jnp.zeros((dims[0], 1), jnp.float32)]
    for i, depth in enumerate(depths):
        for j in range(depth):
            cin, cout = dims[i + (j > 0)], dims[i + 1]
            # Default config: every block has cin == cout and stride 1 (identity shortcut).
            # TODO(synk): strided ResidualBlock / 1x1 down_sample projection path is never
            # instantiated under the default MiniResNet config and is not implemented.
            assert cin == cout, "down_sample projection shortcut not implemented"
            key, k1, k2 = jax.random.split(key, 3)
            w1, w2 = _conv_weight(k1, cout, cin), _conv_weight(k2, cout, cout)
            raw_blocks += [w1, w2]
            block_ws += [_to_matmul_layout(w1), _to_matmul_layout(w2)]
            gammas += [jnp.ones((cout, 1), jnp.float32)] * 2
            betas += [jnp.zeros((cout, 1), jnp.float32)] * 2
    params = dict(
        wt=_to_matmul_layout(w_trunk, CIN_PAD).astype(jnp.bfloat16),   # (C, 9*CIN_PAD)
        wb=jnp.stack(block_ws).astype(jnp.bfloat16),                   # (2*n_blocks, C, 9*C)
        gamma=jnp.stack(gammas),                                       # (1+2*n_blocks, C, 1)
        beta=jnp.stack(betas),
    )
    raw = dict(wt=w_trunk, wb=raw_blocks)                  # OIHW f32, for the reference
    return params, raw


# --------------------------------- forward (wrapper) --------------------------------

def _boundary_masks(B, H, W):
    """(9, B*H*W) f32 in {0,1}: row 3*ky+kx is 1 where tap (ky-1, kx-1) stays in-image."""
    hh = jnp.arange(H).reshape(1, H, 1)
    ww = jnp.arange(W).reshape(1, 1, W)
    rows = []
    for ky in range(3):
        for kx in range(3):
            ok = jnp.ones((1, H, W), bool)
            if ky == 0:
                ok = ok & (hh >= 1)
            elif ky == 2:
                ok = ok & (hh <= H - 2)
            if kx == 0:
                ok = ok & (ww >= 1)
            elif kx == 2:
                ok = ok & (ww <= W - 2)
            rows.append(jnp.broadcast_to(ok, (B, H, W)).reshape(-1))
    return jnp.stack(rows).astype(jnp.float32)


def mini_resnet_forward(params, x):
    # MiniResNet.forward context handling: a single 4-D input of matching spatial shape
    # reshapes to (lead..., C, H, W) -- a no-op here.
    lead = x.shape[:-3]
    x = x.reshape((-1,) + x.shape[-3:])                     # (B, Cin, H, W)
    B, Cin, H, W = x.shape
    C = params["gamma"].shape[1]
    cin_pad = params["wt"].shape[1] // 9
    N = B * H * W

    # Tiny host-side glue: (B,Cin,H,W) -> lane-dense (cin_pad, N) with pixels on lanes.
    x_cn = jnp.transpose(x, (1, 0, 2, 3)).reshape(Cin, N)
    x_cn = jnp.pad(x_cn, ((0, cin_pad - Cin), (0, 0)))
    masks = _boundary_masks(B, H, W)                        # constant-folded under jit

    out = mini_resnet_fused(x_cn, masks, params["wt"], params["wb"],
                            params["gamma"], params["beta"], W=W)      # (C, N) f32
    out = out.reshape(C, B, H, W).transpose(1, 0, 2, 3)                # -> NCHW
    # projection = nn.Identity() since output_dim is None.
    return out.reshape(lead + out.shape[1:])


# ------------------------------- pure-JAX reference ----------------------------------

def mini_resnet_reference(raw, x):
    """Independent reference with matching numerics: bf16 conv operands, f32 accumulation,
    training-mode BatchNorm (gamma=1, beta=0 at init so BN reduces to normalization)."""
    def conv(h, w):
        return jax.lax.conv_general_dilated(
            h.astype(jnp.bfloat16), w.astype(jnp.bfloat16), window_strides=(1, 1),
            padding=((1, 1), (1, 1)), dimension_numbers=("NCHW", "OIHW", "NCHW"),
            preferred_element_type=jnp.float32)

    def bn_relu(h, residual=None):
        mean = h.mean(axis=(0, 2, 3), keepdims=True)
        var = ((h - mean) ** 2).mean(axis=(0, 2, 3), keepdims=True)
        y = (h - mean) * jax.lax.rsqrt(var + BN_EPS)
        if residual is not None:
            y = y + residual
        return jnp.maximum(y, 0.0)

    h = bn_relu(conv(x, raw["wt"]))
    for blk in range(len(raw["wb"]) // 2):
        pre = bn_relu(conv(h, raw["wb"][2 * blk]))
        h = bn_relu(conv(pre, raw["wb"][2 * blk + 1]), residual=h)
    return h


if __name__ == "__main__":
    key = jax.random.PRNGKey(0)
    pkey, xkey = jax.random.split(key)

    input_shape = (4, 16, 16)                                # (C, H, W)
    params, raw = init_params(pkey, in_channels=input_shape[0])
    x = jax.random.normal(xkey, (2,) + input_shape, jnp.float32)     # batch of 2, NCHW

    fwd = jax.jit(mini_resnet_forward)
    out = jax.block_until_ready(fwd(params, x))
    assert out.shape == (2, 32, 16, 16), out.shape
    assert bool(jnp.all(jnp.isfinite(out)))

    ref = jax.block_until_ready(jax.jit(mini_resnet_reference)(raw, x))
    err = float(jnp.max(jnp.abs(out - ref)))
    assert err < 5e-2, f"kernel vs reference max |err| = {err}"
    print("KERNEL_OK")
</pallas_src>

<mosaic_0001>
module attributes {stable_mosaic.version = 11 : i64} {
  func.func @kernel(%arg0: memref<16x512xf32, #tpu.memory_space<vmem>>, %arg1: memref<9x512xf32, #tpu.memory_space<vmem>>, %arg2: memref<32x144xbf16, #tpu.memory_space<vmem>>, %arg3: memref<6x32x288xbf16, #tpu.memory_space<vmem>>, %arg4: memref<7x32x1xf32, #tpu.memory_space<vmem>>, %arg5: memref<7x32x1xf32, #tpu.memory_space<vmem>>, %arg6: memref<32x512xf32, #tpu.memory_space<vmem>>) attributes {dimension_semantics = [], scalar_prefetch = 0 : i64, scratch_operands = 0 : i64, tpu.core_type = #tpu.core_type<tc>} {
    %c0 = arith.constant 0 : index
    %c0_0 = arith.constant 0 : index
    %0 = vector.load %arg1[%c0, %c0_0] : memref<9x512xf32, #tpu.memory_space<vmem>>, vector<1x512xf32>
    %c1 = arith.constant 1 : index
    %c0_1 = arith.constant 0 : index
    %1 = vector.load %arg1[%c1, %c0_1] : memref<9x512xf32, #tpu.memory_space<vmem>>, vector<1x512xf32>
    %c2 = arith.constant 2 : index
    %c0_2 = arith.constant 0 : index
    %2 = vector.load %arg1[%c2, %c0_2] : memref<9x512xf32, #tpu.memory_space<vmem>>, vector<1x512xf32>
    %c3 = arith.constant 3 : index
    %c0_3 = arith.constant 0 : index
    %3 = vector.load %arg1[%c3, %c0_3] : memref<9x512xf32, #tpu.memory_space<vmem>>, vector<1x512xf32>
    %c5 = arith.constant 5 : index
    %c0_4 = arith.constant 0 : index
    %4 = vector.load %arg1[%c5, %c0_4] : memref<9x512xf32, #tpu.memory_space<vmem>>, vector<1x512xf32>
    %c6 = arith.constant 6 : index
    %c0_5 = arith.constant 0 : index
    %5 = vector.load %arg1[%c6, %c0_5] : memref<9x512xf32, #tpu.memory_space<vmem>>, vector<1x512xf32>
    %c7 = arith.constant 7 : index
    %c0_6 = arith.constant 0 : index
    %6 = vector.load %arg1[%c7, %c0_6] : memref<9x512xf32, #tpu.memory_space<vmem>>, vector<1x512xf32>
    %c8 = arith.constant 8 : index
    %c0_7 = arith.constant 0 : index
    %7 = vector.load %arg1[%c8, %c0_7] : memref<9x512xf32, #tpu.memory_space<vmem>>, vector<1x512xf32>
    %c0_8 = arith.constant 0 : index
    %c0_9 = arith.constant 0 : index
    %8 = vector.load %arg0[%c0_8, %c0_9] : memref<16x512xf32, #tpu.memory_space<vmem>>, vector<16x512xf32>
    %c0_10 = arith.constant 0 : index
    %c0_11 = arith.constant 0 : index
    %9 = vector.load %arg2[%c0_10, %c0_11] : memref<32x144xbf16, #tpu.memory_space<vmem>>, vector<32x144xbf16>
    %c17_i32 = arith.constant 17 : i32
    %10 = tpu.dynamic_rotate %8 by %c17_i32 dim 1 : vector<16x512xf32>, i32 -> vector<16x512xf32>
    %11 = vector.broadcast %0 : vector<1x512xf32> to vector<16x512xf32>
    %12 = arith.mulf %10, %11 : vector<16x512xf32>
    %13 = arith.truncf %12 : vector<16x512xf32> to vector<16x512xbf16>
    %c16_i32 = arith.constant 16 : i32
    %14 = tpu.dynamic_rotate %8 by %c16_i32 dim 1 : vector<16x512xf32>, i32 -> vector<16x512xf32>
    %15 = vector.broadcast %1 : vector<1x512xf32> to vector<16x512xf32>
    %16 = arith.mulf %14, %15 : vector<16x512xf32>
    %17 = arith.truncf %16 : vector<16x512xf32> to vector<16x512xbf16>
    %c15_i32 = arith.constant 15 : i32
    %18 = tpu.dynamic_rotate %8 by %c15_i32 dim 1 : vector<16x512xf32>, i32 -> vector<16x512xf32>
    %19 = vector.broadcast %2 : vector<1x512xf32> to vector<16x512xf32>
    %20 = arith.mulf %18, %19 : vector<16x512xf32>
    %21 = arith.truncf %20 : vector<16x512xf32> to vector<16x512xbf16>
    %c1_i32 = arith.constant 1 : i32
    %22 = tpu.dynamic_rotate %8 by %c1_i32 dim 1 : vector<16x512xf32>, i32 -> vector<16x512xf32>
    %23 = vector.broadcast %3 : vector<1x512xf32> to vector<16x512xf32>
    %24 = arith.mulf %22, %23 : vector<16x512xf32>
    %25 = arith.truncf %24 : vector<16x512xf32> to vector<16x512xbf16>
    %26 = arith.truncf %8 : vector<16x512xf32> to vector<16x512xbf16>
    %c511_i32 = arith.constant 511 : i32
    %27 = tpu.dynamic_rotate %8 by %c511_i32 dim 1 : vector<16x512xf32>, i32 -> vector<16x512xf32>
    %28 = vector.broadcast %4 : vector<1x512xf32> to vector<16x512xf32>
    %29 = arith.mulf %27, %28 : vector<16x512xf32>
    %30 = arith.truncf %29 : vector<16x512xf32> to vector<16x512xbf16>
    %c497_i32 = arith.constant 497 : i32
    %31 = tpu.dynamic_rotate %8 by %c497_i32 dim 1 : vector<16x512xf32>, i32 -> vector<16x512xf32>
    %32 = vector.broadcast %5 : vector<1x512xf32> to vector<16x512xf32>
    %33 = arith.mulf %31, %32 : vector<16x512xf32>
    %34 = arith.truncf %33 : vector<16x512xf32> to vector<16x512xbf16>
    %c496_i32 = arith.constant 496 : i32
    %35 = tpu.dynamic_rotate %8 by %c496_i32 dim 1 : vector<16x512xf32>, i32 -> vector<16x512xf32>
    %36 = vector.broadcast %6 : vector<1x512xf32> to vector<16x512xf32>
    %37 = arith.mulf %35, %36 : vector<16x512xf32>
    %38 = arith.truncf %37 : vector<16x512xf32> to vector<16x512xbf16>
    %c495_i32 = arith.constant 495 : i32
    %39 = tpu.dynamic_rotate %8 by %c495_i32 dim 1 : vector<16x512xf32>, i32 -> vector<16x512xf32>
    %40 = vector.broadcast %7 : vector<1x512xf32> to vector<16x512xf32>
    %41 = arith.mulf %39, %40 : vector<16x512xf32>
    %42 = arith.truncf %41 : vector<16x512xf32> to vector<16x512xbf16>
    %43 = tpu.concatenate %13, %17, %21, %25, %26, %30, %34, %38, %42 in 0 : vector<16x512xbf16>, vector<16x512xbf16>, vector<16x512xbf16>, vector<16x512xbf16>, vector<16x512xbf16>, vector<16x512xbf16>, vector<16x512xbf16>, vector<16x512xbf16>, vector<16x512xbf16> -> vector<144x512xbf16>
    %cst = arith.constant dense<0.000000e+00> : vector<32x512xf32>
    %44 = tpu.matmul %9, %43, %cst {dimension_numbers = #tpu.dot_dimension_numbers<[1], [0], [0], [1], [0, 0, 1, 1], [], []>} : vector<32x144xbf16>, vector<144x512xbf16>, vector<32x512xf32> -> vector<32x512xf32>
    %cst_12 = arith.constant dense<0.000000e+00> : vector<32xf32>
    %45 = vector.multi_reduction <add>, %44, %cst_12 [1] : vector<32x512xf32> to vector<32xf32>
    %46 = vector.shape_cast %45 : vector<32xf32> to vector<32x1xf32>
    %cst_13 = arith.constant 5.120000e+02 : f32
    %47 = vector.broadcast %cst_13 : f32 to vector<32x1xf32>
    %48 = arith.divf %46, %47 : vector<32x1xf32>
    %49 = vector.broadcast %48 : vector<32x1xf32> to vector<32x512xf32>
    %50 = arith.subf %44, %49 : vector<32x512xf32>
    %51 = arith.mulf %50, %50 : vector<32x512xf32>
    %cst_14 = arith.constant dense<0.000000e+00> : vector<32xf32>
    %52 = vector.multi_reduction <add>, %51, %cst_14 [1] : vector<32x512xf32> to vector<32xf32>
    %53 = vector.shape_cast %52 : vector<32xf32> to vector<32x1xf32>
    %cst_15 = arith.constant 5.120000e+02 : f32
    %54 = vector.broadcast %cst_15 : f32 to vector<32x1xf32>
    %55 = arith.divf %53, %54 : vector<32x1xf32>
    %c0_16 = arith.constant 0 : index
    %c0_17 = arith.constant 0 : index
    %c0_18 = arith.constant 0 : index
    %56 = vector.load %arg4[%c0_16, %c0_17, %c0_18] : memref<7x32x1xf32, #tpu.memory_space<vmem>>, vector<1x32x1xf32>
    %57 = vector.shape_cast %56 : vector<1x32x1xf32> to vector<32x1xf32>
    %cst_19 = arith.constant 9.99999974E-6 : f32
    %58 = vector.broadcast %cst_19 : f32 to vector<32x1xf32>
    %59 = arith.addf %55, %58 : vector<32x1xf32>
    %60 = math.rsqrt %59 : vector<32x1xf32>
    %61 = arith.mulf %57, %60 : vector<32x1xf32>
    %62 = vector.broadcast %61 : vector<32x1xf32> to vector<32x512xf32>
    %63 = arith.mulf %50, %62 : vector<32x512xf32>
    %c0_20 = arith.constant 0 : index
    %c0_21 = arith.constant 0 : index
    %c0_22 = arith.constant 0 : index
    %64 = vector.load %arg5[%c0_20, %c0_21, %c0_22] : memref<7x32x1xf32, #tpu.memory_space<vmem>>, vector<1x32x1xf32>
    %65 = vector.shape_cast %64 : vector<1x32x1xf32> to vector<32x1xf32>
    %66 = vector.broadcast %65 : vector<32x1xf32> to vector<32x512xf32>
    %67 = arith.addf %63, %66 : vector<32x512xf32>
    %cst_23 = arith.constant 0.000000e+00 : f32
    %68 = vector.broadcast %cst_23 : f32 to vector<32x512xf32>
    %69 = arith.maximumf %67, %68 : vector<32x512xf32>
    %c0_24 = arith.constant 0 : index
    %c0_25 = arith.constant 0 : index
    %c0_26 = arith.constant 0 : index
    %70 = vector.load %arg3[%c0_24, %c0_25, %c0_26] : memref<6x32x288xbf16, #tpu.memory_space<vmem>>, vector<1x32x288xbf16>
    %71 = vector.shape_cast %70 : vector<1x32x288xbf16> to vector<32x288xbf16>
    %c17_i32_27 = arith.constant 17 : i32
    %72 = tpu.dynamic_rotate %69 by %c17_i32_27 dim 1 : vector<32x512xf32>, i32 -> vector<32x512xf32>
    %73 = vector.broadcast %0 : vector<1x512xf32> to vector<32x512xf32>
    %74 = arith.mulf %72, %73 : vector<32x512xf32>
    %75 = arith.truncf %74 : vector<32x512xf32> to vector<32x512xbf16>
    %c16_i32_28 = arith.constant 16 : i32
    %76 = tpu.dynamic_rotate %69 by %c16_i32_28 dim 1 : vector<32x512xf32>, i32 -> vector<32x512xf32>
    %77 = vector.broadcast %1 : vector<1x512xf32> to vector<32x512xf32>
    %78 = arith.mulf %76, %77 : vector<32x512xf32>
    %79 = arith.truncf %78 : vector<32x512xf32> to vector<32x512xbf16>
    %c15_i32_29 = arith.constant 15 : i32
    %80 = tpu.dynamic_rotate %69 by %c15_i32_29 dim 1 : vector<32x512xf32>, i32 -> vector<32x512xf32>
    %81 = vector.broadcast %2 : vector<1x512xf32> to vector<32x512xf32>
    %82 = arith.mulf %80, %81 : vector<32x512xf32>
    %83 = arith.truncf %82 : vector<32x512xf32> to vector<32x512xbf16>
    %c1_i32_30 = arith.constant 1 : i32
    %84 = tpu.dynamic_rotate %69 by %c1_i32_30 dim 1 : vector<32x512xf32>, i32 -> vector<32x512xf32>
    %85 = vector.broadcast %3 : vector<1x512xf32> to vector<32x512xf32>
    %86 = arith.mulf %84, %85 : vector<32x512xf32>
    %87 = arith.truncf %86 : vector<32x512xf32> to vector<32x512xbf16>
    %88 = arith.truncf %69 : vector<32x512xf32> to vector<32x512xbf16>
    %c511_i32_31 = arith.constant 511 : i32
    %89 = tpu.dynamic_rotate %69 by %c511_i32_31 dim 1 : vector<32x512xf32>, i32 -> vector<32x512xf32>
    %90 = vector.broadcast %4 : vector<1x512xf32> to vector<32x512xf32>
    %91 = arith.mulf %89, %90 : vector<32x512xf32>
    %92 = arith.truncf %91 : vector<32x512xf32> to vector<32x512xbf16>
    %c497_i32_32 = arith.constant 497 : i32
    %93 = tpu.dynamic_rotate %69 by %c497_i32_32 dim 1 : vector<32x512xf32>, i32 -> vector<32x512xf32>
    %94 = vector.broadcast %5 : vector<1x512xf32> to vector<32x512xf32>
    %95 = arith.mulf %93, %94 : vector<32x512xf32>
    %96 = arith.truncf %95 : vector<32x512xf32> to vector<32x512xbf16>
    %c496_i32_33 = arith.constant 496 : i32
    %97 = tpu.dynamic_rotate %69 by %c496_i32_33 dim 1 : vector<32x512xf32>, i32 -> vector<32x512xf32>
    %98 = vector.broadcast %6 : vector<1x512xf32> to vector<32x512xf32>
    %99 = arith.mulf %97, %98 : vector<32x512xf32>
    %100 = arith.truncf %99 : vector<32x512xf32> to vector<32x512xbf16>
    %c495_i32_34 = arith.constant 495 : i32
    %101 = tpu.dynamic_rotate %69 by %c495_i32_34 dim 1 : vector<32x512xf32>, i32 -> vector<32x512xf32>
    %102 = vector.broadcast %7 : vector<1x512xf32> to vector<32x512xf32>
    %103 = arith.mulf %101, %102 : vector<32x512xf32>
    %104 = arith.truncf %103 : vector<32x512xf32> to vector<32x512xbf16>
    %105 = tpu.concatenate %75, %79, %83, %87, %88, %92, %96, %100, %104 in 0 : vector<32x512xbf16>, vector<32x512xbf16>, vector<32x512xbf16>, vector<32x512xbf16>, vector<32x512xbf16>, vector<32x512xbf16>, vector<32x512xbf16>, vector<32x512xbf16>, vector<32x512xbf16> -> vector<288x512xbf16>
    %cst_35 = arith.constant dense<0.000000e+00> : vector<32x512xf32>
    %106 = tpu.matmul %71, %105, %cst_35 {dimension_numbers = #tpu.dot_dimension_numbers<[1], [0], [0], [1], [0, 0, 1, 1], [], []>} : vector<32x288xbf16>, vector<288x512xbf16>, vector<32x512xf32> -> vector<32x512xf32>
    %cst_36 = arith.constant dense<0.000000e+00> : vector<32xf32>
    %107 = vector.multi_reduction <add>, %106, %cst_36 [1] : vector<32x512xf32> to vector<32xf32>
    %108 = vector.shape_cast %107 : vector<32xf32> to vector<32x1xf32>
    %cst_37 = arith.constant 5.120000e+02 : f32
    %109 = vector.broadcast %cst_37 : f32 to vector<32x1xf32>
    %110 = arith.divf %108, %109 : vector<32x1xf32>
    %111 = vector.broadcast %110 : vector<32x1xf32> to vector<32x512xf32>
    %112 = arith.subf %106, %111 : vector<32x512xf32>
    %113 = arith.mulf %112, %112 : vector<32x512xf32>
    %cst_38 = arith.constant dense<0.000000e+00> : vector<32xf32>
    %114 = vector.multi_reduction <add>, %113, %cst_38 [1] : vector<32x512xf32> to vector<32xf32>
    %115 = vector.shape_cast %114 : vector<32xf32> to vector<32x1xf32>
    %cst_39 = arith.constant 5.120000e+02 : f32
    %116 = vector.broadcast %cst_39 : f32 to vector<32x1xf32>
    %117 = arith.divf %115, %116 : vector<32x1xf32>
    %c1_40 = arith.constant 1 : index
    %c0_41 = arith.constant 0 : index
    %c0_42 = arith.constant 0 : index
    %118 = vector.load %arg4[%c1_40, %c0_41, %c0_42] : memref<7x32x1xf32, #tpu.memory_space<vmem>>, vector<1x32x1xf32>
    %119 = vector.shape_cast %118 : vector<1x32x1xf32> to vector<32x1xf32>
    %cst_43 = arith.constant 9.99999974E-6 : f32
    %120 = vector.broadcast %cst_43 : f32 to vector<32x1xf32>
    %121 = arith.addf %117, %120 : vector<32x1xf32>
    %122 = math.rsqrt %121 : vector<32x1xf32>
    %123 = arith.mulf %119, %122 : vector<32x1xf32>
    %124 = vector.broadcast %123 : vector<32x1xf32> to vector<32x512xf32>
    %125 = arith.mulf %112, %124 : vector<32x512xf32>
    %c1_44 = arith.constant 1 : index
    %c0_45 = arith.constant 0 : index
    %c0_46 = arith.constant 0 : index
    %126 = vector.load %arg5[%c1_44, %c0_45, %c0_46] : memref<7x32x1xf32, #tpu.memory_space<vmem>>, vector<1x32x1xf32>
    %127 = vector.shape_cast %126 : vector<1x32x1xf32> to vector<32x1xf32>
    %128 = vector.broadcast %127 : vector<32x1xf32> to vector<32x512xf32>
    %129 = arith.addf %125, %128 : vector<32x512xf32>
    %cst_47 = arith.constant 0.000000e+00 : f32
    %130 = vector.broadcast %cst_47 : f32 to vector<32x512xf32>
    %131 = arith.maximumf %129, %130 : vector<32x512xf32>
    %c1_48 = arith.constant 1 : index
    %c0_49 = arith.constant 0 : index
    %c0_50 = arith.constant 0 : index
    %132 = vector.load %arg3[%c1_48, %c0_49, %c0_50] : memref<6x32x288xbf16, #tpu.memory_space<vmem>>, vector<1x32x288xbf16>
    %133 = vector.shape_cast %132 : vector<1x32x288xbf16> to vector<32x288xbf16>
    %c17_i32_51 = arith.constant 17 : i32
    %134 = tpu.dynamic_rotate %131 by %c17_i32_51 dim 1 : vector<32x512xf32>, i32 -> vector<32x512xf32>
    %135 = vector.broadcast %0 : vector<1x512xf32> to vector<32x512xf32>
    %136 = arith.mulf %134, %135 : vector<32x512xf32>
    %137 = arith.truncf %136 : vector<32x512xf32> to vector<32x512xbf16>
    %c16_i32_52 = arith.constant 16 : i32
    %138 = tpu.dynamic_rotate %131 by %c16_i32_52 dim 1 : vector<32x512xf32>, i32 -> vector<32x512xf32>
    %139 = vector.broadcast %1 : vector<1x512xf32> to vector<32x512xf32>
    %140 = arith.mulf %138, %139 : vector<32x512xf32>
    %141 = arith.truncf %140 : vector<32x512xf32> to vector<32x512xbf16>
    %c15_i32_53 = arith.constant 15 : i32
    %142 = tpu.dynamic_rotate %131 by %c15_i32_53 dim 1 : vector<32x512xf32>, i32 -> vector<32x512xf32>
    %143 = vector.broadcast %2 : vector<1x512xf32> to vector<32x512xf32>
    %144 = arith.mulf %142, %143 : vector<32x512xf32>
    %145 = arith.truncf %144 : vector<32x512xf32> to vector<32x512xbf16>
    %c1_i32_54 = arith.constant 1 : i32
    %146 = tpu.dynamic_rotate %131 by %c1_i32_54 dim 1 : vector<32x512xf32>, i32 -> vector<32x512xf32>
    %147 = vector.broadcast %3 : vector<1x512xf32> to vector<32x512xf32>
    %148 = arith.mulf %146, %147 : vector<32x512xf32>
    %149 = arith.truncf %148 : vector<32x512xf32> to vector<32x512xbf16>
    %150 = arith.truncf %131 : vector<32x512xf32> to vector<32x512xbf16>
    %c511_i32_55 = arith.constant 511 : i32
    %151 = tpu.dynamic_rotate %131 by %c511_i32_55 dim 1 : vector<32x512xf32>, i32 -> vector<32x512xf32>
    %152 = vector.broadcast %4 : vector<1x512xf32> to vector<32x512xf32>
    %153 = arith.mulf %151, %152 : vector<32x512xf32>
    %154 = arith.truncf %153 : vector<32x512xf32> to vector<32x512xbf16>
    %c497_i32_56 = arith.constant 497 : i32
    %155 = tpu.dynamic_rotate %131 by %c497_i32_56 dim 1 : vector<32x512xf32>, i32 -> vector<32x512xf32>
    %156 = vector.broadcast %5 : vector<1x512xf32> to vector<32x512xf32>
    %157 = arith.mulf %155, %156 : vector<32x512xf32>
    %158 = arith.truncf %157 : vector<32x512xf32> to vector<32x512xbf16>
    %c496_i32_57 = arith.constant 496 : i32
    %159 = tpu.dynamic_rotate %131 by %c496_i32_57 dim 1 : vector<32x512xf32>, i32 -> vector<32x512xf32>
    %160 = vector.broadcast %6 : vector<1x512xf32> to vector<32x512xf32>
    %161 = arith.mulf %159, %160 : vector<32x512xf32>
    %162 = arith.truncf %161 : vector<32x512xf32> to vector<32x512xbf16>
    %c495_i32_58 = arith.constant 495 : i32
    %163 = tpu.dynamic_rotate %131 by %c495_i32_58 dim 1 : vector<32x512xf32>, i32 -> vector<32x512xf32>
    %164 = vector.broadcast %7 : vector<1x512xf32> to vector<32x512xf32>
    %165 = arith.mulf %163, %164 : vector<32x512xf32>
    %166 = arith.truncf %165 : vector<32x512xf32> to vector<32x512xbf16>
    %167 = tpu.concatenate %137, %141, %145, %149, %150, %154, %158, %162, %166 in 0 : vector<32x512xbf16>, vector<32x512xbf16>, vector<32x512xbf16>, vector<32x512xbf16>, vector<32x512xbf16>, vector<32x512xbf16>, vector<32x512xbf16>, vector<32x512xbf16>, vector<32x512xbf16> -> vector<288x512xbf16>
    %cst_59 = arith.constant dense<0.000000e+00> : vector<32x512xf32>
    %168 = tpu.matmul %133, %167, %cst_59 {dimension_numbers = #tpu.dot_dimension_numbers<[1], [0], [0], [1], [0, 0, 1, 1], [], []>} : vector<32x288xbf16>, vector<288x512xbf16>, vector<32x512xf32> -> vector<32x512xf32>
    %cst_60 = arith.constant dense<0.000000e+00> : vector<32xf32>
    %169 = vector.multi_reduction <add>, %168, %cst_60 [1] : vector<32x512xf32> to vector<32xf32>
    %170 = vector.shape_cast %169 : vector<32xf32> to vector<32x1xf32>
    %cst_61 = arith.constant 5.120000e+02 : f32
    %171 = vector.broadcast %cst_61 : f32 to vector<32x1xf32>
    %172 = arith.divf %170, %171 : vector<32x1xf32>
    %173 = vector.broadcast %172 : vector<32x1xf32> to vector<32x512xf32>
    %174 = arith.subf %168, %173 : vector<32x512xf32>
    %175 = arith.mulf %174, %174 : vector<32x512xf32>
    %cst_62 = arith.constant dense<0.000000e+00> : vector<32xf32>
    %176 = vector.multi_reduction <add>, %175, %cst_62 [1] : vector<32x512xf32> to vector<32xf32>
    %177 = vector.shape_cast %176 : vector<32xf32> to vector<32x1xf32>
    %cst_63 = arith.constant 5.120000e+02 : f32
    %178 = vector.broadcast %cst_63 : f32 to vector<32x1xf32>
    %179 = arith.divf %177, %178 : vector<32x1xf32>
    %c2_64 = arith.constant 2 : index
    %c0_65 = arith.constant 0 : index
    %c0_66 = arith.constant 0 : index
    %180 = vector.load %arg4[%c2_64, %c0_65, %c0_66] : memref<7x32x1xf32, #tpu.memory_space<vmem>>, vector<1x32x1xf32>
    %181 = vector.shape_cast %180 : vector<1x32x1xf32> to vector<32x1xf32>
    %cst_67 = arith.constant 9.99999974E-6 : f32
    %182 = vector.broadcast %cst_67 : f32 to vector<32x1xf32>
    %183 = arith.addf %179, %182 : vector<32x1xf32>
    %184 = math.rsqrt %183 : vector<32x1xf32>
    %185 = arith.mulf %181, %184 : vector<32x1xf32>
    %186 = vector.broadcast %185 : vector<32x1xf32> to vector<32x512xf32>
    %187 = arith.mulf %174, %186 : vector<32x512xf32>
    %c2_68 = arith.constant 2 : index
    %c0_69 = arith.constant 0 : index
    %c0_70 = arith.constant 0 : index
    %188 = vector.load %arg5[%c2_68, %c0_69, %c0_70] : memref<7x32x1xf32, #tpu.memory_space<vmem>>, vector<1x32x1xf32>
    %189 = vector.shape_cast %188 : vector<1x32x1xf32> to vector<32x1xf32>
    %190 = vector.broadcast %189 : vector<32x1xf32> to vector<32x512xf32>
    %191 = arith.addf %187, %190 : vector<32x512xf32>
    %192 = arith.addf %191, %69 : vector<32x512xf32>
    %cst_71 = arith.constant 0.000000e+00 : f32
    %193 = vector.broadcast %cst_71 : f32 to vector<32x512xf32>
    %194 = arith.maximumf %192, %193 : vector<32x512xf32>
    %c2_72 = arith.constant 2 : index
    %c0_73 = arith.constant 0 : index
    %c0_74 = arith.constant 0 : index
    %195 = vector.load %arg3[%c2_72, %c0_73, %c0_74] : memref<6x32x288xbf16, #tpu.memory_space<vmem>>, vector<1x32x288xbf16>
    %196 = vector.shape_cast %195 : vector<1x32x288xbf16> to vector<32x288xbf16>
    %c17_i32_75 = arith.constant 17 : i32
    %197 = tpu.dynamic_rotate %194 by %c17_i32_75 dim 1 : vector<32x512xf32>, i32 -> vector<32x512xf32>
    %198 = vector.broadcast %0 : vector<1x512xf32> to vector<32x512xf32>
    %199 = arith.mulf %197, %198 : vector<32x512xf32>
    %200 = arith.truncf %199 : vector<32x512xf32> to vector<32x512xbf16>
    %c16_i32_76 = arith.constant 16 : i32
    %201 = tpu.dynamic_rotate %194 by %c16_i32_76 dim 1 : vector<32x512xf32>, i32 -> vector<32x512xf32>
    %202 = vector.broadcast %1 : vector<1x512xf32> to vector<32x512xf32>
    %203 = arith.mulf %201, %202 : vector<32x512xf32>
    %204 = arith.truncf %203 : vector<32x512xf32> to vector<32x512xbf16>
    %c15_i32_77 = arith.constant 15 : i32
    %205 = tpu.dynamic_rotate %194 by %c15_i32_77 dim 1 : vector<32x512xf32>, i32 -> vector<32x512xf32>
    %206 = vector.broadcast %2 : vector<1x512xf32> to vector<32x512xf32>
    %207 = arith.mulf %205, %206 : vector<32x512xf32>
    %208 = arith.truncf %207 : vector<32x512xf32> to vector<32x512xbf16>
    %c1_i32_78 = arith.constant 1 : i32
    %209 = tpu.dynamic_rotate %194 by %c1_i32_78 dim 1 : vector<32x512xf32>, i32 -> vector<32x512xf32>
    %210 = vector.broadcast %3 : vector<1x512xf32> to vector<32x512xf32>
    %211 = arith.mulf %209, %210 : vector<32x512xf32>
    %212 = arith.truncf %211 : vector<32x512xf32> to vector<32x512xbf16>
    %213 = arith.truncf %194 : vector<32x512xf32> to vector<32x512xbf16>
    %c511_i32_79 = arith.constant 511 : i32
    %214 = tpu.dynamic_rotate %194 by %c511_i32_79 dim 1 : vector<32x512xf32>, i32 -> vector<32x512xf32>
    %215 = vector.broadcast %4 : vector<1x512xf32> to vector<32x512xf32>
    %216 = arith.mulf %214, %215 : vector<32x512xf32>
    %217 = arith.truncf %216 : vector<32x512xf32> to vector<32x512xbf16>
    %c497_i32_80 = arith.constant 497 : i32
    %218 = tpu.dynamic_rotate %194 by %c497_i32_80 dim 1 : vector<32x512xf32>, i32 -> vector<32x512xf32>
    %219 = vector.broadcast %5 : vector<1x512xf32> to vector<32x512xf32>
    %220 = arith.mulf %218, %219 : vector<32x512xf32>
    %221 = arith.truncf %220 : vector<32x512xf32> to vector<32x512xbf16>
    %c496_i32_81 = arith.constant 496 : i32
    %222 = tpu.dynamic_rotate %194 by %c496_i32_81 dim 1 : vector<32x512xf32>, i32 -> vector<32x512xf32>
    %223 = vector.broadcast %6 : vector<1x512xf32> to vector<32x512xf32>
    %224 = arith.mulf %222, %223 : vector<32x512xf32>
    %225 = arith.truncf %224 : vector<32x512xf32> to vector<32x512xbf16>
    %c495_i32_82 = arith.constant 495 : i32
    %226 = tpu.dynamic_rotate %194 by %c495_i32_82 dim 1 : vector<32x512xf32>, i32 -> vector<32x512xf32>
    %227 = vector.broadcast %7 : vector<1x512xf32> to vector<32x512xf32>
    %228 = arith.mulf %226, %227 : vector<32x512xf32>
    %229 = arith.truncf %228 : vector<32x512xf32> to vector<32x512xbf16>
    %230 = tpu.concatenate %200, %204, %208, %212, %213, %217, %221, %225, %229 in 0 : vector<32x512xbf16>, vector<32x512xbf16>, vector<32x512xbf16>, vector<32x512xbf16>, vector<32x512xbf16>, vector<32x512xbf16>, vector<32x512xbf16>, vector<32x512xbf16>, vector<32x512xbf16> -> vector<288x512xbf16>
    %cst_83 = arith.constant dense<0.000000e+00> : vector<32x512xf32>
    %231 = tpu.matmul %196, %230, %cst_83 {dimension_numbers = #tpu.dot_dimension_numbers<[1], [0], [0], [1], [0, 0, 1, 1], [], []>} : vector<32x288xbf16>, vector<288x512xbf16>, vector<32x512xf32> -> vector<32x512xf32>
    %cst_84 = arith.constant dense<0.000000e+00> : vector<32xf32>
    %232 = vector.multi_reduction <add>, %231, %cst_84 [1] : vector<32x512xf32> to vector<32xf32>
    %233 = vector.shape_cast %232 : vector<32xf32> to vector<32x1xf32>
    %cst_85 = arith.constant 5.120000e+02 : f32
    %234 = vector.broadcast %cst_85 : f32 to vector<32x1xf32>
    %235 = arith.divf %233, %234 : vector<32x1xf32>
    %236 = vector.broadcast %235 : vector<32x1xf32> to vector<32x512xf32>
    %237 = arith.subf %231, %236 : vector<32x512xf32>
    %238 = arith.mulf %237, %237 : vector<32x512xf32>
    %cst_86 = arith.constant dense<0.000000e+00> : vector<32xf32>
    %239 = vector.multi_reduction <add>, %238, %cst_86 [1] : vector<32x512xf32> to vector<32xf32>
    %240 = vector.shape_cast %239 : vector<32xf32> to vector<32x1xf32>
    %cst_87 = arith.constant 5.120000e+02 : f32
    %241 = vector.broadcast %cst_87 : f32 to vector<32x1xf32>
    %242 = arith.divf %240, %241 : vector<32x1xf32>
    %c3_88 = arith.constant 3 : index
    %c0_89 = arith.constant 0 : index
    %c0_90 = arith.constant 0 : index
    %243 = vector.load %arg4[%c3_88, %c0_89, %c0_90] : memref<7x32x1xf32, #tpu.memory_space<vmem>>, vector<1x32x1xf32>
    %244 = vector.shape_cast %243 : vector<1x32x1xf32> to vector<32x1xf32>
    %cst_91 = arith.constant 9.99999974E-6 : f32
    %245 = vector.broadcast %cst_91 : f32 to vector<32x1xf32>
    %246 = arith.addf %242, %245 : vector<32x1xf32>
    %247 = math.rsqrt %246 : vector<32x1xf32>
    %248 = arith.mulf %244, %247 : vector<32x1xf32>
    %249 = vector.broadcast %248 : vector<32x1xf32> to vector<32x512xf32>
    %250 = arith.mulf %237, %249 : vector<32x512xf32>
    %c3_92 = arith.constant 3 : index
    %c0_93 = arith.constant 0 : index
    %c0_94 = arith.constant 0 : index
    %251 = vector.load %arg5[%c3_92, %c0_93, %c0_94] : memref<7x32x1xf32, #tpu.memory_space<vmem>>, vector<1x32x1xf32>
    %252 = vector.shape_cast %251 : vector<1x32x1xf32> to vector<32x1xf32>
    %253 = vector.broadcast %252 : vector<32x1xf32> to vector<32x512xf32>
    %254 = arith.addf %250, %253 : vector<32x512xf32>
    %cst_95 = arith.constant 0.000000e+00 : f32
    %255 = vector.broadcast %cst_95 : f32 to vector<32x512xf32>
    %256 = arith.maximumf %254, %255 : vector<32x512xf32>
    %c3_96 = arith.constant 3 : index
    %c0_97 = arith.constant 0 : index
    %c0_98 = arith.constant 0 : index
    %257 = vector.load %arg3[%c3_96, %c0_97, %c0_98] : memref<6x32x288xbf16, #tpu.memory_space<vmem>>, vector<1x32x288xbf16>
    %258 = vector.shape_cast %257 : vector<1x32x288xbf16> to vector<32x288xbf16>
    %c17_i32_99 = arith.constant 17 : i32
    %259 = tpu.dynamic_rotate %256 by %c17_i32_99 dim 1 : vector<32x512xf32>, i32 -> vector<32x512xf32>
    %260 = vector.broadcast %0 : vector<1x512xf32> to vector<32x512xf32>
    %261 = arith.mulf %259, %260 : vector<32x512xf32>
    %262 = arith.truncf %261 : vector<32x512xf32> to vector<32x512xbf16>
    %c16_i32_100 = arith.constant 16 : i32
    %263 = tpu.dynamic_rotate %256 by %c16_i32_100 dim 1 : vector<32x512xf32>, i32 -> vector<32x512xf32>
    %264 = vector.broadcast %1 : vector<1x512xf32> to vector<32x512xf32>
    %265 = arith.mulf %263, %264 : vector<32x512xf32>
    %266 = arith.truncf %265 : vector<32x512xf32> to vector<32x512xbf16>
    %c15_i32_101 = arith.constant 15 : i32
    %267 = tpu.dynamic_rotate %256 by %c15_i32_101 dim 1 : vector<32x512xf32>, i32 -> vector<32x512xf32>
    %268 = vector.broadcast %2 : vector<1x512xf32> to vector<32x512xf32>
    %269 = arith.mulf %267, %268 : vector<32x512xf32>
    %270 = arith.truncf %269 : vector<32x512xf32> to vector<32x512xbf16>
    %c1_i32_102 = arith.constant 1 : i32
    %271 = tpu.dynamic_rotate %256 by %c1_i32_102 dim 1 : vector<32x512xf32>, i32 -> vector<32x512xf32>
    %272 = vector.broadcast %3 : vector<1x512xf32> to vector<32x512xf32>
    %273 = arith.mulf %271, %272 : vector<32x512xf32>
    %274 = arith.truncf %273 : vector<32x512xf32> to vector<32x512xbf16>
    %275 = arith.truncf %256 : vector<32x512xf32> to vector<32x512xbf16>
    %c511_i32_103 = arith.constant 511 : i32
    %276 = tpu.dynamic_rotate %256 by %c511_i32_103 dim 1 : vector<32x512xf32>, i32 -> vector<32x512xf32>
    %277 = vector.broadcast %4 : vector<1x512xf32> to vector<32x512xf32>
    %278 = arith.mulf %276, %277 : vector<32x512xf32>
    %279 = arith.truncf %278 : vector<32x512xf32> to vector<32x512xbf16>
    %c497_i32_104 = arith.constant 497 : i32
    %280 = tpu.dynamic_rotate %256 by %c497_i32_104 dim 1 : vector<32x512xf32>, i32 -> vector<32x512xf32>
    %281 = vector.broadcast %5 : vector<1x512xf32> to vector<32x512xf32>
    %282 = arith.mulf %280, %281 : vector<32x512xf32>
    %283 = arith.truncf %282 : vector<32x512xf32> to vector<32x512xbf16>
    %c496_i32_105 = arith.constant 496 : i32
    %284 = tpu.dynamic_rotate %256 by %c496_i32_105 dim 1 : vector<32x512xf32>, i32 -> vector<32x512xf32>
    %285 = vector.broadcast %6 : vector<1x512xf32> to vector<32x512xf32>
    %286 = arith.mulf %284, %285 : vector<32x512xf32>
    %287 = arith.truncf %286 : vector<32x512xf32> to vector<32x512xbf16>
    %c495_i32_106 = arith.constant 495 : i32
    %288 = tpu.dynamic_rotate %256 by %c495_i32_106 dim 1 : vector<32x512xf32>, i32 -> vector<32x512xf32>
    %289 = vector.broadcast %7 : vector<1x512xf32> to vector<32x512xf32>
    %290 = arith.mulf %288, %289 : vector<32x512xf32>
    %291 = arith.truncf %290 : vector<32x512xf32> to vector<32x512xbf16>
    %292 = tpu.concatenate %262, %266, %270, %274, %275, %279, %283, %287, %291 in 0 : vector<32x512xbf16>, vector<32x512xbf16>, vector<32x512xbf16>, vector<32x512xbf16>, vector<32x512xbf16>, vector<32x512xbf16>, vector<32x512xbf16>, vector<32x512xbf16>, vector<32x512xbf16> -> vector<288x512xbf16>
    %cst_107 = arith.constant dense<0.000000e+00> : vector<32x512xf32>
    %293 = tpu.matmul %258, %292, %cst_107 {dimension_numbers = #tpu.dot_dimension_numbers<[1], [0], [0], [1], [0, 0, 1, 1], [], []>} : vector<32x288xbf16>, vector<288x512xbf16>, vector<32x512xf32> -> vector<32x512xf32>
    %cst_108 = arith.constant dense<0.000000e+00> : vector<32xf32>
    %294 = vector.multi_reduction <add>, %293, %cst_108 [1] : vector<32x512xf32> to vector<32xf32>
    %295 = vector.shape_cast %294 : vector<32xf32> to vector<32x1xf32>
    %cst_109 = arith.constant 5.120000e+02 : f32
    %296 = vector.broadcast %cst_109 : f32 to vector<32x1xf32>
    %297 = arith.divf %295, %296 : vector<32x1xf32>
    %298 = vector.broadcast %297 : vector<32x1xf32> to vector<32x512xf32>
    %299 = arith.subf %293, %298 : vector<32x512xf32>
    %300 = arith.mulf %299, %299 : vector<32x512xf32>
    %cst_110 = arith.constant dense<0.000000e+00> : vector<32xf32>
    %301 = vector.multi_reduction <add>, %300, %cst_110 [1] : vector<32x512xf32> to vector<32xf32>
    %302 = vector.shape_cast %301 : vector<32xf32> to vector<32x1xf32>
    %cst_111 = arith.constant 5.120000e+02 : f32
    %303 = vector.broadcast %cst_111 : f32 to vector<32x1xf32>
    %304 = arith.divf %302, %303 : vector<32x1xf32>
    %c4 = arith.constant 4 : index
    %c0_112 = arith.constant 0 : index
    %c0_113 = arith.constant 0 : index
    %305 = vector.load %arg4[%c4, %c0_112, %c0_113] : memref<7x32x1xf32, #tpu.memory_space<vmem>>, vector<1x32x1xf32>
    %306 = vector.shape_cast %305 : vector<1x32x1xf32> to vector<32x1xf32>
    %cst_114 = arith.constant 9.99999974E-6 : f32
    %307 = vector.broadcast %cst_114 : f32 to vector<32x1xf32>
    %308 = arith.addf %304, %307 : vector<32x1xf32>
    %309 = math.rsqrt %308 : vector<32x1xf32>
    %310 = arith.mulf %306, %309 : vector<32x1xf32>
    %311 = vector.broadcast %310 : vector<32x1xf32> to vector<32x512xf32>
    %312 = arith.mulf %299, %311 : vector<32x512xf32>
    %c4_115 = arith.constant 4 : index
    %c0_116 = arith.constant 0 : index
    %c0_117 = arith.constant 0 : index
    %313 = vector.load %arg5[%c4_115, %c0_116, %c0_117] : memref<7x32x1xf32, #tpu.memory_space<vmem>>, vector<1x32x1xf32>
    %314 = vector.shape_cast %313 : vector<1x32x1xf32> to vector<32x1xf32>
    %315 = vector.broadcast %314 : vector<32x1xf32> to vector<32x512xf32>
    %316 = arith.addf %312, %315 : vector<32x512xf32>
    %317 = arith.addf %316, %194 : vector<32x512xf32>
    %cst_118 = arith.constant 0.000000e+00 : f32
    %318 = vector.broadcast %cst_118 : f32 to vector<32x512xf32>
    %319 = arith.maximumf %317, %318 : vector<32x512xf32>
    %c4_119 = arith.constant 4 : index
    %c0_120 = arith.constant 0 : index
    %c0_121 = arith.constant 0 : index
    %320 = vector.load %arg3[%c4_119, %c0_120, %c0_121] : memref<6x32x288xbf16, #tpu.memory_space<vmem>>, vector<1x32x288xbf16>
    %321 = vector.shape_cast %320 : vector<1x32x288xbf16> to vector<32x288xbf16>
    %c17_i32_122 = arith.constant 17 : i32
    %322 = tpu.dynamic_rotate %319 by %c17_i32_122 dim 1 : vector<32x512xf32>, i32 -> vector<32x512xf32>
    %323 = vector.broadcast %0 : vector<1x512xf32> to vector<32x512xf32>
    %324 = arith.mulf %322, %323 : vector<32x512xf32>
    %325 = arith.truncf %324 : vector<32x512xf32> to vector<32x512xbf16>
    %c16_i32_123 = arith.constant 16 : i32
    %326 = tpu.dynamic_rotate %319 by %c16_i32_123 dim 1 : vector<32x512xf32>, i32 -> vector<32x512xf32>
    %327 = vector.broadcast %1 : vector<1x512xf32> to vector<32x512xf32>
    %328 = arith.mulf %326, %327 : vector<32x512xf32>
    %329 = arith.truncf %328 : vector<32x512xf32> to vector<32x512xbf16>
    %c15_i32_124 = arith.constant 15 : i32
    %330 = tpu.dynamic_rotate %319 by %c15_i32_124 dim 1 : vector<32x512xf32>, i32 -> vector<32x512xf32>
    %331 = vector.broadcast %2 : vector<1x512xf32> to vector<32x512xf32>
    %332 = arith.mulf %330, %331 : vector<32x512xf32>
    %333 = arith.truncf %332 : vector<32x512xf32> to vector<32x512xbf16>
    %c1_i32_125 = arith.constant 1 : i32
    %334 = tpu.dynamic_rotate %319 by %c1_i32_125 dim 1 : vector<32x512xf32>, i32 -> vector<32x512xf32>
    %335 = vector.broadcast %3 : vector<1x512xf32> to vector<32x512xf32>
    %336 = arith.mulf %334, %335 : vector<32x512xf32>
    %337 = arith.truncf %336 : vector<32x512xf32> to vector<32x512xbf16>
    %338 = arith.truncf %319 : vector<32x512xf32> to vector<32x512xbf16>
    %c511_i32_126 = arith.constant 511 : i32
    %339 = tpu.dynamic_rotate %319 by %c511_i32_126 dim 1 : vector<32x512xf32>, i32 -> vector<32x512xf32>
    %340 = vector.broadcast %4 : vector<1x512xf32> to vector<32x512xf32>
    %341 = arith.mulf %339, %340 : vector<32x512xf32>
    %342 = arith.truncf %341 : vector<32x512xf32> to vector<32x512xbf16>
    %c497_i32_127 = arith.constant 497 : i32
    %343 = tpu.dynamic_rotate %319 by %c497_i32_127 dim 1 : vector<32x512xf32>, i32 -> vector<32x512xf32>
    %344 = vector.broadcast %5 : vector<1x512xf32> to vector<32x512xf32>
    %345 = arith.mulf %343, %344 : vector<32x512xf32>
    %346 = arith.truncf %345 : vector<32x512xf32> to vector<32x512xbf16>
    %c496_i32_128 = arith.constant 496 : i32
    %347 = tpu.dynamic_rotate %319 by %c496_i32_128 dim 1 : vector<32x512xf32>, i32 -> vector<32x512xf32>
    %348 = vector.broadcast %6 : vector<1x512xf32> to vector<32x512xf32>
    %349 = arith.mulf %347, %348 : vector<32x512xf32>
    %350 = arith.truncf %349 : vector<32x512xf32> to vector<32x512xbf16>
    %c495_i32_129 = arith.constant 495 : i32
    %351 = tpu.dynamic_rotate %319 by %c495_i32_129 dim 1 : vector<32x512xf32>, i32 -> vector<32x512xf32>
    %352 = vector.broadcast %7 : vector<1x512xf32> to vector<32x512xf32>
    %353 = arith.mulf %351, %352 : vector<32x512xf32>
    %354 = arith.truncf %353 : vector<32x512xf32> to vector<32x512xbf16>
    %355 = tpu.concatenate %325, %329, %333, %337, %338, %342, %346, %350, %354 in 0 : vector<32x512xbf16>, vector<32x512xbf16>, vector<32x512xbf16>, vector<32x512xbf16>, vector<32x512xbf16>, vector<32x512xbf16>, vector<32x512xbf16>, vector<32x512xbf16>, vector<32x512xbf16> -> vector<288x512xbf16>
    %cst_130 = arith.constant dense<0.000000e+00> : vector<32x512xf32>
    %356 = tpu.matmul %321, %355, %cst_130 {dimension_numbers = #tpu.dot_dimension_numbers<[1], [0], [0], [1], [0, 0, 1, 1], [], []>} : vector<32x288xbf16>, vector<288x512xbf16>, vector<32x512xf32> -> vector<32x512xf32>
    %cst_131 = arith.constant dense<0.000000e+00> : vector<32xf32>
    %357 = vector.multi_reduction <add>, %356, %cst_131 [1] : vector<32x512xf32> to vector<32xf32>
    %358 = vector.shape_cast %357 : vector<32xf32> to vector<32x1xf32>
    %cst_132 = arith.constant 5.120000e+02 : f32
    %359 = vector.broadcast %cst_132 : f32 to vector<32x1xf32>
    %360 = arith.divf %358, %359 : vector<32x1xf32>
    %361 = vector.broadcast %360 : vector<32x1xf32> to vector<32x512xf32>
    %362 = arith.subf %356, %361 : vector<32x512xf32>
    %363 = arith.mulf %362, %362 : vector<32x512xf32>
    %cst_133 = arith.constant dense<0.000000e+00> : vector<32xf32>
    %364 = vector.multi_reduction <add>, %363, %cst_133 [1] : vector<32x512xf32> to vector<32xf32>
    %365 = vector.shape_cast %364 : vector<32xf32> to vector<32x1xf32>
    %cst_134 = arith.constant 5.120000e+02 : f32
    %366 = vector.broadcast %cst_134 : f32 to vector<32x1xf32>
    %367 = arith.divf %365, %366 : vector<32x1xf32>
    %c5_135 = arith.constant 5 : index
    %c0_136 = arith.constant 0 : index
    %c0_137 = arith.constant 0 : index
    %368 = vector.load %arg4[%c5_135, %c0_136, %c0_137] : memref<7x32x1xf32, #tpu.memory_space<vmem>>, vector<1x32x1xf32>
    %369 = vector.shape_cast %368 : vector<1x32x1xf32> to vector<32x1xf32>
    %cst_138 = arith.constant 9.99999974E-6 : f32
    %370 = vector.broadcast %cst_138 : f32 to vector<32x1xf32>
    %371 = arith.addf %367, %370 : vector<32x1xf32>
    %372 = math.rsqrt %371 : vector<32x1xf32>
    %373 = arith.mulf %369, %372 : vector<32x1xf32>
    %374 = vector.broadcast %373 : vector<32x1xf32> to vector<32x512xf32>
    %375 = arith.mulf %362, %374 : vector<32x512xf32>
    %c5_139 = arith.constant 5 : index
    %c0_140 = arith.constant 0 : index
    %c0_141 = arith.constant 0 : index
    %376 = vector.load %arg5[%c5_139, %c0_140, %c0_141] : memref<7x32x1xf32, #tpu.memory_space<vmem>>, vector<1x32x1xf32>
    %377 = vector.shape_cast %376 : vector<1x32x1xf32> to vector<32x1xf32>
    %378 = vector.broadcast %377 : vector<32x1xf32> to vector<32x512xf32>
    %379 = arith.addf %375, %378 : vector<32x512xf32>
    %cst_142 = arith.constant 0.000000e+00 : f32
    %380 = vector.broadcast %cst_142 : f32 to vector<32x512xf32>
    %381 = arith.maximumf %379, %380 : vector<32x512xf32>
    %c5_143 = arith.constant 5 : index
    %c0_144 = arith.constant 0 : index
    %c0_145 = arith.constant 0 : index
    %382 = vector.load %arg3[%c5_143, %c0_144, %c0_145] : memref<6x32x288xbf16, #tpu.memory_space<vmem>>, vector<1x32x288xbf16>
    %383 = vector.shape_cast %382 : vector<1x32x288xbf16> to vector<32x288xbf16>
    %c17_i32_146 = arith.constant 17 : i32
    %384 = tpu.dynamic_rotate %381 by %c17_i32_146 dim 1 : vector<32x512xf32>, i32 -> vector<32x512xf32>
    %385 = vector.broadcast %0 : vector<1x512xf32> to vector<32x512xf32>
    %386 = arith.mulf %384, %385 : vector<32x512xf32>
    %387 = arith.truncf %386 : vector<32x512xf32> to vector<32x512xbf16>
    %c16_i32_147 = arith.constant 16 : i32
    %388 = tpu.dynamic_rotate %381 by %c16_i32_147 dim 1 : vector<32x512xf32>, i32 -> vector<32x512xf32>
    %389 = vector.broadcast %1 : vector<1x512xf32> to vector<32x512xf32>
    %390 = arith.mulf %388, %389 : vector<32x512xf32>
    %391 = arith.truncf %390 : vector<32x512xf32> to vector<32x512xbf16>
    %c15_i32_148 = arith.constant 15 : i32
    %392 = tpu.dynamic_rotate %381 by %c15_i32_148 dim 1 : vector<32x512xf32>, i32 -> vector<32x512xf32>
    %393 = vector.broadcast %2 : vector<1x512xf32> to vector<32x512xf32>
    %394 = arith.mulf %392, %393 : vector<32x512xf32>
    %395 = arith.truncf %394 : vector<32x512xf32> to vector<32x512xbf16>
    %c1_i32_149 = arith.constant 1 : i32
    %396 = tpu.dynamic_rotate %381 by %c1_i32_149 dim 1 : vector<32x512xf32>, i32 -> vector<32x512xf32>
    %397 = vector.broadcast %3 : vector<1x512xf32> to vector<32x512xf32>
    %398 = arith.mulf %396, %397 : vector<32x512xf32>
    %399 = arith.truncf %398 : vector<32x512xf32> to vector<32x512xbf16>
    %400 = arith.truncf %381 : vector<32x512xf32> to vector<32x512xbf16>
    %c511_i32_150 = arith.constant 511 : i32
    %401 = tpu.dynamic_rotate %381 by %c511_i32_150 dim 1 : vector<32x512xf32>, i32 -> vector<32x512xf32>
    %402 = vector.broadcast %4 : vector<1x512xf32> to vector<32x512xf32>
    %403 = arith.mulf %401, %402 : vector<32x512xf32>
    %404 = arith.truncf %403 : vector<32x512xf32> to vector<32x512xbf16>
    %c497_i32_151 = arith.constant 497 : i32
    %405 = tpu.dynamic_rotate %381 by %c497_i32_151 dim 1 : vector<32x512xf32>, i32 -> vector<32x512xf32>
    %406 = vector.broadcast %5 : vector<1x512xf32> to vector<32x512xf32>
    %407 = arith.mulf %405, %406 : vector<32x512xf32>
    %408 = arith.truncf %407 : vector<32x512xf32> to vector<32x512xbf16>
    %c496_i32_152 = arith.constant 496 : i32
    %409 = tpu.dynamic_rotate %381 by %c496_i32_152 dim 1 : vector<32x512xf32>, i32 -> vector<32x512xf32>
    %410 = vector.broadcast %6 : vector<1x512xf32> to vector<32x512xf32>
    %411 = arith.mulf %409, %410 : vector<32x512xf32>
    %412 = arith.truncf %411 : vector<32x512xf32> to vector<32x512xbf16>
    %c495_i32_153 = arith.constant 495 : i32
    %413 = tpu.dynamic_rotate %381 by %c495_i32_153 dim 1 : vector<32x512xf32>, i32 -> vector<32x512xf32>
    %414 = vector.broadcast %7 : vector<1x512xf32> to vector<32x512xf32>
    %415 = arith.mulf %413, %414 : vector<32x512xf32>
    %416 = arith.truncf %415 : vector<32x512xf32> to vector<32x512xbf16>
    %417 = tpu.concatenate %387, %391, %395, %399, %400, %404, %408, %412, %416 in 0 : vector<32x512xbf16>, vector<32x512xbf16>, vector<32x512xbf16>, vector<32x512xbf16>, vector<32x512xbf16>, vector<32x512xbf16>, vector<32x512xbf16>, vector<32x512xbf16>, vector<32x512xbf16> -> vector<288x512xbf16>
    %cst_154 = arith.constant dense<0.000000e+00> : vector<32x512xf32>
    %418 = tpu.matmul %383, %417, %cst_154 {dimension_numbers = #tpu.dot_dimension_numbers<[1], [0], [0], [1], [0, 0, 1, 1], [], []>} : vector<32x288xbf16>, vector<288x512xbf16>, vector<32x512xf32> -> vector<32x512xf32>
    %cst_155 = arith.constant dense<0.000000e+00> : vector<32xf32>
    %419 = vector.multi_reduction <add>, %418, %cst_155 [1] : vector<32x512xf32> to vector<32xf32>
    %420 = vector.shape_cast %419 : vector<32xf32> to vector<32x1xf32>
    %cst_156 = arith.constant 5.120000e+02 : f32
    %421 = vector.broadcast %cst_156 : f32 to vector<32x1xf32>
    %422 = arith.divf %420, %421 : vector<32x1xf32>
    %423 = vector.broadcast %422 : vector<32x1xf32> to vector<32x512xf32>
    %424 = arith.subf %418, %423 : vector<32x512xf32>
    %425 = arith.mulf %424, %424 : vector<32x512xf32>
    %cst_157 = arith.constant dense<0.000000e+00> : vector<32xf32>
    %426 = vector.multi_reduction <add>, %425, %cst_157 [1] : vector<32x512xf32> to vector<32xf32>
    %427 = vector.shape_cast %426 : vector<32xf32> to vector<32x1xf32>
    %cst_158 = arith.constant 5.120000e+02 : f32
    %428 = vector.broadcast %cst_158 : f32 to vector<32x1xf32>
    %429 = arith.divf %427, %428 : vector<32x1xf32>
    %c6_159 = arith.constant 6 : index
    %c0_160 = arith.constant 0 : index
    %c0_161 = arith.constant 0 : index
    %430 = vector.load %arg4[%c6_159, %c0_160, %c0_161] : memref<7x32x1xf32, #tpu.memory_space<vmem>>, vector<1x32x1xf32>
    %431 = vector.shape_cast %430 : vector<1x32x1xf32> to vector<32x1xf32>
    %cst_162 = arith.constant 9.99999974E-6 : f32
    %432 = vector.broadcast %cst_162 : f32 to vector<32x1xf32>
    %433 = arith.addf %429, %432 : vector<32x1xf32>
    %434 = math.rsqrt %433 : vector<32x1xf32>
    %435 = arith.mulf %431, %434 : vector<32x1xf32>
    %436 = vector.broadcast %435 : vector<32x1xf32> to vector<32x512xf32>
    %437 = arith.mulf %424, %436 : vector<32x512xf32>
    %c6_163 = arith.constant 6 : index
    %c0_164 = arith.constant 0 : index
    %c0_165 = arith.constant 0 : index
    %438 = vector.load %arg5[%c6_163, %c0_164, %c0_165] : memref<7x32x1xf32, #tpu.memory_space<vmem>>, vector<1x32x1xf32>
    %439 = vector.shape_cast %438 : vector<1x32x1xf32> to vector<32x1xf32>
    %440 = vector.broadcast %439 : vector<32x1xf32> to vector<32x512xf32>
    %441 = arith.addf %437, %440 : vector<32x512xf32>
    %442 = arith.addf %441, %319 : vector<32x512xf32>
    %cst_166 = arith.constant 0.000000e+00 : f32
    %443 = vector.broadcast %cst_166 : f32 to vector<32x512xf32>
    %444 = arith.maximumf %442, %443 : vector<32x512xf32>
    %c0_167 = arith.constant 0 : index
    %c0_168 = arith.constant 0 : index
    %445 = vector.load %arg6[%c0_167, %c0_168] : memref<32x512xf32, #tpu.memory_space<vmem>>, vector<32x512xf32>
    tpu.vector_store %arg6[%c0_167, %c0_168], %444 {strides = array<i32>} : memref<32x512xf32, #tpu.memory_space<vmem>>, vector<32x512xf32>,
    return
  }
}

</mosaic_0001>

<llo_original>
// kernel: mini_resnet_forward.1
$region0: #{mini_resnet_forward.1}
  #allocation0 [shape = 'u32[]', space=smem, size = 0x4, offset = 0x4, fixed_abs, tag = 'smem constant byte address 0x4 - core index']
  #allocation1 [shape = 'u32[72,128]{1,0:T(1,128)}', space=vmem, size = 0x9000, scoped, tag = 'internal scratch']
  %s0 = inlined_call_operand.vmem [shape: f32[16,512], index: 0, kind: input, shape index: {}]
  %s1 = inlined_call_operand.vmem [shape: f32[9,512], index: 1, kind: input, shape index: {}]
  %s2 = inlined_call_operand.vmem [shape: bf16[32,144], index: 2, kind: input, shape index: {}]
  %s3 = inlined_call_operand.vmem [shape: bf16[6,32,288], index: 3, kind: input, shape index: {}]
  %s4 = inlined_call_operand.vmem [shape: f32[7,32,1], index: 4, kind: input, shape index: {}]
  %s5 = inlined_call_operand.vmem [shape: f32[7,32,1], index: 5, kind: input, shape index: {}]
  %s6 = inlined_call_operand.vmem [shape: f32[32,512], index: 6, kind: output, shape index: {}]
  %s7 = sld [smem:[#allocation0]]
  $region34: #{mini_resnet_forward.1} parent=0
    _
  %s9 = ssub.s32 1, %s7
  %s10 = scalar_select 0, %s9, %s7
  // Predicated region
  $region2: #{mini_resnet_forward.1} parent=0 // pred_check
    _
  $region3: #{mini_resnet_forward.1} parent=0 // pred_check_branch
    %12 = sbr.rel (0) target = $region5
  $region4: #{mini_resnet_forward.1} parent=0 // pred_region
    _
  $region5: #{mini_resnet_forward.1} parent=0 // pred_fallthru
    _
  // Predicated region
  $region6: #{mini_resnet_forward.1} parent=0 // pred_check
    _
  $region7: #{mini_resnet_forward.1} parent=0 // pred_check_branch
    %14 = sbr.rel (0) target = $region9
  $region8: #{mini_resnet_forward.1} parent=0 // pred_region
    _
  $region9: #{mini_resnet_forward.1} parent=0 // pred_fallthru
    _
  // Predicated region
  $region10: #{mini_resnet_forward.1} parent=0 // pred_check
    _
  $region11: #{mini_resnet_forward.1} parent=0 // pred_check_branch
    %16 = sbr.rel (0) target = $region13
  $region12: #{mini_resnet_forward.1} parent=0 // pred_region
    _
  $region13: #{mini_resnet_forward.1} parent=0 // pred_fallthru
    _
  // Predicated region
  $region14: #{mini_resnet_forward.1} parent=0 // pred_check
    _
  $region15: #{mini_resnet_forward.1} parent=0 // pred_check_branch
    %18 = sbr.rel (0) target = $region17
  $region16: #{mini_resnet_forward.1} parent=0 // pred_region
    _
  $region17: #{mini_resnet_forward.1} parent=0 // pred_fallthru
    _
  // Predicated region
  $region18: #{mini_resnet_forward.1} parent=0 // pred_check
    _
  $region19: #{mini_resnet_forward.1} parent=0 // pred_check_branch
    %20 = sbr.rel (0) target = $region21
  $region20: #{mini_resnet_forward.1} parent=0 // pred_region
    _
  $region21: #{mini_resnet_forward.1} parent=0 // pred_fallthru
    _
  // Predicated region
  $region22: #{mini_resnet_forward.1} parent=0 // pred_check
    _
  $region23: #{mini_resnet_forward.1} parent=0 // pred_check_branch
    %22 = sbr.rel (0) target = $region25
  $region24: #{mini_resnet_forward.1} parent=0 // pred_region
    _
  $region25: #{mini_resnet_forward.1} parent=0 // pred_fallthru
    _
  %v24 = vld [vmem:[%s1] ss:$8 sm:$0xf]
  %s25 = scalar_lea.vmem %s1, 1
  %v26 = vld [vmem:[%s25] ss:$8 sm:$0xf]
  %s27 = scalar_lea.vmem %s1, 2
  %v28 = vld [vmem:[%s27] ss:$8 sm:$0xf]
  %s29 = scalar_lea.vmem %s1, 3
  %v30 = vld [vmem:[%s29] ss:$8 sm:$0xf]
  %s31 = scalar_lea.vmem %s1, 5
  %v32 = vld [vmem:[%s31] ss:$8 sm:$0xf]
  %s33 = scalar_lea.vmem %s1, 6
  %v34 = vld [vmem:[%s33] ss:$8 sm:$0xf]
  %s35 = scalar_lea.vmem %s1, 7
  %v36 = vld [vmem:[%s35] ss:$8 sm:$0xf]
  %s37 = scalar_lea.vmem %s1, 32
  %v38 = vld [vmem:[%s37] ss:$8 sm:$0xf]
  %v39 = vld [vmem:[%s0] sm:$0xff]
  %v40 = vld [vmem:[%s0 + $0x8] sm:$0xff]
  %v41 = vld [vmem:[%s0 + $0x10] sm:$0xff]
  %v42 = vld [vmem:[%s0 + $0x18] sm:$0xff]
  %v43 = vld [vmem:[%s0 + $0x20] sm:$0xff]
  %v44 = vld [vmem:[%s0 + $0x28] sm:$0xff]
  %v45 = vld [vmem:[%s0 + $0x30] sm:$0xff]
  %v46 = vld [vmem:[%s0 + $0x38] sm:$0xff]
  %v47 = vld [vmem:[%s2] sm:$0xff]
  %v48 = vld [vmem:[%s2 + $0x8] sm:$0xff]
  %v49 = vld [vmem:[%s2 + $0x10] sm:$0xff]
  %v50 = vld [vmem:[%s2 + $0x18] sm:$0xff]
  %51 = vrot.lane.b32.xlu0 %v39, 17
  %v52 = vpop.permute.xlu0 %51
  %53 = vrot.lane.b32.xlu0 %v43, 17
  %v54 = vpop.permute.xlu0 %53
  %55 = vrot.lane.b32.xlu0 %v40, 17
  %v56 = vpop.permute.xlu0 %55
  %57 = vrot.lane.b32.xlu0 %v44, 17
  %v58 = vpop.permute.xlu0 %57
  %59 = vrot.lane.b32.xlu0 %v41, 17
  %v60 = vpop.permute.xlu0 %59
  %61 = vrot.lane.b32.xlu0 %v45, 17
  %v62 = vpop.permute.xlu0 %61
  %63 = vrot.lane.b32.xlu0 %v42, 17
  %v64 = vpop.permute.xlu0 %63
  %65 = vrot.lane.b32.xlu0 %v46, 17
  %v66 = vpop.permute.xlu0 %65
  %v67 = vlaneseq
  %v68 = vand.u32 %v67, 127
  %vm69 = vcmp.lt.s32.totalorder %v68, 17
  %v70 = vsel %vm69, %v60, %v64
  %v71 = vsel %vm69, %v62, %v66
  %v72 = vsel %vm69, %v56, %v60
  %v73 = vsel %vm69, %v58, %v62
  %v74 = vsel %vm69, %v52, %v56
  %v75 = vsel %vm69, %v54, %v58
  %v76 = vsel %vm69, %v64, %v52
  %v77 = vsel %vm69, %v66, %v54
  %v79 = vperm.slane %v24, 0
  %v80 = vperm.slane %v24, 1
  %v81 = vperm.slane %v24, 2
  %v82 = vperm.slane %v24, 3
  %v87 = vmul.f32 %v76, %v79
  %v88 = vmul.f32 %v74, %v80
  %v89 = vmul.f32 %v72, %v81
  %v90 = vmul.f32 %v70, %v82
  %v91 = vmul.f32 %v77, %v79
  %v92 = vmul.f32 %v75, %v80
  %v93 = vmul.f32 %v73, %v81
  %v94 = vmul.f32 %v71, %v82
  %v95 = vpack.c.bf16 %v88, %v87
  %v96 = vpack.c.bf16 %v90, %v89
  %v97 = vpack.c.bf16 %v92, %v91
  %v98 = vpack.c.bf16 %v94, %v93
  %99 = vrot.lane.b32.xlu0 %v39, 16
  %v100 = vpop.permute.xlu0 %99
  %101 = vrot.lane.b32.xlu0 %v43, 16
  %v102 = vpop.permute.xlu0 %101
  %103 = vrot.lane.b32.xlu0 %v40, 16
  %v104 = vpop.permute.xlu0 %103
  %105 = vrot.lane.b32.xlu0 %v44, 16
  %v106 = vpop.permute.xlu0 %105
  %107 = vrot.lane.b32.xlu0 %v41, 16
  %v108 = vpop.permute.xlu0 %107
  %109 = vrot.lane.b32.xlu0 %v45, 16
  %v110 = vpop.permute.xlu0 %109
  %111 = vrot.lane.b32.xlu0 %v42, 16
  %v112 = vpop.permute.xlu0 %111
  %113 = vrot.lane.b32.xlu0 %v46, 16
  %v114 = vpop.permute.xlu0 %113
  %vm115 = vcmp.lt.s32.totalorder %v68, 16
  %v116 = vsel %vm115, %v108, %v112
  %v117 = vsel %vm115, %v110, %v114
  %v118 = vsel %vm115, %v104, %v108
  %v119 = vsel %vm115, %v106, %v110
  %v120 = vsel %vm115, %v100, %v104
  %v121 = vsel %vm115, %v102, %v106
  %v122 = vsel %vm115, %v112, %v100
  %v123 = vsel %vm115, %v114, %v102
  %v125 = vperm.slane %v26, 0
  %v126 = vperm.slane %v26, 1
  %v127 = vperm.slane %v26, 2
  %v128 = vperm.slane %v26, 3
  %v133 = vmul.f32 %v122, %v125
  %v134 = vmul.f32 %v120, %v126
  %v135 = vmul.f32 %v118, %v127
  %v136 = vmul.f32 %v116, %v128
  %v137 = vmul.f32 %v123, %v125
  %v138 = vmul.f32 %v121, %v126
  %v139 = vmul.f32 %v119, %v127
  %v140 = vmul.f32 %v117, %v128
  %v141 = vpack.c.bf16 %v134, %v133
  %v142 = vpack.c.bf16 %v136, %v135
  %v143 = vpack.c.bf16 %v138, %v137
  %v144 = vpack.c.bf16 %v140, %v139
  %145 = vrot.lane.b32.xlu0 %v39, 15
  %v146 = vpop.permute.xlu0 %145
  %147 = vrot.lane.b32.xlu0 %v43, 15
  %v148 = vpop.permute.xlu0 %147
  %149 = vrot.lane.b32.xlu0 %v40, 15
  %v150 = vpop.permute.xlu0 %149
  %151 = vrot.lane.b32.xlu0 %v44, 15
  %v152 = vpop.permute.xlu0 %151
  %153 = vrot.lane.b32.xlu0 %v41, 15
  %v154 = vpop.permute.xlu0 %153
  %155 = vrot.lane.b32.xlu0 %v45, 15
  %v156 = vpop.permute.xlu0 %155
  %157 = vrot.lane.b32.xlu0 %v42, 15
  %v158 = vpop.permute.xlu0 %157
  %159 = vrot.lane.b32.xlu0 %v46, 15
  %v160 = vpop.permute.xlu0 %159
  %vm161 = vcmp.lt.s32.totalorder %v68, 15
  %v162 = vsel %vm161, %v154, %v158
  %v163 = vsel %vm161, %v156, %v160
  %v164 = vsel %vm161, %v150, %v154
  %v165 = vsel %vm161, %v152, %v156
  %v166 = vsel %vm161, %v146, %v150
  %v167 = vsel %vm161, %v148, %v152
  %v168 = vsel %vm161, %v158, %v146
  %v169 = vsel %vm161, %v160, %v148
  %v171 = vperm.slane %v28, 0
  %v172 = vperm.slane %v28, 1
  %v173 = vperm.slane %v28, 2
  %v174 = vperm.slane %v28, 3
  %v179 = vmul.f32 %v168, %v171
  %v180 = vmul.f32 %v166, %v172
  %v181 = vmul.f32 %v164, %v173
  %v182 = vmul.f32 %v162, %v174
  %v183 = vmul.f32 %v169, %v171
  %v184 = vmul.f32 %v167, %v172
  %v185 = vmul.f32 %v165, %v173
  %v186 = vmul.f32 %v163, %v174
  %v187 = vpack.c.bf16 %v180, %v179
  %v188 = vpack.c.bf16 %v182, %v181
  %v189 = vpack.c.bf16 %v184, %v183
  %v190 = vpack.c.bf16 %v186, %v185
  %191 = vrot.lane.b32.xlu0 %v39, 1
  %v192 = vpop.permute.xlu0 %191
  %193 = vrot.lane.b32.xlu0 %v43, 1
  %v194 = vpop.permute.xlu0 %193
  %195 = vrot.lane.b32.xlu0 %v40, 1
  %v196 = vpop.permute.xlu0 %195
  %197 = vrot.lane.b32.xlu0 %v44, 1
  %v198 = vpop.permute.xlu0 %197
  %199 = vrot.lane.b32.xlu0 %v41, 1
  %v200 = vpop.permute.xlu0 %199
  %201 = vrot.lane.b32.xlu0 %v45, 1
  %v202 = vpop.permute.xlu0 %201
  %203 = vrot.lane.b32.xlu0 %v42, 1
  %v204 = vpop.permute.xlu0 %203
  %205 = vrot.lane.b32.xlu0 %v46, 1
  %v206 = vpop.permute.xlu0 %205
  %vm207 = vcmp.lt.s32.totalorder %v68, 1
  %v208 = vsel %vm207, %v200, %v204
  %v209 = vsel %vm207, %v202, %v206
  %v210 = vsel %vm207, %v196, %v200
  %v211 = vsel %vm207, %v198, %v202
  %v212 = vsel %vm207, %v192, %v196
  %v213 = vsel %vm207, %v194, %v198
  %v214 = vsel %vm207, %v204, %v192
  %v215 = vsel %vm207, %v206, %v194
  %v217 = vperm.slane %v30, 0
  %v218 = vperm.slane %v30, 1
  %v219 = vperm.slane %v30, 2
  %v220 = vperm.slane %v30, 3
  %v225 = vmul.f32 %v214, %v217
  %v226 = vmul.f32 %v212, %v218
  %v227 = vmul.f32 %v210, %v219
  %v228 = vmul.f32 %v208, %v220
  %v229 = vmul.f32 %v215, %v217
  %v230 = vmul.f32 %v213, %v218
  %v231 = vmul.f32 %v211, %v219
  %v232 = vmul.f32 %v209, %v220
  %v233 = vpack.c.bf16 %v226, %v225
  %v234 = vpack.c.bf16 %v228, %v227
  %v235 = vpack.c.bf16 %v230, %v229
  %v236 = vpack.c.bf16 %v232, %v231
  %v237 = vpack.c.bf16 %v40, %v39
  %v238 = vpack.c.bf16 %v42, %v41
  %v239 = vpack.c.bf16 %v44, %v43
  %v240 = vpack.c.bf16 %v46, %v45
  %241 = vrot.lane.b32.xlu0 %v39, 127
  %v242 = vpop.permute.xlu0 %241
  %243 = vrot.lane.b32.xlu0 %v43, 127
  %v244 = vpop.permute.xlu0 %243
  %245 = vrot.lane.b32.xlu0 %v40, 127
  %v246 = vpop.permute.xlu0 %245
  %247 = vrot.lane.b32.xlu0 %v44, 127
  %v248 = vpop.permute.xlu0 %247
  %249 = vrot.lane.b32.xlu0 %v41, 127
  %v250 = vpop.permute.xlu0 %249
  %251 = vrot.lane.b32.xlu0 %v45, 127
  %v252 = vpop.permute.xlu0 %251
  %253 = vrot.lane.b32.xlu0 %v42, 127
  %v254 = vpop.permute.xlu0 %253
  %255 = vrot.lane.b32.xlu0 %v46, 127
  %v256 = vpop.permute.xlu0 %255
  %vm257 = vcmp.lt.s32.totalorder %v68, 127
  %v258 = vsel %vm257, %v250, %v254
  %v259 = vsel %vm257, %v252, %v256
  %v260 = vsel %vm257, %v246, %v250
  %v261 = vsel %vm257, %v248, %v252
  %v262 = vsel %vm257, %v242, %v246
  %v263 = vsel %vm257, %v244, %v248
  %v264 = vsel %vm257, %v254, %v242
  %v265 = vsel %vm257, %v256, %v244
  %v267 = vperm.slane %v32, 0
  %v268 = vperm.slane %v32, 1
  %v269 = vperm.slane %v32, 2
  %v270 = vperm.slane %v32, 3
  %v275 = vmul.f32 %v262, %v267
  %v276 = vmul.f32 %v260, %v268
  %v277 = vmul.f32 %v258, %v269
  %v278 = vmul.f32 %v264, %v270
  %v279 = vmul.f32 %v263, %v267
  %v280 = vmul.f32 %v261, %v268
  %v281 = vmul.f32 %v259, %v269
  %v282 = vmul.f32 %v265, %v270
  %v283 = vpack.c.bf16 %v276, %v275
  %v284 = vpack.c.bf16 %v278, %v277
  %v285 = vpack.c.bf16 %v280, %v279
  %v286 = vpack.c.bf16 %v282, %v281
  %287 = vrot.lane.b32.xlu0 %v39, 113
  %v288 = vpop.permute.xlu0 %287
  %289 = vrot.lane.b32.xlu0 %v43, 113
  %v290 = vpop.permute.xlu0 %289
  %291 = vrot.lane.b32.xlu0 %v40, 113
  %v292 = vpop.permute.xlu0 %291
  %293 = vrot.lane.b32.xlu0 %v44, 113
  %v294 = vpop.permute.xlu0 %293
  %295 = vrot.lane.b32.xlu0 %v41, 113
  %v296 = vpop.permute.xlu0 %295
  %297 = vrot.lane.b32.xlu0 %v45, 113
  %v298 = vpop.permute.xlu0 %297
  %299 = vrot.lane.b32.xlu0 %v42, 113
  %v300 = vpop.permute.xlu0 %299
  %301 = vrot.lane.b32.xlu0 %v46, 113
  %v302 = vpop.permute.xlu0 %301
  %vm303 = vcmp.lt.s32.totalorder %v68, 113
  %v304 = vsel %vm303, %v296, %v300
  %v305 = vsel %vm303, %v298, %v302
  %v306 = vsel %vm303, %v292, %v296
  %v307 = vsel %vm303, %v294, %v298
  %v308 = vsel %vm303, %v288, %v292
  %v309 = vsel %vm303, %v290, %v294
  %v310 = vsel %vm303, %v300, %v288
  %v311 = vsel %vm303, %v302, %v290
  %v313 = vperm.slane %v34, 0
  %v314 = vperm.slane %v34, 1
  %v315 = vperm.slane %v34, 2
  %v316 = vperm.slane %v34, 3
  %v321 = vmul.f32 %v308, %v313
  %v322 = vmul.f32 %v306, %v314
  %v323 = vmul.f32 %v304, %v315
  %v324 = vmul.f32 %v310, %v316
  %v325 = vmul.f32 %v309, %v313
  %v326 = vmul.f32 %v307, %v314
  %v327 = vmul.f32 %v305, %v315
  %v328 = vmul.f32 %v311, %v316
  %v329 = vpack.c.bf16 %v322, %v321
  %v330 = vpack.c.bf16 %v324, %v323
  %v331 = vpack.c.bf16 %v326, %v325
  %v332 = vpack.c.bf16 %v328, %v327
  %333 = vrot.lane.b32.xlu0 %v39, 112
  %v334 = vpop.permute.xlu0 %333
  %335 = vrot.lane.b32.xlu0 %v43, 112
  %v336 = vpop.permute.xlu0 %335
  %337 = vrot.lane.b32.xlu0 %v40, 112
  %v338 = vpop.permute.xlu0 %337
  %339 = vrot.lane.b32.xlu0 %v44, 112
  %v340 = vpop.permute.xlu0 %339
  %341 = vrot.lane.b32.xlu0 %v41, 112
  %v342 = vpop.permute.xlu0 %341
  %343 = vrot.lane.b32.xlu0 %v45, 112
  %v344 = vpop.permute.xlu0 %343
  %345 = vrot.lane.b32.xlu0 %v42, 112
  %v346 = vpop.permute.xlu0 %345
  %347 = vrot.lane.b32.xlu0 %v46, 112
  %v348 = vpop.permute.xlu0 %347
  %vm349 = vcmp.lt.s32.totalorder %v68, 112
  %v350 = vsel %vm349, %v342, %v346
  %v351 = vsel %vm349, %v344, %v348
  %v352 = vsel %vm349, %v338, %v342
  %v353 = vsel %vm349, %v340, %v344
  %v354 = vsel %vm349, %v334, %v338
  %v355 = vsel %vm349, %v336, %v340
  %v356 = vsel %vm349, %v346, %v334
  %v357 = vsel %vm349, %v348, %v336
  %v359 = vperm.slane %v36, 0
  %v360 = vperm.slane %v36, 1
  %v361 = vperm.slane %v36, 2
  %v362 = vperm.slane %v36, 3
  %v367 = vmul.f32 %v354, %v359
  %v368 = vmul.f32 %v352, %v360
  %v369 = vmul.f32 %v350, %v361
  %v370 = vmul.f32 %v356, %v362
  %v371 = vmul.f32 %v355, %v359
  %v372 = vmul.f32 %v353, %v360
  %v373 = vmul.f32 %v351, %v361
  %v374 = vmul.f32 %v357, %v362
  %v375 = vpack.c.bf16 %v368, %v367
  %v376 = vpack.c.bf16 %v370, %v369
  %v377 = vpack.c.bf16 %v372, %v371
  %v378 = vpack.c.bf16 %v374, %v373
  %379 = vrot.lane.b32.xlu0 %v39, 111
  %v380 = vpop.permute.xlu0 %379
  %381 = vrot.lane.b32.xlu0 %v43, 111
  %v382 = vpop.permute.xlu0 %381
  %383 = vrot.lane.b32.xlu0 %v40, 111
  %v384 = vpop.permute.xlu0 %383
  %385 = vrot.lane.b32.xlu0 %v44, 111
  %v386 = vpop.permute.xlu0 %385
  %387 = vrot.lane.b32.xlu0 %v41, 111
  %v388 = vpop.permute.xlu0 %387
  %389 = vrot.lane.b32.xlu0 %v45, 111
  %v390 = vpop.permute.xlu0 %389
  %391 = vrot.lane.b32.xlu0 %v42, 111
  %v392 = vpop.permute.xlu0 %391
  %393 = vrot.lane.b32.xlu0 %v46, 111
  %v394 = vpop.permute.xlu0 %393
  %vm395 = vcmp.lt.s32.totalorder %v68, 111
  %v396 = vsel %vm395, %v388, %v392
  %v397 = vsel %vm395, %v390, %v394
  %v398 = vsel %vm395, %v384, %v388
  %v399 = vsel %vm395, %v386, %v390
  %v400 = vsel %vm395, %v380, %v384
  %v401 = vsel %vm395, %v382, %v386
  %v402 = vsel %vm395, %v392, %v380
  %v403 = vsel %vm395, %v394, %v382
  %v405 = vperm.slane %v38, 0
  %v406 = vperm.slane %v38, 1
  %v407 = vperm.slane %v38, 2
  %v408 = vperm.slane %v38, 3
  %v413 = vmul.f32 %v400, %v405
  %v414 = vmul.f32 %v398, %v406
  %v415 = vmul.f32 %v396, %v407
  %v416 = vmul.f32 %v402, %v408
  %v417 = vmul.f32 %v401, %v405
  %v418 = vmul.f32 %v399, %v406
  %v419 = vmul.f32 %v397, %v407
  %v420 = vmul.f32 %v403, %v408
  %v421 = vpack.c.bf16 %v414, %v413
  %v422 = vpack.c.bf16 %v416, %v415
  %v423 = vpack.c.bf16 %v418, %v417
  %v424 = vpack.c.bf16 %v420, %v419
  %v429 = vunpack.c.l.b16 %v95
  %v430 = vunpack.c.h.b16 %v95
  %v431 = vunpack.c.l.b16 %v96
  %v432 = vunpack.c.h.b16 %v96
  %v433 = vunpack.c.l.b16 %v97
  %v434 = vunpack.c.h.b16 %v97
  %v435 = vunpack.c.l.b16 %v98
  %v436 = vunpack.c.h.b16 %v98
  %v437 = vpack.c.b16 %v433, %v429
  %v438 = vpack.c.b16 %v434, %v430
  %v439 = vpack.c.b16 %v435, %v431
  %v440 = vpack.c.b16 %v436, %v432
  %v449 = vunpack.c.l.b16 %v141
  %v450 = vunpack.c.h.b16 %v141
  %v451 = vunpack.c.l.b16 %v142
  %v452 = vunpack.c.h.b16 %v142
  %v453 = vunpack.c.l.b16 %v143
  %v454 = vunpack.c.h.b16 %v143
  %v455 = vunpack.c.l.b16 %v144
  %v456 = vunpack.c.h.b16 %v144
  %v457 = vpack.c.b16 %v453, %v449
  %v458 = vpack.c.b16 %v454, %v450
  %v459 = vpack.c.b16 %v455, %v451
  %v460 = vpack.c.b16 %v456, %v452
  %v469 = vunpack.c.l.b16 %v187
  %v470 = vunpack.c.h.b16 %v187
  %v471 = vunpack.c.l.b16 %v188
  %v472 = vunpack.c.h.b16 %v188
  %v473 = vunpack.c.l.b16 %v189
  %v474 = vunpack.c.h.b16 %v189
  %v475 = vunpack.c.l.b16 %v190
  %v476 = vunpack.c.h.b16 %v190
  %v477 = vpack.c.b16 %v473, %v469
  %v478 = vpack.c.b16 %v474, %v470
  %v479 = vpack.c.b16 %v475, %v471
  %v480 = vpack.c.b16 %v476, %v472
  %v489 = vunpack.c.l.b16 %v233
  %v490 = vunpack.c.h.b16 %v233
  %v491 = vunpack.c.l.b16 %v234
  %v492 = vunpack.c.h.b16 %v234
  %v493 = vunpack.c.l.b16 %v235
  %v494 = vunpack.c.h.b16 %v235
  %v495 = vunpack.c.l.b16 %v236
  %v496 = vunpack.c.h.b16 %v236
  %v497 = vpack.c.b16 %v493, %v489
  %v498 = vpack.c.b16 %v494, %v490
  %v499 = vpack.c.b16 %v495, %v491
  %v500 = vpack.c.b16 %v496, %v492
  %v509 = vunpack.c.l.b16 %v237
  %v510 = vunpack.c.h.b16 %v237
  %v511 = vunpack.c.l.b16 %v238
  %v512 = vunpack.c.h.b16 %v238
  %v513 = vunpack.c.l.b16 %v239
  %v514 = vunpack.c.h.b16 %v239
  %v515 = vunpack.c.l.b16 %v240
  %v516 = vunpack.c.h.b16 %v240
  %v517 = vpack.c.b16 %v513, %v509
  %v518 = vpack.c.b16 %v514, %v510
  %v519 = vpack.c.b16 %v515, %v511
  %v520 = vpack.c.b16 %v516, %v512
  %v529 = vunpack.c.l.b16 %v283
  %v530 = vunpack.c.h.b16 %v283
  %v531 = vunpack.c.l.b16 %v284
  %v532 = vunpack.c.h.b16 %v284
  %v533 = vunpack.c.l.b16 %v285
  %v534 = vunpack.c.h.b16 %v285
  %v535 = vunpack.c.l.b16 %v286
  %v536 = vunpack.c.h.b16 %v286
  %v537 = vpack.c.b16 %v533, %v529
  %v538 = vpack.c.b16 %v534, %v530
  %v539 = vpack.c.b16 %v535, %v531
  %v540 = vpack.c.b16 %v536, %v532
  %v549 = vunpack.c.l.b16 %v329
  %v550 = vunpack.c.h.b16 %v329
  %v551 = vunpack.c.l.b16 %v330
  %v552 = vunpack.c.h.b16 %v330
  %v553 = vunpack.c.l.b16 %v331
  %v554 = vunpack.c.h.b16 %v331
  %v555 = vunpack.c.l.b16 %v332
  %v556 = vunpack.c.h.b16 %v332
  %v557 = vpack.c.b16 %v553, %v549
  %v558 = vpack.c.b16 %v554, %v550
  %v559 = vpack.c.b16 %v555, %v551
  %v560 = vpack.c.b16 %v556, %v552
  %v569 = vunpack.c.l.b16 %v375
  %v570 = vunpack.c.h.b16 %v375
  %v571 = vunpack.c.l.b16 %v376
  %v572 = vunpack.c.h.b16 %v376
  %v573 = vunpack.c.l.b16 %v377
  %v574 = vunpack.c.h.b16 %v377
  %v575 = vunpack.c.l.b16 %v378
  %v576 = vunpack.c.h.b16 %v378
  %v577 = vpack.c.b16 %v573, %v569
  %v578 = vpack.c.b16 %v574, %v570
  %v579 = vpack.c.b16 %v575, %v571
  %v580 = vpack.c.b16 %v576, %v572
  %v589 = vunpack.c.l.b16 %v421
  %v590 = vunpack.c.h.b16 %v421
  %v591 = vunpack.c.l.b16 %v422
  %v592 = vunpack.c.h.b16 %v422
  %v593 = vunpack.c.l.b16 %v423
  %v594 = vunpack.c.h.b16 %v423
  %v595 = vunpack.c.l.b16 %v424
  %v596 = vunpack.c.h.b16 %v424
  %v597 = vpack.c.b16 %v593, %v589
  %v598 = vpack.c.b16 %v594, %v590
  %v599 = vpack.c.b16 %v595, %v591
  %v600 = vpack.c.b16 %v596, %v592
  %v609 = vunpack.c.l.b16 %v47
  %v610 = vunpack.c.h.b16 %v47
  %v611 = vunpack.c.l.b16 %v48
  %v612 = vunpack.c.h.b16 %v48
  %v613 = vunpack.c.l.b16 %v49
  %v614 = vunpack.c.h.b16 %v49
  %v615 = vunpack.c.l.b16 %v50
  %v616 = vunpack.c.h.b16 %v50
  %v617 = vpack.c.b16 %v611, %v609
  %v618 = vpack.c.b16 %v612, %v610
  %v619 = vpack.c.b16 %v615, %v613
  %v620 = vpack.c.b16 %v616, %v614
  %vm623 = vcmask 130048
  %v625 = vsel %vm623, %v618, 0
  %v628 = vsel %vm623, %v620, 0
  %630 = vmatpush.bf16.msra.mxu0 %v577
  %631 = vmatpush.bf16.msra.mxu0 %v557
  %632 = vmatpush.bf16.msra.mxu0 %v537
  %633 = vmatpush.bf16.msra.mxu0 %v517
  %634 = vmatpush.bf16.msra.mxu0 %v497
  %635 = vmatpush.bf16.msra.mxu0 %v477
  %636 = vmatpush.bf16.msra.mxu0 %v457
  %637 = vmatpush.bf16.msra.mxu0 %v437
  %638 = vmatmul.bf16.gmra.mxu0 %v617
  %v639 = vpop.f32.mrf.mxu0
  %v640 = vadd.f32 0.0, %v639
  %v641 = vpop.f32.mrf.mxu0
  %v642 = vadd.f32 0.0, %v641
  %643 = vmatmul.bf16.gmra.mxu0 %v619
  %v644 = vpop.f32.mrf.mxu0
  %v645 = vadd.f32 0.0, %v644
  %v646 = vpop.f32.mrf.mxu0
  %v647 = vadd.f32 0.0, %v646
  %648 = vdwg.mxu0
  %649 = vmatpush.bf16.msra.mxu0 0
  %650 = vmatpush.bf16.msra.mxu0 0
  %651 = vmatpush.bf16.msra.mxu0 0
  %652 = vmatpush.bf16.msra.mxu0 0
  %653 = vmatpush.bf16.msra.mxu0 0
  %654 = vmatpush.bf16.msra.mxu0 0
  %655 = vmatpush.bf16.msra.mxu0 0
  %656 = vmatpush.bf16.msra.mxu0 %v597
  %657 = vmatmul.bf16.gmra.mxu0 %v625
  %v658 = vpop.f32.mrf.mxu0
  %v659 = vadd.f32 %v640, %v658
  %v660 = vpop.f32.mrf.mxu0
  %v661 = vadd.f32 %v642, %v660
  %662 = vmatmul.bf16.gmra.mxu0 %v628
  %v663 = vpop.f32.mrf.mxu0
  %v664 = vadd.f32 %v645, %v663
  %v665 = vpop.f32.mrf.mxu0
  %v666 = vadd.f32 %v647, %v665
  %667 = vdwg.mxu0
  %668 = vmatpush.bf16.msra.mxu0 %v578
  %669 = vmatpush.bf16.msra.mxu0 %v558
  %670 = vmatpush.bf16.msra.mxu0 %v538
  %671 = vmatpush.bf16.msra.mxu0 %v518
  %672 = vmatpush.bf16.msra.mxu0 %v498
  %673 = vmatpush.bf16.msra.mxu0 %v478
  %674 = vmatpush.bf16.msra.mxu0 %v458
  %675 = vmatpush.bf16.msra.mxu0 %v438
  %676 = vmatmul.bf16.gmra.mxu0 %v617
  %v677 = vpop.f32.mrf.mxu0
  %v678 = vadd.f32 0.0, %v677
  %v679 = vpop.f32.mrf.mxu0
  %v680 = vadd.f32 0.0, %v679
  %681 = vmatmul.bf16.gmra.mxu0 %v619
  %v682 = vpop.f32.mrf.mxu0
  %v683 = vadd.f32 0.0, %v682
  %v684 = vpop.f32.mrf.mxu0
  %v685 = vadd.f32 0.0, %v684
  %686 = vdwg.mxu0
  %687 = vmatpush.bf16.msra.mxu0 0
  %688 = vmatpush.bf16.msra.mxu0 0
  %689 = vmatpush.bf16.msra.mxu0 0
  %690 = vmatpush.bf16.msra.mxu0 0
  %691 = vmatpush.bf16.msra.mxu0 0
  %692 = vmatpush.bf16.msra.mxu0 0
  %693 = vmatpush.bf16.msra.mxu0 0
  %694 = vmatpush.bf16.msra.mxu0 %v598
  %695 = vmatmul.bf16.gmra.mxu0 %v625
  %v696 = vpop.f32.mrf.mxu0
  %v697 = vadd.f32 %v678, %v696
  %v698 = vpop.f32.mrf.mxu0
  %v699 = vadd.f32 %v680, %v698
  %700 = vmatmul.bf16.gmra.mxu0 %v628
  %v701 = vpop.f32.mrf.mxu0
  %v702 = vadd.f32 %v683, %v701
  %v703 = vpop.f32.mrf.mxu0
  %v704 = vadd.f32 %v685, %v703
  %705 = vdwg.mxu0
  %706 = vmatpush.bf16.msra.mxu0 %v579
  %707 = vmatpush.bf16.msra.mxu0 %v559
  %708 = vmatpush.bf16.msra.mxu0 %v539
  %709 = vmatpush.bf16.msra.mxu0 %v519
  %710 = vmatpush.bf16.msra.mxu0 %v499
  %711 = vmatpush.bf16.msra.mxu0 %v479
  %712 = vmatpush.bf16.msra.mxu0 %v459
  %713 = vmatpush.bf16.msra.mxu0 %v439
  %714 = vmatmul.bf16.gmra.mxu0 %v617
  %v715 = vpop.f32.mrf.mxu0
  %v716 = vadd.f32 0.0, %v715
  %v717 = vpop.f32.mrf.mxu0
  %v718 = vadd.f32 0.0, %v717
  %719 = vmatmul.bf16.gmra.mxu0 %v619
  %v720 = vpop.f32.mrf.mxu0
  %v721 = vadd.f32 0.0, %v720
  %v722 = vpop.f32.mrf.mxu0
  %v723 = vadd.f32 0.0, %v722
  %724 = vdwg.mxu0
  %725 = vmatpush.bf16.msra.mxu0 0
  %726 = vmatpush.bf16.msra.mxu0 0
  %727 = vmatpush.bf16.msra.mxu0 0
  %728 = vmatpush.bf16.msra.mxu0 0
  %729 = vmatpush.bf16.msra.mxu0 0
  %730 = vmatpush.bf16.msra.mxu0 0
  %731 = vmatpush.bf16.msra.mxu0 0
  %732 = vmatpush.bf16.msra.mxu0 %v599
  %733 = vmatmul.bf16.gmra.mxu0 %v625
  %v734 = vpop.f32.mrf.mxu0
  %v735 = vadd.f32 %v716, %v734
  %v736 = vpop.f32.mrf.mxu0
  %v737 = vadd.f32 %v718, %v736
  %738 = vmatmul.bf16.gmra.mxu0 %v628
  %v739 = vpop.f32.mrf.mxu0
  %v740 = vadd.f32 %v721, %v739
  %v741 = vpop.f32.mrf.mxu0
  %v742 = vadd.f32 %v723, %v741
  %743 = vdwg.mxu0
  %744 = vmatpush.bf16.msra.mxu0 %v580
  %745 = vmatpush.bf16.msra.mxu0 %v560
  %746 = vmatpush.bf16.msra.mxu0 %v540
  %747 = vmatpush.bf16.msra.mxu0 %v520
  %748 = vmatpush.bf16.msra.mxu0 %v500
  %749 = vmatpush.bf16.msra.mxu0 %v480
  %750 = vmatpush.bf16.msra.mxu0 %v460
  %751 = vmatpush.bf16.msra.mxu0 %v440
  %752 = vmatmul.bf16.gmra.mxu0 %v617
  %v753 = vpop.f32.mrf.mxu0
  %v754 = vadd.f32 0.0, %v753
  %v755 = vpop.f32.mrf.mxu0
  %v756 = vadd.f32 0.0, %v755
  %757 = vmatmul.bf16.gmra.mxu0 %v619
  %v758 = vpop.f32.mrf.mxu0
  %v759 = vadd.f32 0.0, %v758
  %v760 = vpop.f32.mrf.mxu0
  %v761 = vadd.f32 0.0, %v760
  %762 = vdwg.mxu0
  %763 = vmatpush.bf16.msra.mxu0 0
  %764 = vmatpush.bf16.msra.mxu0 0
  %765 = vmatpush.bf16.msra.mxu0 0
  %766 = vmatpush.bf16.msra.mxu0 0
  %767 = vmatpush.bf16.msra.mxu0 0
  %768 = vmatpush.bf16.msra.mxu0 0
  %769 = vmatpush.bf16.msra.mxu0 0
  %770 = vmatpush.bf16.msra.mxu0 %v600
  %771 = vmatmul.bf16.gmra.mxu0 %v625
  %v772 = vpop.f32.mrf.mxu0
  %v773 = vadd.f32 %v754, %v772
  %v774 = vpop.f32.mrf.mxu0
  %v775 = vadd.f32 %v756, %v774
  %776 = vmatmul.bf16.gmra.mxu0 %v628
  %v777 = vpop.f32.mrf.mxu0
  %v778 = vadd.f32 %v759, %v777
  %v779 = vpop.f32.mrf.mxu0
  %v780 = vadd.f32 %v761, %v779
  %781 = vdwg.mxu0
  %v782 = vadd.f32 %v659, %v697
  %v783 = vadd.f32 %v782, %v735
  %v784 = vadd.f32 %v783, %v773
  %785 = vadd.xlane.f32.xlu0 %v784
  %v786 = vpop.xlane.xlu0 %785
  %v787 = vadd.f32 %v661, %v699
  %v788 = vadd.f32 %v787, %v737
  %v789 = vadd.f32 %v788, %v775
  %790 = vadd.xlane.f32.xlu0 %v789
  %v791 = vpop.xlane.xlu0 %790
  %v792 = vadd.f32 %v664, %v702
  %v793 = vadd.f32 %v792, %v740
  %v794 = vadd.f32 %v793, %v778
  %795 = vadd.xlane.f32.xlu0 %v794
  %v796 = vpop.xlane.xlu0 %795
  %v797 = vadd.f32 %v666, %v704
  %v798 = vadd.f32 %v797, %v742
  %v799 = vadd.f32 %v798, %v780
  %800 = vadd.xlane.f32.xlu0 %v799
  %v801 = vpop.xlane.xlu0 %800
  %v802 = vrcp.pop 512.0
  %v803 = vmul.f32 512.0, %v802
  %v804 = vsub.f32 1.0, %v803
  %v805 = vmul.f32 %v802, %v804
  %v806 = vadd.f32 %v802, %v805
  %vm807 = vweird.f32 %v802
  %v808 = vsel %vm807, %v802, %v806
  %v809 = vmul.f32 %v786, %v808
  %v810 = vmul.f32 %v791, %v808
  %v811 = vmul.f32 %v796, %v808
  %v812 = vmul.f32 %v801, %v808
  %v813 = vsub.f32 %v659, %v809
  %v814 = vsub.f32 %v697, %v809
  %v815 = vsub.f32 %v735, %v809
  %v816 = vsub.f32 %v773, %v809
  %v817 = vsub.f32 %v661, %v810
  %v818 = vsub.f32 %v699, %v810
  %v819 = vsub.f32 %v737, %v810
  %v820 = vsub.f32 %v775, %v810
  %v821 = vsub.f32 %v664, %v811
  %v822 = vsub.f32 %v702, %v811
  %v823 = vsub.f32 %v740, %v811
  %v824 = vsub.f32 %v778, %v811
  %v825 = vsub.f32 %v666, %v812
  %v826 = vsub.f32 %v704, %v812
  %v827 = vsub.f32 %v742, %v812
  %v828 = vsub.f32 %v780, %v812
  %v829 = vmul.f32 %v813, %v813
  %v830 = vmul.f32 %v814, %v814
  %v831 = vmul.f32 %v815, %v815
  %v832 = vmul.f32 %v816, %v816
  %v833 = vmul.f32 %v817, %v817
  %v834 = vmul.f32 %v818, %v818
  %v835 = vmul.f32 %v819, %v819
  %v836 = vmul.f32 %v820, %v820
  %v837 = vmul.f32 %v821, %v821
  %v838 = vmul.f32 %v822, %v822
  %v839 = vmul.f32 %v823, %v823
  %v840 = vmul.f32 %v824, %v824
  %v841 = vmul.f32 %v825, %v825
  %v842 = vmul.f32 %v826, %v826
  %v843 = vmul.f32 %v827, %v827
  %v844 = vmul.f32 %v828, %v828
  %v845 = vadd.f32 %v829, %v830
  %v846 = vadd.f32 %v845, %v831
  %v847 = vadd.f32 %v846, %v832
  %848 = vadd.xlane.f32.xlu0 %v847
  %v849 = vpop.xlane.xlu0 %848
  %v850 = vadd.f32 %v833, %v834
  %v851 = vadd.f32 %v850, %v835
  %v852 = vadd.f32 %v851, %v836
  %853 = vadd.xlane.f32.xlu0 %v852
  %v854 = vpop.xlane.xlu0 %853
  %v855 = vadd.f32 %v837, %v838
  %v856 = vadd.f32 %v855, %v839
  %v857 = vadd.f32 %v856, %v840
  %858 = vadd.xlane.f32.xlu0 %v857
  %v859 = vpop.xlane.xlu0 %858
  %v860 = vadd.f32 %v841, %v842
  %v861 = vadd.f32 %v860, %v843
  %v862 = vadd.f32 %v861, %v844
  %863 = vadd.xlane.f32.xlu0 %v862
  %v864 = vpop.xlane.xlu0 %863
  %v865 = vmul.f32 %v849, %v808
  %v866 = vmul.f32 %v854, %v808
  %v867 = vmul.f32 %v859, %v808
  %v868 = vmul.f32 %v864, %v808
  %v869 = vld [vmem:[%s4] sm:$0xff]
  %v870 = vld [vmem:[%s4 + $0x8] sm:$0xff]
  %v871 = vld [vmem:[%s4 + $0x10] sm:$0xff]
  %v872 = vld [vmem:[%s4 + $0x18] sm:$0xff]
  %v873 = vadd.f32 %v865, 1e-05
  %v874 = vadd.f32 %v866, 1e-05
  %v875 = vadd.f32 %v867, 1e-05
  %v876 = vadd.f32 %v868, 1e-05
  %v877 = vrsqrt.pop %v873
  %v878 = vmul.f32 %v877, %v873
  %v879 = vmul.f32 %v878, %v877
  %v880 = vmul.f32 0.5, %v879
  %v881 = vsub.f32 1.5, %v880
  %v882 = vmul.f32 %v877, %v881
  %vm883 = vweird.f32 %v873
  %vm884 = vweird.f32 %v877
  %vm885 = vmor %vm883, %vm884
  %v886 = vsel %vm885, %v877, %v882
  %v887 = vrsqrt.pop %v874
  %v888 = vmul.f32 %v887, %v874
  %v889 = vmul.f32 %v888, %v887
  %v890 = vmul.f32 0.5, %v889
  %v891 = vsub.f32 1.5, %v890
  %v892 = vmul.f32 %v887, %v891
  %vm893 = vweird.f32 %v874
  %vm894 = vweird.f32 %v887
  %vm895 = vmor %vm893, %vm894
  %v896 = vsel %vm895, %v887, %v892
  %v897 = vrsqrt.pop %v875
  %v898 = vmul.f32 %v897, %v875
  %v899 = vmul.f32 %v898, %v897
  %v900 = vmul.f32 0.5, %v899
  %v901 = vsub.f32 1.5, %v900
  %v902 = vmul.f32 %v897, %v901
  %vm903 = vweird.f32 %v875
  %vm904 = vweird.f32 %v897
  %vm905 = vmor %vm903, %vm904
  %v906 = vsel %vm905, %v897, %v902
  %v907 = vrsqrt.pop %v876
  %v908 = vmul.f32 %v907, %v876
  %v909 = vmul.f32 %v908, %v907
  %v910 = vmul.f32 0.5, %v909
  %v911 = vsub.f32 1.5, %v910
  %v912 = vmul.f32 %v907, %v911
  %vm913 = vweird.f32 %v876
  %vm914 = vweird.f32 %v907
  %vm915 = vmor %vm913, %vm914
  %v916 = vsel %vm915, %v907, %v912
  %v917 = vmul.f32 %v869, %v886
  %v918 = vmul.f32 %v870, %v896
  %v919 = vmul.f32 %v871, %v906
  %v920 = vmul.f32 %v872, %v916
  %922 = vset.pattern.permute.xlu0 0
  %923 = vperm.xlu0 %922, %v917
  %v924 = vpop.permute.xlu0 %923
  %927 = vset.pattern.permute.xlu0 0
  %928 = vperm.xlu0 %927, %v918
  %v929 = vpop.permute.xlu0 %928
  %932 = vset.pattern.permute.xlu0 0
  %933 = vperm.xlu0 %932, %v919
  %v934 = vpop.permute.xlu0 %933
  %937 = vset.pattern.permute.xlu0 0
  %938 = vperm.xlu0 %937, %v920
  %v939 = vpop.permute.xlu0 %938
  %v941 = vmul.f32 %v813, %v924
  %v942 = vmul.f32 %v814, %v924
  %v943 = vmul.f32 %v815, %v924
  %v944 = vmul.f32 %v816, %v924
  %v945 = vmul.f32 %v817, %v929
  %v946 = vmul.f32 %v818, %v929
  %v947 = vmul.f32 %v819, %v929
  %v948 = vmul.f32 %v820, %v929
  %v949 = vmul.f32 %v821, %v934
  %v950 = vmul.f32 %v822, %v934
  %v951 = vmul.f32 %v823, %v934
  %v952 = vmul.f32 %v824, %v934
  %v953 = vmul.f32 %v825, %v939
  %v954 = vmul.f32 %v826, %v939
  %v955 = vmul.f32 %v827, %v939
  %v956 = vmul.f32 %v828, %v939
  %v957 = vld [vmem:[%s5] sm:$0xff]
  %v958 = vld [vmem:[%s5 + $0x8] sm:$0xff]
  %v959 = vld [vmem:[%s5 + $0x10] sm:$0xff]
  %v960 = vld [vmem:[%s5 + $0x18] sm:$0xff]
  %962 = vset.pattern.permute.xlu0 0
  %963 = vperm.xlu0 %962, %v957
  %v964 = vpop.permute.xlu0 %963
  %967 = vset.pattern.permute.xlu0 0
  %968 = vperm.xlu0 %967, %v958
  %v969 = vpop.permute.xlu0 %968
  %972 = vset.pattern.permute.xlu0 0
  %973 = vperm.xlu0 %972, %v959
  %v974 = vpop.permute.xlu0 %973
  %977 = vset.pattern.permute.xlu0 0
  %978 = vperm.xlu0 %977, %v960
  %v979 = vpop.permute.xlu0 %978
  %v981 = vadd.f32 %v941, %v964
  %v982 = vadd.f32 %v942, %v964
  %v983 = vadd.f32 %v943, %v964
  %v984 = vadd.f32 %v944, %v964
  %v985 = vadd.f32 %v945, %v969
  %v986 = vadd.f32 %v946, %v969
  %v987 = vadd.f32 %v947, %v969
  %v988 = vadd.f32 %v948, %v969
  %v989 = vadd.f32 %v949, %v974
  %v990 = vadd.f32 %v950, %v974
  %v991 = vadd.f32 %v951, %v974
  %v992 = vadd.f32 %v952, %v974
  %v993 = vadd.f32 %v953, %v979
  %v994 = vadd.f32 %v954, %v979
  %v995 = vadd.f32 %v955, %v979
  %v996 = vadd.f32 %v956, %v979
  %v997 = vmax.f32 %v981, 0.0
  %v998 = vmax.f32 %v982, 0.0
  %v999 = vmax.f32 %v983, 0.0
  %v1000 = vmax.f32 %v984, 0.0
  %v1001 = vmax.f32 %v985, 0.0
  %v1002 = vmax.f32 %v986, 0.0
  %v1003 = vmax.f32 %v987, 0.0
  %v1004 = vmax.f32 %v988, 0.0
  %v1005 = vmax.f32 %v989, 0.0
  %v1006 = vmax.f32 %v990, 0.0
  %v1007 = vmax.f32 %v991, 0.0
  %v1008 = vmax.f32 %v992, 0.0
  %v1009 = vmax.f32 %v993, 0.0
  %v1010 = vmax.f32 %v994, 0.0
  %v1011 = vmax.f32 %v995, 0.0
  %v1012 = vmax.f32 %v996, 0.0
  %v1013 = vld [vmem:[%s3] sm:$0xff]
  %v1014 = vld [vmem:[%s3 + $0x8] sm:$0xf]
  %v1015 = vld [vmem:[%s3 + $0xc] sm:$0xff]
  %v1016 = vld [vmem:[%s3 + $0x14] sm:$0xf]
  %v1017 = vld [vmem:[%s3 + $0x18] sm:$0xff]
  %v1018 = vld [vmem:[%s3 + $0x20] sm:$0xf]
  %v1019 = vld [vmem:[%s3 + $0x24] sm:$0xff]
  %v1020 = vld [vmem:[%s3 + $0x2c] sm:$0xf]
  %1021 = vrot.lane.b32.xlu0 %v997, 17
  %v1022 = vpop.permute.xlu0 %1021
  %1023 = vrot.lane.b32.xlu0 %v1001, 17
  %v1024 = vpop.permute.xlu0 %1023
  %1025 = vrot.lane.b32.xlu0 %v1005, 17
  %v1026 = vpop.permute.xlu0 %1025
  %1027 = vrot.lane.b32.xlu0 %v1009, 17
  %v1028 = vpop.permute.xlu0 %1027
  %1029 = vrot.lane.b32.xlu0 %v998, 17
  %v1030 = vpop.permute.xlu0 %1029
  %1031 = vrot.lane.b32.xlu0 %v1002, 17
  %v1032 = vpop.permute.xlu0 %1031
  %1033 = vrot.lane.b32.xlu0 %v1006, 17
  %v1034 = vpop.permute.xlu0 %1033
  %1035 = vrot.lane.b32.xlu0 %v1010, 17
  %v1036 = vpop.permute.xlu0 %1035
  %1037 = vrot.lane.b32.xlu0 %v999, 17
  %v1038 = vpop.permute.xlu0 %1037
  %1039 = vrot.lane.b32.xlu0 %v1003, 17
  %v1040 = vpop.permute.xlu0 %1039
  %1041 = vrot.lane.b32.xlu0 %v1007, 17
  %v1042 = vpop.permute.xlu0 %1041
  %1043 = vrot.lane.b32.xlu0 %v1011, 17
  %v1044 = vpop.permute.xlu0 %1043
  %1045 = vrot.lane.b32.xlu0 %v1000, 17
  %v1046 = vpop.permute.xlu0 %1045
  %1047 = vrot.lane.b32.xlu0 %v1004, 17
  %v1048 = vpop.permute.xlu0 %1047
  %1049 = vrot.lane.b32.xlu0 %v1008, 17
  %v1050 = vpop.permute.xlu0 %1049
  %1051 = vrot.lane.b32.xlu0 %v1012, 17
  %v1052 = vpop.permute.xlu0 %1051
  %v1053 = vsel %vm69, %v1038, %v1046
  %v1054 = vsel %vm69, %v1040, %v1048
  %v1055 = vsel %vm69, %v1042, %v1050
  %v1056 = vsel %vm69, %v1044, %v1052
  %v1057 = vsel %vm69, %v1030, %v1038
  %v1058 = vsel %vm69, %v1032, %v1040
  %v1059 = vsel %vm69, %v1034, %v1042
  %v1060 = vsel %vm69, %v1036, %v1044
  %v1061 = vsel %vm69, %v1022, %v1030
  %v1062 = vsel %vm69, %v1024, %v1032
  %v1063 = vsel %vm69, %v1026, %v1034
  %v1064 = vsel %vm69, %v1028, %v1036
  %v1065 = vsel %vm69, %v1046, %v1022
  %v1066 = vsel %vm69, %v1048, %v1024
  %v1067 = vsel %vm69, %v1050, %v1026
  %v1068 = vsel %vm69, %v1052, %v1028
  %v1069 = vmul.f32 %v1065, %v79
  %v1070 = vmul.f32 %v1061, %v80
  %v1071 = vmul.f32 %v1057, %v81
  %v1072 = vmul.f32 %v1053, %v82
  %v1073 = vmul.f32 %v1066, %v79
  %v1074 = vmul.f32 %v1062, %v80
  %v1075 = vmul.f32 %v1058, %v81
  %v1076 = vmul.f32 %v1054, %v82
  %v1077 = vmul.f32 %v1067, %v79
  %v1078 = vmul.f32 %v1063, %v80
  %v1079 = vmul.f32 %v1059, %v81
  %v1080 = vmul.f32 %v1055, %v82
  %v1081 = vmul.f32 %v1068, %v79
  %v1082 = vmul.f32 %v1064, %v80
  %v1083 = vmul.f32 %v1060, %v81
  %v1084 = vmul.f32 %v1056, %v82
  %v1085 = vpack.c.bf16 %v1070, %v1069
  %v1086 = vpack.c.bf16 %v1072, %v1071
  %v1087 = vpack.c.bf16 %v1074, %v1073
  %v1088 = vpack.c.bf16 %v1076, %v1075
  %v1089 = vpack.c.bf16 %v1078, %v1077
  %v1090 = vpack.c.bf16 %v1080, %v1079
  %v1091 = vpack.c.bf16 %v1082, %v1081
  %v1092 = vpack.c.bf16 %v1084, %v1083
  %1093 = vrot.lane.b32.xlu0 %v997, 16
  %v1094 = vpop.permute.xlu0 %1093
  %1095 = vrot.lane.b32.xlu0 %v1001, 16
  %v1096 = vpop.permute.xlu0 %1095
  %1097 = vrot.lane.b32.xlu0 %v1005, 16
  %v1098 = vpop.permute.xlu0 %1097
  %1099 = vrot.lane.b32.xlu0 %v1009, 16
  %v1100 = vpop.permute.xlu0 %1099
  %1101 = vrot.lane.b32.xlu0 %v998, 16
  %v1102 = vpop.permute.xlu0 %1101
  %1103 = vrot.lane.b32.xlu0 %v1002, 16
  %v1104 = vpop.permute.xlu0 %1103
  %1105 = vrot.lane.b32.xlu0 %v1006, 16
  %v1106 = vpop.permute.xlu0 %1105
  %1107 = vrot.lane.b32.xlu0 %v1010, 16
  %v1108 = vpop.permute.xlu0 %1107
  %1109 = vrot.lane.b32.xlu0 %v999, 16
  %v1110 = vpop.permute.xlu0 %1109
  %1111 = vrot.lane.b32.xlu0 %v1003, 16
  %v1112 = vpop.permute.xlu0 %1111
  %1113 = vrot.lane.b32.xlu0 %v1007, 16
  %v1114 = vpop.permute.xlu0 %1113
  %1115 = vrot.lane.b32.xlu0 %v1011, 16
  %v1116 = vpop.permute.xlu0 %1115
  %1117 = vrot.lane.b32.xlu0 %v1000, 16
  %v1118 = vpop.permute.xlu0 %1117
  %1119 = vrot.lane.b32.xlu0 %v1004, 16
  %v1120 = vpop.permute.xlu0 %1119
  %1121 = vrot.lane.b32.xlu0 %v1008, 16
  %v1122 = vpop.permute.xlu0 %1121
  %1123 = vrot.lane.b32.xlu0 %v1012, 16
  %v1124 = vpop.permute.xlu0 %1123
  %v1125 = vsel %vm115, %v1110, %v1118
  %v1126 = vsel %vm115, %v1112, %v1120
  %v1127 = vsel %vm115, %v1114, %v1122
  %v1128 = vsel %vm115, %v1116, %v1124
  %v1129 = vsel %vm115, %v1102, %v1110
  %v1130 = vsel %vm115, %v1104, %v1112
  %v1131 = vsel %vm115, %v1106, %v1114
  %v1132 = vsel %vm115, %v1108, %v1116
  %v1133 = vsel %vm115, %v1094, %v1102
  %v1134 = vsel %vm115, %v1096, %v1104
  %v1135 = vsel %vm115, %v1098, %v1106
  %v1136 = vsel %vm115, %v1100, %v1108
  %v1137 = vsel %vm115, %v1118, %v1094
  %v1138 = vsel %vm115, %v1120, %v1096
  %v1139 = vsel %vm115, %v1122, %v1098
  %v1140 = vsel %vm115, %v1124, %v1100
  %v1141 = vmul.f32 %v1137, %v125
  %v1142 = vmul.f32 %v1133, %v126
  %v1143 = vmul.f32 %v1129, %v127
  %v1144 = vmul.f32 %v1125, %v128
  %v1145 = vmul.f32 %v1138, %v125
  %v1146 = vmul.f32 %v1134, %v126
  %v1147 = vmul.f32 %v1130, %v127
  %v1148 = vmul.f32 %v1126, %v128
  %v1149 = vmul.f32 %v1139, %v125
  %v1150 = vmul.f32 %v1135, %v126
  %v1151 = vmul.f32 %v1131, %v127
  %v1152 = vmul.f32 %v1127, %v128
  %v1153 = vmul.f32 %v1140, %v125
  %v1154 = vmul.f32 %v1136, %v126
  %v1155 = vmul.f32 %v1132, %v127
  %v1156 = vmul.f32 %v1128, %v128
  %v1157 = vpack.c.bf16 %v1142, %v1141
  %v1158 = vpack.c.bf16 %v1144, %v1143
  %v1159 = vpack.c.bf16 %v1146, %v1145
  %v1160 = vpack.c.bf16 %v1148, %v1147
  %v1161 = vpack.c.bf16 %v1150, %v1149
  %v1162 = vpack.c.bf16 %v1152, %v1151
  %v1163 = vpack.c.bf16 %v1154, %v1153
  %v1164 = vpack.c.bf16 %v1156, %v1155
  %1165 = vrot.lane.b32.xlu0 %v997, 15
  %v1166 = vpop.permute.xlu0 %1165
  %1167 = vrot.lane.b32.xlu0 %v1001, 15
  %v1168 = vpop.permute.xlu0 %1167
  %1169 = vrot.lane.b32.xlu0 %v1005, 15
  %v1170 = vpop.permute.xlu0 %1169
  %1171 = vrot.lane.b32.xlu0 %v1009, 15
  %v1172 = vpop.permute.xlu0 %1171
  %1173 = vrot.lane.b32.xlu0 %v998, 15
  %v1174 = vpop.permute.xlu0 %1173
  %1175 = vrot.lane.b32.xlu0 %v1002, 15
  %v1176 = vpop.permute.xlu0 %1175
  %1177 = vrot.lane.b32.xlu0 %v1006, 15
  %v1178 = vpop.permute.xlu0 %1177
  %1179 = vrot.lane.b32.xlu0 %v1010, 15
  %v1180 = vpop.permute.xlu0 %1179
  %1181 = vrot.lane.b32.xlu0 %v999, 15
  %v1182 = vpop.permute.xlu0 %1181
  %1183 = vrot.lane.b32.xlu0 %v1003, 15
  %v1184 = vpop.permute.xlu0 %1183
  %1185 = vrot.lane.b32.xlu0 %v1007, 15
  %v1186 = vpop.permute.xlu0 %1185
  %1187 = vrot.lane.b32.xlu0 %v1011, 15
  %v1188 = vpop.permute.xlu0 %1187
  %1189 = vrot.lane.b32.xlu0 %v1000, 15
  %v1190 = vpop.permute.xlu0 %1189
  %1191 = vrot.lane.b32.xlu0 %v1004, 15
  %v1192 = vpop.permute.xlu0 %1191
  %1193 = vrot.lane.b32.xlu0 %v1008, 15
  %v1194 = vpop.permute.xlu0 %1193
  %1195 = vrot.lane.b32.xlu0 %v1012, 15
  %v1196 = vpop.permute.xlu0 %1195
  %v1197 = vsel %vm161, %v1182, %v1190
  %v1198 = vsel %vm161, %v1184, %v1192
  %v1199 = vsel %vm161, %v1186, %v1194
  %v1200 = vsel %vm161, %v1188, %v1196
  %v1201 = vsel %vm161, %v1174, %v1182
  %v1202 = vsel %vm161, %v1176, %v1184
  %v1203 = vsel %vm161, %v1178, %v1186
  %v1204 = vsel %vm161, %v1180, %v1188
  %v1205 = vsel %vm161, %v1166, %v1174
  %v1206 = vsel %vm161, %v1168, %v1176
  %v1207 = vsel %vm161, %v1170, %v1178
  %v1208 = vsel %vm161, %v1172, %v1180
  %v1209 = vsel %vm161, %v1190, %v1166
  %v1210 = vsel %vm161, %v1192, %v1168
  %v1211 = vsel %vm161, %v1194, %v1170
  %v1212 = vsel %vm161, %v1196, %v1172
  %v1213 = vmul.f32 %v1209, %v171
  %v1214 = vmul.f32 %v1205, %v172
  %v1215 = vmul.f32 %v1201, %v173
  %v1216 = vmul.f32 %v1197, %v174
  %v1217 = vmul.f32 %v1210, %v171
  %v1218 = vmul.f32 %v1206, %v172
  %v1219 = vmul.f32 %v1202, %v173
  %v1220 = vmul.f32 %v1198, %v174
  %v1221 = vmul.f32 %v1211, %v171
  %v1222 = vmul.f32 %v1207, %v172
  %v1223 = vmul.f32 %v1203, %v173
  %v1224 = vmul.f32 %v1199, %v174
  %v1225 = vmul.f32 %v1212, %v171
  %v1226 = vmul.f32 %v1208, %v172
  %v1227 = vmul.f32 %v1204, %v173
  %v1228 = vmul.f32 %v1200, %v174
  %v1229 = vpack.c.bf16 %v1214, %v1213
  %v1230 = vpack.c.bf16 %v1216, %v1215
  %v1231 = vpack.c.bf16 %v1218, %v1217
  %v1232 = vpack.c.bf16 %v1220, %v1219
  %v1233 = vpack.c.bf16 %v1222, %v1221
  %v1234 = vpack.c.bf16 %v1224, %v1223
  %v1235 = vpack.c.bf16 %v1226, %v1225
  %v1236 = vpack.c.bf16 %v1228, %v1227
  %1237 = vrot.lane.b32.xlu0 %v997, 1
  %v1238 = vpop.permute.xlu0 %1237
  %1239 = vrot.lane.b32.xlu0 %v1001, 1
  %v1240 = vpop.permute.xlu0 %1239
  %1241 = vrot.lane.b32.xlu0 %v1005, 1
  %v1242 = vpop.permute.xlu0 %1241
  %1243 = vrot.lane.b32.xlu0 %v1009, 1
  %v1244 = vpop.permute.xlu0 %1243
  %1245 = vrot.lane.b32.xlu0 %v998, 1
  %v1246 = vpop.permute.xlu0 %1245
  %1247 = vrot.lane.b32.xlu0 %v1002, 1
  %v1248 = vpop.permute.xlu0 %1247
  %1249 = vrot.lane.b32.xlu0 %v1006, 1
  %v1250 = vpop.permute.xlu0 %1249
  %1251 = vrot.lane.b32.xlu0 %v1010, 1
  %v1252 = vpop.permute.xlu0 %1251
  %1253 = vrot.lane.b32.xlu0 %v999, 1
  %v1254 = vpop.permute.xlu0 %1253
  %1255 = vrot.lane.b32.xlu0 %v1003, 1
  %v1256 = vpop.permute.xlu0 %1255
  %1257 = vrot.lane.b32.xlu0 %v1007, 1
  %v1258 = vpop.permute.xlu0 %1257
  %1259 = vrot.lane.b32.xlu0 %v1011, 1
  %v1260 = vpop.permute.xlu0 %1259
  %1261 = vrot.lane.b32.xlu0 %v1000, 1
  %v1262 = vpop.permute.xlu0 %1261
  %1263 = vrot.lane.b32.xlu0 %v1004, 1
  %v1264 = vpop.permute.xlu0 %1263
  %1265 = vrot.lane.b32.xlu0 %v1008, 1
  %v1266 = vpop.permute.xlu0 %1265
  %1267 = vrot.lane.b32.xlu0 %v1012, 1
  %v1268 = vpop.permute.xlu0 %1267
  %v1269 = vsel %vm207, %v1254, %v1262
  %v1270 = vsel %vm207, %v1256, %v1264
  %v1271 = vsel %vm207, %v1258, %v1266
  %v1272 = vsel %vm207, %v1260, %v1268
  %v1273 = vsel %vm207, %v1246, %v1254
  %v1274 = vsel %vm207, %v1248, %v1256
  %v1275 = vsel %vm207, %v1250, %v1258
  %v1276 = vsel %vm207, %v1252, %v1260
  %v1277 = vsel %vm207, %v1238, %v1246
  %v1278 = vsel %vm207, %v1240, %v1248
  %v1279 = vsel %vm207, %v1242, %v1250
  %v1280 = vsel %vm207, %v1244, %v1252
  %v1281 = vsel %vm207, %v1262, %v1238
  %v1282 = vsel %vm207, %v1264, %v1240
  %v1283 = vsel %vm207, %v1266, %v1242
  %v1284 = vsel %vm207, %v1268, %v1244
  %v1285 = vmul.f32 %v1281, %v217
  %v1286 = vmul.f32 %v1277, %v218
  %v1287 = vmul.f32 %v1273, %v219
  %v1288 = vmul.f32 %v1269, %v220
  %v1289 = vmul.f32 %v1282, %v217
  %v1290 = vmul.f32 %v1278, %v218
  %v1291 = vmul.f32 %v1274, %v219
  %v1292 = vmul.f32 %v1270, %v220
  %v1293 = vmul.f32 %v1283, %v217
  %v1294 = vmul.f32 %v1279, %v218
  %v1295 = vmul.f32 %v1275, %v219
  %v1296 = vmul.f32 %v1271, %v220
  %v1297 = vmul.f32 %v1284, %v217
  %v1298 = vmul.f32 %v1280, %v218
  %v1299 = vmul.f32 %v1276, %v219
  %v1300 = vmul.f32 %v1272, %v220
  %v1301 = vpack.c.bf16 %v1286, %v1285
  %v1302 = vpack.c.bf16 %v1288, %v1287
  %v1303 = vpack.c.bf16 %v1290, %v1289
  %v1304 = vpack.c.bf16 %v1292, %v1291
  %v1305 = vpack.c.bf16 %v1294, %v1293
  %v1306 = vpack.c.bf16 %v1296, %v1295
  %v1307 = vpack.c.bf16 %v1298, %v1297
  %v1308 = vpack.c.bf16 %v1300, %v1299
  %v1309 = vpack.c.bf16 %v998, %v997
  %v1310 = vpack.c.bf16 %v1000, %v999
  %v1311 = vpack.c.bf16 %v1002, %v1001
  %v1312 = vpack.c.bf16 %v1004, %v1003
  %v1313 = vpack.c.bf16 %v1006, %v1005
  %v1314 = vpack.c.bf16 %v1008, %v1007
  %v1315 = vpack.c.bf16 %v1010, %v1009
  %v1316 = vpack.c.bf16 %v1012, %v1011
  %1317 = vrot.lane.b32.xlu0 %v997, 127
  %v1318 = vpop.permute.xlu0 %1317
  %1319 = vrot.lane.b32.xlu0 %v1001, 127
  %v1320 = vpop.permute.xlu0 %1319
  %1321 = vrot.lane.b32.xlu0 %v1005, 127
  %v1322 = vpop.permute.xlu0 %1321
  %1323 = vrot.lane.b32.xlu0 %v1009, 127
  %v1324 = vpop.permute.xlu0 %1323
  %1325 = vrot.lane.b32.xlu0 %v998, 127
  %v1326 = vpop.permute.xlu0 %1325
  %1327 = vrot.lane.b32.xlu0 %v1002, 127
  %v1328 = vpop.permute.xlu0 %1327
  %1329 = vrot.lane.b32.xlu0 %v1006, 127
  %v1330 = vpop.permute.xlu0 %1329
  %1331 = vrot.lane.b32.xlu0 %v1010, 127
  %v1332 = vpop.permute.xlu0 %1331
  %1333 = vrot.lane.b32.xlu0 %v999, 127
  %v1334 = vpop.permute.xlu0 %1333
  %1335 = vrot.lane.b32.xlu0 %v1003, 127
  %v1336 = vpop.permute.xlu0 %1335
  %1337 = vrot.lane.b32.xlu0 %v1007, 127
  %v1338 = vpop.permute.xlu0 %1337
  %1339 = vrot.lane.b32.xlu0 %v1011, 127
  %v1340 = vpop.permute.xlu0 %1339
  %1341 = vrot.lane.b32.xlu0 %v1000, 127
  %v1342 = vpop.permute.xlu0 %1341
  %1343 = vrot.lane.b32.xlu0 %v1004, 127
  %v1344 = vpop.permute.xlu0 %1343
  %1345 = vrot.lane.b32.xlu0 %v1008, 127
  %v1346 = vpop.permute.xlu0 %1345
  %1347 = vrot.lane.b32.xlu0 %v1012, 127
  %v1348 = vpop.permute.xlu0 %1347
  %v1349 = vsel %vm257, %v1334, %v1342
  %v1350 = vsel %vm257, %v1336, %v1344
  %v1351 = vsel %vm257, %v1338, %v1346
  %v1352 = vsel %vm257, %v1340, %v1348
  %v1353 = vsel %vm257, %v1326, %v1334
  %v1354 = vsel %vm257, %v1328, %v1336
  %v1355 = vsel %vm257, %v1330, %v1338
  %v1356 = vsel %vm257, %v1332, %v1340
  %v1357 = vsel %vm257, %v1318, %v1326
  %v1358 = vsel %vm257, %v1320, %v1328
  %v1359 = vsel %vm257, %v1322, %v1330
  %v1360 = vsel %vm257, %v1324, %v1332
  %v1361 = vsel %vm257, %v1342, %v1318
  %v1362 = vsel %vm257, %v1344, %v1320
  %v1363 = vsel %vm257, %v1346, %v1322
  %v1364 = vsel %vm257, %v1348, %v1324
  %v1365 = vmul.f32 %v1357, %v267
  %v1366 = vmul.f32 %v1353, %v268
  %v1367 = vmul.f32 %v1349, %v269
  %v1368 = vmul.f32 %v1361, %v270
  %v1369 = vmul.f32 %v1358, %v267
  %v1370 = vmul.f32 %v1354, %v268
  %v1371 = vmul.f32 %v1350, %v269
  %v1372 = vmul.f32 %v1362, %v270
  %v1373 = vmul.f32 %v1359, %v267
  %v1374 = vmul.f32 %v1355, %v268
  %v1375 = vmul.f32 %v1351, %v269
  %v1376 = vmul.f32 %v1363, %v270
  %v1377 = vmul.f32 %v1360, %v267
  %v1378 = vmul.f32 %v1356, %v268
  %v1379 = vmul.f32 %v1352, %v269
  %v1380 = vmul.f32 %v1364, %v270
  %v1381 = vpack.c.bf16 %v1366, %v1365
  %v1382 = vpack.c.bf16 %v1368, %v1367
  %v1383 = vpack.c.bf16 %v1370, %v1369
  %v1384 = vpack.c.bf16 %v1372, %v1371
  %v1385 = vpack.c.bf16 %v1374, %v1373
  %v1386 = vpack.c.bf16 %v1376, %v1375
  %v1387 = vpack.c.bf16 %v1378, %v1377
  %v1388 = vpack.c.bf16 %v1380, %v1379
  %1389 = vrot.lane.b32.xlu0 %v997, 113
  %v1390 = vpop.permute.xlu0 %1389
  %1391 = vrot.lane.b32.xlu0 %v1001, 113
  %v1392 = vpop.permute.xlu0 %1391
  %1393 = vrot.lane.b32.xlu0 %v1005, 113
  %v1394 = vpop.permute.xlu0 %1393
  %1395 = vrot.lane.b32.xlu0 %v1009, 113
  %v1396 = vpop.permute.xlu0 %1395
  %1397 = vrot.lane.b32.xlu0 %v998, 113
  %v1398 = vpop.permute.xlu0 %1397
  %1399 = vrot.lane.b32.xlu0 %v1002, 113
  %v1400 = vpop.permute.xlu0 %1399
  %1401 = vrot.lane.b32.xlu0 %v1006, 113
  %v1402 = vpop.permute.xlu0 %1401
  %1403 = vrot.lane.b32.xlu0 %v1010, 113
  %v1404 = vpop.permute.xlu0 %1403
  %1405 = vrot.lane.b32.xlu0 %v999, 113
  %v1406 = vpop.permute.xlu0 %1405
  %1407 = vrot.lane.b32.xlu0 %v1003, 113
  %v1408 = vpop.permute.xlu0 %1407
  %1409 = vrot.lane.b32.xlu0 %v1007, 113
  %v1410 = vpop.permute.xlu0 %1409
  %1411 = vrot.lane.b32.xlu0 %v1011, 113
  %v1412 = vpop.permute.xlu0 %1411
  %1413 = vrot.lane.b32.xlu0 %v1000, 113
  %v1414 = vpop.permute.xlu0 %1413
  %1415 = vrot.lane.b32.xlu0 %v1004, 113
  %v1416 = vpop.permute.xlu0 %1415
  %1417 = vrot.lane.b32.xlu0 %v1008, 113
  %v1418 = vpop.permute.xlu0 %1417
  %1419 = vrot.lane.b32.xlu0 %v1012, 113
  %v1420 = vpop.permute.xlu0 %1419
  %v1421 = vsel %vm303, %v1406, %v1414
  %v1422 = vsel %vm303, %v1408, %v1416
  %v1423 = vsel %vm303, %v1410, %v1418
  %v1424 = vsel %vm303, %v1412, %v1420
  %v1425 = vsel %vm303, %v1398, %v1406
  %v1426 = vsel %vm303, %v1400, %v1408
  %v1427 = vsel %vm303, %v1402, %v1410
  %v1428 = vsel %vm303, %v1404, %v1412
  %v1429 = vsel %vm303, %v1390, %v1398
  %v1430 = vsel %vm303, %v1392, %v1400
  %v1431 = vsel %vm303, %v1394, %v1402
  %v1432 = vsel %vm303, %v1396, %v1404
  %v1433 = vsel %vm303, %v1414, %v1390
  %v1434 = vsel %vm303, %v1416, %v1392
  %v1435 = vsel %vm303, %v1418, %v1394
  %v1436 = vsel %vm303, %v1420, %v1396
  %v1437 = vmul.f32 %v1429, %v313
  %v1438 = vmul.f32 %v1425, %v314
  %v1439 = vmul.f32 %v1421, %v315
  %v1440 = vmul.f32 %v1433, %v316
  %v1441 = vmul.f32 %v1430, %v313
  %v1442 = vmul.f32 %v1426, %v314
  %v1443 = vmul.f32 %v1422, %v315
  %v1444 = vmul.f32 %v1434, %v316
  %v1445 = vmul.f32 %v1431, %v313
  %v1446 = vmul.f32 %v1427, %v314
  %v1447 = vmul.f32 %v1423, %v315
  %v1448 = vmul.f32 %v1435, %v316
  %v1449 = vmul.f32 %v1432, %v313
  %v1450 = vmul.f32 %v1428, %v314
  %v1451 = vmul.f32 %v1424, %v315
  %v1452 = vmul.f32 %v1436, %v316
  %v1453 = vpack.c.bf16 %v1438, %v1437
  %v1454 = vpack.c.bf16 %v1440, %v1439
  %v1455 = vpack.c.bf16 %v1442, %v1441
  %v1456 = vpack.c.bf16 %v1444, %v1443
  %v1457 = vpack.c.bf16 %v1446, %v1445
  %v1458 = vpack.c.bf16 %v1448, %v1447
  %v1459 = vpack.c.bf16 %v1450, %v1449
  %v1460 = vpack.c.bf16 %v1452, %v1451
  %1461 = vrot.lane.b32.xlu0 %v997, 112
  %v1462 = vpop.permute.xlu0 %1461
  %1463 = vrot.lane.b32.xlu0 %v1001, 112
  %v1464 = vpop.permute.xlu0 %1463
  %1465 = vrot.lane.b32.xlu0 %v1005, 112
  %v1466 = vpop.permute.xlu0 %1465
  %1467 = vrot.lane.b32.xlu0 %v1009, 112
  %v1468 = vpop.permute.xlu0 %1467
  %1469 = vrot.lane.b32.xlu0 %v998, 112
  %v1470 = vpop.permute.xlu0 %1469
  %1471 = vrot.lane.b32.xlu0 %v1002, 112
  %v1472 = vpop.permute.xlu0 %1471
  %1473 = vrot.lane.b32.xlu0 %v1006, 112
  %v1474 = vpop.permute.xlu0 %1473
  %1475 = vrot.lane.b32.xlu0 %v1010, 112
  %v1476 = vpop.permute.xlu0 %1475
  %1477 = vrot.lane.b32.xlu0 %v999, 112
  %v1478 = vpop.permute.xlu0 %1477
  %1479 = vrot.lane.b32.xlu0 %v1003, 112
  %v1480 = vpop.permute.xlu0 %1479
  %1481 = vrot.lane.b32.xlu0 %v1007, 112
  %v1482 = vpop.permute.xlu0 %1481
  %1483 = vrot.lane.b32.xlu0 %v1011, 112
  %v1484 = vpop.permute.xlu0 %1483
  %1485 = vrot.lane.b32.xlu0 %v1000, 112
  %v1486 = vpop.permute.xlu0 %1485
  %1487 = vrot.lane.b32.xlu0 %v1004, 112
  %v1488 = vpop.permute.xlu0 %1487
  %1489 = vrot.lane.b32.xlu0 %v1008, 112
  %v1490 = vpop.permute.xlu0 %1489
  %1491 = vrot.lane.b32.xlu0 %v1012, 112
  %v1492 = vpop.permute.xlu0 %1491
  %v1493 = vsel %vm349, %v1478, %v1486
  %v1494 = vsel %vm349, %v1480, %v1488
  %v1495 = vsel %vm349, %v1482, %v1490
  %v1496 = vsel %vm349, %v1484, %v1492
  %v1497 = vsel %vm349, %v1470, %v1478
  %v1498 = vsel %vm349, %v1472, %v1480
  %v1499 = vsel %vm349, %v1474, %v1482
  %v1500 = vsel %vm349, %v1476, %v1484
  %v1501 = vsel %vm349, %v1462, %v1470
  %v1502 = vsel %vm349, %v1464, %v1472
  %v1503 = vsel %vm349, %v1466, %v1474
  %v1504 = vsel %vm349, %v1468, %v1476
  %v1505 = vsel %vm349, %v1486, %v1462
  %v1506 = vsel %vm349, %v1488, %v1464
  %v1507 = vsel %vm349, %v1490, %v1466
  %v1508 = vsel %vm349, %v1492, %v1468
  %v1509 = vmul.f32 %v1501, %v359
  %v1510 = vmul.f32 %v1497, %v360
  %v1511 = vmul.f32 %v1493, %v361
  %v1512 = vmul.f32 %v1505, %v362
  %v1513 = vmul.f32 %v1502, %v359
  %v1514 = vmul.f32 %v1498, %v360
  %v1515 = vmul.f32 %v1494, %v361
  %v1516 = vmul.f32 %v1506, %v362
  %v1517 = vmul.f32 %v1503, %v359
  %v1518 = vmul.f32 %v1499, %v360
  %v1519 = vmul.f32 %v1495, %v361
  %v1520 = vmul.f32 %v1507, %v362
  %v1521 = vmul.f32 %v1504, %v359
  %v1522 = vmul.f32 %v1500, %v360
  %v1523 = vmul.f32 %v1496, %v361
  %v1524 = vmul.f32 %v1508, %v362
  %v1525 = vpack.c.bf16 %v1510, %v1509
  %v1526 = vpack.c.bf16 %v1512, %v1511
  %v1527 = vpack.c.bf16 %v1514, %v1513
  %v1528 = vpack.c.bf16 %v1516, %v1515
  %v1529 = vpack.c.bf16 %v1518, %v1517
  %v1530 = vpack.c.bf16 %v1520, %v1519
  %v1531 = vpack.c.bf16 %v1522, %v1521
  %v1532 = vpack.c.bf16 %v1524, %v1523
  %1533 = vrot.lane.b32.xlu0 %v997, 111
  %v1534 = vpop.permute.xlu0 %1533
  %1535 = vrot.lane.b32.xlu0 %v1001, 111
  %v1536 = vpop.permute.xlu0 %1535
  %1537 = vrot.lane.b32.xlu0 %v1005, 111
  %v1538 = vpop.permute.xlu0 %1537
  %1539 = vrot.lane.b32.xlu0 %v1009, 111
  %v1540 = vpop.permute.xlu0 %1539
  %1541 = vrot.lane.b32.xlu0 %v998, 111
  %v1542 = vpop.permute.xlu0 %1541
  %1543 = vrot.lane.b32.xlu0 %v1002, 111
  %v1544 = vpop.permute.xlu0 %1543
  %1545 = vrot.lane.b32.xlu0 %v1006, 111
  %v1546 = vpop.permute.xlu0 %1545
  %1547 = vrot.lane.b32.xlu0 %v1010, 111
  %v1548 = vpop.permute.xlu0 %1547
  %1549 = vrot.lane.b32.xlu0 %v999, 111
  %v1550 = vpop.permute.xlu0 %1549
  %1551 = vrot.lane.b32.xlu0 %v1003, 111
  %v1552 = vpop.permute.xlu0 %1551
  %1553 = vrot.lane.b32.xlu0 %v1007, 111
  %v1554 = vpop.permute.xlu0 %1553
  %1555 = vrot.lane.b32.xlu0 %v1011, 111
  %v1556 = vpop.permute.xlu0 %1555
  %1557 = vrot.lane.b32.xlu0 %v1000, 111
  %v1558 = vpop.permute.xlu0 %1557
  %1559 = vrot.lane.b32.xlu0 %v1004, 111
  %v1560 = vpop.permute.xlu0 %1559
  %1561 = vrot.lane.b32.xlu0 %v1008, 111
  %v1562 = vpop.permute.xlu0 %1561
  %1563 = vrot.lane.b32.xlu0 %v1012, 111
  %v1564 = vpop.permute.xlu0 %1563
  %v1565 = vsel %vm395, %v1550, %v1558
  %v1566 = vsel %vm395, %v1552, %v1560
  %v1567 = vsel %vm395, %v1554, %v1562
  %v1568 = vsel %vm395, %v1556, %v1564
  %v1569 = vsel %vm395, %v1542, %v1550
  %v1570 = vsel %vm395, %v1544, %v1552
  %v1571 = vsel %vm395, %v1546, %v1554
  %v1572 = vsel %vm395, %v1548, %v1556
  %v1573 = vsel %vm395, %v1534, %v1542
  %v1574 = vsel %vm395, %v1536, %v1544
  %v1575 = vsel %vm395, %v1538, %v1546
  %v1576 = vsel %vm395, %v1540, %v1548
  %v1577 = vsel %vm395, %v1558, %v1534
  %v1578 = vsel %vm395, %v1560, %v1536
  %v1579 = vsel %vm395, %v1562, %v1538
  %v1580 = vsel %vm395, %v1564, %v1540
  %v1581 = vmul.f32 %v1573, %v405
  %v1582 = vmul.f32 %v1569, %v406
  %v1583 = vmul.f32 %v1565, %v407
  %v1584 = vmul.f32 %v1577, %v408
  %v1585 = vmul.f32 %v1574, %v405
  %v1586 = vmul.f32 %v1570, %v406
  %v1587 = vmul.f32 %v1566, %v407
  %v1588 = vmul.f32 %v1578, %v408
  %v1589 = vmul.f32 %v1575, %v405
  %v1590 = vmul.f32 %v1571, %v406
  %v1591 = vmul.f32 %v1567, %v407
  %v1592 = vmul.f32 %v1579, %v408
  %v1593 = vmul.f32 %v1576, %v405
  %v1594 = vmul.f32 %v1572, %v406
  %v1595 = vmul.f32 %v1568, %v407
  %v1596 = vmul.f32 %v1580, %v408
  %v1597 = vpack.c.bf16 %v1582, %v1581
  %v1598 = vpack.c.bf16 %v1584, %v1583
  %v1599 = vpack.c.bf16 %v1586, %v1585
  %v1600 = vpack.c.bf16 %v1588, %v1587
  %v1601 = vpack.c.bf16 %v1590, %v1589
  %v1602 = vpack.c.bf16 %v1592, %v1591
  %v1603 = vpack.c.bf16 %v1594, %v1593
  %v1604 = vpack.c.bf16 %v1596, %v1595
  %v1613 = vunpack.c.l.b16 %v1085
  %v1614 = vunpack.c.h.b16 %v1085
  %v1615 = vunpack.c.l.b16 %v1086
  %v1616 = vunpack.c.h.b16 %v1086
  %v1617 = vunpack.c.l.b16 %v1087
  %v1618 = vunpack.c.h.b16 %v1087
  %v1619 = vunpack.c.l.b16 %v1088
  %v1620 = vunpack.c.h.b16 %v1088
  %v1621 = vunpack.c.l.b16 %v1089
  %v1622 = vunpack.c.h.b16 %v1089
  %v1623 = vunpack.c.l.b16 %v1090
  %v1624 = vunpack.c.h.b16 %v1090
  %v1625 = vunpack.c.l.b16 %v1091
  %v1626 = vunpack.c.h.b16 %v1091
  %v1627 = vunpack.c.l.b16 %v1092
  %v1628 = vunpack.c.h.b16 %v1092
  %v1629 = vpack.c.b16 %v1617, %v1613
  %v1630 = vpack.c.b16 %v1618, %v1614
  %v1631 = vpack.c.b16 %v1619, %v1615
  %v1632 = vpack.c.b16 %v1620, %v1616
  %v1633 = vpack.c.b16 %v1625, %v1621
  %v1634 = vpack.c.b16 %v1626, %v1622
  %v1635 = vpack.c.b16 %v1627, %v1623
  %v1636 = vpack.c.b16 %v1628, %v1624
  %v1653 = vunpack.c.l.b16 %v1157
  %v1654 = vunpack.c.h.b16 %v1157
  %v1655 = vunpack.c.l.b16 %v1158
  %v1656 = vunpack.c.h.b16 %v1158
  %v1657 = vunpack.c.l.b16 %v1159
  %v1658 = vunpack.c.h.b16 %v1159
  %v1659 = vunpack.c.l.b16 %v1160
  %v1660 = vunpack.c.h.b16 %v1160
  %v1661 = vunpack.c.l.b16 %v1161
  %v1662 = vunpack.c.h.b16 %v1161
  %v1663 = vunpack.c.l.b16 %v1162
  %v1664 = vunpack.c.h.b16 %v1162
  %v1665 = vunpack.c.l.b16 %v1163
  %v1666 = vunpack.c.h.b16 %v1163
  %v1667 = vunpack.c.l.b16 %v1164
  %v1668 = vunpack.c.h.b16 %v1164
  %v1669 = vpack.c.b16 %v1657, %v1653
  %v1670 = vpack.c.b16 %v1658, %v1654
  %v1671 = vpack.c.b16 %v1659, %v1655
  %v1672 = vpack.c.b16 %v1660, %v1656
  %v1673 = vpack.c.b16 %v1665, %v1661
  %v1674 = vpack.c.b16 %v1666, %v1662
  %v1675 = vpack.c.b16 %v1667, %v1663
  %v1676 = vpack.c.b16 %v1668, %v1664
  %v1693 = vunpack.c.l.b16 %v1229
  %v1694 = vunpack.c.h.b16 %v1229
  %v1695 = vunpack.c.l.b16 %v1230
  %v1696 = vunpack.c.h.b16 %v1230
  %v1697 = vunpack.c.l.b16 %v1231
  %v1698 = vunpack.c.h.b16 %v1231
  %v1699 = vunpack.c.l.b16 %v1232
  %v1700 = vunpack.c.h.b16 %v1232
  %v1701 = vunpack.c.l.b16 %v1233
  %v1702 = vunpack.c.h.b16 %v1233
  %v1703 = vunpack.c.l.b16 %v1234
  %v1704 = vunpack.c.h.b16 %v1234
  %v1705 = vunpack.c.l.b16 %v1235
  %v1706 = vunpack.c.h.b16 %v1235
  %v1707 = vunpack.c.l.b16 %v1236
  %v1708 = vunpack.c.h.b16 %v1236
  %v1709 = vpack.c.b16 %v1697, %v1693
  %v1710 = vpack.c.b16 %v1698, %v1694
  %v1711 = vpack.c.b16 %v1699, %v1695
  %v1712 = vpack.c.b16 %v1700, %v1696
  %v1713 = vpack.c.b16 %v1705, %v1701
  %v1714 = vpack.c.b16 %v1706, %v1702
  %v1715 = vpack.c.b16 %v1707, %v1703
  %v1716 = vpack.c.b16 %v1708, %v1704
  %v1733 = vunpack.c.l.b16 %v1301
  %v1734 = vunpack.c.h.b16 %v1301
  %v1735 = vunpack.c.l.b16 %v1302
  %v1736 = vunpack.c.h.b16 %v1302
  %v1737 = vunpack.c.l.b16 %v1303
  %v1738 = vunpack.c.h.b16 %v1303
  %v1739 = vunpack.c.l.b16 %v1304
  %v1740 = vunpack.c.h.b16 %v1304
  %v1741 = vunpack.c.l.b16 %v1305
  %v1742 = vunpack.c.h.b16 %v1305
  %v1743 = vunpack.c.l.b16 %v1306
  %v1744 = vunpack.c.h.b16 %v1306
  %v1745 = vunpack.c.l.b16 %v1307
  %v1746 = vunpack.c.h.b16 %v1307
  %v1747 = vunpack.c.l.b16 %v1308
  %v1748 = vunpack.c.h.b16 %v1308
  %v1749 = vpack.c.b16 %v1737, %v1733
  %v1750 = vpack.c.b16 %v1738, %v1734
  %v1751 = vpack.c.b16 %v1739, %v1735
  %v1752 = vpack.c.b16 %v1740, %v1736
  %v1753 = vpack.c.b16 %v1745, %v1741
  %v1754 = vpack.c.b16 %v1746, %v1742
  %v1755 = vpack.c.b16 %v1747, %v1743
  %v1756 = vpack.c.b16 %v1748, %v1744
  %v1773 = vunpack.c.l.b16 %v1309
  %v1774 = vunpack.c.h.b16 %v1309
  %v1775 = vunpack.c.l.b16 %v1310
  %v1776 = vunpack.c.h.b16 %v1310
  %v1777 = vunpack.c.l.b16 %v1311
  %v1778 = vunpack.c.h.b16 %v1311
  %v1779 = vunpack.c.l.b16 %v1312
  %v1780 = vunpack.c.h.b16 %v1312
  %v1781 = vunpack.c.l.b16 %v1313
  %v1782 = vunpack.c.h.b16 %v1313
  %v1783 = vunpack.c.l.b16 %v1314
  %v1784 = vunpack.c.h.b16 %v1314
  %v1785 = vunpack.c.l.b16 %v1315
  %v1786 = vunpack.c.h.b16 %v1315
  %v1787 = vunpack.c.l.b16 %v1316
  %v1788 = vunpack.c.h.b16 %v1316
  %v1789 = vpack.c.b16 %v1777, %v1773
  %v1790 = vpack.c.b16 %v1778, %v1774
  %v1791 = vpack.c.b16 %v1779, %v1775
  %v1792 = vpack.c.b16 %v1780, %v1776
  %v1793 = vpack.c.b16 %v1785, %v1781
  %v1794 = vpack.c.b16 %v1786, %v1782
  %v1795 = vpack.c.b16 %v1787, %v1783
  %v1796 = vpack.c.b16 %v1788, %v1784
  %v1813 = vunpack.c.l.b16 %v1381
  %v1814 = vunpack.c.h.b16 %v1381
  %v1815 = vunpack.c.l.b16 %v1382
  %v1816 = vunpack.c.h.b16 %v1382
  %v1817 = vunpack.c.l.b16 %v1383
  %v1818 = vunpack.c.h.b16 %v1383
  %v1819 = vunpack.c.l.b16 %v1384
  %v1820 = vunpack.c.h.b16 %v1384
  %v1821 = vunpack.c.l.b16 %v1385
  %v1822 = vunpack.c.h.b16 %v1385
  %v1823 = vunpack.c.l.b16 %v1386
  %v1824 = vunpack.c.h.b16 %v1386
  %v1825 = vunpack.c.l.b16 %v1387
  %v1826 = vunpack.c.h.b16 %v1387
  %v1827 = vunpack.c.l.b16 %v1388
  %v1828 = vunpack.c.h.b16 %v1388
  %v1829 = vpack.c.b16 %v1817, %v1813
  %v1830 = vpack.c.b16 %v1818, %v1814
  %v1831 = vpack.c.b16 %v1819, %v1815
  %v1832 = vpack.c.b16 %v1820, %v1816
  %v1833 = vpack.c.b16 %v1825, %v1821
  %v1834 = vpack.c.b16 %v1826, %v1822
  %v1835 = vpack.c.b16 %v1827, %v1823
  %v1836 = vpack.c.b16 %v1828, %v1824
  %v1853 = vunpack.c.l.b16 %v1453
  %v1854 = vunpack.c.h.b16 %v1453
  %v1855 = vunpack.c.l.b16 %v1454
  %v1856 = vunpack.c.h.b16 %v1454
  %v1857 = vunpack.c.l.b16 %v1455
  %v1858 = vunpack.c.h.b16 %v1455
  %v1859 = vunpack.c.l.b16 %v1456
  %v1860 = vunpack.c.h.b16 %v1456
  %v1861 = vunpack.c.l.b16 %v1457
  %v1862 = vunpack.c.h.b16 %v1457
  %v1863 = vunpack.c.l.b16 %v1458
  %v1864 = vunpack.c.h.b16 %v1458
  %v1865 = vunpack.c.l.b16 %v1459
  %v1866 = vunpack.c.h.b16 %v1459
  %v1867 = vunpack.c.l.b16 %v1460
  %v1868 = vunpack.c.h.b16 %v1460
  %v1869 = vpack.c.b16 %v1857, %v1853
  %v1870 = vpack.c.b16 %v1858, %v1854
  %v1871 = vpack.c.b16 %v1859, %v1855
  %v1872 = vpack.c.b16 %v1860, %v1856
  %v1873 = vpack.c.b16 %v1865, %v1861
  %v1874 = vpack.c.b16 %v1866, %v1862
  %v1875 = vpack.c.b16 %v1867, %v1863
  %v1876 = vpack.c.b16 %v1868, %v1864
  %v1893 = vunpack.c.l.b16 %v1525
  %v1894 = vunpack.c.h.b16 %v1525
  %v1895 = vunpack.c.l.b16 %v1526
  %v1896 = vunpack.c.h.b16 %v1526
  %v1897 = vunpack.c.l.b16 %v1527
  %v1898 = vunpack.c.h.b16 %v1527
  %v1899 = vunpack.c.l.b16 %v1528
  %v1900 = vunpack.c.h.b16 %v1528
  %v1901 = vunpack.c.l.b16 %v1529
  %v1902 = vunpack.c.h.b16 %v1529
  %v1903 = vunpack.c.l.b16 %v1530
  %v1904 = vunpack.c.h.b16 %v1530
  %v1905 = vunpack.c.l.b16 %v1531
  %v1906 = vunpack.c.h.b16 %v1531
  %v1907 = vunpack.c.l.b16 %v1532
  %v1908 = vunpack.c.h.b16 %v1532
  %v1909 = vpack.c.b16 %v1897, %v1893
  %v1910 = vpack.c.b16 %v1898, %v1894
  %v1911 = vpack.c.b16 %v1899, %v1895
  %v1912 = vpack.c.b16 %v1900, %v1896
  %v1913 = vpack.c.b16 %v1905, %v1901
  %v1914 = vpack.c.b16 %v1906, %v1902
  %v1915 = vpack.c.b16 %v1907, %v1903
  %v1916 = vpack.c.b16 %v1908, %v1904
  %v1933 = vunpack.c.l.b16 %v1597
  %v1934 = vunpack.c.h.b16 %v1597
  %v1935 = vunpack.c.l.b16 %v1598
  %v1936 = vunpack.c.h.b16 %v1598
  %v1937 = vunpack.c.l.b16 %v1599
  %v1938 = vunpack.c.h.b16 %v1599
  %v1939 = vunpack.c.l.b16 %v1600
  %v1940 = vunpack.c.h.b16 %v1600
  %v1941 = vunpack.c.l.b16 %v1601
  %v1942 = vunpack.c.h.b16 %v1601
  %v1943 = vunpack.c.l.b16 %v1602
  %v1944 = vunpack.c.h.b16 %v1602
  %v1945 = vunpack.c.l.b16 %v1603
  %v1946 = vunpack.c.h.b16 %v1603
  %v1947 = vunpack.c.l.b16 %v1604
  %v1948 = vunpack.c.h.b16 %v1604
  %v1949 = vpack.c.b16 %v1937, %v1933
  %v1950 = vpack.c.b16 %v1938, %v1934
  %v1951 = vpack.c.b16 %v1939, %v1935
  %v1952 = vpack.c.b16 %v1940, %v1936
  %v1953 = vpack.c.b16 %v1945, %v1941
  %v1954 = vpack.c.b16 %v1946, %v1942
  %v1955 = vpack.c.b16 %v1947, %v1943
  %v1956 = vpack.c.b16 %v1948, %v1944
  %v1973 = vunpack.c.l.b16 %v1013
  %v1974 = vunpack.c.h.b16 %v1013
  %v1975 = vunpack.c.l.b16 %v1014
  %v1976 = vunpack.c.l.b16 %v1015
  %v1977 = vunpack.c.h.b16 %v1015
  %v1978 = vunpack.c.l.b16 %v1016
  %v1979 = vunpack.c.l.b16 %v1017
  %v1980 = vunpack.c.h.b16 %v1017
  %v1981 = vunpack.c.l.b16 %v1018
  %v1982 = vunpack.c.l.b16 %v1019
  %v1983 = vunpack.c.h.b16 %v1019
  %v1984 = vunpack.c.l.b16 %v1020
  %v1985 = vpack.c.b16 %v1976, %v1973
  %v1986 = vpack.c.b16 %v1977, %v1974
  %v1987 = vpack.c.b16 %v1978, %v1975
  %v1988 = vpack.c.b16 %v1982, %v1979
  %v1989 = vpack.c.b16 %v1983, %v1980
  %v1990 = vpack.c.b16 %v1984, %v1981
  %vm1995 = vcmask 261120
  %v1997 = vsel %vm1995, %v1987, 0
  %v2000 = vsel %vm1995, %v1990, 0
  %2002 = vmatpush.bf16.msra.mxu0 %v1753
  %2003 = vmatpush.bf16.msra.mxu0 %v1749
  %2004 = vmatpush.bf16.msra.mxu0 %v1713
  %2005 = vmatpush.bf16.msra.mxu0 %v1709
  %2006 = vmatpush.bf16.msra.mxu0 %v1673
  %2007 = vmatpush.bf16.msra.mxu0 %v1669
  %2008 = vmatpush.bf16.msra.mxu0 %v1633
  %2009 = vmatpush.bf16.msra.mxu0 %v1629
  %2010 = vmatmul.bf16.gmra.mxu0 %v1985
  %v2011 = vpop.f32.mrf.mxu0
  %v2012 = vadd.f32 0.0, %v2011
  %v2013 = vpop.f32.mrf.mxu0
  %v2014 = vadd.f32 0.0, %v2013
  %2015 = vmatmul.bf16.gmra.mxu0 %v1988
  %v2016 = vpop.f32.mrf.mxu0
  %v2017 = vadd.f32 0.0, %v2016
  %v2018 = vpop.f32.mrf.mxu0
  %v2019 = vadd.f32 0.0, %v2018
  %2020 = vdwg.mxu0
  %2021 = vmatpush.bf16.msra.mxu0 %v1913
  %2022 = vmatpush.bf16.msra.mxu0 %v1909
  %2023 = vmatpush.bf16.msra.mxu0 %v1873
  %2024 = vmatpush.bf16.msra.mxu0 %v1869
  %2025 = vmatpush.bf16.msra.mxu0 %v1833
  %2026 = vmatpush.bf16.msra.mxu0 %v1829
  %2027 = vmatpush.bf16.msra.mxu0 %v1793
  %2028 = vmatpush.bf16.msra.mxu0 %v1789
  %2029 = vmatmul.bf16.gmra.mxu0 %v1986
  %v2030 = vpop.f32.mrf.mxu0
  %v2031 = vadd.f32 %v2012, %v2030
  %v2032 = vpop.f32.mrf.mxu0
  %v2033 = vadd.f32 %v2014, %v2032
  %2034 = vmatmul.bf16.gmra.mxu0 %v1989
  %v2035 = vpop.f32.mrf.mxu0
  %v2036 = vadd.f32 %v2017, %v2035
  %v2037 = vpop.f32.mrf.mxu0
  %v2038 = vadd.f32 %v2019, %v2037
  %2039 = vdwg.mxu0
  %2040 = vmatpush.bf16.msra.mxu0 0
  %2041 = vmatpush.bf16.msra.mxu0 0
  %2042 = vmatpush.bf16.msra.mxu0 0
  %2043 = vmatpush.bf16.msra.mxu0 0
  %2044 = vmatpush.bf16.msra.mxu0 0
  %2045 = vmatpush.bf16.msra.mxu0 0
  %2046 = vmatpush.bf16.msra.mxu0 %v1953
  %2047 = vmatpush.bf16.msra.mxu0 %v1949
  %2048 = vmatmul.bf16.gmra.mxu0 %v1997
  %v2049 = vpop.f32.mrf.mxu0
  %v2050 = vadd.f32 %v2031, %v2049
  %v2051 = vpop.f32.mrf.mxu0
  %v2052 = vadd.f32 %v2033, %v2051
  %2053 = vmatmul.bf16.gmra.mxu0 %v2000
  %v2054 = vpop.f32.mrf.mxu0
  %v2055 = vadd.f32 %v2036, %v2054
  %v2056 = vpop.f32.mrf.mxu0
  %v2057 = vadd.f32 %v2038, %v2056
  %2058 = vdwg.mxu0
  %2059 = vmatpush.bf16.msra.mxu0 %v1754
  %2060 = vmatpush.bf16.msra.mxu0 %v1750
  %2061 = vmatpush.bf16.msra.mxu0 %v1714
  %2062 = vmatpush.bf16.msra.mxu0 %v1710
  %2063 = vmatpush.bf16.msra.mxu0 %v1674
  %2064 = vmatpush.bf16.msra.mxu0 %v1670
  %2065 = vmatpush.bf16.msra.mxu0 %v1634
  %2066 = vmatpush.bf16.msra.mxu0 %v1630
  %2067 = vmatmul.bf16.gmra.mxu0 %v1985
  %v2068 = vpop.f32.mrf.mxu0
  %v2069 = vadd.f32 0.0, %v2068
  %v2070 = vpop.f32.mrf.mxu0
  %v2071 = vadd.f32 0.0, %v2070
  %2072 = vmatmul.bf16.gmra.mxu0 %v1988
  %v2073 = vpop.f32.mrf.mxu0
  %v2074 = vadd.f32 0.0, %v2073
  %v2075 = vpop.f32.mrf.mxu0
  %v2076 = vadd.f32 0.0, %v2075
  %2077 = vdwg.mxu0
  %2078 = vmatpush.bf16.msra.mxu0 %v1914
  %2079 = vmatpush.bf16.msra.mxu0 %v1910
  %2080 = vmatpush.bf16.msra.mxu0 %v1874
  %2081 = vmatpush.bf16.msra.mxu0 %v1870
  %2082 = vmatpush.bf16.msra.mxu0 %v1834
  %2083 = vmatpush.bf16.msra.mxu0 %v1830
  %2084 = vmatpush.bf16.msra.mxu0 %v1794
  %2085 = vmatpush.bf16.msra.mxu0 %v1790
  %2086 = vmatmul.bf16.gmra.mxu0 %v1986
  %v2087 = vpop.f32.mrf.mxu0
  %v2088 = vadd.f32 %v2069, %v2087
  %v2089 = vpop.f32.mrf.mxu0
  %v2090 = vadd.f32 %v2071, %v2089
  %2091 = vmatmul.bf16.gmra.mxu0 %v1989
  %v2092 = vpop.f32.mrf.mxu0
  %v2093 = vadd.f32 %v2074, %v2092
  %v2094 = vpop.f32.mrf.mxu0
  %v2095 = vadd.f32 %v2076, %v2094
  %2096 = vdwg.mxu0
  %2097 = vmatpush.bf16.msra.mxu0 0
  %2098 = vmatpush.bf16.msra.mxu0 0
  %2099 = vmatpush.bf16.msra.mxu0 0
  %2100 = vmatpush.bf16.msra.mxu0 0
  %2101 = vmatpush.bf16.msra.mxu0 0
  %2102 = vmatpush.bf16.msra.mxu0 0
  %2103 = vmatpush.bf16.msra.mxu0 %v1954
  %2104 = vmatpush.bf16.msra.mxu0 %v1950
  %2105 = vmatmul.bf16.gmra.mxu0 %v1997
  %v2106 = vpop.f32.mrf.mxu0
  %v2107 = vadd.f32 %v2088, %v2106
  %v2108 = vpop.f32.mrf.mxu0
  %v2109 = vadd.f32 %v2090, %v2108
  %2110 = vmatmul.bf16.gmra.mxu0 %v2000
  %v2111 = vpop.f32.mrf.mxu0
  %v2112 = vadd.f32 %v2093, %v2111
  %v2113 = vpop.f32.mrf.mxu0
  %v2114 = vadd.f32 %v2095, %v2113
  %2115 = vdwg.mxu0
  %2116 = vmatpush.bf16.msra.mxu0 %v1755
  %2117 = vmatpush.bf16.msra.mxu0 %v1751
  %2118 = vmatpush.bf16.msra.mxu0 %v1715
  %2119 = vmatpush.bf16.msra.mxu0 %v1711
  %2120 = vmatpush.bf16.msra.mxu0 %v1675
  %2121 = vmatpush.bf16.msra.mxu0 %v1671
  %2122 = vmatpush.bf16.msra.mxu0 %v1635
  %2123 = vmatpush.bf16.msra.mxu0 %v1631
  %2124 = vmatmul.bf16.gmra.mxu0 %v1985
  %v2125 = vpop.f32.mrf.mxu0
  %v2126 = vadd.f32 0.0, %v2125
  %v2127 = vpop.f32.mrf.mxu0
  %v2128 = vadd.f32 0.0, %v2127
  %2129 = vmatmul.bf16.gmra.mxu0 %v1988
  %v2130 = vpop.f32.mrf.mxu0
  %v2131 = vadd.f32 0.0, %v2130
  %v2132 = vpop.f32.mrf.mxu0
  %v2133 = vadd.f32 0.0, %v2132
  %2134 = vdwg.mxu0
  %2135 = vmatpush.bf16.msra.mxu0 %v1915
  %2136 = vmatpush.bf16.msra.mxu0 %v1911
  %2137 = vmatpush.bf16.msra.mxu0 %v1875
  %2138 = vmatpush.bf16.msra.mxu0 %v1871
  %2139 = vmatpush.bf16.msra.mxu0 %v1835
  %2140 = vmatpush.bf16.msra.mxu0 %v1831
  %2141 = vmatpush.bf16.msra.mxu0 %v1795
  %2142 = vmatpush.bf16.msra.mxu0 %v1791
  %2143 = vmatmul.bf16.gmra.mxu0 %v1986
  %v2144 = vpop.f32.mrf.mxu0
  %v2145 = vadd.f32 %v2126, %v2144
  %v2146 = vpop.f32.mrf.mxu0
  %v2147 = vadd.f32 %v2128, %v2146
  %2148 = vmatmul.bf16.gmra.mxu0 %v1989
  %v2149 = vpop.f32.mrf.mxu0
  %v2150 = vadd.f32 %v2131, %v2149
  %v2151 = vpop.f32.mrf.mxu0
  %v2152 = vadd.f32 %v2133, %v2151
  %2153 = vdwg.mxu0
  %2154 = vmatpush.bf16.msra.mxu0 0
  %2155 = vmatpush.bf16.msra.mxu0 0
  %2156 = vmatpush.bf16.msra.mxu0 0
  %2157 = vmatpush.bf16.msra.mxu0 0
  %2158 = vmatpush.bf16.msra.mxu0 0
  %2159 = vmatpush.bf16.msra.mxu0 0
  %2160 = vmatpush.bf16.msra.mxu0 %v1955
  %2161 = vmatpush.bf16.msra.mxu0 %v1951
  %2162 = vmatmul.bf16.gmra.mxu0 %v1997
  %v2163 = vpop.f32.mrf.mxu0
  %v2164 = vadd.f32 %v2145, %v2163
  %v2165 = vpop.f32.mrf.mxu0
  %v2166 = vadd.f32 %v2147, %v2165
  %2167 = vmatmul.bf16.gmra.mxu0 %v2000
  %v2168 = vpop.f32.mrf.mxu0
  %v2169 = vadd.f32 %v2150, %v2168
  %v2170 = vpop.f32.mrf.mxu0
  %v2171 = vadd.f32 %v2152, %v2170
  %2172 = vdwg.mxu0
  %2173 = vmatpush.bf16.msra.mxu0 %v1756
  %2174 = vmatpush.bf16.msra.mxu0 %v1752
  %2175 = vmatpush.bf16.msra.mxu0 %v1716
  %2176 = vmatpush.bf16.msra.mxu0 %v1712
  %2177 = vmatpush.bf16.msra.mxu0 %v1676
  %2178 = vmatpush.bf16.msra.mxu0 %v1672
  %2179 = vmatpush.bf16.msra.mxu0 %v1636
  %2180 = vmatpush.bf16.msra.mxu0 %v1632
  %2181 = vmatmul.bf16.gmra.mxu0 %v1985
  %v2182 = vpop.f32.mrf.mxu0
  %v2183 = vadd.f32 0.0, %v2182
  %v2184 = vpop.f32.mrf.mxu0
  %v2185 = vadd.f32 0.0, %v2184
  %2186 = vmatmul.bf16.gmra.mxu0 %v1988
  %v2187 = vpop.f32.mrf.mxu0
  %v2188 = vadd.f32 0.0, %v2187
  %v2189 = vpop.f32.mrf.mxu0
  %v2190 = vadd.f32 0.0, %v2189
  %2191 = vdwg.mxu0
  %2192 = vmatpush.bf16.msra.mxu0 %v1916
  %2193 = vmatpush.bf16.msra.mxu0 %v1912
  %2194 = vmatpush.bf16.msra.mxu0 %v1876
  %2195 = vmatpush.bf16.msra.mxu0 %v1872
  %2196 = vmatpush.bf16.msra.mxu0 %v1836
  %2197 = vmatpush.bf16.msra.mxu0 %v1832
  %2198 = vmatpush.bf16.msra.mxu0 %v1796
  %2199 = vmatpush.bf16.msra.mxu0 %v1792
  %2200 = vmatmul.bf16.gmra.mxu0 %v1986
  %v2201 = vpop.f32.mrf.mxu0
  %v2202 = vadd.f32 %v2183, %v2201
  %v2203 = vpop.f32.mrf.mxu0
  %v2204 = vadd.f32 %v2185, %v2203
  %2205 = vmatmul.bf16.gmra.mxu0 %v1989
  %v2206 = vpop.f32.mrf.mxu0
  %v2207 = vadd.f32 %v2188, %v2206
  %v2208 = vpop.f32.mrf.mxu0
  %v2209 = vadd.f32 %v2190, %v2208
  %2210 = vdwg.mxu0
  %2211 = vmatpush.bf16.msra.mxu0 0
  %2212 = vmatpush.bf16.msra.mxu0 0
  %2213 = vmatpush.bf16.msra.mxu0 0
  %2214 = vmatpush.bf16.msra.mxu0 0
  %2215 = vmatpush.bf16.msra.mxu0 0
  %2216 = vmatpush.bf16.msra.mxu0 0
  %2217 = vmatpush.bf16.msra.mxu0 %v1956
  %2218 = vmatpush.bf16.msra.mxu0 %v1952
  %2219 = vmatmul.bf16.gmra.mxu0 %v1997
  %v2220 = vpop.f32.mrf.mxu0
  %v2221 = vadd.f32 %v2202, %v2220
  %v2222 = vpop.f32.mrf.mxu0
  %v2223 = vadd.f32 %v2204, %v2222
  %2224 = vmatmul.bf16.gmra.mxu0 %v2000
  %v2225 = vpop.f32.mrf.mxu0
  %v2226 = vadd.f32 %v2207, %v2225
  %v2227 = vpop.f32.mrf.mxu0
  %v2228 = vadd.f32 %v2209, %v2227
  %2229 = vdwg.mxu0
  %v2230 = vadd.f32 %v2050, %v2107
  %v2231 = vadd.f32 %v2230, %v2164
  %v2232 = vadd.f32 %v2231, %v2221
  %2233 = vadd.xlane.f32.xlu0 %v2232
  %v2234 = vpop.xlane.xlu0 %2233
  %v2235 = vadd.f32 %v2052, %v2109
  %v2236 = vadd.f32 %v2235, %v2166
  %v2237 = vadd.f32 %v2236, %v2223
  %2238 = vadd.xlane.f32.xlu0 %v2237
  %v2239 = vpop.xlane.xlu0 %2238
  %v2240 = vadd.f32 %v2055, %v2112
  %v2241 = vadd.f32 %v2240, %v2169
  %v2242 = vadd.f32 %v2241, %v2226
  %2243 = vadd.xlane.f32.xlu0 %v2242
  %v2244 = vpop.xlane.xlu0 %2243
  %v2245 = vadd.f32 %v2057, %v2114
  %v2246 = vadd.f32 %v2245, %v2171
  %v2247 = vadd.f32 %v2246, %v2228
  %2248 = vadd.xlane.f32.xlu0 %v2247
  %v2249 = vpop.xlane.xlu0 %2248
  %v2250 = vmul.f32 %v2234, %v808
  %v2251 = vmul.f32 %v2239, %v808
  %v2252 = vmul.f32 %v2244, %v808
  %v2253 = vmul.f32 %v2249, %v808
  %v2254 = vsub.f32 %v2050, %v2250
  %v2255 = vsub.f32 %v2107, %v2250
  %v2256 = vsub.f32 %v2164, %v2250
  %v2257 = vsub.f32 %v2221, %v2250
  %v2258 = vsub.f32 %v2052, %v2251
  %v2259 = vsub.f32 %v2109, %v2251
  %v2260 = vsub.f32 %v2166, %v2251
  %v2261 = vsub.f32 %v2223, %v2251
  %v2262 = vsub.f32 %v2055, %v2252
  %v2263 = vsub.f32 %v2112, %v2252
  %v2264 = vsub.f32 %v2169, %v2252
  %v2265 = vsub.f32 %v2226, %v2252
  %v2266 = vsub.f32 %v2057, %v2253
  %v2267 = vsub.f32 %v2114, %v2253
  %v2268 = vsub.f32 %v2171, %v2253
  %v2269 = vsub.f32 %v2228, %v2253
  %v2270 = vmul.f32 %v2254, %v2254
  %v2271 = vmul.f32 %v2255, %v2255
  %v2272 = vmul.f32 %v2256, %v2256
  %v2273 = vmul.f32 %v2257, %v2257
  %v2274 = vmul.f32 %v2258, %v2258
  %v2275 = vmul.f32 %v2259, %v2259
  %v2276 = vmul.f32 %v2260, %v2260
  %v2277 = vmul.f32 %v2261, %v2261
  %v2278 = vmul.f32 %v2262, %v2262
  %v2279 = vmul.f32 %v2263, %v2263
  %v2280 = vmul.f32 %v2264, %v2264
  %v2281 = vmul.f32 %v2265, %v2265
  %v2282 = vmul.f32 %v2266, %v2266
  %v2283 = vmul.f32 %v2267, %v2267
  %v2284 = vmul.f32 %v2268, %v2268
  %v2285 = vmul.f32 %v2269, %v2269
  %v2286 = vadd.f32 %v2270, %v2271
  %v2287 = vadd.f32 %v2286, %v2272
  %v2288 = vadd.f32 %v2287, %v2273
  %2289 = vadd.xlane.f32.xlu0 %v2288
  %v2290 = vpop.xlane.xlu0 %2289
  %v2291 = vadd.f32 %v2274, %v2275
  %v2292 = vadd.f32 %v2291, %v2276
  %v2293 = vadd.f32 %v2292, %v2277
  %2294 = vadd.xlane.f32.xlu0 %v2293
  %v2295 = vpop.xlane.xlu0 %2294
  %v2296 = vadd.f32 %v2278, %v2279
  %v2297 = vadd.f32 %v2296, %v2280
  %v2298 = vadd.f32 %v2297, %v2281
  %2299 = vadd.xlane.f32.xlu0 %v2298
  %v2300 = vpop.xlane.xlu0 %2299
  %v2301 = vadd.f32 %v2282, %v2283
  %v2302 = vadd.f32 %v2301, %v2284
  %v2303 = vadd.f32 %v2302, %v2285
  %2304 = vadd.xlane.f32.xlu0 %v2303
  %v2305 = vpop.xlane.xlu0 %2304
  %v2306 = vmul.f32 %v2290, %v808
  %v2307 = vmul.f32 %v2295, %v808
  %v2308 = vmul.f32 %v2300, %v808
  %v2309 = vmul.f32 %v2305, %v808
  %s2310 = scalar_lea.vmem %s4, 32
  %v2311 = vld [vmem:[%s2310] sm:$0xff]
  %v2312 = vld [vmem:[%s2310 + $0x8] sm:$0xff]
  %v2313 = vld [vmem:[%s2310 + $0x10] sm:$0xff]
  %v2314 = vld [vmem:[%s2310 + $0x18] sm:$0xff]
  %v2315 = vadd.f32 %v2306, 1e-05
  %v2316 = vadd.f32 %v2307, 1e-05
  %v2317 = vadd.f32 %v2308, 1e-05
  %v2318 = vadd.f32 %v2309, 1e-05
  %v2319 = vrsqrt.pop %v2315
  %v2320 = vmul.f32 %v2319, %v2315
  %v2321 = vmul.f32 %v2320, %v2319
  %v2322 = vmul.f32 0.5, %v2321
  %v2323 = vsub.f32 1.5, %v2322
  %v2324 = vmul.f32 %v2319, %v2323
  %vm2325 = vweird.f32 %v2315
  %vm2326 = vweird.f32 %v2319
  %vm2327 = vmor %vm2325, %vm2326
  %v2328 = vsel %vm2327, %v2319, %v2324
  %v2329 = vrsqrt.pop %v2316
  %v2330 = vmul.f32 %v2329, %v2316
  %v2331 = vmul.f32 %v2330, %v2329
  %v2332 = vmul.f32 0.5, %v2331
  %v2333 = vsub.f32 1.5, %v2332
  %v2334 = vmul.f32 %v2329, %v2333
  %vm2335 = vweird.f32 %v2316
  %vm2336 = vweird.f32 %v2329
  %vm2337 = vmor %vm2335, %vm2336
  %v2338 = vsel %vm2337, %v2329, %v2334
  %v2339 = vrsqrt.pop %v2317
  %v2340 = vmul.f32 %v2339, %v2317
  %v2341 = vmul.f32 %v2340, %v2339
  %v2342 = vmul.f32 0.5, %v2341
  %v2343 = vsub.f32 1.5, %v2342
  %v2344 = vmul.f32 %v2339, %v2343
  %vm2345 = vweird.f32 %v2317
  %vm2346 = vweird.f32 %v2339
  %vm2347 = vmor %vm2345, %vm2346
  %v2348 = vsel %vm2347, %v2339, %v2344
  %v2349 = vrsqrt.pop %v2318
  %v2350 = vmul.f32 %v2349, %v2318
  %v2351 = vmul.f32 %v2350, %v2349
  %v2352 = vmul.f32 0.5, %v2351
  %v2353 = vsub.f32 1.5, %v2352
  %v2354 = vmul.f32 %v2349, %v2353
  %vm2355 = vweird.f32 %v2318
  %vm2356 = vweird.f32 %v2349
  %vm2357 = vmor %vm2355, %vm2356
  %v2358 = vsel %vm2357, %v2349, %v2354
  %v2359 = vmul.f32 %v2311, %v2328
  %v2360 = vmul.f32 %v2312, %v2338
  %v2361 = vmul.f32 %v2313, %v2348
  %v2362 = vmul.f32 %v2314, %v2358
  %2364 = vset.pattern.permute.xlu0 0
  %2365 = vperm.xlu0 %2364, %v2359
  %v2366 = vpop.permute.xlu0 %2365
  %2369 = vset.pattern.permute.xlu0 0
  %2370 = vperm.xlu0 %2369, %v2360
  %v2371 = vpop.permute.xlu0 %2370
  %2374 = vset.pattern.permute.xlu0 0
  %2375 = vperm.xlu0 %2374, %v2361
  %v2376 = vpop.permute.xlu0 %2375
  %2379 = vset.pattern.permute.xlu0 0
  %2380 = vperm.xlu0 %2379, %v2362
  %v2381 = vpop.permute.xlu0 %2380
  %v2383 = vmul.f32 %v2254, %v2366
  %v2384 = vmul.f32 %v2255, %v2366
  %v2385 = vmul.f32 %v2256, %v2366
  %v2386 = vmul.f32 %v2257, %v2366
  %v2387 = vmul.f32 %v2258, %v2371
  %v2388 = vmul.f32 %v2259, %v2371
  %v2389 = vmul.f32 %v2260, %v2371
  %v2390 = vmul.f32 %v2261, %v2371
  %v2391 = vmul.f32 %v2262, %v2376
  %v2392 = vmul.f32 %v2263, %v2376
  %v2393 = vmul.f32 %v2264, %v2376
  %v2394 = vmul.f32 %v2265, %v2376
  %v2395 = vmul.f32 %v2266, %v2381
  %v2396 = vmul.f32 %v2267, %v2381
  %v2397 = vmul.f32 %v2268, %v2381
  %v2398 = vmul.f32 %v2269, %v2381
  %s2399 = scalar_lea.vmem %s5, 32
  %v2400 = vld [vmem:[%s2399] sm:$0xff]
  %v2401 = vld [vmem:[%s2399 + $0x8] sm:$0xff]
  %v2402 = vld [vmem:[%s2399 + $0x10] sm:$0xff]
  %v2403 = vld [vmem:[%s2399 + $0x18] sm:$0xff]
  %2405 = vset.pattern.permute.xlu0 0
  %2406 = vperm.xlu0 %2405, %v2400
  %v2407 = vpop.permute.xlu0 %2406
  %2410 = vset.pattern.permute.xlu0 0
  %2411 = vperm.xlu0 %2410, %v2401
  %v2412 = vpop.permute.xlu0 %2411
  %2415 = vset.pattern.permute.xlu0 0
  %2416 = vperm.xlu0 %2415, %v2402
  %v2417 = vpop.permute.xlu0 %2416
  %2420 = vset.pattern.permute.xlu0 0
  %2421 = vperm.xlu0 %2420, %v2403
  %v2422 = vpop.permute.xlu0 %2421
  %v2424 = vadd.f32 %v2383, %v2407
  %v2425 = vadd.f32 %v2384, %v2407
  %v2426 = vadd.f32 %v2385, %v2407
  %v2427 = vadd.f32 %v2386, %v2407
  %v2428 = vadd.f32 %v2387, %v2412
  %v2429 = vadd.f32 %v2388, %v2412
  %v2430 = vadd.f32 %v2389, %v2412
  %v2431 = vadd.f32 %v2390, %v2412
  %v2432 = vadd.f32 %v2391, %v2417
  %v2433 = vadd.f32 %v2392, %v2417
  %v2434 = vadd.f32 %v2393, %v2417
  %v2435 = vadd.f32 %v2394, %v2417
  %v2436 = vadd.f32 %v2395, %v2422
  %v2437 = vadd.f32 %v2396, %v2422
  %v2438 = vadd.f32 %v2397, %v2422
  %v2439 = vadd.f32 %v2398, %v2422
  %v2440 = vmax.f32 %v2424, 0.0
  %v2441 = vmax.f32 %v2425, 0.0
  %v2442 = vmax.f32 %v2426, 0.0
  %v2443 = vmax.f32 %v2427, 0.0
  %v2444 = vmax.f32 %v2428, 0.0
  %v2445 = vmax.f32 %v2429, 0.0
  %v2446 = vmax.f32 %v2430, 0.0
  %v2447 = vmax.f32 %v2431, 0.0
  %v2448 = vmax.f32 %v2432, 0.0
  %v2449 = vmax.f32 %v2433, 0.0
  %v2450 = vmax.f32 %v2434, 0.0
  %v2451 = vmax.f32 %v2435, 0.0
  %v2452 = vmax.f32 %v2436, 0.0
  %v2453 = vmax.f32 %v2437, 0.0
  %v2454 = vmax.f32 %v2438, 0.0
  %v2455 = vmax.f32 %v2439, 0.0
  %s2456 = scalar_lea.vmem %s3, 48
  %v2457 = vld [vmem:[%s2456] sm:$0xff]
  %v2458 = vld [vmem:[%s2456 + $0x8] sm:$0xf]
  %v2459 = vld [vmem:[%s2456 + $0xc] sm:$0xff]
  %v2460 = vld [vmem:[%s2456 + $0x14] sm:$0xf]
  %v2461 = vld [vmem:[%s2456 + $0x18] sm:$0xff]
  %v2462 = vld [vmem:[%s2456 + $0x20] sm:$0xf]
  %v2463 = vld [vmem:[%s2456 + $0x24] sm:$0xff]
  %v2464 = vld [vmem:[%s2456 + $0x2c] sm:$0xf]
  %2465 = vrot.lane.b32.xlu0 %v2440, 17
  %v2466 = vpop.permute.xlu0 %2465
  %2467 = vrot.lane.b32.xlu0 %v2444, 17
  %v2468 = vpop.permute.xlu0 %2467
  %2469 = vrot.lane.b32.xlu0 %v2448, 17
  %v2470 = vpop.permute.xlu0 %2469
  %2471 = vrot.lane.b32.xlu0 %v2452, 17
  %v2472 = vpop.permute.xlu0 %2471
  %2473 = vrot.lane.b32.xlu0 %v2441, 17
  %v2474 = vpop.permute.xlu0 %2473
  %2475 = vrot.lane.b32.xlu0 %v2445, 17
  %v2476 = vpop.permute.xlu0 %2475
  %2477 = vrot.lane.b32.xlu0 %v2449, 17
  %v2478 = vpop.permute.xlu0 %2477
  %2479 = vrot.lane.b32.xlu0 %v2453, 17
  %v2480 = vpop.permute.xlu0 %2479
  %2481 = vrot.lane.b32.xlu0 %v2442, 17
  %v2482 = vpop.permute.xlu0 %2481
  %2483 = vrot.lane.b32.xlu0 %v2446, 17
  %v2484 = vpop.permute.xlu0 %2483
  %2485 = vrot.lane.b32.xlu0 %v2450, 17
  %v2486 = vpop.permute.xlu0 %2485
  %2487 = vrot.lane.b32.xlu0 %v2454, 17
  %v2488 = vpop.permute.xlu0 %2487
  %2489 = vrot.lane.b32.xlu0 %v2443, 17
  %v2490 = vpop.permute.xlu0 %2489
  %2491 = vrot.lane.b32.xlu0 %v2447, 17
  %v2492 = vpop.permute.xlu0 %2491
  %2493 = vrot.lane.b32.xlu0 %v2451, 17
  %v2494 = vpop.permute.xlu0 %2493
  %2495 = vrot.lane.b32.xlu0 %v2455, 17
  %v2496 = vpop.permute.xlu0 %2495
  %v2497 = vsel %vm69, %v2482, %v2490
  %v2498 = vsel %vm69, %v2484, %v2492
  %v2499 = vsel %vm69, %v2486, %v2494
  %v2500 = vsel %vm69, %v2488, %v2496
  %v2501 = vsel %vm69, %v2474, %v2482
  %v2502 = vsel %vm69, %v2476, %v2484
  %v2503 = vsel %vm69, %v2478, %v2486
  %v2504 = vsel %vm69, %v2480, %v2488
  %v2505 = vsel %vm69, %v2466, %v2474
  %v2506 = vsel %vm69, %v2468, %v2476
  %v2507 = vsel %vm69, %v2470, %v2478
  %v2508 = vsel %vm69, %v2472, %v2480
  %v2509 = vsel %vm69, %v2490, %v2466
  %v2510 = vsel %vm69, %v2492, %v2468
  %v2511 = vsel %vm69, %v2494, %v2470
  %v2512 = vsel %vm69, %v2496, %v2472
  %v2513 = vmul.f32 %v2509, %v79
  %v2514 = vmul.f32 %v2505, %v80
  %v2515 = vmul.f32 %v2501, %v81
  %v2516 = vmul.f32 %v2497, %v82
  %v2517 = vmul.f32 %v2510, %v79
  %v2518 = vmul.f32 %v2506, %v80
  %v2519 = vmul.f32 %v2502, %v81
  %v2520 = vmul.f32 %v2498, %v82
  %v2521 = vmul.f32 %v2511, %v79
  %v2522 = vmul.f32 %v2507, %v80
  %v2523 = vmul.f32 %v2503, %v81
  %v2524 = vmul.f32 %v2499, %v82
  %v2525 = vmul.f32 %v2512, %v79
  %v2526 = vmul.f32 %v2508, %v80
  %v2527 = vmul.f32 %v2504, %v81
  %v2528 = vmul.f32 %v2500, %v82
  %v2529 = vpack.c.bf16 %v2514, %v2513
  %v2530 = vpack.c.bf16 %v2516, %v2515
  %v2531 = vpack.c.bf16 %v2518, %v2517
  %v2532 = vpack.c.bf16 %v2520, %v2519
  %v2533 = vpack.c.bf16 %v2522, %v2521
  %v2534 = vpack.c.bf16 %v2524, %v2523
  %v2535 = vpack.c.bf16 %v2526, %v2525
  %v2536 = vpack.c.bf16 %v2528, %v2527
  %2537 = vrot.lane.b32.xlu0 %v2440, 16
  %v2538 = vpop.permute.xlu0 %2537
  %2539 = vrot.lane.b32.xlu0 %v2444, 16
  %v2540 = vpop.permute.xlu0 %2539
  %2541 = vrot.lane.b32.xlu0 %v2448, 16
  %v2542 = vpop.permute.xlu0 %2541
  %2543 = vrot.lane.b32.xlu0 %v2452, 16
  %v2544 = vpop.permute.xlu0 %2543
  %2545 = vrot.lane.b32.xlu0 %v2441, 16
  %v2546 = vpop.permute.xlu0 %2545
  %2547 = vrot.lane.b32.xlu0 %v2445, 16
  %v2548 = vpop.permute.xlu0 %2547
  %2549 = vrot.lane.b32.xlu0 %v2449, 16
  %v2550 = vpop.permute.xlu0 %2549
  %2551 = vrot.lane.b32.xlu0 %v2453, 16
  %v2552 = vpop.permute.xlu0 %2551
  %2553 = vrot.lane.b32.xlu0 %v2442, 16
  %v2554 = vpop.permute.xlu0 %2553
  %2555 = vrot.lane.b32.xlu0 %v2446, 16
  %v2556 = vpop.permute.xlu0 %2555
  %2557 = vrot.lane.b32.xlu0 %v2450, 16
  %v2558 = vpop.permute.xlu0 %2557
  %2559 = vrot.lane.b32.xlu0 %v2454, 16
  %v2560 = vpop.permute.xlu0 %2559
  %2561 = vrot.lane.b32.xlu0 %v2443, 16
  %v2562 = vpop.permute.xlu0 %2561
  %2563 = vrot.lane.b32.xlu0 %v2447, 16
  %v2564 = vpop.permute.xlu0 %2563
  %2565 = vrot.lane.b32.xlu0 %v2451, 16
  %v2566 = vpop.permute.xlu0 %2565
  %2567 = vrot.lane.b32.xlu0 %v2455, 16
  %v2568 = vpop.permute.xlu0 %2567
  %v2569 = vsel %vm115, %v2554, %v2562
  %v2570 = vsel %vm115, %v2556, %v2564
  %v2571 = vsel %vm115, %v2558, %v2566
  %v2572 = vsel %vm115, %v2560, %v2568
  %v2573 = vsel %vm115, %v2546, %v2554
  %v2574 = vsel %vm115, %v2548, %v2556
  %v2575 = vsel %vm115, %v2550, %v2558
  %v2576 = vsel %vm115, %v2552, %v2560
  %v2577 = vsel %vm115, %v2538, %v2546
  %v2578 = vsel %vm115, %v2540, %v2548
  %v2579 = vsel %vm115, %v2542, %v2550
  %v2580 = vsel %vm115, %v2544, %v2552
  %v2581 = vsel %vm115, %v2562, %v2538
  %v2582 = vsel %vm115, %v2564, %v2540
  %v2583 = vsel %vm115, %v2566, %v2542
  %v2584 = vsel %vm115, %v2568, %v2544
  %v2585 = vmul.f32 %v2581, %v125
  %v2586 = vmul.f32 %v2577, %v126
  %v2587 = vmul.f32 %v2573, %v127
  %v2588 = vmul.f32 %v2569, %v128
  %v2589 = vmul.f32 %v2582, %v125
  %v2590 = vmul.f32 %v2578, %v126
  %v2591 = vmul.f32 %v2574, %v127
  %v2592 = vmul.f32 %v2570, %v128
  %v2593 = vmul.f32 %v2583, %v125
  %v2594 = vmul.f32 %v2579, %v126
  %v2595 = vmul.f32 %v2575, %v127
  %v2596 = vmul.f32 %v2571, %v128
  %v2597 = vmul.f32 %v2584, %v125
  %v2598 = vmul.f32 %v2580, %v126
  %v2599 = vmul.f32 %v2576, %v127
  %v2600 = vmul.f32 %v2572, %v128
  %v2601 = vpack.c.bf16 %v2586, %v2585
  %v2602 = vpack.c.bf16 %v2588, %v2587
  %v2603 = vpack.c.bf16 %v2590, %v2589
  %v2604 = vpack.c.bf16 %v2592, %v2591
  %v2605 = vpack.c.bf16 %v2594, %v2593
  %v2606 = vpack.c.bf16 %v2596, %v2595
  %v2607 = vpack.c.bf16 %v2598, %v2597
  %v2608 = vpack.c.bf16 %v2600, %v2599
  %2609 = vrot.lane.b32.xlu0 %v2440, 15
  %v2610 = vpop.permute.xlu0 %2609
  %2611 = vrot.lane.b32.xlu0 %v2444, 15
  %v2612 = vpop.permute.xlu0 %2611
  %2613 = vrot.lane.b32.xlu0 %v2448, 15
  %v2614 = vpop.permute.xlu0 %2613
  %2615 = vrot.lane.b32.xlu0 %v2452, 15
  %v2616 = vpop.permute.xlu0 %2615
  %2617 = vrot.lane.b32.xlu0 %v2441, 15
  %v2618 = vpop.permute.xlu0 %2617
  %2619 = vrot.lane.b32.xlu0 %v2445, 15
  %v2620 = vpop.permute.xlu0 %2619
  %2621 = vrot.lane.b32.xlu0 %v2449, 15
  %v2622 = vpop.permute.xlu0 %2621
  %2623 = vrot.lane.b32.xlu0 %v2453, 15
  %v2624 = vpop.permute.xlu0 %2623
  %2625 = vrot.lane.b32.xlu0 %v2442, 15
  %v2626 = vpop.permute.xlu0 %2625
  %2627 = vrot.lane.b32.xlu0 %v2446, 15
  %v2628 = vpop.permute.xlu0 %2627
  %2629 = vrot.lane.b32.xlu0 %v2450, 15
  %v2630 = vpop.permute.xlu0 %2629
  %2631 = vrot.lane.b32.xlu0 %v2454, 15
  %v2632 = vpop.permute.xlu0 %2631
  %2633 = vrot.lane.b32.xlu0 %v2443, 15
  %v2634 = vpop.permute.xlu0 %2633
  %2635 = vrot.lane.b32.xlu0 %v2447, 15
  %v2636 = vpop.permute.xlu0 %2635
  %2637 = vrot.lane.b32.xlu0 %v2451, 15
  %v2638 = vpop.permute.xlu0 %2637
  %2639 = vrot.lane.b32.xlu0 %v2455, 15
  %v2640 = vpop.permute.xlu0 %2639
  %v2641 = vsel %vm161, %v2626, %v2634
  %v2642 = vsel %vm161, %v2628, %v2636
  %v2643 = vsel %vm161, %v2630, %v2638
  %v2644 = vsel %vm161, %v2632, %v2640
  %v2645 = vsel %vm161, %v2618, %v2626
  %v2646 = vsel %vm161, %v2620, %v2628
  %v2647 = vsel %vm161, %v2622, %v2630
  %v2648 = vsel %vm161, %v2624, %v2632
  %v2649 = vsel %vm161, %v2610, %v2618
  %v2650 = vsel %vm161, %v2612, %v2620
  %v2651 = vsel %vm161, %v2614, %v2622
  %v2652 = vsel %vm161, %v2616, %v2624
  %v2653 = vsel %vm161, %v2634, %v2610
  %v2654 = vsel %vm161, %v2636, %v2612
  %v2655 = vsel %vm161, %v2638, %v2614
  %v2656 = vsel %vm161, %v2640, %v2616
  %v2657 = vmul.f32 %v2653, %v171
  %v2658 = vmul.f32 %v2649, %v172
  %v2659 = vmul.f32 %v2645, %v173
  %v2660 = vmul.f32 %v2641, %v174
  %v2661 = vmul.f32 %v2654, %v171
  %v2662 = vmul.f32 %v2650, %v172
  %v2663 = vmul.f32 %v2646, %v173
  %v2664 = vmul.f32 %v2642, %v174
  %v2665 = vmul.f32 %v2655, %v171
  %v2666 = vmul.f32 %v2651, %v172
  %v2667 = vmul.f32 %v2647, %v173
  %v2668 = vmul.f32 %v2643, %v174
  %v2669 = vmul.f32 %v2656, %v171
  %v2670 = vmul.f32 %v2652, %v172
  %v2671 = vmul.f32 %v2648, %v173
  %v2672 = vmul.f32 %v2644, %v174
  %v2673 = vpack.c.bf16 %v2658, %v2657
  %v2674 = vpack.c.bf16 %v2660, %v2659
  %v2675 = vpack.c.bf16 %v2662, %v2661
  %v2676 = vpack.c.bf16 %v2664, %v2663
  %v2677 = vpack.c.bf16 %v2666, %v2665
  %v2678 = vpack.c.bf16 %v2668, %v2667
  %v2679 = vpack.c.bf16 %v2670, %v2669
  %v2680 = vpack.c.bf16 %v2672, %v2671
  %2681 = vrot.lane.b32.xlu0 %v2440, 1
  %v2682 = vpop.permute.xlu0 %2681
  %2683 = vrot.lane.b32.xlu0 %v2444, 1
  %v2684 = vpop.permute.xlu0 %2683
  %2685 = vrot.lane.b32.xlu0 %v2448, 1
  %v2686 = vpop.permute.xlu0 %2685
  %2687 = vrot.lane.b32.xlu0 %v2452, 1
  %v2688 = vpop.permute.xlu0 %2687
  %2689 = vrot.lane.b32.xlu0 %v2441, 1
  %v2690 = vpop.permute.xlu0 %2689
  %2691 = vrot.lane.b32.xlu0 %v2445, 1
  %v2692 = vpop.permute.xlu0 %2691
  %2693 = vrot.lane.b32.xlu0 %v2449, 1
  %v2694 = vpop.permute.xlu0 %2693
  %2695 = vrot.lane.b32.xlu0 %v2453, 1
  %v2696 = vpop.permute.xlu0 %2695
  %2697 = vrot.lane.b32.xlu0 %v2442, 1
  %v2698 = vpop.permute.xlu0 %2697
  %2699 = vrot.lane.b32.xlu0 %v2446, 1
  %v2700 = vpop.permute.xlu0 %2699
  %2701 = vrot.lane.b32.xlu0 %v2450, 1
  %v2702 = vpop.permute.xlu0 %2701
  %2703 = vrot.lane.b32.xlu0 %v2454, 1
  %v2704 = vpop.permute.xlu0 %2703
  %2705 = vrot.lane.b32.xlu0 %v2443, 1
  %v2706 = vpop.permute.xlu0 %2705
  %2707 = vrot.lane.b32.xlu0 %v2447, 1
  %v2708 = vpop.permute.xlu0 %2707
  %2709 = vrot.lane.b32.xlu0 %v2451, 1
  %v2710 = vpop.permute.xlu0 %2709
  %2711 = vrot.lane.b32.xlu0 %v2455, 1
  %v2712 = vpop.permute.xlu0 %2711
  %v2713 = vsel %vm207, %v2698, %v2706
  %v2714 = vsel %vm207, %v2700, %v2708
  %v2715 = vsel %vm207, %v2702, %v2710
  %v2716 = vsel %vm207, %v2704, %v2712
  %v2717 = vsel %vm207, %v2690, %v2698
  %v2718 = vsel %vm207, %v2692, %v2700
  %v2719 = vsel %vm207, %v2694, %v2702
  %v2720 = vsel %vm207, %v2696, %v2704
  %v2721 = vsel %vm207, %v2682, %v2690
  %v2722 = vsel %vm207, %v2684, %v2692
  %v2723 = vsel %vm207, %v2686, %v2694
  %v2724 = vsel %vm207, %v2688, %v2696
  %v2725 = vsel %vm207, %v2706, %v2682
  %v2726 = vsel %vm207, %v2708, %v2684
  %v2727 = vsel %vm207, %v2710, %v2686
  %v2728 = vsel %vm207, %v2712, %v2688
  %v2729 = vmul.f32 %v2725, %v217
  %v2730 = vmul.f32 %v2721, %v218
  %v2731 = vmul.f32 %v2717, %v219
  %v2732 = vmul.f32 %v2713, %v220
  %v2733 = vmul.f32 %v2726, %v217
  %v2734 = vmul.f32 %v2722, %v218
  %v2735 = vmul.f32 %v2718, %v219
  %v2736 = vmul.f32 %v2714, %v220
  %v2737 = vmul.f32 %v2727, %v217
  %v2738 = vmul.f32 %v2723, %v218
  %v2739 = vmul.f32 %v2719, %v219
  %v2740 = vmul.f32 %v2715, %v220
  %v2741 = vmul.f32 %v2728, %v217
  %v2742 = vmul.f32 %v2724, %v218
  %v2743 = vmul.f32 %v2720, %v219
  %v2744 = vmul.f32 %v2716, %v220
  %v2745 = vpack.c.bf16 %v2730, %v2729
  %v2746 = vpack.c.bf16 %v2732, %v2731
  %v2747 = vpack.c.bf16 %v2734, %v2733
  %v2748 = vpack.c.bf16 %v2736, %v2735
  %v2749 = vpack.c.bf16 %v2738, %v2737
  %v2750 = vpack.c.bf16 %v2740, %v2739
  %v2751 = vpack.c.bf16 %v2742, %v2741
  %v2752 = vpack.c.bf16 %v2744, %v2743
  %v2753 = vpack.c.bf16 %v2441, %v2440
  %v2754 = vpack.c.bf16 %v2443, %v2442
  %v2755 = vpack.c.bf16 %v2445, %v2444
  %v2756 = vpack.c.bf16 %v2447, %v2446
  %v2757 = vpack.c.bf16 %v2449, %v2448
  %v2758 = vpack.c.bf16 %v2451, %v2450
  %v2759 = vpack.c.bf16 %v2453, %v2452
  %v2760 = vpack.c.bf16 %v2455, %v2454
  %2761 = vrot.lane.b32.xlu0 %v2440, 127
  %v2762 = vpop.permute.xlu0 %2761
  %2763 = vrot.lane.b32.xlu0 %v2444, 127
  %v2764 = vpop.permute.xlu0 %2763
  %2765 = vrot.lane.b32.xlu0 %v2448, 127
  %v2766 = vpop.permute.xlu0 %2765
  %2767 = vrot.lane.b32.xlu0 %v2452, 127
  %v2768 = vpop.permute.xlu0 %2767
  %2769 = vrot.lane.b32.xlu0 %v2441, 127
  %v2770 = vpop.permute.xlu0 %2769
  %2771 = vrot.lane.b32.xlu0 %v2445, 127
  %v2772 = vpop.permute.xlu0 %2771
  %2773 = vrot.lane.b32.xlu0 %v2449, 127
  %v2774 = vpop.permute.xlu0 %2773
  %2775 = vrot.lane.b32.xlu0 %v2453, 127
  %v2776 = vpop.permute.xlu0 %2775
  %2777 = vrot.lane.b32.xlu0 %v2442, 127
  %v2778 = vpop.permute.xlu0 %2777
  %2779 = vrot.lane.b32.xlu0 %v2446, 127
  %v2780 = vpop.permute.xlu0 %2779
  %2781 = vrot.lane.b32.xlu0 %v2450, 127
  %v2782 = vpop.permute.xlu0 %2781
  %2783 = vrot.lane.b32.xlu0 %v2454, 127
  %v2784 = vpop.permute.xlu0 %2783
  %2785 = vrot.lane.b32.xlu0 %v2443, 127
  %v2786 = vpop.permute.xlu0 %2785
  %2787 = vrot.lane.b32.xlu0 %v2447, 127
  %v2788 = vpop.permute.xlu0 %2787
  %2789 = vrot.lane.b32.xlu0 %v2451, 127
  %v2790 = vpop.permute.xlu0 %2789
  %2791 = vrot.lane.b32.xlu0 %v2455, 127
  %v2792 = vpop.permute.xlu0 %2791
  %v2793 = vsel %vm257, %v2778, %v2786
  %v2794 = vsel %vm257, %v2780, %v2788
  %v2795 = vsel %vm257, %v2782, %v2790
  %v2796 = vsel %vm257, %v2784, %v2792
  %v2797 = vsel %vm257, %v2770, %v2778
  %v2798 = vsel %vm257, %v2772, %v2780
  %v2799 = vsel %vm257, %v2774, %v2782
  %v2800 = vsel %vm257, %v2776, %v2784
  %v2801 = vsel %vm257, %v2762, %v2770
  %v2802 = vsel %vm257, %v2764, %v2772
  %v2803 = vsel %vm257, %v2766, %v2774
  %v2804 = vsel %vm257, %v2768, %v2776
  %v2805 = vsel %vm257, %v2786, %v2762
  %v2806 = vsel %vm257, %v2788, %v2764
  %v2807 = vsel %vm257, %v2790, %v2766
  %v2808 = vsel %vm257, %v2792, %v2768
  %v2809 = vmul.f32 %v2801, %v267
  %v2810 = vmul.f32 %v2797, %v268
  %v2811 = vmul.f32 %v2793, %v269
  %v2812 = vmul.f32 %v2805, %v270
  %v2813 = vmul.f32 %v2802, %v267
  %v2814 = vmul.f32 %v2798, %v268
  %v2815 = vmul.f32 %v2794, %v269
  %v2816 = vmul.f32 %v2806, %v270
  %v2817 = vmul.f32 %v2803, %v267
  %v2818 = vmul.f32 %v2799, %v268
  %v2819 = vmul.f32 %v2795, %v269
  %v2820 = vmul.f32 %v2807, %v270
  %v2821 = vmul.f32 %v2804, %v267
  %v2822 = vmul.f32 %v2800, %v268
  %v2823 = vmul.f32 %v2796, %v269
  %v2824 = vmul.f32 %v2808, %v270
  %v2825 = vpack.c.bf16 %v2810, %v2809
  %v2826 = vpack.c.bf16 %v2812, %v2811
  %v2827 = vpack.c.bf16 %v2814, %v2813
  %v2828 = vpack.c.bf16 %v2816, %v2815
  %v2829 = vpack.c.bf16 %v2818, %v2817
  %v2830 = vpack.c.bf16 %v2820, %v2819
  %v2831 = vpack.c.bf16 %v2822, %v2821
  %v2832 = vpack.c.bf16 %v2824, %v2823
  %2833 = vrot.lane.b32.xlu0 %v2440, 113
  %v2834 = vpop.permute.xlu0 %2833
  %2835 = vrot.lane.b32.xlu0 %v2444, 113
  %v2836 = vpop.permute.xlu0 %2835
  %2837 = vrot.lane.b32.xlu0 %v2448, 113
  %v2838 = vpop.permute.xlu0 %2837
  %2839 = vrot.lane.b32.xlu0 %v2452, 113
  %v2840 = vpop.permute.xlu0 %2839
  %2841 = vrot.lane.b32.xlu0 %v2441, 113
  %v2842 = vpop.permute.xlu0 %2841
  %2843 = vrot.lane.b32.xlu0 %v2445, 113
  %v2844 = vpop.permute.xlu0 %2843
  %2845 = vrot.lane.b32.xlu0 %v2449, 113
  %v2846 = vpop.permute.xlu0 %2845
  %2847 = vrot.lane.b32.xlu0 %v2453, 113
  %v2848 = vpop.permute.xlu0 %2847
  %2849 = vrot.lane.b32.xlu0 %v2442, 113
  %v2850 = vpop.permute.xlu0 %2849
  %2851 = vrot.lane.b32.xlu0 %v2446, 113
  %v2852 = vpop.permute.xlu0 %2851
  %2853 = vrot.lane.b32.xlu0 %v2450, 113
  %v2854 = vpop.permute.xlu0 %2853
  %2855 = vrot.lane.b32.xlu0 %v2454, 113
  %v2856 = vpop.permute.xlu0 %2855
  %2857 = vrot.lane.b32.xlu0 %v2443, 113
  %v2858 = vpop.permute.xlu0 %2857
  %2859 = vrot.lane.b32.xlu0 %v2447, 113
  %v2860 = vpop.permute.xlu0 %2859
  %2861 = vrot.lane.b32.xlu0 %v2451, 113
  %v2862 = vpop.permute.xlu0 %2861
  %2863 = vrot.lane.b32.xlu0 %v2455, 113
  %v2864 = vpop.permute.xlu0 %2863
  %v2865 = vsel %vm303, %v2850, %v2858
  %v2866 = vsel %vm303, %v2852, %v2860
  %v2867 = vsel %vm303, %v2854, %v2862
  %v2868 = vsel %vm303, %v2856, %v2864
  %v2869 = vsel %vm303, %v2842, %v2850
  %v2870 = vsel %vm303, %v2844, %v2852
  %v2871 = vsel %vm303, %v2846, %v2854
  %v2872 = vsel %vm303, %v2848, %v2856
  %v2873 = vsel %vm303, %v2834, %v2842
  %v2874 = vsel %vm303, %v2836, %v2844
  %v2875 = vsel %vm303, %v2838, %v2846
  %v2876 = vsel %vm303, %v2840, %v2848
  %v2877 = vsel %vm303, %v2858, %v2834
  %v2878 = vsel %vm303, %v2860, %v2836
  %v2879 = vsel %vm303, %v2862, %v2838
  %v2880 = vsel %vm303, %v2864, %v2840
  %v2881 = vmul.f32 %v2873, %v313
  %v2882 = vmul.f32 %v2869, %v314
  %v2883 = vmul.f32 %v2865, %v315
  %v2884 = vmul.f32 %v2877, %v316
  %v2885 = vmul.f32 %v2874, %v313
  %v2886 = vmul.f32 %v2870, %v314
  %v2887 = vmul.f32 %v2866, %v315
  %v2888 = vmul.f32 %v2878, %v316
  %v2889 = vmul.f32 %v2875, %v313
  %v2890 = vmul.f32 %v2871, %v314
  %v2891 = vmul.f32 %v2867, %v315
  %v2892 = vmul.f32 %v2879, %v316
  %v2893 = vmul.f32 %v2876, %v313
  %v2894 = vmul.f32 %v2872, %v314
  %v2895 = vmul.f32 %v2868, %v315
  %v2896 = vmul.f32 %v2880, %v316
  %v2897 = vpack.c.bf16 %v2882, %v2881
  %v2898 = vpack.c.bf16 %v2884, %v2883
  %v2899 = vpack.c.bf16 %v2886, %v2885
  %v2900 = vpack.c.bf16 %v2888, %v2887
  %v2901 = vpack.c.bf16 %v2890, %v2889
  %v2902 = vpack.c.bf16 %v2892, %v2891
  %v2903 = vpack.c.bf16 %v2894, %v2893
  %v2904 = vpack.c.bf16 %v2896, %v2895
  %2905 = vrot.lane.b32.xlu0 %v2440, 112
  %v2906 = vpop.permute.xlu0 %2905
  %2907 = vrot.lane.b32.xlu0 %v2444, 112
  %v2908 = vpop.permute.xlu0 %2907
  %2909 = vrot.lane.b32.xlu0 %v2448, 112
  %v2910 = vpop.permute.xlu0 %2909
  %2911 = vrot.lane.b32.xlu0 %v2452, 112
  %v2912 = vpop.permute.xlu0 %2911
  %2913 = vrot.lane.b32.xlu0 %v2441, 112
  %v2914 = vpop.permute.xlu0 %2913
  %2915 = vrot.lane.b32.xlu0 %v2445, 112
  %v2916 = vpop.permute.xlu0 %2915
  %2917 = vrot.lane.b32.xlu0 %v2449, 112
  %v2918 = vpop.permute.xlu0 %2917
  %2919 = vrot.lane.b32.xlu0 %v2453, 112
  %v2920 = vpop.permute.xlu0 %2919
  %2921 = vrot.lane.b32.xlu0 %v2442, 112
  %v2922 = vpop.permute.xlu0 %2921
  %2923 = vrot.lane.b32.xlu0 %v2446, 112
  %v2924 = vpop.permute.xlu0 %2923
  %2925 = vrot.lane.b32.xlu0 %v2450, 112
  %v2926 = vpop.permute.xlu0 %2925
  %2927 = vrot.lane.b32.xlu0 %v2454, 112
  %v2928 = vpop.permute.xlu0 %2927
  %2929 = vrot.lane.b32.xlu0 %v2443, 112
  %v2930 = vpop.permute.xlu0 %2929
  %2931 = vrot.lane.b32.xlu0 %v2447, 112
  %v2932 = vpop.permute.xlu0 %2931
  %2933 = vrot.lane.b32.xlu0 %v2451, 112
  %v2934 = vpop.permute.xlu0 %2933
  %2935 = vrot.lane.b32.xlu0 %v2455, 112
  %v2936 = vpop.permute.xlu0 %2935
  %v2937 = vsel %vm349, %v2922, %v2930
  %v2938 = vsel %vm349, %v2924, %v2932
  %v2939 = vsel %vm349, %v2926, %v2934
  %v2940 = vsel %vm349, %v2928, %v2936
  %v2941 = vsel %vm349, %v2914, %v2922
  %v2942 = vsel %vm349, %v2916, %v2924
  %v2943 = vsel %vm349, %v2918, %v2926
  %v2944 = vsel %vm349, %v2920, %v2928
  %v2945 = vsel %vm349, %v2906, %v2914
  %v2946 = vsel %vm349, %v2908, %v2916
  %v2947 = vsel %vm349, %v2910, %v2918
  %v2948 = vsel %vm349, %v2912, %v2920
  %v2949 = vsel %vm349, %v2930, %v2906
  %v2950 = vsel %vm349, %v2932, %v2908
  %v2951 = vsel %vm349, %v2934, %v2910
  %v2952 = vsel %vm349, %v2936, %v2912
  %v2953 = vmul.f32 %v2945, %v359
  %v2954 = vmul.f32 %v2941, %v360
  %v2955 = vmul.f32 %v2937, %v361
  %v2956 = vmul.f32 %v2949, %v362
  %v2957 = vmul.f32 %v2946, %v359
  %v2958 = vmul.f32 %v2942, %v360
  %v2959 = vmul.f32 %v2938, %v361
  %v2960 = vmul.f32 %v2950, %v362
  %v2961 = vmul.f32 %v2947, %v359
  %v2962 = vmul.f32 %v2943, %v360
  %v2963 = vmul.f32 %v2939, %v361
  %v2964 = vmul.f32 %v2951, %v362
  %v2965 = vmul.f32 %v2948, %v359
  %v2966 = vmul.f32 %v2944, %v360
  %v2967 = vmul.f32 %v2940, %v361
  %v2968 = vmul.f32 %v2952, %v362
  %v2969 = vpack.c.bf16 %v2954, %v2953
  %v2970 = vpack.c.bf16 %v2956, %v2955
  %v2971 = vpack.c.bf16 %v2958, %v2957
  %v2972 = vpack.c.bf16 %v2960, %v2959
  %v2973 = vpack.c.bf16 %v2962, %v2961
  %v2974 = vpack.c.bf16 %v2964, %v2963
  %v2975 = vpack.c.bf16 %v2966, %v2965
  %v2976 = vpack.c.bf16 %v2968, %v2967
  %2977 = vrot.lane.b32.xlu0 %v2440, 111
  %v2978 = vpop.permute.xlu0 %2977
  %2979 = vrot.lane.b32.xlu0 %v2444, 111
  %v2980 = vpop.permute.xlu0 %2979
  %2981 = vrot.lane.b32.xlu0 %v2448, 111
  %v2982 = vpop.permute.xlu0 %2981
  %2983 = vrot.lane.b32.xlu0 %v2452, 111
  %v2984 = vpop.permute.xlu0 %2983
  %2985 = vrot.lane.b32.xlu0 %v2441, 111
  %v2986 = vpop.permute.xlu0 %2985
  %2987 = vrot.lane.b32.xlu0 %v2445, 111
  %v2988 = vpop.permute.xlu0 %2987
  %2989 = vrot.lane.b32.xlu0 %v2449, 111
  %v2990 = vpop.permute.xlu0 %2989
  %2991 = vrot.lane.b32.xlu0 %v2453, 111
  %v2992 = vpop.permute.xlu0 %2991
  %2993 = vrot.lane.b32.xlu0 %v2442, 111
  %v2994 = vpop.permute.xlu0 %2993
  %2995 = vrot.lane.b32.xlu0 %v2446, 111
  %v2996 = vpop.permute.xlu0 %2995
  %2997 = vrot.lane.b32.xlu0 %v2450, 111
  %v2998 = vpop.permute.xlu0 %2997
  %2999 = vrot.lane.b32.xlu0 %v2454, 111
  %v3000 = vpop.permute.xlu0 %2999
  %3001 = vrot.lane.b32.xlu0 %v2443, 111
  %v3002 = vpop.permute.xlu0 %3001
  %3003 = vrot.lane.b32.xlu0 %v2447, 111
  %v3004 = vpop.permute.xlu0 %3003
  %3005 = vrot.lane.b32.xlu0 %v2451, 111
  %v3006 = vpop.permute.xlu0 %3005
  %3007 = vrot.lane.b32.xlu0 %v2455, 111
  %v3008 = vpop.permute.xlu0 %3007
  %v3009 = vsel %vm395, %v2994, %v3002
  %v3010 = vsel %vm395, %v2996, %v3004
  %v3011 = vsel %vm395, %v2998, %v3006
  %v3012 = vsel %vm395, %v3000, %v3008
  %v3013 = vsel %vm395, %v2986, %v2994
  %v3014 = vsel %vm395, %v2988, %v2996
  %v3015 = vsel %vm395, %v2990, %v2998
  %v3016 = vsel %vm395, %v2992, %v3000
  %v3017 = vsel %vm395, %v2978, %v2986
  %v3018 = vsel %vm395, %v2980, %v2988
  %v3019 = vsel %vm395, %v2982, %v2990
  %v3020 = vsel %vm395, %v2984, %v2992
  %v3021 = vsel %vm395, %v3002, %v2978
  %v3022 = vsel %vm395, %v3004, %v2980
  %v3023 = vsel %vm395, %v3006, %v2982
  %v3024 = vsel %vm395, %v3008, %v2984
  %v3025 = vmul.f32 %v3017, %v405
  %v3026 = vmul.f32 %v3013, %v406
  %v3027 = vmul.f32 %v3009, %v407
  %v3028 = vmul.f32 %v3021, %v408
  %v3029 = vmul.f32 %v3018, %v405
  %v3030 = vmul.f32 %v3014, %v406
  %v3031 = vmul.f32 %v3010, %v407
  %v3032 = vmul.f32 %v3022, %v408
  %v3033 = vmul.f32 %v3019, %v405
  %v3034 = vmul.f32 %v3015, %v406
  %v3035 = vmul.f32 %v3011, %v407
  %v3036 = vmul.f32 %v3023, %v408
  %v3037 = vmul.f32 %v3020, %v405
  %v3038 = vmul.f32 %v3016, %v406
  %v3039 = vmul.f32 %v3012, %v407
  %v3040 = vmul.f32 %v3024, %v408
  %v3041 = vpack.c.bf16 %v3026, %v3025
  %v3042 = vpack.c.bf16 %v3028, %v3027
  %v3043 = vpack.c.bf16 %v3030, %v3029
  %v3044 = vpack.c.bf16 %v3032, %v3031
  %v3045 = vpack.c.bf16 %v3034, %v3033
  %v3046 = vpack.c.bf16 %v3036, %v3035
  %v3047 = vpack.c.bf16 %v3038, %v3037
  %v3048 = vpack.c.bf16 %v3040, %v3039
  %v3057 = vunpack.c.l.b16 %v2529
  %v3058 = vunpack.c.h.b16 %v2529
  %v3059 = vunpack.c.l.b16 %v2530
  %v3060 = vunpack.c.h.b16 %v2530
  %v3061 = vunpack.c.l.b16 %v2531
  %v3062 = vunpack.c.h.b16 %v2531
  %v3063 = vunpack.c.l.b16 %v2532
  %v3064 = vunpack.c.h.b16 %v2532
  %v3065 = vunpack.c.l.b16 %v2533
  %v3066 = vunpack.c.h.b16 %v2533
  %v3067 = vunpack.c.l.b16 %v2534
  %v3068 = vunpack.c.h.b16 %v2534
  %v3069 = vunpack.c.l.b16 %v2535
  %v3070 = vunpack.c.h.b16 %v2535
  %v3071 = vunpack.c.l.b16 %v2536
  %v3072 = vunpack.c.h.b16 %v2536
  %v3073 = vpack.c.b16 %v3061, %v3057
  %v3074 = vpack.c.b16 %v3062, %v3058
  %v3075 = vpack.c.b16 %v3063, %v3059
  %v3076 = vpack.c.b16 %v3064, %v3060
  %v3077 = vpack.c.b16 %v3069, %v3065
  %v3078 = vpack.c.b16 %v3070, %v3066
  %v3079 = vpack.c.b16 %v3071, %v3067
  %v3080 = vpack.c.b16 %v3072, %v3068
  %v3097 = vunpack.c.l.b16 %v2601
  %v3098 = vunpack.c.h.b16 %v2601
  %v3099 = vunpack.c.l.b16 %v2602
  %v3100 = vunpack.c.h.b16 %v2602
  %v3101 = vunpack.c.l.b16 %v2603
  %v3102 = vunpack.c.h.b16 %v2603
  %v3103 = vunpack.c.l.b16 %v2604
  %v3104 = vunpack.c.h.b16 %v2604
  %v3105 = vunpack.c.l.b16 %v2605
  %v3106 = vunpack.c.h.b16 %v2605
  %v3107 = vunpack.c.l.b16 %v2606
  %v3108 = vunpack.c.h.b16 %v2606
  %v3109 = vunpack.c.l.b16 %v2607
  %v3110 = vunpack.c.h.b16 %v2607
  %v3111 = vunpack.c.l.b16 %v2608
  %v3112 = vunpack.c.h.b16 %v2608
  %v3113 = vpack.c.b16 %v3101, %v3097
  %v3114 = vpack.c.b16 %v3102, %v3098
  %v3115 = vpack.c.b16 %v3103, %v3099
  %v3116 = vpack.c.b16 %v3104, %v3100
  %v3117 = vpack.c.b16 %v3109, %v3105
  %v3118 = vpack.c.b16 %v3110, %v3106
  %v3119 = vpack.c.b16 %v3111, %v3107
  %v3120 = vpack.c.b16 %v3112, %v3108
  %v3137 = vunpack.c.l.b16 %v2673
  %v3138 = vunpack.c.h.b16 %v2673
  %v3139 = vunpack.c.l.b16 %v2674
  %v3140 = vunpack.c.h.b16 %v2674
  %v3141 = vunpack.c.l.b16 %v2675
  %v3142 = vunpack.c.h.b16 %v2675
  %v3143 = vunpack.c.l.b16 %v2676
  %v3144 = vunpack.c.h.b16 %v2676
  %v3145 = vunpack.c.l.b16 %v2677
  %v3146 = vunpack.c.h.b16 %v2677
  %v3147 = vunpack.c.l.b16 %v2678
  %v3148 = vunpack.c.h.b16 %v2678
  %v3149 = vunpack.c.l.b16 %v2679
  %v3150 = vunpack.c.h.b16 %v2679
  %v3151 = vunpack.c.l.b16 %v2680
  %v3152 = vunpack.c.h.b16 %v2680
  %v3153 = vpack.c.b16 %v3141, %v3137
  %v3154 = vpack.c.b16 %v3142, %v3138
  %v3155 = vpack.c.b16 %v3143, %v3139
  %v3156 = vpack.c.b16 %v3144, %v3140
  %v3157 = vpack.c.b16 %v3149, %v3145
  %v3158 = vpack.c.b16 %v3150, %v3146
  %v3159 = vpack.c.b16 %v3151, %v3147
  %v3160 = vpack.c.b16 %v3152, %v3148
  %v3177 = vunpack.c.l.b16 %v2745
  %v3178 = vunpack.c.h.b16 %v2745
  %v3179 = vunpack.c.l.b16 %v2746
  %v3180 = vunpack.c.h.b16 %v2746
  %v3181 = vunpack.c.l.b16 %v2747
  %v3182 = vunpack.c.h.b16 %v2747
  %v3183 = vunpack.c.l.b16 %v2748
  %v3184 = vunpack.c.h.b16 %v2748
  %v3185 = vunpack.c.l.b16 %v2749
  %v3186 = vunpack.c.h.b16 %v2749
  %v3187 = vunpack.c.l.b16 %v2750
  %v3188 = vunpack.c.h.b16 %v2750
  %v3189 = vunpack.c.l.b16 %v2751
  %v3190 = vunpack.c.h.b16 %v2751
  %v3191 = vunpack.c.l.b16 %v2752
  %v3192 = vunpack.c.h.b16 %v2752
  %v3193 = vpack.c.b16 %v3181, %v3177
  %v3194 = vpack.c.b16 %v3182, %v3178
  %v3195 = vpack.c.b16 %v3183, %v3179
  %v3196 = vpack.c.b16 %v3184, %v3180
  %v3197 = vpack.c.b16 %v3189, %v3185
  %v3198 = vpack.c.b16 %v3190, %v3186
  %v3199 = vpack.c.b16 %v3191, %v3187
  %v3200 = vpack.c.b16 %v3192, %v3188
  %v3217 = vunpack.c.l.b16 %v2753
  %v3218 = vunpack.c.h.b16 %v2753
  %v3219 = vunpack.c.l.b16 %v2754
  %v3220 = vunpack.c.h.b16 %v2754
  %v3221 = vunpack.c.l.b16 %v2755
  %v3222 = vunpack.c.h.b16 %v2755
  %v3223 = vunpack.c.l.b16 %v2756
  %v3224 = vunpack.c.h.b16 %v2756
  %v3225 = vunpack.c.l.b16 %v2757
  %v3226 = vunpack.c.h.b16 %v2757
  %v3227 = vunpack.c.l.b16 %v2758
  %v3228 = vunpack.c.h.b16 %v2758
  %v3229 = vunpack.c.l.b16 %v2759
  %v3230 = vunpack.c.h.b16 %v2759
  %v3231 = vunpack.c.l.b16 %v2760
  %v3232 = vunpack.c.h.b16 %v2760
  %v3233 = vpack.c.b16 %v3221, %v3217
  %v3234 = vpack.c.b16 %v3222, %v3218
  %v3235 = vpack.c.b16 %v3223, %v3219
  %v3236 = vpack.c.b16 %v3224, %v3220
  %v3237 = vpack.c.b16 %v3229, %v3225
  %v3238 = vpack.c.b16 %v3230, %v3226
  %v3239 = vpack.c.b16 %v3231, %v3227
  %v3240 = vpack.c.b16 %v3232, %v3228
  %v3257 = vunpack.c.l.b16 %v2825
  %v3258 = vunpack.c.h.b16 %v2825
  %v3259 = vunpack.c.l.b16 %v2826
  %v3260 = vunpack.c.h.b16 %v2826
  %v3261 = vunpack.c.l.b16 %v2827
  %v3262 = vunpack.c.h.b16 %v2827
  %v3263 = vunpack.c.l.b16 %v2828
  %v3264 = vunpack.c.h.b16 %v2828
  %v3265 = vunpack.c.l.b16 %v2829
  %v3266 = vunpack.c.h.b16 %v2829
  %v3267 = vunpack.c.l.b16 %v2830
  %v3268 = vunpack.c.h.b16 %v2830
  %v3269 = vunpack.c.l.b16 %v2831
  %v3270 = vunpack.c.h.b16 %v2831
  %v3271 = vunpack.c.l.b16 %v2832
  %v3272 = vunpack.c.h.b16 %v2832
  %v3273 = vpack.c.b16 %v3261, %v3257
  %v3274 = vpack.c.b16 %v3262, %v3258
  %v3275 = vpack.c.b16 %v3263, %v3259
  %v3276 = vpack.c.b16 %v3264, %v3260
  %v3277 = vpack.c.b16 %v3269, %v3265
  %v3278 = vpack.c.b16 %v3270, %v3266
  %v3279 = vpack.c.b16 %v3271, %v3267
  %v3280 = vpack.c.b16 %v3272, %v3268
  %v3297 = vunpack.c.l.b16 %v2897
  %v3298 = vunpack.c.h.b16 %v2897
  %v3299 = vunpack.c.l.b16 %v2898
  %v3300 = vunpack.c.h.b16 %v2898
  %v3301 = vunpack.c.l.b16 %v2899
  %v3302 = vunpack.c.h.b16 %v2899
  %v3303 = vunpack.c.l.b16 %v2900
  %v3304 = vunpack.c.h.b16 %v2900
  %v3305 = vunpack.c.l.b16 %v2901
  %v3306 = vunpack.c.h.b16 %v2901
  %v3307 = vunpack.c.l.b16 %v2902
  %v3308 = vunpack.c.h.b16 %v2902
  %v3309 = vunpack.c.l.b16 %v2903
  %v3310 = vunpack.c.h.b16 %v2903
  %v3311 = vunpack.c.l.b16 %v2904
  %v3312 = vunpack.c.h.b16 %v2904
  %v3313 = vpack.c.b16 %v3301, %v3297
  %v3314 = vpack.c.b16 %v3302, %v3298
  %v3315 = vpack.c.b16 %v3303, %v3299
  %v3316 = vpack.c.b16 %v3304, %v3300
  %v3317 = vpack.c.b16 %v3309, %v3305
  %v3318 = vpack.c.b16 %v3310, %v3306
  %v3319 = vpack.c.b16 %v3311, %v3307
  %v3320 = vpack.c.b16 %v3312, %v3308
  %v3337 = vunpack.c.l.b16 %v2969
  %v3338 = vunpack.c.h.b16 %v2969
  %v3339 = vunpack.c.l.b16 %v2970
  %v3340 = vunpack.c.h.b16 %v2970
  %v3341 = vunpack.c.l.b16 %v2971
  %v3342 = vunpack.c.h.b16 %v2971
  %v3343 = vunpack.c.l.b16 %v2972
  %v3344 = vunpack.c.h.b16 %v2972
  %v3345 = vunpack.c.l.b16 %v2973
  %v3346 = vunpack.c.h.b16 %v2973
  %v3347 = vunpack.c.l.b16 %v2974
  %v3348 = vunpack.c.h.b16 %v2974
  %v3349 = vunpack.c.l.b16 %v2975
  %v3350 = vunpack.c.h.b16 %v2975
  %v3351 = vunpack.c.l.b16 %v2976
  %v3352 = vunpack.c.h.b16 %v2976
  %v3353 = vpack.c.b16 %v3341, %v3337
  %v3354 = vpack.c.b16 %v3342, %v3338
  %v3355 = vpack.c.b16 %v3343, %v3339
  %v3356 = vpack.c.b16 %v3344, %v3340
  %v3357 = vpack.c.b16 %v3349, %v3345
  %v3358 = vpack.c.b16 %v3350, %v3346
  %v3359 = vpack.c.b16 %v3351, %v3347
  %v3360 = vpack.c.b16 %v3352, %v3348
  %v3377 = vunpack.c.l.b16 %v3041
  %v3378 = vunpack.c.h.b16 %v3041
  %v3379 = vunpack.c.l.b16 %v3042
  %v3380 = vunpack.c.h.b16 %v3042
  %v3381 = vunpack.c.l.b16 %v3043
  %v3382 = vunpack.c.h.b16 %v3043
  %v3383 = vunpack.c.l.b16 %v3044
  %v3384 = vunpack.c.h.b16 %v3044
  %v3385 = vunpack.c.l.b16 %v3045
  %v3386 = vunpack.c.h.b16 %v3045
  %v3387 = vunpack.c.l.b16 %v3046
  %v3388 = vunpack.c.h.b16 %v3046
  %v3389 = vunpack.c.l.b16 %v3047
  %v3390 = vunpack.c.h.b16 %v3047
  %v3391 = vunpack.c.l.b16 %v3048
  %v3392 = vunpack.c.h.b16 %v3048
  %v3393 = vpack.c.b16 %v3381, %v3377
  %v3394 = vpack.c.b16 %v3382, %v3378
  %v3395 = vpack.c.b16 %v3383, %v3379
  %v3396 = vpack.c.b16 %v3384, %v3380
  %v3397 = vpack.c.b16 %v3389, %v3385
  %v3398 = vpack.c.b16 %v3390, %v3386
  %v3399 = vpack.c.b16 %v3391, %v3387
  %v3400 = vpack.c.b16 %v3392, %v3388
  %v3417 = vunpack.c.l.b16 %v2457
  %v3418 = vunpack.c.h.b16 %v2457
  %v3419 = vunpack.c.l.b16 %v2458
  %v3420 = vunpack.c.l.b16 %v2459
  %v3421 = vunpack.c.h.b16 %v2459
  %v3422 = vunpack.c.l.b16 %v2460
  %v3423 = vunpack.c.l.b16 %v2461
  %v3424 = vunpack.c.h.b16 %v2461
  %v3425 = vunpack.c.l.b16 %v2462
  %v3426 = vunpack.c.l.b16 %v2463
  %v3427 = vunpack.c.h.b16 %v2463
  %v3428 = vunpack.c.l.b16 %v2464
  %v3429 = vpack.c.b16 %v3420, %v3417
  %v3430 = vpack.c.b16 %v3421, %v3418
  %v3431 = vpack.c.b16 %v3422, %v3419
  %v3432 = vpack.c.b16 %v3426, %v3423
  %v3433 = vpack.c.b16 %v3427, %v3424
  %v3434 = vpack.c.b16 %v3428, %v3425
  %v3440 = vsel %vm1995, %v3431, 0
  %v3443 = vsel %vm1995, %v3434, 0
  %3445 = vmatpush.bf16.msra.mxu0 %v3197
  %3446 = vmatpush.bf16.msra.mxu0 %v3193
  %3447 = vmatpush.bf16.msra.mxu0 %v3157
  %3448 = vmatpush.bf16.msra.mxu0 %v3153
  %3449 = vmatpush.bf16.msra.mxu0 %v3117
  %3450 = vmatpush.bf16.msra.mxu0 %v3113
  %3451 = vmatpush.bf16.msra.mxu0 %v3077
  %3452 = vmatpush.bf16.msra.mxu0 %v3073
  %3453 = vmatmul.bf16.gmra.mxu0 %v3429
  %v3454 = vpop.f32.mrf.mxu0
  %v3455 = vadd.f32 0.0, %v3454
  %v3456 = vpop.f32.mrf.mxu0
  %v3457 = vadd.f32 0.0, %v3456
  %3458 = vmatmul.bf16.gmra.mxu0 %v3432
  %v3459 = vpop.f32.mrf.mxu0
  %v3460 = vadd.f32 0.0, %v3459
  %v3461 = vpop.f32.mrf.mxu0
  %v3462 = vadd.f32 0.0, %v3461
  %3463 = vdwg.mxu0
  %3464 = vmatpush.bf16.msra.mxu0 %v3357
  %3465 = vmatpush.bf16.msra.mxu0 %v3353
  %3466 = vmatpush.bf16.msra.mxu0 %v3317
  %3467 = vmatpush.bf16.msra.mxu0 %v3313
  %3468 = vmatpush.bf16.msra.mxu0 %v3277
  %3469 = vmatpush.bf16.msra.mxu0 %v3273
  %3470 = vmatpush.bf16.msra.mxu0 %v3237
  %3471 = vmatpush.bf16.msra.mxu0 %v3233
  %3472 = vmatmul.bf16.gmra.mxu0 %v3430
  %v3473 = vpop.f32.mrf.mxu0
  %v3474 = vadd.f32 %v3455, %v3473
  %v3475 = vpop.f32.mrf.mxu0
  %v3476 = vadd.f32 %v3457, %v3475
  %3477 = vmatmul.bf16.gmra.mxu0 %v3433
  %v3478 = vpop.f32.mrf.mxu0
  %v3479 = vadd.f32 %v3460, %v3478
  %v3480 = vpop.f32.mrf.mxu0
  %v3481 = vadd.f32 %v3462, %v3480
  %3482 = vdwg.mxu0
  %3483 = vmatpush.bf16.msra.mxu0 0
  %3484 = vmatpush.bf16.msra.mxu0 0
  %3485 = vmatpush.bf16.msra.mxu0 0
  %3486 = vmatpush.bf16.msra.mxu0 0
  %3487 = vmatpush.bf16.msra.mxu0 0
  %3488 = vmatpush.bf16.msra.mxu0 0
  %3489 = vmatpush.bf16.msra.mxu0 %v3397
  %3490 = vmatpush.bf16.msra.mxu0 %v3393
  %3491 = vmatmul.bf16.gmra.mxu0 %v3440
  %v3492 = vpop.f32.mrf.mxu0
  %v3493 = vadd.f32 %v3474, %v3492
  %v3494 = vpop.f32.mrf.mxu0
  %v3495 = vadd.f32 %v3476, %v3494
  %3496 = vmatmul.bf16.gmra.mxu0 %v3443
  %v3497 = vpop.f32.mrf.mxu0
  %v3498 = vadd.f32 %v3479, %v3497
  %v3499 = vpop.f32.mrf.mxu0
  %v3500 = vadd.f32 %v3481, %v3499
  %3501 = vdwg.mxu0
  %3502 = vmatpush.bf16.msra.mxu0 %v3198
  %3503 = vmatpush.bf16.msra.mxu0 %v3194
  %3504 = vmatpush.bf16.msra.mxu0 %v3158
  %3505 = vmatpush.bf16.msra.mxu0 %v3154
  %3506 = vmatpush.bf16.msra.mxu0 %v3118
  %3507 = vmatpush.bf16.msra.mxu0 %v3114
  %3508 = vmatpush.bf16.msra.mxu0 %v3078
  %3509 = vmatpush.bf16.msra.mxu0 %v3074
  %3510 = vmatmul.bf16.gmra.mxu0 %v3429
  %v3511 = vpop.f32.mrf.mxu0
  %v3512 = vadd.f32 0.0, %v3511
  %v3513 = vpop.f32.mrf.mxu0
  %v3514 = vadd.f32 0.0, %v3513
  %3515 = vmatmul.bf16.gmra.mxu0 %v3432
  %v3516 = vpop.f32.mrf.mxu0
  %v3517 = vadd.f32 0.0, %v3516
  %v3518 = vpop.f32.mrf.mxu0
  %v3519 = vadd.f32 0.0, %v3518
  %3520 = vdwg.mxu0
  %3521 = vmatpush.bf16.msra.mxu0 %v3358
  %3522 = vmatpush.bf16.msra.mxu0 %v3354
  %3523 = vmatpush.bf16.msra.mxu0 %v3318
  %3524 = vmatpush.bf16.msra.mxu0 %v3314
  %3525 = vmatpush.bf16.msra.mxu0 %v3278
  %3526 = vmatpush.bf16.msra.mxu0 %v3274
  %3527 = vmatpush.bf16.msra.mxu0 %v3238
  %3528 = vmatpush.bf16.msra.mxu0 %v3234
  %3529 = vmatmul.bf16.gmra.mxu0 %v3430
  %v3530 = vpop.f32.mrf.mxu0
  %v3531 = vadd.f32 %v3512, %v3530
  %v3532 = vpop.f32.mrf.mxu0
  %v3533 = vadd.f32 %v3514, %v3532
  %3534 = vmatmul.bf16.gmra.mxu0 %v3433
  %v3535 = vpop.f32.mrf.mxu0
  %v3536 = vadd.f32 %v3517, %v3535
  %v3537 = vpop.f32.mrf.mxu0
  %v3538 = vadd.f32 %v3519, %v3537
  %3539 = vdwg.mxu0
  %3540 = vmatpush.bf16.msra.mxu0 0
  %3541 = vmatpush.bf16.msra.mxu0 0
  %3542 = vmatpush.bf16.msra.mxu0 0
  %3543 = vmatpush.bf16.msra.mxu0 0
  %3544 = vmatpush.bf16.msra.mxu0 0
  %3545 = vmatpush.bf16.msra.mxu0 0
  %3546 = vmatpush.bf16.msra.mxu0 %v3398
  %3547 = vmatpush.bf16.msra.mxu0 %v3394
  %3548 = vmatmul.bf16.gmra.mxu0 %v3440
  %v3549 = vpop.f32.mrf.mxu0
  %v3550 = vadd.f32 %v3531, %v3549
  %v3551 = vpop.f32.mrf.mxu0
  %v3552 = vadd.f32 %v3533, %v3551
  %3553 = vmatmul.bf16.gmra.mxu0 %v3443
  %v3554 = vpop.f32.mrf.mxu0
  %v3555 = vadd.f32 %v3536, %v3554
  %v3556 = vpop.f32.mrf.mxu0
  %v3557 = vadd.f32 %v3538, %v3556
  %3558 = vdwg.mxu0
  %3559 = vmatpush.bf16.msra.mxu0 %v3199
  %3560 = vmatpush.bf16.msra.mxu0 %v3195
  %3561 = vmatpush.bf16.msra.mxu0 %v3159
  %3562 = vmatpush.bf16.msra.mxu0 %v3155
  %3563 = vmatpush.bf16.msra.mxu0 %v3119
  %3564 = vmatpush.bf16.msra.mxu0 %v3115
  %3565 = vmatpush.bf16.msra.mxu0 %v3079
  %3566 = vmatpush.bf16.msra.mxu0 %v3075
  %3567 = vmatmul.bf16.gmra.mxu0 %v3429
  %v3568 = vpop.f32.mrf.mxu0
  %v3569 = vadd.f32 0.0, %v3568
  %v3570 = vpop.f32.mrf.mxu0
  %v3571 = vadd.f32 0.0, %v3570
  %3572 = vmatmul.bf16.gmra.mxu0 %v3432
  %v3573 = vpop.f32.mrf.mxu0
  %v3574 = vadd.f32 0.0, %v3573
  %v3575 = vpop.f32.mrf.mxu0
  %v3576 = vadd.f32 0.0, %v3575
  %3577 = vdwg.mxu0
  %3578 = vmatpush.bf16.msra.mxu0 %v3359
  %3579 = vmatpush.bf16.msra.mxu0 %v3355
  %3580 = vmatpush.bf16.msra.mxu0 %v3319
  %3581 = vmatpush.bf16.msra.mxu0 %v3315
  %3582 = vmatpush.bf16.msra.mxu0 %v3279
  %3583 = vmatpush.bf16.msra.mxu0 %v3275
  %3584 = vmatpush.bf16.msra.mxu0 %v3239
  %3585 = vmatpush.bf16.msra.mxu0 %v3235
  %3586 = vmatmul.bf16.gmra.mxu0 %v3430
  %v3587 = vpop.f32.mrf.mxu0
  %v3588 = vadd.f32 %v3569, %v3587
  %v3589 = vpop.f32.mrf.mxu0
  %v3590 = vadd.f32 %v3571, %v3589
  %3591 = vmatmul.bf16.gmra.mxu0 %v3433
  %v3592 = vpop.f32.mrf.mxu0
  %v3593 = vadd.f32 %v3574, %v3592
  %v3594 = vpop.f32.mrf.mxu0
  %v3595 = vadd.f32 %v3576, %v3594
  %3596 = vdwg.mxu0
  %3597 = vmatpush.bf16.msra.mxu0 0
  %3598 = vmatpush.bf16.msra.mxu0 0
  %3599 = vmatpush.bf16.msra.mxu0 0
  %3600 = vmatpush.bf16.msra.mxu0 0
  %3601 = vmatpush.bf16.msra.mxu0 0
  %3602 = vmatpush.bf16.msra.mxu0 0
  %3603 = vmatpush.bf16.msra.mxu0 %v3399
  %3604 = vmatpush.bf16.msra.mxu0 %v3395
  %3605 = vmatmul.bf16.gmra.mxu0 %v3440
  %v3606 = vpop.f32.mrf.mxu0
  %v3607 = vadd.f32 %v3588, %v3606
  %v3608 = vpop.f32.mrf.mxu0
  %v3609 = vadd.f32 %v3590, %v3608
  %3610 = vmatmul.bf16.gmra.mxu0 %v3443
  %v3611 = vpop.f32.mrf.mxu0
  %v3612 = vadd.f32 %v3593, %v3611
  %v3613 = vpop.f32.mrf.mxu0
  %v3614 = vadd.f32 %v3595, %v3613
  %3615 = vdwg.mxu0
  %3616 = vmatpush.bf16.msra.mxu0 %v3200
  %3617 = vmatpush.bf16.msra.mxu0 %v3196
  %3618 = vmatpush.bf16.msra.mxu0 %v3160
  %3619 = vmatpush.bf16.msra.mxu0 %v3156
  %3620 = vmatpush.bf16.msra.mxu0 %v3120
  %3621 = vmatpush.bf16.msra.mxu0 %v3116
  %3622 = vmatpush.bf16.msra.mxu0 %v3080
  %3623 = vmatpush.bf16.msra.mxu0 %v3076
  %3624 = vmatmul.bf16.gmra.mxu0 %v3429
  %v3625 = vpop.f32.mrf.mxu0
  %v3626 = vadd.f32 0.0, %v3625
  %v3627 = vpop.f32.mrf.mxu0
  %v3628 = vadd.f32 0.0, %v3627
  %3629 = vmatmul.bf16.gmra.mxu0 %v3432
  %v3630 = vpop.f32.mrf.mxu0
  %v3631 = vadd.f32 0.0, %v3630
  %v3632 = vpop.f32.mrf.mxu0
  %v3633 = vadd.f32 0.0, %v3632
  %3634 = vdwg.mxu0
  %3635 = vmatpush.bf16.msra.mxu0 %v3360
  %3636 = vmatpush.bf16.msra.mxu0 %v3356
  %3637 = vmatpush.bf16.msra.mxu0 %v3320
  %3638 = vmatpush.bf16.msra.mxu0 %v3316
  %3639 = vmatpush.bf16.msra.mxu0 %v3280
  %3640 = vmatpush.bf16.msra.mxu0 %v3276
  %3641 = vmatpush.bf16.msra.mxu0 %v3240
  %3642 = vmatpush.bf16.msra.mxu0 %v3236
  %3643 = vmatmul.bf16.gmra.mxu0 %v3430
  %v3644 = vpop.f32.mrf.mxu0
  %v3645 = vadd.f32 %v3626, %v3644
  %v3646 = vpop.f32.mrf.mxu0
  %v3647 = vadd.f32 %v3628, %v3646
  %3648 = vmatmul.bf16.gmra.mxu0 %v3433
  %v3649 = vpop.f32.mrf.mxu0
  %v3650 = vadd.f32 %v3631, %v3649
  %v3651 = vpop.f32.mrf.mxu0
  %v3652 = vadd.f32 %v3633, %v3651
  %3653 = vdwg.mxu0
  %3654 = vmatpush.bf16.msra.mxu0 0
  %3655 = vmatpush.bf16.msra.mxu0 0
  %3656 = vmatpush.bf16.msra.mxu0 0
  %3657 = vmatpush.bf16.msra.mxu0 0
  %3658 = vmatpush.bf16.msra.mxu0 0
  %3659 = vmatpush.bf16.msra.mxu0 0
  %3660 = vmatpush.bf16.msra.mxu0 %v3400
  %3661 = vmatpush.bf16.msra.mxu0 %v3396
  %3662 = vmatmul.bf16.gmra.mxu0 %v3440
  %v3663 = vpop.f32.mrf.mxu0
  %v3664 = vadd.f32 %v3645, %v3663
  %v3665 = vpop.f32.mrf.mxu0
  %v3666 = vadd.f32 %v3647, %v3665
  %3667 = vmatmul.bf16.gmra.mxu0 %v3443
  %v3668 = vpop.f32.mrf.mxu0
  %v3669 = vadd.f32 %v3650, %v3668
  %v3670 = vpop.f32.mrf.mxu0
  %v3671 = vadd.f32 %v3652, %v3670
  %3672 = vdwg.mxu0
  %v3673 = vadd.f32 %v3493, %v3550
  %v3674 = vadd.f32 %v3673, %v3607
  %v3675 = vadd.f32 %v3674, %v3664
  %3676 = vadd.xlane.f32.xlu0 %v3675
  %v3677 = vpop.xlane.xlu0 %3676
  %v3678 = vadd.f32 %v3495, %v3552
  %v3679 = vadd.f32 %v3678, %v3609
  %v3680 = vadd.f32 %v3679, %v3666
  %3681 = vadd.xlane.f32.xlu0 %v3680
  %v3682 = vpop.xlane.xlu0 %3681
  %v3683 = vadd.f32 %v3498, %v3555
  %v3684 = vadd.f32 %v3683, %v3612
  %v3685 = vadd.f32 %v3684, %v3669
  %3686 = vadd.xlane.f32.xlu0 %v3685
  %v3687 = vpop.xlane.xlu0 %3686
  %v3688 = vadd.f32 %v3500, %v3557
  %v3689 = vadd.f32 %v3688, %v3614
  %v3690 = vadd.f32 %v3689, %v3671
  %3691 = vadd.xlane.f32.xlu0 %v3690
  %v3692 = vpop.xlane.xlu0 %3691
  %v3693 = vmul.f32 %v3677, %v808
  %v3694 = vmul.f32 %v3682, %v808
  %v3695 = vmul.f32 %v3687, %v808
  %v3696 = vmul.f32 %v3692, %v808
  %v3697 = vsub.f32 %v3493, %v3693
  %v3698 = vsub.f32 %v3550, %v3693
  %v3699 = vsub.f32 %v3607, %v3693
  %v3700 = vsub.f32 %v3664, %v3693
  %v3701 = vsub.f32 %v3495, %v3694
  %v3702 = vsub.f32 %v3552, %v3694
  %v3703 = vsub.f32 %v3609, %v3694
  %v3704 = vsub.f32 %v3666, %v3694
  %v3705 = vsub.f32 %v3498, %v3695
  %v3706 = vsub.f32 %v3555, %v3695
  %v3707 = vsub.f32 %v3612, %v3695
  %v3708 = vsub.f32 %v3669, %v3695
  %v3709 = vsub.f32 %v3500, %v3696
  %v3710 = vsub.f32 %v3557, %v3696
  %v3711 = vsub.f32 %v3614, %v3696
  %v3712 = vsub.f32 %v3671, %v3696
  %v3713 = vmul.f32 %v3697, %v3697
  %v3714 = vmul.f32 %v3698, %v3698
  %v3715 = vmul.f32 %v3699, %v3699
  %v3716 = vmul.f32 %v3700, %v3700
  %v3717 = vmul.f32 %v3701, %v3701
  %v3718 = vmul.f32 %v3702, %v3702
  %v3719 = vmul.f32 %v3703, %v3703
  %v3720 = vmul.f32 %v3704, %v3704
  %v3721 = vmul.f32 %v3705, %v3705
  %v3722 = vmul.f32 %v3706, %v3706
  %v3723 = vmul.f32 %v3707, %v3707
  %v3724 = vmul.f32 %v3708, %v3708
  %v3725 = vmul.f32 %v3709, %v3709
  %v3726 = vmul.f32 %v3710, %v3710
  %v3727 = vmul.f32 %v3711, %v3711
  %v3728 = vmul.f32 %v3712, %v3712
  %v3729 = vadd.f32 %v3713, %v3714
  %v3730 = vadd.f32 %v3729, %v3715
  %v3731 = vadd.f32 %v3730, %v3716
  %3732 = vadd.xlane.f32.xlu0 %v3731
  %v3733 = vpop.xlane.xlu0 %3732
  %v3734 = vadd.f32 %v3717, %v3718
  %v3735 = vadd.f32 %v3734, %v3719
  %v3736 = vadd.f32 %v3735, %v3720
  %3737 = vadd.xlane.f32.xlu0 %v3736
  %v3738 = vpop.xlane.xlu0 %3737
  %v3739 = vadd.f32 %v3721, %v3722
  %v3740 = vadd.f32 %v3739, %v3723
  %v3741 = vadd.f32 %v3740, %v3724
  %3742 = vadd.xlane.f32.xlu0 %v3741
  %v3743 = vpop.xlane.xlu0 %3742
  %v3744 = vadd.f32 %v3725, %v3726
  %v3745 = vadd.f32 %v3744, %v3727
  %v3746 = vadd.f32 %v3745, %v3728
  %3747 = vadd.xlane.f32.xlu0 %v3746
  %v3748 = vpop.xlane.xlu0 %3747
  %v3749 = vmul.f32 %v3733, %v808
  %v3750 = vmul.f32 %v3738, %v808
  %v3751 = vmul.f32 %v3743, %v808
  %v3752 = vmul.f32 %v3748, %v808
  %s3753 = scalar_lea.vmem %s4, 64
  %v3754 = vld [vmem:[%s3753] sm:$0xff]
  %v3755 = vld [vmem:[%s3753 + $0x8] sm:$0xff]
  %v3756 = vld [vmem:[%s3753 + $0x10] sm:$0xff]
  %v3757 = vld [vmem:[%s3753 + $0x18] sm:$0xff]
  %v3758 = vadd.f32 %v3749, 1e-05
  %v3759 = vadd.f32 %v3750, 1e-05
  %v3760 = vadd.f32 %v3751, 1e-05
  %v3761 = vadd.f32 %v3752, 1e-05
  %v3762 = vrsqrt.pop %v3758
  %v3763 = vmul.f32 %v3762, %v3758
  %v3764 = vmul.f32 %v3763, %v3762
  %v3765 = vmul.f32 0.5, %v3764
  %v3766 = vsub.f32 1.5, %v3765
  %v3767 = vmul.f32 %v3762, %v3766
  %vm3768 = vweird.f32 %v3758
  %vm3769 = vweird.f32 %v3762
  %vm3770 = vmor %vm3768, %vm3769
  %v3771 = vsel %vm3770, %v3762, %v3767
  %v3772 = vrsqrt.pop %v3759
  %v3773 = vmul.f32 %v3772, %v3759
  %v3774 = vmul.f32 %v3773, %v3772
  %v3775 = vmul.f32 0.5, %v3774
  %v3776 = vsub.f32 1.5, %v3775
  %v3777 = vmul.f32 %v3772, %v3776
  %vm3778 = vweird.f32 %v3759
  %vm3779 = vweird.f32 %v3772
  %vm3780 = vmor %vm3778, %vm3779
  %v3781 = vsel %vm3780, %v3772, %v3777
  %v3782 = vrsqrt.pop %v3760
  %v3783 = vmul.f32 %v3782, %v3760
  %v3784 = vmul.f32 %v3783, %v3782
  %v3785 = vmul.f32 0.5, %v3784
  %v3786 = vsub.f32 1.5, %v3785
  %v3787 = vmul.f32 %v3782, %v3786
  %vm3788 = vweird.f32 %v3760
  %vm3789 = vweird.f32 %v3782
  %vm3790 = vmor %vm3788, %vm3789
  %v3791 = vsel %vm3790, %v3782, %v3787
  %v3792 = vrsqrt.pop %v3761
  %v3793 = vmul.f32 %v3792, %v3761
  %v3794 = vmul.f32 %v3793, %v3792
  %v3795 = vmul.f32 0.5, %v3794
  %v3796 = vsub.f32 1.5, %v3795
  %v3797 = vmul.f32 %v3792, %v3796
  %vm3798 = vweird.f32 %v3761
  %vm3799 = vweird.f32 %v3792
  %vm3800 = vmor %vm3798, %vm3799
  %v3801 = vsel %vm3800, %v3792, %v3797
  %v3802 = vmul.f32 %v3754, %v3771
  %v3803 = vmul.f32 %v3755, %v3781
  %v3804 = vmul.f32 %v3756, %v3791
  %v3805 = vmul.f32 %v3757, %v3801
  %3807 = vset.pattern.permute.xlu0 0
  %3808 = vperm.xlu0 %3807, %v3802
  %v3809 = vpop.permute.xlu0 %3808
  %3812 = vset.pattern.permute.xlu0 0
  %3813 = vperm.xlu0 %3812, %v3803
  %v3814 = vpop.permute.xlu0 %3813
  %3817 = vset.pattern.permute.xlu0 0
  %3818 = vperm.xlu0 %3817, %v3804
  %v3819 = vpop.permute.xlu0 %3818
  %3822 = vset.pattern.permute.xlu0 0
  %3823 = vperm.xlu0 %3822, %v3805
  %v3824 = vpop.permute.xlu0 %3823
  %v3826 = vmul.f32 %v3697, %v3809
  %v3827 = vmul.f32 %v3698, %v3809
  %v3828 = vmul.f32 %v3699, %v3809
  %v3829 = vmul.f32 %v3700, %v3809
  %v3830 = vmul.f32 %v3701, %v3814
  %v3831 = vmul.f32 %v3702, %v3814
  %v3832 = vmul.f32 %v3703, %v3814
  %v3833 = vmul.f32 %v3704, %v3814
  %v3834 = vmul.f32 %v3705, %v3819
  %v3835 = vmul.f32 %v3706, %v3819
  %v3836 = vmul.f32 %v3707, %v3819
  %v3837 = vmul.f32 %v3708, %v3819
  %v3838 = vmul.f32 %v3709, %v3824
  %v3839 = vmul.f32 %v3710, %v3824
  %v3840 = vmul.f32 %v3711, %v3824
  %v3841 = vmul.f32 %v3712, %v3824
  %s3842 = scalar_lea.vmem %s5, 64
  %v3843 = vld [vmem:[%s3842] sm:$0xff]
  %v3844 = vld [vmem:[%s3842 + $0x8] sm:$0xff]
  %v3845 = vld [vmem:[%s3842 + $0x10] sm:$0xff]
  %v3846 = vld [vmem:[%s3842 + $0x18] sm:$0xff]
  %3848 = vset.pattern.permute.xlu0 0
  %3849 = vperm.xlu0 %3848, %v3843
  %v3850 = vpop.permute.xlu0 %3849
  %3853 = vset.pattern.permute.xlu0 0
  %3854 = vperm.xlu0 %3853, %v3844
  %v3855 = vpop.permute.xlu0 %3854
  %3858 = vset.pattern.permute.xlu0 0
  %3859 = vperm.xlu0 %3858, %v3845
  %v3860 = vpop.permute.xlu0 %3859
  %3863 = vset.pattern.permute.xlu0 0
  %3864 = vperm.xlu0 %3863, %v3846
  %v3865 = vpop.permute.xlu0 %3864
  %v3867 = vadd.f32 %v3826, %v3850
  %v3868 = vadd.f32 %v3827, %v3850
  %v3869 = vadd.f32 %v3828, %v3850
  %v3870 = vadd.f32 %v3829, %v3850
  %v3871 = vadd.f32 %v3830, %v3855
  %v3872 = vadd.f32 %v3831, %v3855
  %v3873 = vadd.f32 %v3832, %v3855
  %v3874 = vadd.f32 %v3833, %v3855
  %v3875 = vadd.f32 %v3834, %v3860
  %v3876 = vadd.f32 %v3835, %v3860
  %v3877 = vadd.f32 %v3836, %v3860
  %v3878 = vadd.f32 %v3837, %v3860
  %v3879 = vadd.f32 %v3838, %v3865
  %v3880 = vadd.f32 %v3839, %v3865
  %v3881 = vadd.f32 %v3840, %v3865
  %v3882 = vadd.f32 %v3841, %v3865
  %v3883 = vadd.f32 %v3867, %v997
  %v3884 = vadd.f32 %v3868, %v998
  %v3885 = vadd.f32 %v3869, %v999
  %v3886 = vadd.f32 %v3870, %v1000
  %v3887 = vadd.f32 %v3871, %v1001
  %v3888 = vadd.f32 %v3872, %v1002
  %v3889 = vadd.f32 %v3873, %v1003
  %v3890 = vadd.f32 %v3874, %v1004
  %v3891 = vadd.f32 %v3875, %v1005
  %v3892 = vadd.f32 %v3876, %v1006
  %v3893 = vadd.f32 %v3877, %v1007
  %v3894 = vadd.f32 %v3878, %v1008
  %v3895 = vadd.f32 %v3879, %v1009
  %v3896 = vadd.f32 %v3880, %v1010
  %v3897 = vadd.f32 %v3881, %v1011
  %v3898 = vadd.f32 %v3882, %v1012
  %v3899 = vmax.f32 %v3883, 0.0
  %v3900 = vmax.f32 %v3884, 0.0
  %v3901 = vmax.f32 %v3885, 0.0
  %v3902 = vmax.f32 %v3886, 0.0
  %v3903 = vmax.f32 %v3887, 0.0
  %v3904 = vmax.f32 %v3888, 0.0
  %v3905 = vmax.f32 %v3889, 0.0
  %v3906 = vmax.f32 %v3890, 0.0
  %v3907 = vmax.f32 %v3891, 0.0
  %v3908 = vmax.f32 %v3892, 0.0
  %v3909 = vmax.f32 %v3893, 0.0
  %v3910 = vmax.f32 %v3894, 0.0
  %v3911 = vmax.f32 %v3895, 0.0
  %v3912 = vmax.f32 %v3896, 0.0
  %v3913 = vmax.f32 %v3897, 0.0
  %v3914 = vmax.f32 %v3898, 0.0
  %s3915 = scalar_lea.vmem %s3, 96
  %v3916 = vld [vmem:[%s3915] sm:$0xff]
  %v3917 = vld [vmem:[%s3915 + $0x8] sm:$0xf]
  %v3918 = vld [vmem:[%s3915 + $0xc] sm:$0xff]
  %v3919 = vld [vmem:[%s3915 + $0x14] sm:$0xf]
  %v3920 = vld [vmem:[%s3915 + $0x18] sm:$0xff]
  %v3921 = vld [vmem:[%s3915 + $0x20] sm:$0xf]
  %v3922 = vld [vmem:[%s3915 + $0x24] sm:$0xff]
  %v3923 = vld [vmem:[%s3915 + $0x2c] sm:$0xf]
  %3924 = vrot.lane.b32.xlu0 %v3899, 17
  %v3925 = vpop.permute.xlu0 %3924
  %3926 = vrot.lane.b32.xlu0 %v3903, 17
  %v3927 = vpop.permute.xlu0 %3926
  %3928 = vrot.lane.b32.xlu0 %v3907, 17
  %v3929 = vpop.permute.xlu0 %3928
  %3930 = vrot.lane.b32.xlu0 %v3911, 17
  %v3931 = vpop.permute.xlu0 %3930
  %3932 = vrot.lane.b32.xlu0 %v3900, 17
  %v3933 = vpop.permute.xlu0 %3932
  %3934 = vrot.lane.b32.xlu0 %v3904, 17
  %v3935 = vpop.permute.xlu0 %3934
  %3936 = vrot.lane.b32.xlu0 %v3908, 17
  %v3937 = vpop.permute.xlu0 %3936
  %3938 = vrot.lane.b32.xlu0 %v3912, 17
  %v3939 = vpop.permute.xlu0 %3938
  %3940 = vrot.lane.b32.xlu0 %v3901, 17
  %v3941 = vpop.permute.xlu0 %3940
  %3942 = vrot.lane.b32.xlu0 %v3905, 17
  %v3943 = vpop.permute.xlu0 %3942
  %3944 = vrot.lane.b32.xlu0 %v3909, 17
  %v3945 = vpop.permute.xlu0 %3944
  %3946 = vrot.lane.b32.xlu0 %v3913, 17
  %v3947 = vpop.permute.xlu0 %3946
  %3948 = vrot.lane.b32.xlu0 %v3902, 17
  %v3949 = vpop.permute.xlu0 %3948
  %3950 = vrot.lane.b32.xlu0 %v3906, 17
  %v3951 = vpop.permute.xlu0 %3950
  %3952 = vrot.lane.b32.xlu0 %v3910, 17
  %v3953 = vpop.permute.xlu0 %3952
  %3954 = vrot.lane.b32.xlu0 %v3914, 17
  %v3955 = vpop.permute.xlu0 %3954
  %v3956 = vsel %vm69, %v3941, %v3949
  %v3957 = vsel %vm69, %v3943, %v3951
  %v3958 = vsel %vm69, %v3945, %v3953
  %v3959 = vsel %vm69, %v3947, %v3955
  %v3960 = vsel %vm69, %v3933, %v3941
  %v3961 = vsel %vm69, %v3935, %v3943
  %v3962 = vsel %vm69, %v3937, %v3945
  %v3963 = vsel %vm69, %v3939, %v3947
  %v3964 = vsel %vm69, %v3925, %v3933
  %v3965 = vsel %vm69, %v3927, %v3935
  %v3966 = vsel %vm69, %v3929, %v3937
  %v3967 = vsel %vm69, %v3931, %v3939
  %v3968 = vsel %vm69, %v3949, %v3925
  %v3969 = vsel %vm69, %v3951, %v3927
  %v3970 = vsel %vm69, %v3953, %v3929
  %v3971 = vsel %vm69, %v3955, %v3931
  %v3972 = vmul.f32 %v3968, %v79
  %v3973 = vmul.f32 %v3964, %v80
  %v3974 = vmul.f32 %v3960, %v81
  %v3975 = vmul.f32 %v3956, %v82
  %v3976 = vmul.f32 %v3969, %v79
  %v3977 = vmul.f32 %v3965, %v80
  %v3978 = vmul.f32 %v3961, %v81
  %v3979 = vmul.f32 %v3957, %v82
  %v3980 = vmul.f32 %v3970, %v79
  %v3981 = vmul.f32 %v3966, %v80
  %v3982 = vmul.f32 %v3962, %v81
  %v3983 = vmul.f32 %v3958, %v82
  %v3984 = vmul.f32 %v3971, %v79
  %v3985 = vmul.f32 %v3967, %v80
  %v3986 = vmul.f32 %v3963, %v81
  %v3987 = vmul.f32 %v3959, %v82
  %v3988 = vpack.c.bf16 %v3973, %v3972
  %v3989 = vpack.c.bf16 %v3975, %v3974
  %v3990 = vpack.c.bf16 %v3977, %v3976
  %v3991 = vpack.c.bf16 %v3979, %v3978
  %v3992 = vpack.c.bf16 %v3981, %v3980
  %v3993 = vpack.c.bf16 %v3983, %v3982
  %v3994 = vpack.c.bf16 %v3985, %v3984
  %v3995 = vpack.c.bf16 %v3987, %v3986
  %3996 = vrot.lane.b32.xlu0 %v3899, 16
  %v3997 = vpop.permute.xlu0 %3996
  %3998 = vrot.lane.b32.xlu0 %v3903, 16
  %v3999 = vpop.permute.xlu0 %3998
  %4000 = vrot.lane.b32.xlu0 %v3907, 16
  %v4001 = vpop.permute.xlu0 %4000
  %4002 = vrot.lane.b32.xlu0 %v3911, 16
  %v4003 = vpop.permute.xlu0 %4002
  %4004 = vrot.lane.b32.xlu0 %v3900, 16
  %v4005 = vpop.permute.xlu0 %4004
  %4006 = vrot.lane.b32.xlu0 %v3904, 16
  %v4007 = vpop.permute.xlu0 %4006
  %4008 = vrot.lane.b32.xlu0 %v3908, 16
  %v4009 = vpop.permute.xlu0 %4008
  %4010 = vrot.lane.b32.xlu0 %v3912, 16
  %v4011 = vpop.permute.xlu0 %4010
  %4012 = vrot.lane.b32.xlu0 %v3901, 16
  %v4013 = vpop.permute.xlu0 %4012
  %4014 = vrot.lane.b32.xlu0 %v3905, 16
  %v4015 = vpop.permute.xlu0 %4014
  %4016 = vrot.lane.b32.xlu0 %v3909, 16
  %v4017 = vpop.permute.xlu0 %4016
  %4018 = vrot.lane.b32.xlu0 %v3913, 16
  %v4019 = vpop.permute.xlu0 %4018
  %4020 = vrot.lane.b32.xlu0 %v3902, 16
  %v4021 = vpop.permute.xlu0 %4020
  %4022 = vrot.lane.b32.xlu0 %v3906, 16
  %v4023 = vpop.permute.xlu0 %4022
  %4024 = vrot.lane.b32.xlu0 %v3910, 16
  %v4025 = vpop.permute.xlu0 %4024
  %4026 = vrot.lane.b32.xlu0 %v3914, 16
  %v4027 = vpop.permute.xlu0 %4026
  %v4028 = vsel %vm115, %v4013, %v4021
  %v4029 = vsel %vm115, %v4015, %v4023
  %v4030 = vsel %vm115, %v4017, %v4025
  %v4031 = vsel %vm115, %v4019, %v4027
  %v4032 = vsel %vm115, %v4005, %v4013
  %v4033 = vsel %vm115, %v4007, %v4015
  %v4034 = vsel %vm115, %v4009, %v4017
  %v4035 = vsel %vm115, %v4011, %v4019
  %v4036 = vsel %vm115, %v3997, %v4005
  %v4037 = vsel %vm115, %v3999, %v4007
  %v4038 = vsel %vm115, %v4001, %v4009
  %v4039 = vsel %vm115, %v4003, %v4011
  %v4040 = vsel %vm115, %v4021, %v3997
  %v4041 = vsel %vm115, %v4023, %v3999
  %v4042 = vsel %vm115, %v4025, %v4001
  %v4043 = vsel %vm115, %v4027, %v4003
  %v4044 = vmul.f32 %v4040, %v125
  %v4045 = vmul.f32 %v4036, %v126
  %v4046 = vmul.f32 %v4032, %v127
  %v4047 = vmul.f32 %v4028, %v128
  %v4048 = vmul.f32 %v4041, %v125
  %v4049 = vmul.f32 %v4037, %v126
  %v4050 = vmul.f32 %v4033, %v127
  %v4051 = vmul.f32 %v4029, %v128
  %v4052 = vmul.f32 %v4042, %v125
  %v4053 = vmul.f32 %v4038, %v126
  %v4054 = vmul.f32 %v4034, %v127
  %v4055 = vmul.f32 %v4030, %v128
  %v4056 = vmul.f32 %v4043, %v125
  %v4057 = vmul.f32 %v4039, %v126
  %v4058 = vmul.f32 %v4035, %v127
  %v4059 = vmul.f32 %v4031, %v128
  %v4060 = vpack.c.bf16 %v4045, %v4044
  %v4061 = vpack.c.bf16 %v4047, %v4046
  %v4062 = vpack.c.bf16 %v4049, %v4048
  %v4063 = vpack.c.bf16 %v4051, %v4050
  %v4064 = vpack.c.bf16 %v4053, %v4052
  %v4065 = vpack.c.bf16 %v4055, %v4054
  %v4066 = vpack.c.bf16 %v4057, %v4056
  %v4067 = vpack.c.bf16 %v4059, %v4058
  %4068 = vrot.lane.b32.xlu0 %v3899, 15
  %v4069 = vpop.permute.xlu0 %4068
  %4070 = vrot.lane.b32.xlu0 %v3903, 15
  %v4071 = vpop.permute.xlu0 %4070
  %4072 = vrot.lane.b32.xlu0 %v3907, 15
  %v4073 = vpop.permute.xlu0 %4072
  %4074 = vrot.lane.b32.xlu0 %v3911, 15
  %v4075 = vpop.permute.xlu0 %4074
  %4076 = vrot.lane.b32.xlu0 %v3900, 15
  %v4077 = vpop.permute.xlu0 %4076
  %4078 = vrot.lane.b32.xlu0 %v3904, 15
  %v4079 = vpop.permute.xlu0 %4078
  %4080 = vrot.lane.b32.xlu0 %v3908, 15
  %v4081 = vpop.permute.xlu0 %4080
  %4082 = vrot.lane.b32.xlu0 %v3912, 15
  %v4083 = vpop.permute.xlu0 %4082
  %4084 = vrot.lane.b32.xlu0 %v3901, 15
  %v4085 = vpop.permute.xlu0 %4084
  %4086 = vrot.lane.b32.xlu0 %v3905, 15
  %v4087 = vpop.permute.xlu0 %4086
  %4088 = vrot.lane.b32.xlu0 %v3909, 15
  %v4089 = vpop.permute.xlu0 %4088
  %4090 = vrot.lane.b32.xlu0 %v3913, 15
  %v4091 = vpop.permute.xlu0 %4090
  %4092 = vrot.lane.b32.xlu0 %v3902, 15
  %v4093 = vpop.permute.xlu0 %4092
  %4094 = vrot.lane.b32.xlu0 %v3906, 15
  %v4095 = vpop.permute.xlu0 %4094
  %4096 = vrot.lane.b32.xlu0 %v3910, 15
  %v4097 = vpop.permute.xlu0 %4096
  %4098 = vrot.lane.b32.xlu0 %v3914, 15
  %v4099 = vpop.permute.xlu0 %4098
  %v4100 = vsel %vm161, %v4085, %v4093
  %v4101 = vsel %vm161, %v4087, %v4095
  %v4102 = vsel %vm161, %v4089, %v4097
  %v4103 = vsel %vm161, %v4091, %v4099
  %v4104 = vsel %vm161, %v4077, %v4085
  %v4105 = vsel %vm161, %v4079, %v4087
  %v4106 = vsel %vm161, %v4081, %v4089
  %v4107 = vsel %vm161, %v4083, %v4091
  %v4108 = vsel %vm161, %v4069, %v4077
  %v4109 = vsel %vm161, %v4071, %v4079
  %v4110 = vsel %vm161, %v4073, %v4081
  %v4111 = vsel %vm161, %v4075, %v4083
  %v4112 = vsel %vm161, %v4093, %v4069
  %v4113 = vsel %vm161, %v4095, %v4071
  %v4114 = vsel %vm161, %v4097, %v4073
  %v4115 = vsel %vm161, %v4099, %v4075
  %v4116 = vmul.f32 %v4112, %v171
  %v4117 = vmul.f32 %v4108, %v172
  %v4118 = vmul.f32 %v4104, %v173
  %v4119 = vmul.f32 %v4100, %v174
  %v4120 = vmul.f32 %v4113, %v171
  %v4121 = vmul.f32 %v4109, %v172
  %v4122 = vmul.f32 %v4105, %v173
  %v4123 = vmul.f32 %v4101, %v174
  %v4124 = vmul.f32 %v4114, %v171
  %v4125 = vmul.f32 %v4110, %v172
  %v4126 = vmul.f32 %v4106, %v173
  %v4127 = vmul.f32 %v4102, %v174
  %v4128 = vmul.f32 %v4115, %v171
  %v4129 = vmul.f32 %v4111, %v172
  %v4130 = vmul.f32 %v4107, %v173
  %v4131 = vmul.f32 %v4103, %v174
  %v4132 = vpack.c.bf16 %v4117, %v4116
  %v4133 = vpack.c.bf16 %v4119, %v4118
  %v4134 = vpack.c.bf16 %v4121, %v4120
  %v4135 = vpack.c.bf16 %v4123, %v4122
  %v4136 = vpack.c.bf16 %v4125, %v4124
  %v4137 = vpack.c.bf16 %v4127, %v4126
  %v4138 = vpack.c.bf16 %v4129, %v4128
  %v4139 = vpack.c.bf16 %v4131, %v4130
  %4140 = vrot.lane.b32.xlu0 %v3899, 1
  %v4141 = vpop.permute.xlu0 %4140
  %4142 = vrot.lane.b32.xlu0 %v3903, 1
  %v4143 = vpop.permute.xlu0 %4142
  %4144 = vrot.lane.b32.xlu0 %v3907, 1
  %v4145 = vpop.permute.xlu0 %4144
  %4146 = vrot.lane.b32.xlu0 %v3911, 1
  %v4147 = vpop.permute.xlu0 %4146
  %4148 = vrot.lane.b32.xlu0 %v3900, 1
  %v4149 = vpop.permute.xlu0 %4148
  %4150 = vrot.lane.b32.xlu0 %v3904, 1
  %v4151 = vpop.permute.xlu0 %4150
  %4152 = vrot.lane.b32.xlu0 %v3908, 1
  %v4153 = vpop.permute.xlu0 %4152
  %4154 = vrot.lane.b32.xlu0 %v3912, 1
  %v4155 = vpop.permute.xlu0 %4154
  %4156 = vrot.lane.b32.xlu0 %v3901, 1
  %v4157 = vpop.permute.xlu0 %4156
  %4158 = vrot.lane.b32.xlu0 %v3905, 1
  %v4159 = vpop.permute.xlu0 %4158
  %4160 = vrot.lane.b32.xlu0 %v3909, 1
  %v4161 = vpop.permute.xlu0 %4160
  %4162 = vrot.lane.b32.xlu0 %v3913, 1
  %v4163 = vpop.permute.xlu0 %4162
  %4164 = vrot.lane.b32.xlu0 %v3902, 1
  %v4165 = vpop.permute.xlu0 %4164
  %4166 = vrot.lane.b32.xlu0 %v3906, 1
  %v4167 = vpop.permute.xlu0 %4166
  %4168 = vrot.lane.b32.xlu0 %v3910, 1
  %v4169 = vpop.permute.xlu0 %4168
  %4170 = vrot.lane.b32.xlu0 %v3914, 1
  %v4171 = vpop.permute.xlu0 %4170
  %v4172 = vsel %vm207, %v4157, %v4165
  %v4173 = vsel %vm207, %v4159, %v4167
  %v4174 = vsel %vm207, %v4161, %v4169
  %v4175 = vsel %vm207, %v4163, %v4171
  %v4176 = vsel %vm207, %v4149, %v4157
  %v4177 = vsel %vm207, %v4151, %v4159
  %v4178 = vsel %vm207, %v4153, %v4161
  %v4179 = vsel %vm207, %v4155, %v4163
  %v4180 = vsel %vm207, %v4141, %v4149
  %v4181 = vsel %vm207, %v4143, %v4151
  %v4182 = vsel %vm207, %v4145, %v4153
  %v4183 = vsel %vm207, %v4147, %v4155
  %v4184 = vsel %vm207, %v4165, %v4141
  %v4185 = vsel %vm207, %v4167, %v4143
  %v4186 = vsel %vm207, %v4169, %v4145
  %v4187 = vsel %vm207, %v4171, %v4147
  %v4188 = vmul.f32 %v4184, %v217
  %v4189 = vmul.f32 %v4180, %v218
  %v4190 = vmul.f32 %v4176, %v219
  %v4191 = vmul.f32 %v4172, %v220
  %v4192 = vmul.f32 %v4185, %v217
  %v4193 = vmul.f32 %v4181, %v218
  %v4194 = vmul.f32 %v4177, %v219
  %v4195 = vmul.f32 %v4173, %v220
  %v4196 = vmul.f32 %v4186, %v217
  %v4197 = vmul.f32 %v4182, %v218
  %v4198 = vmul.f32 %v4178, %v219
  %v4199 = vmul.f32 %v4174, %v220
  %v4200 = vmul.f32 %v4187, %v217
  %v4201 = vmul.f32 %v4183, %v218
  %v4202 = vmul.f32 %v4179, %v219
  %v4203 = vmul.f32 %v4175, %v220
  %v4204 = vpack.c.bf16 %v4189, %v4188
  %v4205 = vpack.c.bf16 %v4191, %v4190
  %v4206 = vpack.c.bf16 %v4193, %v4192
  %v4207 = vpack.c.bf16 %v4195, %v4194
  %v4208 = vpack.c.bf16 %v4197, %v4196
  %v4209 = vpack.c.bf16 %v4199, %v4198
  %v4210 = vpack.c.bf16 %v4201, %v4200
  %v4211 = vpack.c.bf16 %v4203, %v4202
  %v4212 = vpack.c.bf16 %v3900, %v3899
  %v4213 = vpack.c.bf16 %v3902, %v3901
  %v4214 = vpack.c.bf16 %v3904, %v3903
  %v4215 = vpack.c.bf16 %v3906, %v3905
  %v4216 = vpack.c.bf16 %v3908, %v3907
  %v4217 = vpack.c.bf16 %v3910, %v3909
  %v4218 = vpack.c.bf16 %v3912, %v3911
  %v4219 = vpack.c.bf16 %v3914, %v3913
  %4220 = vrot.lane.b32.xlu0 %v3899, 127
  %v4221 = vpop.permute.xlu0 %4220
  %4222 = vrot.lane.b32.xlu0 %v3903, 127
  %v4223 = vpop.permute.xlu0 %4222
  %4224 = vrot.lane.b32.xlu0 %v3907, 127
  %v4225 = vpop.permute.xlu0 %4224
  %4226 = vrot.lane.b32.xlu0 %v3911, 127
  %v4227 = vpop.permute.xlu0 %4226
  %4228 = vrot.lane.b32.xlu0 %v3900, 127
  %v4229 = vpop.permute.xlu0 %4228
  %4230 = vrot.lane.b32.xlu0 %v3904, 127
  %v4231 = vpop.permute.xlu0 %4230
  %4232 = vrot.lane.b32.xlu0 %v3908, 127
  %v4233 = vpop.permute.xlu0 %4232
  %4234 = vrot.lane.b32.xlu0 %v3912, 127
  %v4235 = vpop.permute.xlu0 %4234
  %4236 = vrot.lane.b32.xlu0 %v3901, 127
  %v4237 = vpop.permute.xlu0 %4236
  %4238 = vrot.lane.b32.xlu0 %v3905, 127
  %v4239 = vpop.permute.xlu0 %4238
  %4240 = vrot.lane.b32.xlu0 %v3909, 127
  %v4241 = vpop.permute.xlu0 %4240
  %4242 = vrot.lane.b32.xlu0 %v3913, 127
  %v4243 = vpop.permute.xlu0 %4242
  %4244 = vrot.lane.b32.xlu0 %v3902, 127
  %v4245 = vpop.permute.xlu0 %4244
  %4246 = vrot.lane.b32.xlu0 %v3906, 127
  %v4247 = vpop.permute.xlu0 %4246
  %4248 = vrot.lane.b32.xlu0 %v3910, 127
  %v4249 = vpop.permute.xlu0 %4248
  %4250 = vrot.lane.b32.xlu0 %v3914, 127
  %v4251 = vpop.permute.xlu0 %4250
  %v4252 = vsel %vm257, %v4237, %v4245
  %v4253 = vsel %vm257, %v4239, %v4247
  %v4254 = vsel %vm257, %v4241, %v4249
  %v4255 = vsel %vm257, %v4243, %v4251
  %v4256 = vsel %vm257, %v4229, %v4237
  %v4257 = vsel %vm257, %v4231, %v4239
  %v4258 = vsel %vm257, %v4233, %v4241
  %v4259 = vsel %vm257, %v4235, %v4243
  %v4260 = vsel %vm257, %v4221, %v4229
  %v4261 = vsel %vm257, %v4223, %v4231
  %v4262 = vsel %vm257, %v4225, %v4233
  %v4263 = vsel %vm257, %v4227, %v4235
  %v4264 = vsel %vm257, %v4245, %v4221
  %v4265 = vsel %vm257, %v4247, %v4223
  %v4266 = vsel %vm257, %v4249, %v4225
  %v4267 = vsel %vm257, %v4251, %v4227
  %v4268 = vmul.f32 %v4260, %v267
  %v4269 = vmul.f32 %v4256, %v268
  %v4270 = vmul.f32 %v4252, %v269
  %v4271 = vmul.f32 %v4264, %v270
  %v4272 = vmul.f32 %v4261, %v267
  %v4273 = vmul.f32 %v4257, %v268
  %v4274 = vmul.f32 %v4253, %v269
  %v4275 = vmul.f32 %v4265, %v270
  %v4276 = vmul.f32 %v4262, %v267
  %v4277 = vmul.f32 %v4258, %v268
  %v4278 = vmul.f32 %v4254, %v269
  %v4279 = vmul.f32 %v4266, %v270
  %v4280 = vmul.f32 %v4263, %v267
  %v4281 = vmul.f32 %v4259, %v268
  %v4282 = vmul.f32 %v4255, %v269
  %v4283 = vmul.f32 %v4267, %v270
  %v4284 = vpack.c.bf16 %v4269, %v4268
  %v4285 = vpack.c.bf16 %v4271, %v4270
  %v4286 = vpack.c.bf16 %v4273, %v4272
  %v4287 = vpack.c.bf16 %v4275, %v4274
  %v4288 = vpack.c.bf16 %v4277, %v4276
  %v4289 = vpack.c.bf16 %v4279, %v4278
  %v4290 = vpack.c.bf16 %v4281, %v4280
  %v4291 = vpack.c.bf16 %v4283, %v4282
  %4292 = vrot.lane.b32.xlu0 %v3899, 113
  %v4293 = vpop.permute.xlu0 %4292
  %4294 = vrot.lane.b32.xlu0 %v3903, 113
  %v4295 = vpop.permute.xlu0 %4294
  %4296 = vrot.lane.b32.xlu0 %v3907, 113
  %v4297 = vpop.permute.xlu0 %4296
  %4298 = vrot.lane.b32.xlu0 %v3911, 113
  %v4299 = vpop.permute.xlu0 %4298
  %4300 = vrot.lane.b32.xlu0 %v3900, 113
  %v4301 = vpop.permute.xlu0 %4300
  %4302 = vrot.lane.b32.xlu0 %v3904, 113
  %v4303 = vpop.permute.xlu0 %4302
  %4304 = vrot.lane.b32.xlu0 %v3908, 113
  %v4305 = vpop.permute.xlu0 %4304
  %4306 = vrot.lane.b32.xlu0 %v3912, 113
  %v4307 = vpop.permute.xlu0 %4306
  %4308 = vrot.lane.b32.xlu0 %v3901, 113
  %v4309 = vpop.permute.xlu0 %4308
  %4310 = vrot.lane.b32.xlu0 %v3905, 113
  %v4311 = vpop.permute.xlu0 %4310
  %4312 = vrot.lane.b32.xlu0 %v3909, 113
  %v4313 = vpop.permute.xlu0 %4312
  %4314 = vrot.lane.b32.xlu0 %v3913, 113
  %v4315 = vpop.permute.xlu0 %4314
  %4316 = vrot.lane.b32.xlu0 %v3902, 113
  %v4317 = vpop.permute.xlu0 %4316
  %4318 = vrot.lane.b32.xlu0 %v3906, 113
  %v4319 = vpop.permute.xlu0 %4318
  %4320 = vrot.lane.b32.xlu0 %v3910, 113
  %v4321 = vpop.permute.xlu0 %4320
  %4322 = vrot.lane.b32.xlu0 %v3914, 113
  %v4323 = vpop.permute.xlu0 %4322
  %v4324 = vsel %vm303, %v4309, %v4317
  %v4325 = vsel %vm303, %v4311, %v4319
  %v4326 = vsel %vm303, %v4313, %v4321
  %v4327 = vsel %vm303, %v4315, %v4323
  %v4328 = vsel %vm303, %v4301, %v4309
  %v4329 = vsel %vm303, %v4303, %v4311
  %v4330 = vsel %vm303, %v4305, %v4313
  %v4331 = vsel %vm303, %v4307, %v4315
  %v4332 = vsel %vm303, %v4293, %v4301
  %v4333 = vsel %vm303, %v4295, %v4303
  %v4334 = vsel %vm303, %v4297, %v4305
  %v4335 = vsel %vm303, %v4299, %v4307
  %v4336 = vsel %vm303, %v4317, %v4293
  %v4337 = vsel %vm303, %v4319, %v4295
  %v4338 = vsel %vm303, %v4321, %v4297
  %v4339 = vsel %vm303, %v4323, %v4299
  %v4340 = vmul.f32 %v4332, %v313
  %v4341 = vmul.f32 %v4328, %v314
  %v4342 = vmul.f32 %v4324, %v315
  %v4343 = vmul.f32 %v4336, %v316
  %v4344 = vmul.f32 %v4333, %v313
  %v4345 = vmul.f32 %v4329, %v314
  %v4346 = vmul.f32 %v4325, %v315
  %v4347 = vmul.f32 %v4337, %v316
  %v4348 = vmul.f32 %v4334, %v313
  %v4349 = vmul.f32 %v4330, %v314
  %v4350 = vmul.f32 %v4326, %v315
  %v4351 = vmul.f32 %v4338, %v316
  %v4352 = vmul.f32 %v4335, %v313
  %v4353 = vmul.f32 %v4331, %v314
  %v4354 = vmul.f32 %v4327, %v315
  %v4355 = vmul.f32 %v4339, %v316
  %v4356 = vpack.c.bf16 %v4341, %v4340
  %v4357 = vpack.c.bf16 %v4343, %v4342
  %v4358 = vpack.c.bf16 %v4345, %v4344
  %v4359 = vpack.c.bf16 %v4347, %v4346
  %v4360 = vpack.c.bf16 %v4349, %v4348
  %v4361 = vpack.c.bf16 %v4351, %v4350
  %v4362 = vpack.c.bf16 %v4353, %v4352
  %v4363 = vpack.c.bf16 %v4355, %v4354
  %4364 = vrot.lane.b32.xlu0 %v3899, 112
  %v4365 = vpop.permute.xlu0 %4364
  %4366 = vrot.lane.b32.xlu0 %v3903, 112
  %v4367 = vpop.permute.xlu0 %4366
  %4368 = vrot.lane.b32.xlu0 %v3907, 112
  %v4369 = vpop.permute.xlu0 %4368
  %4370 = vrot.lane.b32.xlu0 %v3911, 112
  %v4371 = vpop.permute.xlu0 %4370
  %4372 = vrot.lane.b32.xlu0 %v3900, 112
  %v4373 = vpop.permute.xlu0 %4372
  %4374 = vrot.lane.b32.xlu0 %v3904, 112
  %v4375 = vpop.permute.xlu0 %4374
  %4376 = vrot.lane.b32.xlu0 %v3908, 112
  %v4377 = vpop.permute.xlu0 %4376
  %4378 = vrot.lane.b32.xlu0 %v3912, 112
  %v4379 = vpop.permute.xlu0 %4378
  %4380 = vrot.lane.b32.xlu0 %v3901, 112
  %v4381 = vpop.permute.xlu0 %4380
  %4382 = vrot.lane.b32.xlu0 %v3905, 112
  %v4383 = vpop.permute.xlu0 %4382
  %4384 = vrot.lane.b32.xlu0 %v3909, 112
  %v4385 = vpop.permute.xlu0 %4384
  %4386 = vrot.lane.b32.xlu0 %v3913, 112
  %v4387 = vpop.permute.xlu0 %4386
  %4388 = vrot.lane.b32.xlu0 %v3902, 112
  %v4389 = vpop.permute.xlu0 %4388
  %4390 = vrot.lane.b32.xlu0 %v3906, 112
  %v4391 = vpop.permute.xlu0 %4390
  %4392 = vrot.lane.b32.xlu0 %v3910, 112
  %v4393 = vpop.permute.xlu0 %4392
  %4394 = vrot.lane.b32.xlu0 %v3914, 112
  %v4395 = vpop.permute.xlu0 %4394
  %v4396 = vsel %vm349, %v4381, %v4389
  %v4397 = vsel %vm349, %v4383, %v4391
  %v4398 = vsel %vm349, %v4385, %v4393
  %v4399 = vsel %vm349, %v4387, %v4395
  %v4400 = vsel %vm349, %v4373, %v4381
  %v4401 = vsel %vm349, %v4375, %v4383
  %v4402 = vsel %vm349, %v4377, %v4385
  %v4403 = vsel %vm349, %v4379, %v4387
  %v4404 = vsel %vm349, %v4365, %v4373
  %v4405 = vsel %vm349, %v4367, %v4375
  %v4406 = vsel %vm349, %v4369, %v4377
  %v4407 = vsel %vm349, %v4371, %v4379
  %v4408 = vsel %vm349, %v4389, %v4365
  %v4409 = vsel %vm349, %v4391, %v4367
  %v4410 = vsel %vm349, %v4393, %v4369
  %v4411 = vsel %vm349, %v4395, %v4371
  %v4412 = vmul.f32 %v4404, %v359
  %v4413 = vmul.f32 %v4400, %v360
  %v4414 = vmul.f32 %v4396, %v361
  %v4415 = vmul.f32 %v4408, %v362
  %v4416 = vmul.f32 %v4405, %v359
  %v4417 = vmul.f32 %v4401, %v360
  %v4418 = vmul.f32 %v4397, %v361
  %v4419 = vmul.f32 %v4409, %v362
  %v4420 = vmul.f32 %v4406, %v359
  %v4421 = vmul.f32 %v4402, %v360
  %v4422 = vmul.f32 %v4398, %v361
  %v4423 = vmul.f32 %v4410, %v362
  %v4424 = vmul.f32 %v4407, %v359
  %v4425 = vmul.f32 %v4403, %v360
  %v4426 = vmul.f32 %v4399, %v361
  %v4427 = vmul.f32 %v4411, %v362
  %v4428 = vpack.c.bf16 %v4413, %v4412
  %v4429 = vpack.c.bf16 %v4415, %v4414
  %v4430 = vpack.c.bf16 %v4417, %v4416
  %v4431 = vpack.c.bf16 %v4419, %v4418
  %v4432 = vpack.c.bf16 %v4421, %v4420
  %v4433 = vpack.c.bf16 %v4423, %v4422
  %v4434 = vpack.c.bf16 %v4425, %v4424
  %v4435 = vpack.c.bf16 %v4427, %v4426
  %4436 = vrot.lane.b32.xlu0 %v3899, 111
  %v4437 = vpop.permute.xlu0 %4436
  %4438 = vrot.lane.b32.xlu0 %v3903, 111
  %v4439 = vpop.permute.xlu0 %4438
  %4440 = vrot.lane.b32.xlu0 %v3907, 111
  %v4441 = vpop.permute.xlu0 %4440
  %4442 = vrot.lane.b32.xlu0 %v3911, 111
  %v4443 = vpop.permute.xlu0 %4442
  %4444 = vrot.lane.b32.xlu0 %v3900, 111
  %v4445 = vpop.permute.xlu0 %4444
  %4446 = vrot.lane.b32.xlu0 %v3904, 111
  %v4447 = vpop.permute.xlu0 %4446
  %4448 = vrot.lane.b32.xlu0 %v3908, 111
  %v4449 = vpop.permute.xlu0 %4448
  %4450 = vrot.lane.b32.xlu0 %v3912, 111
  %v4451 = vpop.permute.xlu0 %4450
  %4452 = vrot.lane.b32.xlu0 %v3901, 111
  %v4453 = vpop.permute.xlu0 %4452
  %4454 = vrot.lane.b32.xlu0 %v3905, 111
  %v4455 = vpop.permute.xlu0 %4454
  %4456 = vrot.lane.b32.xlu0 %v3909, 111
  %v4457 = vpop.permute.xlu0 %4456
  %4458 = vrot.lane.b32.xlu0 %v3913, 111
  %v4459 = vpop.permute.xlu0 %4458
  %4460 = vrot.lane.b32.xlu0 %v3902, 111
  %v4461 = vpop.permute.xlu0 %4460
  %4462 = vrot.lane.b32.xlu0 %v3906, 111
  %v4463 = vpop.permute.xlu0 %4462
  %4464 = vrot.lane.b32.xlu0 %v3910, 111
  %v4465 = vpop.permute.xlu0 %4464
  %4466 = vrot.lane.b32.xlu0 %v3914, 111
  %v4467 = vpop.permute.xlu0 %4466
  %v4468 = vsel %vm395, %v4453, %v4461
  %v4469 = vsel %vm395, %v4455, %v4463
  %v4470 = vsel %vm395, %v4457, %v4465
  %v4471 = vsel %vm395, %v4459, %v4467
  %v4472 = vsel %vm395, %v4445, %v4453
  %v4473 = vsel %vm395, %v4447, %v4455
  %v4474 = vsel %vm395, %v4449, %v4457
  %v4475 = vsel %vm395, %v4451, %v4459
  %v4476 = vsel %vm395, %v4437, %v4445
  %v4477 = vsel %vm395, %v4439, %v4447
  %v4478 = vsel %vm395, %v4441, %v4449
  %v4479 = vsel %vm395, %v4443, %v4451
  %v4480 = vsel %vm395, %v4461, %v4437
  %v4481 = vsel %vm395, %v4463, %v4439
  %v4482 = vsel %vm395, %v4465, %v4441
  %v4483 = vsel %vm395, %v4467, %v4443
  %v4484 = vmul.f32 %v4476, %v405
  %v4485 = vmul.f32 %v4472, %v406
  %v4486 = vmul.f32 %v4468, %v407
  %v4487 = vmul.f32 %v4480, %v408
  %v4488 = vmul.f32 %v4477, %v405
  %v4489 = vmul.f32 %v4473, %v406
  %v4490 = vmul.f32 %v4469, %v407
  %v4491 = vmul.f32 %v4481, %v408
  %v4492 = vmul.f32 %v4478, %v405
  %v4493 = vmul.f32 %v4474, %v406
  %v4494 = vmul.f32 %v4470, %v407
  %v4495 = vmul.f32 %v4482, %v408
  %v4496 = vmul.f32 %v4479, %v405
  %v4497 = vmul.f32 %v4475, %v406
  %v4498 = vmul.f32 %v4471, %v407
  %v4499 = vmul.f32 %v4483, %v408
  %v4500 = vpack.c.bf16 %v4485, %v4484
  %v4501 = vpack.c.bf16 %v4487, %v4486
  %v4502 = vpack.c.bf16 %v4489, %v4488
  %v4503 = vpack.c.bf16 %v4491, %v4490
  %v4504 = vpack.c.bf16 %v4493, %v4492
  %v4505 = vpack.c.bf16 %v4495, %v4494
  %v4506 = vpack.c.bf16 %v4497, %v4496
  %v4507 = vpack.c.bf16 %v4499, %v4498
  %v4516 = vunpack.c.l.b16 %v3988
  %v4517 = vunpack.c.h.b16 %v3988
  %v4518 = vunpack.c.l.b16 %v3989
  %v4519 = vunpack.c.h.b16 %v3989
  %v4520 = vunpack.c.l.b16 %v3990
  %v4521 = vunpack.c.h.b16 %v3990
  %v4522 = vunpack.c.l.b16 %v3991
  %v4523 = vunpack.c.h.b16 %v3991
  %v4524 = vunpack.c.l.b16 %v3992
  %v4525 = vunpack.c.h.b16 %v3992
  %v4526 = vunpack.c.l.b16 %v3993
  %v4527 = vunpack.c.h.b16 %v3993
  %v4528 = vunpack.c.l.b16 %v3994
  %v4529 = vunpack.c.h.b16 %v3994
  %v4530 = vunpack.c.l.b16 %v3995
  %v4531 = vunpack.c.h.b16 %v3995
  %v4532 = vpack.c.b16 %v4520, %v4516
  %v4533 = vpack.c.b16 %v4521, %v4517
  %v4534 = vpack.c.b16 %v4522, %v4518
  %v4535 = vpack.c.b16 %v4523, %v4519
  %v4536 = vpack.c.b16 %v4528, %v4524
  %v4537 = vpack.c.b16 %v4529, %v4525
  %v4538 = vpack.c.b16 %v4530, %v4526
  %v4539 = vpack.c.b16 %v4531, %v4527
  %v4556 = vunpack.c.l.b16 %v4060
  %v4557 = vunpack.c.h.b16 %v4060
  %v4558 = vunpack.c.l.b16 %v4061
  %v4559 = vunpack.c.h.b16 %v4061
  %v4560 = vunpack.c.l.b16 %v4062
  %v4561 = vunpack.c.h.b16 %v4062
  %v4562 = vunpack.c.l.b16 %v4063
  %v4563 = vunpack.c.h.b16 %v4063
  %v4564 = vunpack.c.l.b16 %v4064
  %v4565 = vunpack.c.h.b16 %v4064
  %v4566 = vunpack.c.l.b16 %v4065
  %v4567 = vunpack.c.h.b16 %v4065
  %v4568 = vunpack.c.l.b16 %v4066
  %v4569 = vunpack.c.h.b16 %v4066
  %v4570 = vunpack.c.l.b16 %v4067
  %v4571 = vunpack.c.h.b16 %v4067
  %v4572 = vpack.c.b16 %v4560, %v4556
  %v4573 = vpack.c.b16 %v4561, %v4557
  %v4574 = vpack.c.b16 %v4562, %v4558
  %v4575 = vpack.c.b16 %v4563, %v4559
  %v4576 = vpack.c.b16 %v4568, %v4564
  %v4577 = vpack.c.b16 %v4569, %v4565
  %v4578 = vpack.c.b16 %v4570, %v4566
  %v4579 = vpack.c.b16 %v4571, %v4567
  %v4596 = vunpack.c.l.b16 %v4132
  %v4597 = vunpack.c.h.b16 %v4132
  %v4598 = vunpack.c.l.b16 %v4133
  %v4599 = vunpack.c.h.b16 %v4133
  %v4600 = vunpack.c.l.b16 %v4134
  %v4601 = vunpack.c.h.b16 %v4134
  %v4602 = vunpack.c.l.b16 %v4135
  %v4603 = vunpack.c.h.b16 %v4135
  %v4604 = vunpack.c.l.b16 %v4136
  %v4605 = vunpack.c.h.b16 %v4136
  %v4606 = vunpack.c.l.b16 %v4137
  %v4607 = vunpack.c.h.b16 %v4137
  %v4608 = vunpack.c.l.b16 %v4138
  %v4609 = vunpack.c.h.b16 %v4138
  %v4610 = vunpack.c.l.b16 %v4139
  %v4611 = vunpack.c.h.b16 %v4139
  %v4612 = vpack.c.b16 %v4600, %v4596
  %v4613 = vpack.c.b16 %v4601, %v4597
  %v4614 = vpack.c.b16 %v4602, %v4598
  %v4615 = vpack.c.b16 %v4603, %v4599
  %v4616 = vpack.c.b16 %v4608, %v4604
  %v4617 = vpack.c.b16 %v4609, %v4605
  %v4618 = vpack.c.b16 %v4610, %v4606
  %v4619 = vpack.c.b16 %v4611, %v4607
  %v4636 = vunpack.c.l.b16 %v4204
  %v4637 = vunpack.c.h.b16 %v4204
  %v4638 = vunpack.c.l.b16 %v4205
  %v4639 = vunpack.c.h.b16 %v4205
  %v4640 = vunpack.c.l.b16 %v4206
  %v4641 = vunpack.c.h.b16 %v4206
  %v4642 = vunpack.c.l.b16 %v4207
  %v4643 = vunpack.c.h.b16 %v4207
  %v4644 = vunpack.c.l.b16 %v4208
  %v4645 = vunpack.c.h.b16 %v4208
  %v4646 = vunpack.c.l.b16 %v4209
  %v4647 = vunpack.c.h.b16 %v4209
  %v4648 = vunpack.c.l.b16 %v4210
  %v4649 = vunpack.c.h.b16 %v4210
  %v4650 = vunpack.c.l.b16 %v4211
  %v4651 = vunpack.c.h.b16 %v4211
  %v4652 = vpack.c.b16 %v4640, %v4636
  %v4653 = vpack.c.b16 %v4641, %v4637
  %v4654 = vpack.c.b16 %v4642, %v4638
  %v4655 = vpack.c.b16 %v4643, %v4639
  %v4656 = vpack.c.b16 %v4648, %v4644
  %v4657 = vpack.c.b16 %v4649, %v4645
  %v4658 = vpack.c.b16 %v4650, %v4646
  %v4659 = vpack.c.b16 %v4651, %v4647
  %v4676 = vunpack.c.l.b16 %v4212
  %v4677 = vunpack.c.h.b16 %v4212
  %v4678 = vunpack.c.l.b16 %v4213
  %v4679 = vunpack.c.h.b16 %v4213
  %v4680 = vunpack.c.l.b16 %v4214
  %v4681 = vunpack.c.h.b16 %v4214
  %v4682 = vunpack.c.l.b16 %v4215
  %v4683 = vunpack.c.h.b16 %v4215
  %v4684 = vunpack.c.l.b16 %v4216
  %v4685 = vunpack.c.h.b16 %v4216
  %v4686 = vunpack.c.l.b16 %v4217
  %v4687 = vunpack.c.h.b16 %v4217
  %v4688 = vunpack.c.l.b16 %v4218
  %v4689 = vunpack.c.h.b16 %v4218
  %v4690 = vunpack.c.l.b16 %v4219
  %v4691 = vunpack.c.h.b16 %v4219
  %v4692 = vpack.c.b16 %v4680, %v4676
  %v4693 = vpack.c.b16 %v4681, %v4677
  %v4694 = vpack.c.b16 %v4682, %v4678
  %v4695 = vpack.c.b16 %v4683, %v4679
  %v4696 = vpack.c.b16 %v4688, %v4684
  %v4697 = vpack.c.b16 %v4689, %v4685
  %v4698 = vpack.c.b16 %v4690, %v4686
  %v4699 = vpack.c.b16 %v4691, %v4687
  %v4716 = vunpack.c.l.b16 %v4284
  %v4717 = vunpack.c.h.b16 %v4284
  %v4718 = vunpack.c.l.b16 %v4285
  %v4719 = vunpack.c.h.b16 %v4285
  %v4720 = vunpack.c.l.b16 %v4286
  %v4721 = vunpack.c.h.b16 %v4286
  %v4722 = vunpack.c.l.b16 %v4287
  %v4723 = vunpack.c.h.b16 %v4287
  %v4724 = vunpack.c.l.b16 %v4288
  %v4725 = vunpack.c.h.b16 %v4288
  %v4726 = vunpack.c.l.b16 %v4289
  %v4727 = vunpack.c.h.b16 %v4289
  %v4728 = vunpack.c.l.b16 %v4290
  %v4729 = vunpack.c.h.b16 %v4290
  %v4730 = vunpack.c.l.b16 %v4291
  %v4731 = vunpack.c.h.b16 %v4291
  %v4732 = vpack.c.b16 %v4720, %v4716
  %v4733 = vpack.c.b16 %v4721, %v4717
  %v4734 = vpack.c.b16 %v4722, %v4718
  %v4735 = vpack.c.b16 %v4723, %v4719
  %v4736 = vpack.c.b16 %v4728, %v4724
  %v4737 = vpack.c.b16 %v4729, %v4725
  %v4738 = vpack.c.b16 %v4730, %v4726
  %v4739 = vpack.c.b16 %v4731, %v4727
  %v4756 = vunpack.c.l.b16 %v4356
  %v4757 = vunpack.c.h.b16 %v4356
  %v4758 = vunpack.c.l.b16 %v4357
  %v4759 = vunpack.c.h.b16 %v4357
  %v4760 = vunpack.c.l.b16 %v4358
  %v4761 = vunpack.c.h.b16 %v4358
  %v4762 = vunpack.c.l.b16 %v4359
  %v4763 = vunpack.c.h.b16 %v4359
  %v4764 = vunpack.c.l.b16 %v4360
  %v4765 = vunpack.c.h.b16 %v4360
  %v4766 = vunpack.c.l.b16 %v4361
  %v4767 = vunpack.c.h.b16 %v4361
  %v4768 = vunpack.c.l.b16 %v4362
  %v4769 = vunpack.c.h.b16 %v4362
  %v4770 = vunpack.c.l.b16 %v4363
  %v4771 = vunpack.c.h.b16 %v4363
  %v4772 = vpack.c.b16 %v4760, %v4756
  %v4773 = vpack.c.b16 %v4761, %v4757
  %v4774 = vpack.c.b16 %v4762, %v4758
  %v4775 = vpack.c.b16 %v4763, %v4759
  %v4776 = vpack.c.b16 %v4768, %v4764
  %v4777 = vpack.c.b16 %v4769, %v4765
  %v4778 = vpack.c.b16 %v4770, %v4766
  %v4779 = vpack.c.b16 %v4771, %v4767
  %v4796 = vunpack.c.l.b16 %v4428
  %v4797 = vunpack.c.h.b16 %v4428
  %v4798 = vunpack.c.l.b16 %v4429
  %v4799 = vunpack.c.h.b16 %v4429
  %v4800 = vunpack.c.l.b16 %v4430
  %v4801 = vunpack.c.h.b16 %v4430
  %v4802 = vunpack.c.l.b16 %v4431
  %v4803 = vunpack.c.h.b16 %v4431
  %v4804 = vunpack.c.l.b16 %v4432
  %v4805 = vunpack.c.h.b16 %v4432
  %v4806 = vunpack.c.l.b16 %v4433
  %v4807 = vunpack.c.h.b16 %v4433
  %v4808 = vunpack.c.l.b16 %v4434
  %v4809 = vunpack.c.h.b16 %v4434
  %v4810 = vunpack.c.l.b16 %v4435
  %v4811 = vunpack.c.h.b16 %v4435
  %v4812 = vpack.c.b16 %v4800, %v4796
  %v4813 = vpack.c.b16 %v4801, %v4797
  %v4814 = vpack.c.b16 %v4802, %v4798
  %v4815 = vpack.c.b16 %v4803, %v4799
  %v4816 = vpack.c.b16 %v4808, %v4804
  %v4817 = vpack.c.b16 %v4809, %v4805
  %v4818 = vpack.c.b16 %v4810, %v4806
  %v4819 = vpack.c.b16 %v4811, %v4807
  %v4836 = vunpack.c.l.b16 %v4500
  %v4837 = vunpack.c.h.b16 %v4500
  %v4838 = vunpack.c.l.b16 %v4501
  %v4839 = vunpack.c.h.b16 %v4501
  %v4840 = vunpack.c.l.b16 %v4502
  %v4841 = vunpack.c.h.b16 %v4502
  %v4842 = vunpack.c.l.b16 %v4503
  %v4843 = vunpack.c.h.b16 %v4503
  %v4844 = vunpack.c.l.b16 %v4504
  %v4845 = vunpack.c.h.b16 %v4504
  %v4846 = vunpack.c.l.b16 %v4505
  %v4847 = vunpack.c.h.b16 %v4505
  %v4848 = vunpack.c.l.b16 %v4506
  %v4849 = vunpack.c.h.b16 %v4506
  %v4850 = vunpack.c.l.b16 %v4507
  %v4851 = vunpack.c.h.b16 %v4507
  %v4852 = vpack.c.b16 %v4840, %v4836
  %v4853 = vpack.c.b16 %v4841, %v4837
  %v4854 = vpack.c.b16 %v4842, %v4838
  %v4855 = vpack.c.b16 %v4843, %v4839
  %v4856 = vpack.c.b16 %v4848, %v4844
  %v4857 = vpack.c.b16 %v4849, %v4845
  %v4858 = vpack.c.b16 %v4850, %v4846
  %v4859 = vpack.c.b16 %v4851, %v4847
  %v4876 = vunpack.c.l.b16 %v3916
  %v4877 = vunpack.c.h.b16 %v3916
  %v4878 = vunpack.c.l.b16 %v3917
  %v4879 = vunpack.c.l.b16 %v3918
  %v4880 = vunpack.c.h.b16 %v3918
  %v4881 = vunpack.c.l.b16 %v3919
  %v4882 = vunpack.c.l.b16 %v3920
  %v4883 = vunpack.c.h.b16 %v3920
  %v4884 = vunpack.c.l.b16 %v3921
  %v4885 = vunpack.c.l.b16 %v3922
  %v4886 = vunpack.c.h.b16 %v3922
  %v4887 = vunpack.c.l.b16 %v3923
  %v4888 = vpack.c.b16 %v4879, %v4876
  %v4889 = vpack.c.b16 %v4880, %v4877
  %v4890 = vpack.c.b16 %v4881, %v4878
  %v4891 = vpack.c.b16 %v4885, %v4882
  %v4892 = vpack.c.b16 %v4886, %v4883
  %v4893 = vpack.c.b16 %v4887, %v4884
  %v4899 = vsel %vm1995, %v4890, 0
  %v4902 = vsel %vm1995, %v4893, 0
  %4904 = vmatpush.bf16.msra.mxu0 %v4656
  %4905 = vmatpush.bf16.msra.mxu0 %v4652
  %4906 = vmatpush.bf16.msra.mxu0 %v4616
  %4907 = vmatpush.bf16.msra.mxu0 %v4612
  %4908 = vmatpush.bf16.msra.mxu0 %v4576
  %4909 = vmatpush.bf16.msra.mxu0 %v4572
  %4910 = vmatpush.bf16.msra.mxu0 %v4536
  %4911 = vmatpush.bf16.msra.mxu0 %v4532
  %4912 = vmatmul.bf16.gmra.mxu0 %v4888
  %v4913 = vpop.f32.mrf.mxu0
  %v4914 = vadd.f32 0.0, %v4913
  %v4915 = vpop.f32.mrf.mxu0
  %v4916 = vadd.f32 0.0, %v4915
  %4917 = vmatmul.bf16.gmra.mxu0 %v4891
  %v4918 = vpop.f32.mrf.mxu0
  %v4919 = vadd.f32 0.0, %v4918
  %v4920 = vpop.f32.mrf.mxu0
  %v4921 = vadd.f32 0.0, %v4920
  %4922 = vdwg.mxu0
  %4923 = vmatpush.bf16.msra.mxu0 %v4816
  %4924 = vmatpush.bf16.msra.mxu0 %v4812
  %4925 = vmatpush.bf16.msra.mxu0 %v4776
  %4926 = vmatpush.bf16.msra.mxu0 %v4772
  %4927 = vmatpush.bf16.msra.mxu0 %v4736
  %4928 = vmatpush.bf16.msra.mxu0 %v4732
  %4929 = vmatpush.bf16.msra.mxu0 %v4696
  %4930 = vmatpush.bf16.msra.mxu0 %v4692
  %4931 = vmatmul.bf16.gmra.mxu0 %v4889
  %v4932 = vpop.f32.mrf.mxu0
  %v4933 = vadd.f32 %v4914, %v4932
  %v4934 = vpop.f32.mrf.mxu0
  %v4935 = vadd.f32 %v4916, %v4934
  %4936 = vmatmul.bf16.gmra.mxu0 %v4892
  %v4937 = vpop.f32.mrf.mxu0
  %v4938 = vadd.f32 %v4919, %v4937
  %v4939 = vpop.f32.mrf.mxu0
  %v4940 = vadd.f32 %v4921, %v4939
  %4941 = vdwg.mxu0
  %4942 = vmatpush.bf16.msra.mxu0 0
  %4943 = vmatpush.bf16.msra.mxu0 0
  %4944 = vmatpush.bf16.msra.mxu0 0
  %4945 = vmatpush.bf16.msra.mxu0 0
  %4946 = vmatpush.bf16.msra.mxu0 0
  %4947 = vmatpush.bf16.msra.mxu0 0
  %4948 = vmatpush.bf16.msra.mxu0 %v4856
  %4949 = vmatpush.bf16.msra.mxu0 %v4852
  %4950 = vmatmul.bf16.gmra.mxu0 %v4899
  %v4951 = vpop.f32.mrf.mxu0
  %v4952 = vadd.f32 %v4933, %v4951
  %v4953 = vpop.f32.mrf.mxu0
  %v4954 = vadd.f32 %v4935, %v4953
  %4955 = vmatmul.bf16.gmra.mxu0 %v4902
  %v4956 = vpop.f32.mrf.mxu0
  %v4957 = vadd.f32 %v4938, %v4956
  %v4958 = vpop.f32.mrf.mxu0
  %v4959 = vadd.f32 %v4940, %v4958
  %4960 = vdwg.mxu0
  %4961 = vmatpush.bf16.msra.mxu0 %v4657
  %4962 = vmatpush.bf16.msra.mxu0 %v4653
  %4963 = vmatpush.bf16.msra.mxu0 %v4617
  %4964 = vmatpush.bf16.msra.mxu0 %v4613
  %4965 = vmatpush.bf16.msra.mxu0 %v4577
  %4966 = vmatpush.bf16.msra.mxu0 %v4573
  %4967 = vmatpush.bf16.msra.mxu0 %v4537
  %4968 = vmatpush.bf16.msra.mxu0 %v4533
  %4969 = vmatmul.bf16.gmra.mxu0 %v4888
  %v4970 = vpop.f32.mrf.mxu0
  %v4971 = vadd.f32 0.0, %v4970
  %v4972 = vpop.f32.mrf.mxu0
  %v4973 = vadd.f32 0.0, %v4972
  %4974 = vmatmul.bf16.gmra.mxu0 %v4891
  %v4975 = vpop.f32.mrf.mxu0
  %v4976 = vadd.f32 0.0, %v4975
  %v4977 = vpop.f32.mrf.mxu0
  %v4978 = vadd.f32 0.0, %v4977
  %4979 = vdwg.mxu0
  %4980 = vmatpush.bf16.msra.mxu0 %v4817
  %4981 = vmatpush.bf16.msra.mxu0 %v4813
  %4982 = vmatpush.bf16.msra.mxu0 %v4777
  %4983 = vmatpush.bf16.msra.mxu0 %v4773
  %4984 = vmatpush.bf16.msra.mxu0 %v4737
  %4985 = vmatpush.bf16.msra.mxu0 %v4733
  %4986 = vmatpush.bf16.msra.mxu0 %v4697
  %4987 = vmatpush.bf16.msra.mxu0 %v4693
  %4988 = vmatmul.bf16.gmra.mxu0 %v4889
  %v4989 = vpop.f32.mrf.mxu0
  %v4990 = vadd.f32 %v4971, %v4989
  %v4991 = vpop.f32.mrf.mxu0
  %v4992 = vadd.f32 %v4973, %v4991
  %4993 = vmatmul.bf16.gmra.mxu0 %v4892
  %v4994 = vpop.f32.mrf.mxu0
  %v4995 = vadd.f32 %v4976, %v4994
  %v4996 = vpop.f32.mrf.mxu0
  %v4997 = vadd.f32 %v4978, %v4996
  %4998 = vdwg.mxu0
  %4999 = vmatpush.bf16.msra.mxu0 0
  %5000 = vmatpush.bf16.msra.mxu0 0
  %5001 = vmatpush.bf16.msra.mxu0 0
  %5002 = vmatpush.bf16.msra.mxu0 0
  %5003 = vmatpush.bf16.msra.mxu0 0
  %5004 = vmatpush.bf16.msra.mxu0 0
  %5005 = vmatpush.bf16.msra.mxu0 %v4857
  %5006 = vmatpush.bf16.msra.mxu0 %v4853
  %5007 = vmatmul.bf16.gmra.mxu0 %v4899
  %v5008 = vpop.f32.mrf.mxu0
  %v5009 = vadd.f32 %v4990, %v5008
  %v5010 = vpop.f32.mrf.mxu0
  %v5011 = vadd.f32 %v4992, %v5010
  %5012 = vmatmul.bf16.gmra.mxu0 %v4902
  %v5013 = vpop.f32.mrf.mxu0
  %v5014 = vadd.f32 %v4995, %v5013
  %v5015 = vpop.f32.mrf.mxu0
  %v5016 = vadd.f32 %v4997, %v5015
  %5017 = vdwg.mxu0
  %5018 = vmatpush.bf16.msra.mxu0 %v4658
  %5019 = vmatpush.bf16.msra.mxu0 %v4654
  %5020 = vmatpush.bf16.msra.mxu0 %v4618
  %5021 = vmatpush.bf16.msra.mxu0 %v4614
  %5022 = vmatpush.bf16.msra.mxu0 %v4578
  %5023 = vmatpush.bf16.msra.mxu0 %v4574
  %5024 = vmatpush.bf16.msra.mxu0 %v4538
  %5025 = vmatpush.bf16.msra.mxu0 %v4534
  %5026 = vmatmul.bf16.gmra.mxu0 %v4888
  %v5027 = vpop.f32.mrf.mxu0
  %v5028 = vadd.f32 0.0, %v5027
  %v5029 = vpop.f32.mrf.mxu0
  %v5030 = vadd.f32 0.0, %v5029
  %5031 = vmatmul.bf16.gmra.mxu0 %v4891
  %v5032 = vpop.f32.mrf.mxu0
  %v5033 = vadd.f32 0.0, %v5032
  %v5034 = vpop.f32.mrf.mxu0
  %v5035 = vadd.f32 0.0, %v5034
  %5036 = vdwg.mxu0
  %5037 = vmatpush.bf16.msra.mxu0 %v4818
  %5038 = vmatpush.bf16.msra.mxu0 %v4814
  %5039 = vmatpush.bf16.msra.mxu0 %v4778
  %5040 = vmatpush.bf16.msra.mxu0 %v4774
  %5041 = vmatpush.bf16.msra.mxu0 %v4738
  %5042 = vmatpush.bf16.msra.mxu0 %v4734
  %5043 = vmatpush.bf16.msra.mxu0 %v4698
  %5044 = vmatpush.bf16.msra.mxu0 %v4694
  %5045 = vmatmul.bf16.gmra.mxu0 %v4889
  %v5046 = vpop.f32.mrf.mxu0
  %v5047 = vadd.f32 %v5028, %v5046
  %v5048 = vpop.f32.mrf.mxu0
  %v5049 = vadd.f32 %v5030, %v5048
  %5050 = vmatmul.bf16.gmra.mxu0 %v4892
  %v5051 = vpop.f32.mrf.mxu0
  %v5052 = vadd.f32 %v5033, %v5051
  %v5053 = vpop.f32.mrf.mxu0
  %v5054 = vadd.f32 %v5035, %v5053
  %5055 = vdwg.mxu0
  %5056 = vmatpush.bf16.msra.mxu0 0
  %5057 = vmatpush.bf16.msra.mxu0 0
  %5058 = vmatpush.bf16.msra.mxu0 0
  %5059 = vmatpush.bf16.msra.mxu0 0
  %5060 = vmatpush.bf16.msra.mxu0 0
  %5061 = vmatpush.bf16.msra.mxu0 0
  %5062 = vmatpush.bf16.msra.mxu0 %v4858
  %5063 = vmatpush.bf16.msra.mxu0 %v4854
  %5064 = vmatmul.bf16.gmra.mxu0 %v4899
  %v5065 = vpop.f32.mrf.mxu0
  %v5066 = vadd.f32 %v5047, %v5065
  %v5067 = vpop.f32.mrf.mxu0
  %v5068 = vadd.f32 %v5049, %v5067
  %5069 = vmatmul.bf16.gmra.mxu0 %v4902
  %v5070 = vpop.f32.mrf.mxu0
  %v5071 = vadd.f32 %v5052, %v5070
  %v5072 = vpop.f32.mrf.mxu0
  %v5073 = vadd.f32 %v5054, %v5072
  %5074 = vdwg.mxu0
  %5075 = vmatpush.bf16.msra.mxu0 %v4659
  %5076 = vmatpush.bf16.msra.mxu0 %v4655
  %5077 = vmatpush.bf16.msra.mxu0 %v4619
  %5078 = vmatpush.bf16.msra.mxu0 %v4615
  %5079 = vmatpush.bf16.msra.mxu0 %v4579
  %5080 = vmatpush.bf16.msra.mxu0 %v4575
  %5081 = vmatpush.bf16.msra.mxu0 %v4539
  %5082 = vmatpush.bf16.msra.mxu0 %v4535
  %5083 = vmatmul.bf16.gmra.mxu0 %v4888
  %v5084 = vpop.f32.mrf.mxu0
  %v5085 = vadd.f32 0.0, %v5084
  %v5086 = vpop.f32.mrf.mxu0
  %v5087 = vadd.f32 0.0, %v5086
  %5088 = vmatmul.bf16.gmra.mxu0 %v4891
  %v5089 = vpop.f32.mrf.mxu0
  %v5090 = vadd.f32 0.0, %v5089
  %v5091 = vpop.f32.mrf.mxu0
  %v5092 = vadd.f32 0.0, %v5091
  %5093 = vdwg.mxu0
  %5094 = vmatpush.bf16.msra.mxu0 %v4819
  %5095 = vmatpush.bf16.msra.mxu0 %v4815
  %5096 = vmatpush.bf16.msra.mxu0 %v4779
  %5097 = vmatpush.bf16.msra.mxu0 %v4775
  %5098 = vmatpush.bf16.msra.mxu0 %v4739
  %5099 = vmatpush.bf16.msra.mxu0 %v4735
  %5100 = vmatpush.bf16.msra.mxu0 %v4699
  %5101 = vmatpush.bf16.msra.mxu0 %v4695
  %5102 = vmatmul.bf16.gmra.mxu0 %v4889
  %v5103 = vpop.f32.mrf.mxu0
  %v5104 = vadd.f32 %v5085, %v5103
  %v5105 = vpop.f32.mrf.mxu0
  %v5106 = vadd.f32 %v5087, %v5105
  %5107 = vmatmul.bf16.gmra.mxu0 %v4892
  %v5108 = vpop.f32.mrf.mxu0
  %v5109 = vadd.f32 %v5090, %v5108
  %v5110 = vpop.f32.mrf.mxu0
  %v5111 = vadd.f32 %v5092, %v5110
  %5112 = vdwg.mxu0
  %5113 = vmatpush.bf16.msra.mxu0 0
  %5114 = vmatpush.bf16.msra.mxu0 0
  %5115 = vmatpush.bf16.msra.mxu0 0
  %5116 = vmatpush.bf16.msra.mxu0 0
  %5117 = vmatpush.bf16.msra.mxu0 0
  %5118 = vmatpush.bf16.msra.mxu0 0
  %5119 = vmatpush.bf16.msra.mxu0 %v4859
  %5120 = vmatpush.bf16.msra.mxu0 %v4855
  %5121 = vmatmul.bf16.gmra.mxu0 %v4899
  %v5122 = vpop.f32.mrf.mxu0
  %v5123 = vadd.f32 %v5104, %v5122
  %v5124 = vpop.f32.mrf.mxu0
  %v5125 = vadd.f32 %v5106, %v5124
  %5126 = vmatmul.bf16.gmra.mxu0 %v4902
  %v5127 = vpop.f32.mrf.mxu0
  %v5128 = vadd.f32 %v5109, %v5127
  %v5129 = vpop.f32.mrf.mxu0
  %v5130 = vadd.f32 %v5111, %v5129
  %5131 = vdwg.mxu0
  %v5132 = vadd.f32 %v4952, %v5009
  %v5133 = vadd.f32 %v5132, %v5066
  %v5134 = vadd.f32 %v5133, %v5123
  %5135 = vadd.xlane.f32.xlu0 %v5134
  %v5136 = vpop.xlane.xlu0 %5135
  %v5137 = vadd.f32 %v4954, %v5011
  %v5138 = vadd.f32 %v5137, %v5068
  %v5139 = vadd.f32 %v5138, %v5125
  %5140 = vadd.xlane.f32.xlu0 %v5139
  %v5141 = vpop.xlane.xlu0 %5140
  %v5142 = vadd.f32 %v4957, %v5014
  %v5143 = vadd.f32 %v5142, %v5071
  %v5144 = vadd.f32 %v5143, %v5128
  %5145 = vadd.xlane.f32.xlu0 %v5144
  %v5146 = vpop.xlane.xlu0 %5145
  %v5147 = vadd.f32 %v4959, %v5016
  %v5148 = vadd.f32 %v5147, %v5073
  %v5149 = vadd.f32 %v5148, %v5130
  %5150 = vadd.xlane.f32.xlu0 %v5149
  %v5151 = vpop.xlane.xlu0 %5150
  %v5152 = vmul.f32 %v5136, %v808
  %v5153 = vmul.f32 %v5141, %v808
  %v5154 = vmul.f32 %v5146, %v808
  %v5155 = vmul.f32 %v5151, %v808
  %v5156 = vsub.f32 %v4952, %v5152
  %v5157 = vsub.f32 %v5009, %v5152
  %v5158 = vsub.f32 %v5066, %v5152
  %v5159 = vsub.f32 %v5123, %v5152
  %v5160 = vsub.f32 %v4954, %v5153
  %v5161 = vsub.f32 %v5011, %v5153
  %v5162 = vsub.f32 %v5068, %v5153
  %v5163 = vsub.f32 %v5125, %v5153
  %v5164 = vsub.f32 %v4957, %v5154
  %v5165 = vsub.f32 %v5014, %v5154
  %v5166 = vsub.f32 %v5071, %v5154
  %v5167 = vsub.f32 %v5128, %v5154
  %v5168 = vsub.f32 %v4959, %v5155
  %v5169 = vsub.f32 %v5016, %v5155
  %v5170 = vsub.f32 %v5073, %v5155
  %v5171 = vsub.f32 %v5130, %v5155
  %v5172 = vmul.f32 %v5156, %v5156
  %v5173 = vmul.f32 %v5157, %v5157
  %v5174 = vmul.f32 %v5158, %v5158
  %v5175 = vmul.f32 %v5159, %v5159
  %v5176 = vmul.f32 %v5160, %v5160
  %v5177 = vmul.f32 %v5161, %v5161
  %v5178 = vmul.f32 %v5162, %v5162
  %v5179 = vmul.f32 %v5163, %v5163
  %v5180 = vmul.f32 %v5164, %v5164
  %v5181 = vmul.f32 %v5165, %v5165
  %v5182 = vmul.f32 %v5166, %v5166
  %v5183 = vmul.f32 %v5167, %v5167
  %v5184 = vmul.f32 %v5168, %v5168
  %v5185 = vmul.f32 %v5169, %v5169
  %v5186 = vmul.f32 %v5170, %v5170
  %v5187 = vmul.f32 %v5171, %v5171
  %v5188 = vadd.f32 %v5172, %v5173
  %v5189 = vadd.f32 %v5188, %v5174
  %v5190 = vadd.f32 %v5189, %v5175
  %5191 = vadd.xlane.f32.xlu0 %v5190
  %v5192 = vpop.xlane.xlu0 %5191
  %v5193 = vadd.f32 %v5176, %v5177
  %v5194 = vadd.f32 %v5193, %v5178
  %v5195 = vadd.f32 %v5194, %v5179
  %5196 = vadd.xlane.f32.xlu0 %v5195
  %v5197 = vpop.xlane.xlu0 %5196
  %v5198 = vadd.f32 %v5180, %v5181
  %v5199 = vadd.f32 %v5198, %v5182
  %v5200 = vadd.f32 %v5199, %v5183
  %5201 = vadd.xlane.f32.xlu0 %v5200
  %v5202 = vpop.xlane.xlu0 %5201
  %v5203 = vadd.f32 %v5184, %v5185
  %v5204 = vadd.f32 %v5203, %v5186
  %v5205 = vadd.f32 %v5204, %v5187
  %5206 = vadd.xlane.f32.xlu0 %v5205
  %v5207 = vpop.xlane.xlu0 %5206
  %v5208 = vmul.f32 %v5192, %v808
  %v5209 = vmul.f32 %v5197, %v808
  %v5210 = vmul.f32 %v5202, %v808
  %v5211 = vmul.f32 %v5207, %v808
  %s5212 = scalar_lea.vmem %s4, 96
  %v5213 = vld [vmem:[%s5212] sm:$0xff]
  %v5214 = vld [vmem:[%s5212 + $0x8] sm:$0xff]
  %v5215 = vld [vmem:[%s5212 + $0x10] sm:$0xff]
  %v5216 = vld [vmem:[%s5212 + $0x18] sm:$0xff]
  %v5217 = vadd.f32 %v5208, 1e-05
  %v5218 = vadd.f32 %v5209, 1e-05
  %v5219 = vadd.f32 %v5210, 1e-05
  %v5220 = vadd.f32 %v5211, 1e-05
  %v5221 = vrsqrt.pop %v5217
  %v5222 = vmul.f32 %v5221, %v5217
  %v5223 = vmul.f32 %v5222, %v5221
  %v5224 = vmul.f32 0.5, %v5223
  %v5225 = vsub.f32 1.5, %v5224
  %v5226 = vmul.f32 %v5221, %v5225
  %vm5227 = vweird.f32 %v5217
  %vm5228 = vweird.f32 %v5221
  %vm5229 = vmor %vm5227, %vm5228
  %v5230 = vsel %vm5229, %v5221, %v5226
  %v5231 = vrsqrt.pop %v5218
  %v5232 = vmul.f32 %v5231, %v5218
  %v5233 = vmul.f32 %v5232, %v5231
  %v5234 = vmul.f32 0.5, %v5233
  %v5235 = vsub.f32 1.5, %v5234
  %v5236 = vmul.f32 %v5231, %v5235
  %vm5237 = vweird.f32 %v5218
  %vm5238 = vweird.f32 %v5231
  %vm5239 = vmor %vm5237, %vm5238
  %v5240 = vsel %vm5239, %v5231, %v5236
  %v5241 = vrsqrt.pop %v5219
  %v5242 = vmul.f32 %v5241, %v5219
  %v5243 = vmul.f32 %v5242, %v5241
  %v5244 = vmul.f32 0.5, %v5243
  %v5245 = vsub.f32 1.5, %v5244
  %v5246 = vmul.f32 %v5241, %v5245
  %vm5247 = vweird.f32 %v5219
  %vm5248 = vweird.f32 %v5241
  %vm5249 = vmor %vm5247, %vm5248
  %v5250 = vsel %vm5249, %v5241, %v5246
  %v5251 = vrsqrt.pop %v5220
  %v5252 = vmul.f32 %v5251, %v5220
  %v5253 = vmul.f32 %v5252, %v5251
  %v5254 = vmul.f32 0.5, %v5253
  %v5255 = vsub.f32 1.5, %v5254
  %v5256 = vmul.f32 %v5251, %v5255
  %vm5257 = vweird.f32 %v5220
  %vm5258 = vweird.f32 %v5251
  %vm5259 = vmor %vm5257, %vm5258
  %v5260 = vsel %vm5259, %v5251, %v5256
  %v5261 = vmul.f32 %v5213, %v5230
  %v5262 = vmul.f32 %v5214, %v5240
  %v5263 = vmul.f32 %v5215, %v5250
  %v5264 = vmul.f32 %v5216, %v5260
  %5266 = vset.pattern.permute.xlu0 0
  %5267 = vperm.xlu0 %5266, %v5261
  %v5268 = vpop.permute.xlu0 %5267
  %5271 = vset.pattern.permute.xlu0 0
  %5272 = vperm.xlu0 %5271, %v5262
  %v5273 = vpop.permute.xlu0 %5272
  %5276 = vset.pattern.permute.xlu0 0
  %5277 = vperm.xlu0 %5276, %v5263
  %v5278 = vpop.permute.xlu0 %5277
  %5281 = vset.pattern.permute.xlu0 0
  %5282 = vperm.xlu0 %5281, %v5264
  %v5283 = vpop.permute.xlu0 %5282
  %v5285 = vmul.f32 %v5156, %v5268
  %v5286 = vmul.f32 %v5157, %v5268
  %v5287 = vmul.f32 %v5158, %v5268
  %v5288 = vmul.f32 %v5159, %v5268
  %v5289 = vmul.f32 %v5160, %v5273
  %v5290 = vmul.f32 %v5161, %v5273
  %v5291 = vmul.f32 %v5162, %v5273
  %v5292 = vmul.f32 %v5163, %v5273
  %v5293 = vmul.f32 %v5164, %v5278
  %v5294 = vmul.f32 %v5165, %v5278
  %v5295 = vmul.f32 %v5166, %v5278
  %v5296 = vmul.f32 %v5167, %v5278
  %v5297 = vmul.f32 %v5168, %v5283
  %v5298 = vmul.f32 %v5169, %v5283
  %v5299 = vmul.f32 %v5170, %v5283
  %v5300 = vmul.f32 %v5171, %v5283
  %s5301 = scalar_lea.vmem %s5, 96
  %v5302 = vld [vmem:[%s5301] sm:$0xff]
  %v5303 = vld [vmem:[%s5301 + $0x8] sm:$0xff]
  %v5304 = vld [vmem:[%s5301 + $0x10] sm:$0xff]
  %v5305 = vld [vmem:[%s5301 + $0x18] sm:$0xff]
  %5307 = vset.pattern.permute.xlu0 0
  %5308 = vperm.xlu0 %5307, %v5302
  %v5309 = vpop.permute.xlu0 %5308
  %5312 = vset.pattern.permute.xlu0 0
  %5313 = vperm.xlu0 %5312, %v5303
  %v5314 = vpop.permute.xlu0 %5313
  %5317 = vset.pattern.permute.xlu0 0
  %5318 = vperm.xlu0 %5317, %v5304
  %v5319 = vpop.permute.xlu0 %5318
  %5322 = vset.pattern.permute.xlu0 0
  %5323 = vperm.xlu0 %5322, %v5305
  %v5324 = vpop.permute.xlu0 %5323
  %v5326 = vadd.f32 %v5285, %v5309
  %v5327 = vadd.f32 %v5286, %v5309
  %v5328 = vadd.f32 %v5287, %v5309
  %v5329 = vadd.f32 %v5288, %v5309
  %v5330 = vadd.f32 %v5289, %v5314
  %v5331 = vadd.f32 %v5290, %v5314
  %v5332 = vadd.f32 %v5291, %v5314
  %v5333 = vadd.f32 %v5292, %v5314
  %v5334 = vadd.f32 %v5293, %v5319
  %v5335 = vadd.f32 %v5294, %v5319
  %v5336 = vadd.f32 %v5295, %v5319
  %v5337 = vadd.f32 %v5296, %v5319
  %v5338 = vadd.f32 %v5297, %v5324
  %v5339 = vadd.f32 %v5298, %v5324
  %v5340 = vadd.f32 %v5299, %v5324
  %v5341 = vadd.f32 %v5300, %v5324
  %v5342 = vmax.f32 %v5326, 0.0
  %v5343 = vmax.f32 %v5327, 0.0
  %v5344 = vmax.f32 %v5328, 0.0
  %v5345 = vmax.f32 %v5329, 0.0
  %v5346 = vmax.f32 %v5330, 0.0
  %v5347 = vmax.f32 %v5331, 0.0
  %v5348 = vmax.f32 %v5332, 0.0
  %v5349 = vmax.f32 %v5333, 0.0
  %v5350 = vmax.f32 %v5334, 0.0
  %v5351 = vmax.f32 %v5335, 0.0
  %v5352 = vmax.f32 %v5336, 0.0
  %v5353 = vmax.f32 %v5337, 0.0
  %v5354 = vmax.f32 %v5338, 0.0
  %v5355 = vmax.f32 %v5339, 0.0
  %v5356 = vmax.f32 %v5340, 0.0
  %v5357 = vmax.f32 %v5341, 0.0
  %s5358 = scalar_lea.vmem %s3, 144
  %v5359 = vld [vmem:[%s5358] sm:$0xff]
  %v5360 = vld [vmem:[%s5358 + $0x8] sm:$0xf]
  %v5361 = vld [vmem:[%s5358 + $0xc] sm:$0xff]
  %v5362 = vld [vmem:[%s5358 + $0x14] sm:$0xf]
  %v5363 = vld [vmem:[%s5358 + $0x18] sm:$0xff]
  %v5364 = vld [vmem:[%s5358 + $0x20] sm:$0xf]
  %v5365 = vld [vmem:[%s5358 + $0x24] sm:$0xff]
  %v5366 = vld [vmem:[%s5358 + $0x2c] sm:$0xf]
  %5367 = vrot.lane.b32.xlu0 %v5342, 17
  %v5368 = vpop.permute.xlu0 %5367
  %5369 = vrot.lane.b32.xlu0 %v5346, 17
  %v5370 = vpop.permute.xlu0 %5369
  %5371 = vrot.lane.b32.xlu0 %v5350, 17
  %v5372 = vpop.permute.xlu0 %5371
  %5373 = vrot.lane.b32.xlu0 %v5354, 17
  %v5374 = vpop.permute.xlu0 %5373
  %5375 = vrot.lane.b32.xlu0 %v5343, 17
  %v5376 = vpop.permute.xlu0 %5375
  %5377 = vrot.lane.b32.xlu0 %v5347, 17
  %v5378 = vpop.permute.xlu0 %5377
  %5379 = vrot.lane.b32.xlu0 %v5351, 17
  %v5380 = vpop.permute.xlu0 %5379
  %5381 = vrot.lane.b32.xlu0 %v5355, 17
  %v5382 = vpop.permute.xlu0 %5381
  %5383 = vrot.lane.b32.xlu0 %v5344, 17
  %v5384 = vpop.permute.xlu0 %5383
  %5385 = vrot.lane.b32.xlu0 %v5348, 17
  %v5386 = vpop.permute.xlu0 %5385
  %5387 = vrot.lane.b32.xlu0 %v5352, 17
  %v5388 = vpop.permute.xlu0 %5387
  %5389 = vrot.lane.b32.xlu0 %v5356, 17
  %v5390 = vpop.permute.xlu0 %5389
  %5391 = vrot.lane.b32.xlu0 %v5345, 17
  %v5392 = vpop.permute.xlu0 %5391
  %5393 = vrot.lane.b32.xlu0 %v5349, 17
  %v5394 = vpop.permute.xlu0 %5393
  %5395 = vrot.lane.b32.xlu0 %v5353, 17
  %v5396 = vpop.permute.xlu0 %5395
  %5397 = vrot.lane.b32.xlu0 %v5357, 17
  %v5398 = vpop.permute.xlu0 %5397
  %v5399 = vsel %vm69, %v5384, %v5392
  %v5400 = vsel %vm69, %v5386, %v5394
  %v5401 = vsel %vm69, %v5388, %v5396
  %v5402 = vsel %vm69, %v5390, %v5398
  %v5403 = vsel %vm69, %v5376, %v5384
  %v5404 = vsel %vm69, %v5378, %v5386
  %v5405 = vsel %vm69, %v5380, %v5388
  %v5406 = vsel %vm69, %v5382, %v5390
  %v5407 = vsel %vm69, %v5368, %v5376
  %v5408 = vsel %vm69, %v5370, %v5378
  %v5409 = vsel %vm69, %v5372, %v5380
  %v5410 = vsel %vm69, %v5374, %v5382
  %v5411 = vsel %vm69, %v5392, %v5368
  %v5412 = vsel %vm69, %v5394, %v5370
  %v5413 = vsel %vm69, %v5396, %v5372
  %v5414 = vsel %vm69, %v5398, %v5374
  %v5415 = vmul.f32 %v5411, %v79
  %v5416 = vmul.f32 %v5407, %v80
  %v5417 = vmul.f32 %v5403, %v81
  %v5418 = vmul.f32 %v5399, %v82
  %v5419 = vmul.f32 %v5412, %v79
  %v5420 = vmul.f32 %v5408, %v80
  %v5421 = vmul.f32 %v5404, %v81
  %v5422 = vmul.f32 %v5400, %v82
  %v5423 = vmul.f32 %v5413, %v79
  %v5424 = vmul.f32 %v5409, %v80
  %v5425 = vmul.f32 %v5405, %v81
  %v5426 = vmul.f32 %v5401, %v82
  %v5427 = vmul.f32 %v5414, %v79
  %v5428 = vmul.f32 %v5410, %v80
  %v5429 = vmul.f32 %v5406, %v81
  %v5430 = vmul.f32 %v5402, %v82
  %v5431 = vpack.c.bf16 %v5416, %v5415
  %v5432 = vpack.c.bf16 %v5418, %v5417
  %v5433 = vpack.c.bf16 %v5420, %v5419
  %v5434 = vpack.c.bf16 %v5422, %v5421
  %v5435 = vpack.c.bf16 %v5424, %v5423
  %v5436 = vpack.c.bf16 %v5426, %v5425
  %v5437 = vpack.c.bf16 %v5428, %v5427
  %v5438 = vpack.c.bf16 %v5430, %v5429
  %5439 = vrot.lane.b32.xlu0 %v5342, 16
  %v5440 = vpop.permute.xlu0 %5439
  %5441 = vrot.lane.b32.xlu0 %v5346, 16
  %v5442 = vpop.permute.xlu0 %5441
  %5443 = vrot.lane.b32.xlu0 %v5350, 16
  %v5444 = vpop.permute.xlu0 %5443
  %5445 = vrot.lane.b32.xlu0 %v5354, 16
  %v5446 = vpop.permute.xlu0 %5445
  %5447 = vrot.lane.b32.xlu0 %v5343, 16
  %v5448 = vpop.permute.xlu0 %5447
  %5449 = vrot.lane.b32.xlu0 %v5347, 16
  %v5450 = vpop.permute.xlu0 %5449
  %5451 = vrot.lane.b32.xlu0 %v5351, 16
  %v5452 = vpop.permute.xlu0 %5451
  %5453 = vrot.lane.b32.xlu0 %v5355, 16
  %v5454 = vpop.permute.xlu0 %5453
  %5455 = vrot.lane.b32.xlu0 %v5344, 16
  %v5456 = vpop.permute.xlu0 %5455
  %5457 = vrot.lane.b32.xlu0 %v5348, 16
  %v5458 = vpop.permute.xlu0 %5457
  %5459 = vrot.lane.b32.xlu0 %v5352, 16
  %v5460 = vpop.permute.xlu0 %5459
  %5461 = vrot.lane.b32.xlu0 %v5356, 16
  %v5462 = vpop.permute.xlu0 %5461
  %5463 = vrot.lane.b32.xlu0 %v5345, 16
  %v5464 = vpop.permute.xlu0 %5463
  %5465 = vrot.lane.b32.xlu0 %v5349, 16
  %v5466 = vpop.permute.xlu0 %5465
  %5467 = vrot.lane.b32.xlu0 %v5353, 16
  %v5468 = vpop.permute.xlu0 %5467
  %5469 = vrot.lane.b32.xlu0 %v5357, 16
  %v5470 = vpop.permute.xlu0 %5469
  %v5471 = vsel %vm115, %v5456, %v5464
  %v5472 = vsel %vm115, %v5458, %v5466
  %v5473 = vsel %vm115, %v5460, %v5468
  %v5474 = vsel %vm115, %v5462, %v5470
  %v5475 = vsel %vm115, %v5448, %v5456
  %v5476 = vsel %vm115, %v5450, %v5458
  %v5477 = vsel %vm115, %v5452, %v5460
  %v5478 = vsel %vm115, %v5454, %v5462
  %v5479 = vsel %vm115, %v5440, %v5448
  %v5480 = vsel %vm115, %v5442, %v5450
  %v5481 = vsel %vm115, %v5444, %v5452
  %v5482 = vsel %vm115, %v5446, %v5454
  %v5483 = vsel %vm115, %v5464, %v5440
  %v5484 = vsel %vm115, %v5466, %v5442
  %v5485 = vsel %vm115, %v5468, %v5444
  %v5486 = vsel %vm115, %v5470, %v5446
  %v5487 = vmul.f32 %v5483, %v125
  %v5488 = vmul.f32 %v5479, %v126
  %v5489 = vmul.f32 %v5475, %v127
  %v5490 = vmul.f32 %v5471, %v128
  %v5491 = vmul.f32 %v5484, %v125
  %v5492 = vmul.f32 %v5480, %v126
  %v5493 = vmul.f32 %v5476, %v127
  %v5494 = vmul.f32 %v5472, %v128
  %v5495 = vmul.f32 %v5485, %v125
  %v5496 = vmul.f32 %v5481, %v126
  %v5497 = vmul.f32 %v5477, %v127
  %v5498 = vmul.f32 %v5473, %v128
  %v5499 = vmul.f32 %v5486, %v125
  %v5500 = vmul.f32 %v5482, %v126
  %v5501 = vmul.f32 %v5478, %v127
  %v5502 = vmul.f32 %v5474, %v128
  %v5503 = vpack.c.bf16 %v5488, %v5487
  %v5504 = vpack.c.bf16 %v5490, %v5489
  %v5505 = vpack.c.bf16 %v5492, %v5491
  %v5506 = vpack.c.bf16 %v5494, %v5493
  %v5507 = vpack.c.bf16 %v5496, %v5495
  %v5508 = vpack.c.bf16 %v5498, %v5497
  %v5509 = vpack.c.bf16 %v5500, %v5499
  %v5510 = vpack.c.bf16 %v5502, %v5501
  %5511 = vrot.lane.b32.xlu0 %v5342, 15
  %v5512 = vpop.permute.xlu0 %5511
  %5513 = vrot.lane.b32.xlu0 %v5346, 15
  %v5514 = vpop.permute.xlu0 %5513
  %5515 = vrot.lane.b32.xlu0 %v5350, 15
  %v5516 = vpop.permute.xlu0 %5515
  %5517 = vrot.lane.b32.xlu0 %v5354, 15
  %v5518 = vpop.permute.xlu0 %5517
  %5519 = vrot.lane.b32.xlu0 %v5343, 15
  %v5520 = vpop.permute.xlu0 %5519
  %5521 = vrot.lane.b32.xlu0 %v5347, 15
  %v5522 = vpop.permute.xlu0 %5521
  %5523 = vrot.lane.b32.xlu0 %v5351, 15
  %v5524 = vpop.permute.xlu0 %5523
  %5525 = vrot.lane.b32.xlu0 %v5355, 15
  %v5526 = vpop.permute.xlu0 %5525
  %5527 = vrot.lane.b32.xlu0 %v5344, 15
  %v5528 = vpop.permute.xlu0 %5527
  %5529 = vrot.lane.b32.xlu0 %v5348, 15
  %v5530 = vpop.permute.xlu0 %5529
  %5531 = vrot.lane.b32.xlu0 %v5352, 15
  %v5532 = vpop.permute.xlu0 %5531
  %5533 = vrot.lane.b32.xlu0 %v5356, 15
  %v5534 = vpop.permute.xlu0 %5533
  %5535 = vrot.lane.b32.xlu0 %v5345, 15
  %v5536 = vpop.permute.xlu0 %5535
  %5537 = vrot.lane.b32.xlu0 %v5349, 15
  %v5538 = vpop.permute.xlu0 %5537
  %5539 = vrot.lane.b32.xlu0 %v5353, 15
  %v5540 = vpop.permute.xlu0 %5539
  %5541 = vrot.lane.b32.xlu0 %v5357, 15
  %v5542 = vpop.permute.xlu0 %5541
  %v5543 = vsel %vm161, %v5528, %v5536
  %v5544 = vsel %vm161, %v5530, %v5538
  %v5545 = vsel %vm161, %v5532, %v5540
  %v5546 = vsel %vm161, %v5534, %v5542
  %v5547 = vsel %vm161, %v5520, %v5528
  %v5548 = vsel %vm161, %v5522, %v5530
  %v5549 = vsel %vm161, %v5524, %v5532
  %v5550 = vsel %vm161, %v5526, %v5534
  %v5551 = vsel %vm161, %v5512, %v5520
  %v5552 = vsel %vm161, %v5514, %v5522
  %v5553 = vsel %vm161, %v5516, %v5524
  %v5554 = vsel %vm161, %v5518, %v5526
  %v5555 = vsel %vm161, %v5536, %v5512
  %v5556 = vsel %vm161, %v5538, %v5514
  %v5557 = vsel %vm161, %v5540, %v5516
  %v5558 = vsel %vm161, %v5542, %v5518
  %v5559 = vmul.f32 %v5555, %v171
  %v5560 = vmul.f32 %v5551, %v172
  %v5561 = vmul.f32 %v5547, %v173
  %v5562 = vmul.f32 %v5543, %v174
  %v5563 = vmul.f32 %v5556, %v171
  %v5564 = vmul.f32 %v5552, %v172
  %v5565 = vmul.f32 %v5548, %v173
  %v5566 = vmul.f32 %v5544, %v174
  %v5567 = vmul.f32 %v5557, %v171
  %v5568 = vmul.f32 %v5553, %v172
  %v5569 = vmul.f32 %v5549, %v173
  %v5570 = vmul.f32 %v5545, %v174
  %v5571 = vmul.f32 %v5558, %v171
  %v5572 = vmul.f32 %v5554, %v172
  %v5573 = vmul.f32 %v5550, %v173
  %v5574 = vmul.f32 %v5546, %v174
  %v5575 = vpack.c.bf16 %v5560, %v5559
  %v5576 = vpack.c.bf16 %v5562, %v5561
  %v5577 = vpack.c.bf16 %v5564, %v5563
  %v5578 = vpack.c.bf16 %v5566, %v5565
  %v5579 = vpack.c.bf16 %v5568, %v5567
  %v5580 = vpack.c.bf16 %v5570, %v5569
  %v5581 = vpack.c.bf16 %v5572, %v5571
  %v5582 = vpack.c.bf16 %v5574, %v5573
  %5583 = vrot.lane.b32.xlu0 %v5342, 1
  %v5584 = vpop.permute.xlu0 %5583
  %5585 = vrot.lane.b32.xlu0 %v5346, 1
  %v5586 = vpop.permute.xlu0 %5585
  %5587 = vrot.lane.b32.xlu0 %v5350, 1
  %v5588 = vpop.permute.xlu0 %5587
  %5589 = vrot.lane.b32.xlu0 %v5354, 1
  %v5590 = vpop.permute.xlu0 %5589
  %5591 = vrot.lane.b32.xlu0 %v5343, 1
  %v5592 = vpop.permute.xlu0 %5591
  %5593 = vrot.lane.b32.xlu0 %v5347, 1
  %v5594 = vpop.permute.xlu0 %5593
  %5595 = vrot.lane.b32.xlu0 %v5351, 1
  %v5596 = vpop.permute.xlu0 %5595
  %5597 = vrot.lane.b32.xlu0 %v5355, 1
  %v5598 = vpop.permute.xlu0 %5597
  %5599 = vrot.lane.b32.xlu0 %v5344, 1
  %v5600 = vpop.permute.xlu0 %5599
  %5601 = vrot.lane.b32.xlu0 %v5348, 1
  %v5602 = vpop.permute.xlu0 %5601
  %5603 = vrot.lane.b32.xlu0 %v5352, 1
  %v5604 = vpop.permute.xlu0 %5603
  %5605 = vrot.lane.b32.xlu0 %v5356, 1
  %v5606 = vpop.permute.xlu0 %5605
  %5607 = vrot.lane.b32.xlu0 %v5345, 1
  %v5608 = vpop.permute.xlu0 %5607
  %5609 = vrot.lane.b32.xlu0 %v5349, 1
  %v5610 = vpop.permute.xlu0 %5609
  %5611 = vrot.lane.b32.xlu0 %v5353, 1
  %v5612 = vpop.permute.xlu0 %5611
  %5613 = vrot.lane.b32.xlu0 %v5357, 1
  %v5614 = vpop.permute.xlu0 %5613
  %v5615 = vsel %vm207, %v5600, %v5608
  %v5616 = vsel %vm207, %v5602, %v5610
  %v5617 = vsel %vm207, %v5604, %v5612
  %v5618 = vsel %vm207, %v5606, %v5614
  %v5619 = vsel %vm207, %v5592, %v5600
  %v5620 = vsel %vm207, %v5594, %v5602
  %v5621 = vsel %vm207, %v5596, %v5604
  %v5622 = vsel %vm207, %v5598, %v5606
  %v5623 = vsel %vm207, %v5584, %v5592
  %v5624 = vsel %vm207, %v5586, %v5594
  %v5625 = vsel %vm207, %v5588, %v5596
  %v5626 = vsel %vm207, %v5590, %v5598
  %v5627 = vsel %vm207, %v5608, %v5584
  %v5628 = vsel %vm207, %v5610, %v5586
  %v5629 = vsel %vm207, %v5612, %v5588
  %v5630 = vsel %vm207, %v5614, %v5590
  %v5631 = vmul.f32 %v5627, %v217
  %v5632 = vmul.f32 %v5623, %v218
  %v5633 = vmul.f32 %v5619, %v219
  %v5634 = vmul.f32 %v5615, %v220
  %v5635 = vmul.f32 %v5628, %v217
  %v5636 = vmul.f32 %v5624, %v218
  %v5637 = vmul.f32 %v5620, %v219
  %v5638 = vmul.f32 %v5616, %v220
  %v5639 = vmul.f32 %v5629, %v217
  %v5640 = vmul.f32 %v5625, %v218
  %v5641 = vmul.f32 %v5621, %v219
  %v5642 = vmul.f32 %v5617, %v220
  %v5643 = vmul.f32 %v5630, %v217
  %v5644 = vmul.f32 %v5626, %v218
  %v5645 = vmul.f32 %v5622, %v219
  %v5646 = vmul.f32 %v5618, %v220
  %v5647 = vpack.c.bf16 %v5632, %v5631
  %v5648 = vpack.c.bf16 %v5634, %v5633
  %v5649 = vpack.c.bf16 %v5636, %v5635
  %v5650 = vpack.c.bf16 %v5638, %v5637
  %v5651 = vpack.c.bf16 %v5640, %v5639
  %v5652 = vpack.c.bf16 %v5642, %v5641
  %v5653 = vpack.c.bf16 %v5644, %v5643
  %v5654 = vpack.c.bf16 %v5646, %v5645
  %v5655 = vpack.c.bf16 %v5343, %v5342
  %v5656 = vpack.c.bf16 %v5345, %v5344
  %v5657 = vpack.c.bf16 %v5347, %v5346
  %v5658 = vpack.c.bf16 %v5349, %v5348
  %v5659 = vpack.c.bf16 %v5351, %v5350
  %v5660 = vpack.c.bf16 %v5353, %v5352
  %v5661 = vpack.c.bf16 %v5355, %v5354
  %v5662 = vpack.c.bf16 %v5357, %v5356
  %5663 = vrot.lane.b32.xlu0 %v5342, 127
  %v5664 = vpop.permute.xlu0 %5663
  %5665 = vrot.lane.b32.xlu0 %v5346, 127
  %v5666 = vpop.permute.xlu0 %5665
  %5667 = vrot.lane.b32.xlu0 %v5350, 127
  %v5668 = vpop.permute.xlu0 %5667
  %5669 = vrot.lane.b32.xlu0 %v5354, 127
  %v5670 = vpop.permute.xlu0 %5669
  %5671 = vrot.lane.b32.xlu0 %v5343, 127
  %v5672 = vpop.permute.xlu0 %5671
  %5673 = vrot.lane.b32.xlu0 %v5347, 127
  %v5674 = vpop.permute.xlu0 %5673
  %5675 = vrot.lane.b32.xlu0 %v5351, 127
  %v5676 = vpop.permute.xlu0 %5675
  %5677 = vrot.lane.b32.xlu0 %v5355, 127
  %v5678 = vpop.permute.xlu0 %5677
  %5679 = vrot.lane.b32.xlu0 %v5344, 127
  %v5680 = vpop.permute.xlu0 %5679
  %5681 = vrot.lane.b32.xlu0 %v5348, 127
  %v5682 = vpop.permute.xlu0 %5681
  %5683 = vrot.lane.b32.xlu0 %v5352, 127
  %v5684 = vpop.permute.xlu0 %5683
  %5685 = vrot.lane.b32.xlu0 %v5356, 127
  %v5686 = vpop.permute.xlu0 %5685
  %5687 = vrot.lane.b32.xlu0 %v5345, 127
  %v5688 = vpop.permute.xlu0 %5687
  %5689 = vrot.lane.b32.xlu0 %v5349, 127
  %v5690 = vpop.permute.xlu0 %5689
  %5691 = vrot.lane.b32.xlu0 %v5353, 127
  %v5692 = vpop.permute.xlu0 %5691
  %5693 = vrot.lane.b32.xlu0 %v5357, 127
  %v5694 = vpop.permute.xlu0 %5693
  %v5695 = vsel %vm257, %v5680, %v5688
  %v5696 = vsel %vm257, %v5682, %v5690
  %v5697 = vsel %vm257, %v5684, %v5692
  %v5698 = vsel %vm257, %v5686, %v5694
  %v5699 = vsel %vm257, %v5672, %v5680
  %v5700 = vsel %vm257, %v5674, %v5682
  %v5701 = vsel %vm257, %v5676, %v5684
  %v5702 = vsel %vm257, %v5678, %v5686
  %v5703 = vsel %vm257, %v5664, %v5672
  %v5704 = vsel %vm257, %v5666, %v5674
  %v5705 = vsel %vm257, %v5668, %v5676
  %v5706 = vsel %vm257, %v5670, %v5678
  %v5707 = vsel %vm257, %v5688, %v5664
  %v5708 = vsel %vm257, %v5690, %v5666
  %v5709 = vsel %vm257, %v5692, %v5668
  %v5710 = vsel %vm257, %v5694, %v5670
  %v5711 = vmul.f32 %v5703, %v267
  %v5712 = vmul.f32 %v5699, %v268
  %v5713 = vmul.f32 %v5695, %v269
  %v5714 = vmul.f32 %v5707, %v270
  %v5715 = vmul.f32 %v5704, %v267
  %v5716 = vmul.f32 %v5700, %v268
  %v5717 = vmul.f32 %v5696, %v269
  %v5718 = vmul.f32 %v5708, %v270
  %v5719 = vmul.f32 %v5705, %v267
  %v5720 = vmul.f32 %v5701, %v268
  %v5721 = vmul.f32 %v5697, %v269
  %v5722 = vmul.f32 %v5709, %v270
  %v5723 = vmul.f32 %v5706, %v267
  %v5724 = vmul.f32 %v5702, %v268
  %v5725 = vmul.f32 %v5698, %v269
  %v5726 = vmul.f32 %v5710, %v270
  %v5727 = vpack.c.bf16 %v5712, %v5711
  %v5728 = vpack.c.bf16 %v5714, %v5713
  %v5729 = vpack.c.bf16 %v5716, %v5715
  %v5730 = vpack.c.bf16 %v5718, %v5717
  %v5731 = vpack.c.bf16 %v5720, %v5719
  %v5732 = vpack.c.bf16 %v5722, %v5721
  %v5733 = vpack.c.bf16 %v5724, %v5723
  %v5734 = vpack.c.bf16 %v5726, %v5725
  %5735 = vrot.lane.b32.xlu0 %v5342, 113
  %v5736 = vpop.permute.xlu0 %5735
  %5737 = vrot.lane.b32.xlu0 %v5346, 113
  %v5738 = vpop.permute.xlu0 %5737
  %5739 = vrot.lane.b32.xlu0 %v5350, 113
  %v5740 = vpop.permute.xlu0 %5739
  %5741 = vrot.lane.b32.xlu0 %v5354, 113
  %v5742 = vpop.permute.xlu0 %5741
  %5743 = vrot.lane.b32.xlu0 %v5343, 113
  %v5744 = vpop.permute.xlu0 %5743
  %5745 = vrot.lane.b32.xlu0 %v5347, 113
  %v5746 = vpop.permute.xlu0 %5745
  %5747 = vrot.lane.b32.xlu0 %v5351, 113
  %v5748 = vpop.permute.xlu0 %5747
  %5749 = vrot.lane.b32.xlu0 %v5355, 113
  %v5750 = vpop.permute.xlu0 %5749
  %5751 = vrot.lane.b32.xlu0 %v5344, 113
  %v5752 = vpop.permute.xlu0 %5751
  %5753 = vrot.lane.b32.xlu0 %v5348, 113
  %v5754 = vpop.permute.xlu0 %5753
  %5755 = vrot.lane.b32.xlu0 %v5352, 113
  %v5756 = vpop.permute.xlu0 %5755
  %5757 = vrot.lane.b32.xlu0 %v5356, 113
  %v5758 = vpop.permute.xlu0 %5757
  %5759 = vrot.lane.b32.xlu0 %v5345, 113
  %v5760 = vpop.permute.xlu0 %5759
  %5761 = vrot.lane.b32.xlu0 %v5349, 113
  %v5762 = vpop.permute.xlu0 %5761
  %5763 = vrot.lane.b32.xlu0 %v5353, 113
  %v5764 = vpop.permute.xlu0 %5763
  %5765 = vrot.lane.b32.xlu0 %v5357, 113
  %v5766 = vpop.permute.xlu0 %5765
  %v5767 = vsel %vm303, %v5752, %v5760
  %v5768 = vsel %vm303, %v5754, %v5762
  %v5769 = vsel %vm303, %v5756, %v5764
  %v5770 = vsel %vm303, %v5758, %v5766
  %v5771 = vsel %vm303, %v5744, %v5752
  %v5772 = vsel %vm303, %v5746, %v5754
  %v5773 = vsel %vm303, %v5748, %v5756
  %v5774 = vsel %vm303, %v5750, %v5758
  %v5775 = vsel %vm303, %v5736, %v5744
  %v5776 = vsel %vm303, %v5738, %v5746
  %v5777 = vsel %vm303, %v5740, %v5748
  %v5778 = vsel %vm303, %v5742, %v5750
  %v5779 = vsel %vm303, %v5760, %v5736
  %v5780 = vsel %vm303, %v5762, %v5738
  %v5781 = vsel %vm303, %v5764, %v5740
  %v5782 = vsel %vm303, %v5766, %v5742
  %v5783 = vmul.f32 %v5775, %v313
  %v5784 = vmul.f32 %v5771, %v314
  %v5785 = vmul.f32 %v5767, %v315
  %v5786 = vmul.f32 %v5779, %v316
  %v5787 = vmul.f32 %v5776, %v313
  %v5788 = vmul.f32 %v5772, %v314
  %v5789 = vmul.f32 %v5768, %v315
  %v5790 = vmul.f32 %v5780, %v316
  %v5791 = vmul.f32 %v5777, %v313
  %v5792 = vmul.f32 %v5773, %v314
  %v5793 = vmul.f32 %v5769, %v315
  %v5794 = vmul.f32 %v5781, %v316
  %v5795 = vmul.f32 %v5778, %v313
  %v5796 = vmul.f32 %v5774, %v314
  %v5797 = vmul.f32 %v5770, %v315
  %v5798 = vmul.f32 %v5782, %v316
  %v5799 = vpack.c.bf16 %v5784, %v5783
  %v5800 = vpack.c.bf16 %v5786, %v5785
  %v5801 = vpack.c.bf16 %v5788, %v5787
  %v5802 = vpack.c.bf16 %v5790, %v5789
  %v5803 = vpack.c.bf16 %v5792, %v5791
  %v5804 = vpack.c.bf16 %v5794, %v5793
  %v5805 = vpack.c.bf16 %v5796, %v5795
  %v5806 = vpack.c.bf16 %v5798, %v5797
  %5807 = vrot.lane.b32.xlu0 %v5342, 112
  %v5808 = vpop.permute.xlu0 %5807
  %5809 = vrot.lane.b32.xlu0 %v5346, 112
  %v5810 = vpop.permute.xlu0 %5809
  %5811 = vrot.lane.b32.xlu0 %v5350, 112
  %v5812 = vpop.permute.xlu0 %5811
  %5813 = vrot.lane.b32.xlu0 %v5354, 112
  %v5814 = vpop.permute.xlu0 %5813
  %5815 = vrot.lane.b32.xlu0 %v5343, 112
  %v5816 = vpop.permute.xlu0 %5815
  %5817 = vrot.lane.b32.xlu0 %v5347, 112
  %v5818 = vpop.permute.xlu0 %5817
  %5819 = vrot.lane.b32.xlu0 %v5351, 112
  %v5820 = vpop.permute.xlu0 %5819
  %5821 = vrot.lane.b32.xlu0 %v5355, 112
  %v5822 = vpop.permute.xlu0 %5821
  %5823 = vrot.lane.b32.xlu0 %v5344, 112
  %v5824 = vpop.permute.xlu0 %5823
  %5825 = vrot.lane.b32.xlu0 %v5348, 112
  %v5826 = vpop.permute.xlu0 %5825
  %5827 = vrot.lane.b32.xlu0 %v5352, 112
  %v5828 = vpop.permute.xlu0 %5827
  %5829 = vrot.lane.b32.xlu0 %v5356, 112
  %v5830 = vpop.permute.xlu0 %5829
  %5831 = vrot.lane.b32.xlu0 %v5345, 112
  %v5832 = vpop.permute.xlu0 %5831
  %5833 = vrot.lane.b32.xlu0 %v5349, 112
  %v5834 = vpop.permute.xlu0 %5833
  %5835 = vrot.lane.b32.xlu0 %v5353, 112
  %v5836 = vpop.permute.xlu0 %5835
  %5837 = vrot.lane.b32.xlu0 %v5357, 112
  %v5838 = vpop.permute.xlu0 %5837
  %v5839 = vsel %vm349, %v5824, %v5832
  %v5840 = vsel %vm349, %v5826, %v5834
  %v5841 = vsel %vm349, %v5828, %v5836
  %v5842 = vsel %vm349, %v5830, %v5838
  %v5843 = vsel %vm349, %v5816, %v5824
  %v5844 = vsel %vm349, %v5818, %v5826
  %v5845 = vsel %vm349, %v5820, %v5828
  %v5846 = vsel %vm349, %v5822, %v5830
  %v5847 = vsel %vm349, %v5808, %v5816
  %v5848 = vsel %vm349, %v5810, %v5818
  %v5849 = vsel %vm349, %v5812, %v5820
  %v5850 = vsel %vm349, %v5814, %v5822
  %v5851 = vsel %vm349, %v5832, %v5808
  %v5852 = vsel %vm349, %v5834, %v5810
  %v5853 = vsel %vm349, %v5836, %v5812
  %v5854 = vsel %vm349, %v5838, %v5814
  %v5855 = vmul.f32 %v5847, %v359
  %v5856 = vmul.f32 %v5843, %v360
  %v5857 = vmul.f32 %v5839, %v361
  %v5858 = vmul.f32 %v5851, %v362
  %v5859 = vmul.f32 %v5848, %v359
  %v5860 = vmul.f32 %v5844, %v360
  %v5861 = vmul.f32 %v5840, %v361
  %v5862 = vmul.f32 %v5852, %v362
  %v5863 = vmul.f32 %v5849, %v359
  %v5864 = vmul.f32 %v5845, %v360
  %v5865 = vmul.f32 %v5841, %v361
  %v5866 = vmul.f32 %v5853, %v362
  %v5867 = vmul.f32 %v5850, %v359
  %v5868 = vmul.f32 %v5846, %v360
  %v5869 = vmul.f32 %v5842, %v361
  %v5870 = vmul.f32 %v5854, %v362
  %v5871 = vpack.c.bf16 %v5856, %v5855
  %v5872 = vpack.c.bf16 %v5858, %v5857
  %v5873 = vpack.c.bf16 %v5860, %v5859
  %v5874 = vpack.c.bf16 %v5862, %v5861
  %v5875 = vpack.c.bf16 %v5864, %v5863
  %v5876 = vpack.c.bf16 %v5866, %v5865
  %v5877 = vpack.c.bf16 %v5868, %v5867
  %v5878 = vpack.c.bf16 %v5870, %v5869
  %5879 = vrot.lane.b32.xlu0 %v5342, 111
  %v5880 = vpop.permute.xlu0 %5879
  %5881 = vrot.lane.b32.xlu0 %v5346, 111
  %v5882 = vpop.permute.xlu0 %5881
  %5883 = vrot.lane.b32.xlu0 %v5350, 111
  %v5884 = vpop.permute.xlu0 %5883
  %5885 = vrot.lane.b32.xlu0 %v5354, 111
  %v5886 = vpop.permute.xlu0 %5885
  %5887 = vrot.lane.b32.xlu0 %v5343, 111
  %v5888 = vpop.permute.xlu0 %5887
  %5889 = vrot.lane.b32.xlu0 %v5347, 111
  %v5890 = vpop.permute.xlu0 %5889
  %5891 = vrot.lane.b32.xlu0 %v5351, 111
  %v5892 = vpop.permute.xlu0 %5891
  %5893 = vrot.lane.b32.xlu0 %v5355, 111
  %v5894 = vpop.permute.xlu0 %5893
  %5895 = vrot.lane.b32.xlu0 %v5344, 111
  %v5896 = vpop.permute.xlu0 %5895
  %5897 = vrot.lane.b32.xlu0 %v5348, 111
  %v5898 = vpop.permute.xlu0 %5897
  %5899 = vrot.lane.b32.xlu0 %v5352, 111
  %v5900 = vpop.permute.xlu0 %5899
  %5901 = vrot.lane.b32.xlu0 %v5356, 111
  %v5902 = vpop.permute.xlu0 %5901
  %5903 = vrot.lane.b32.xlu0 %v5345, 111
  %v5904 = vpop.permute.xlu0 %5903
  %5905 = vrot.lane.b32.xlu0 %v5349, 111
  %v5906 = vpop.permute.xlu0 %5905
  %5907 = vrot.lane.b32.xlu0 %v5353, 111
  %v5908 = vpop.permute.xlu0 %5907
  %5909 = vrot.lane.b32.xlu0 %v5357, 111
  %v5910 = vpop.permute.xlu0 %5909
  %v5911 = vsel %vm395, %v5896, %v5904
  %v5912 = vsel %vm395, %v5898, %v5906
  %v5913 = vsel %vm395, %v5900, %v5908
  %v5914 = vsel %vm395, %v5902, %v5910
  %v5915 = vsel %vm395, %v5888, %v5896
  %v5916 = vsel %vm395, %v5890, %v5898
  %v5917 = vsel %vm395, %v5892, %v5900
  %v5918 = vsel %vm395, %v5894, %v5902
  %v5919 = vsel %vm395, %v5880, %v5888
  %v5920 = vsel %vm395, %v5882, %v5890
  %v5921 = vsel %vm395, %v5884, %v5892
  %v5922 = vsel %vm395, %v5886, %v5894
  %v5923 = vsel %vm395, %v5904, %v5880
  %v5924 = vsel %vm395, %v5906, %v5882
  %v5925 = vsel %vm395, %v5908, %v5884
  %v5926 = vsel %vm395, %v5910, %v5886
  %v5927 = vmul.f32 %v5919, %v405
  %v5928 = vmul.f32 %v5915, %v406
  %v5929 = vmul.f32 %v5911, %v407
  %v5930 = vmul.f32 %v5923, %v408
  %v5931 = vmul.f32 %v5920, %v405
  %v5932 = vmul.f32 %v5916, %v406
  %v5933 = vmul.f32 %v5912, %v407
  %v5934 = vmul.f32 %v5924, %v408
  %v5935 = vmul.f32 %v5921, %v405
  %v5936 = vmul.f32 %v5917, %v406
  %v5937 = vmul.f32 %v5913, %v407
  %v5938 = vmul.f32 %v5925, %v408
  %v5939 = vmul.f32 %v5922, %v405
  %v5940 = vmul.f32 %v5918, %v406
  %v5941 = vmul.f32 %v5914, %v407
  %v5942 = vmul.f32 %v5926, %v408
  %v5943 = vpack.c.bf16 %v5928, %v5927
  %v5944 = vpack.c.bf16 %v5930, %v5929
  %v5945 = vpack.c.bf16 %v5932, %v5931
  %v5946 = vpack.c.bf16 %v5934, %v5933
  %v5947 = vpack.c.bf16 %v5936, %v5935
  %v5948 = vpack.c.bf16 %v5938, %v5937
  %v5949 = vpack.c.bf16 %v5940, %v5939
  %v5950 = vpack.c.bf16 %v5942, %v5941
  %v5959 = vunpack.c.l.b16 %v5431
  %v5960 = vunpack.c.h.b16 %v5431
  %v5961 = vunpack.c.l.b16 %v5432
  %v5962 = vunpack.c.h.b16 %v5432
  %v5963 = vunpack.c.l.b16 %v5433
  %v5964 = vunpack.c.h.b16 %v5433
  %v5965 = vunpack.c.l.b16 %v5434
  %v5966 = vunpack.c.h.b16 %v5434
  %v5967 = vunpack.c.l.b16 %v5435
  %v5968 = vunpack.c.h.b16 %v5435
  %v5969 = vunpack.c.l.b16 %v5436
  %v5970 = vunpack.c.h.b16 %v5436
  %v5971 = vunpack.c.l.b16 %v5437
  %v5972 = vunpack.c.h.b16 %v5437
  %v5973 = vunpack.c.l.b16 %v5438
  %v5974 = vunpack.c.h.b16 %v5438
  %v5975 = vpack.c.b16 %v5963, %v5959
  %v5976 = vpack.c.b16 %v5964, %v5960
  %v5977 = vpack.c.b16 %v5965, %v5961
  %v5978 = vpack.c.b16 %v5966, %v5962
  %v5979 = vpack.c.b16 %v5971, %v5967
  %v5980 = vpack.c.b16 %v5972, %v5968
  %v5981 = vpack.c.b16 %v5973, %v5969
  %v5982 = vpack.c.b16 %v5974, %v5970
  %v5999 = vunpack.c.l.b16 %v5503
  %v6000 = vunpack.c.h.b16 %v5503
  %v6001 = vunpack.c.l.b16 %v5504
  %v6002 = vunpack.c.h.b16 %v5504
  %v6003 = vunpack.c.l.b16 %v5505
  %v6004 = vunpack.c.h.b16 %v5505
  %v6005 = vunpack.c.l.b16 %v5506
  %v6006 = vunpack.c.h.b16 %v5506
  %v6007 = vunpack.c.l.b16 %v5507
  %v6008 = vunpack.c.h.b16 %v5507
  %v6009 = vunpack.c.l.b16 %v5508
  %v6010 = vunpack.c.h.b16 %v5508
  %v6011 = vunpack.c.l.b16 %v5509
  %v6012 = vunpack.c.h.b16 %v5509
  %v6013 = vunpack.c.l.b16 %v5510
  %v6014 = vunpack.c.h.b16 %v5510
  %v6015 = vpack.c.b16 %v6003, %v5999
  %v6016 = vpack.c.b16 %v6004, %v6000
  %v6017 = vpack.c.b16 %v6005, %v6001
  %v6018 = vpack.c.b16 %v6006, %v6002
  %v6019 = vpack.c.b16 %v6011, %v6007
  %v6020 = vpack.c.b16 %v6012, %v6008
  %v6021 = vpack.c.b16 %v6013, %v6009
  %v6022 = vpack.c.b16 %v6014, %v6010
  %v6039 = vunpack.c.l.b16 %v5575
  %v6040 = vunpack.c.h.b16 %v5575
  %v6041 = vunpack.c.l.b16 %v5576
  %v6042 = vunpack.c.h.b16 %v5576
  %v6043 = vunpack.c.l.b16 %v5577
  %v6044 = vunpack.c.h.b16 %v5577
  %v6045 = vunpack.c.l.b16 %v5578
  %v6046 = vunpack.c.h.b16 %v5578
  %v6047 = vunpack.c.l.b16 %v5579
  %v6048 = vunpack.c.h.b16 %v5579
  %v6049 = vunpack.c.l.b16 %v5580
  %v6050 = vunpack.c.h.b16 %v5580
  %v6051 = vunpack.c.l.b16 %v5581
  %v6052 = vunpack.c.h.b16 %v5581
  %v6053 = vunpack.c.l.b16 %v5582
  %v6054 = vunpack.c.h.b16 %v5582
  %v6055 = vpack.c.b16 %v6043, %v6039
  %v6056 = vpack.c.b16 %v6044, %v6040
  %v6057 = vpack.c.b16 %v6045, %v6041
  %v6058 = vpack.c.b16 %v6046, %v6042
  %v6059 = vpack.c.b16 %v6051, %v6047
  %v6060 = vpack.c.b16 %v6052, %v6048
  %v6061 = vpack.c.b16 %v6053, %v6049
  %v6062 = vpack.c.b16 %v6054, %v6050
  %v6079 = vunpack.c.l.b16 %v5647
  %v6080 = vunpack.c.h.b16 %v5647
  %v6081 = vunpack.c.l.b16 %v5648
  %v6082 = vunpack.c.h.b16 %v5648
  %v6083 = vunpack.c.l.b16 %v5649
  %v6084 = vunpack.c.h.b16 %v5649
  %v6085 = vunpack.c.l.b16 %v5650
  %v6086 = vunpack.c.h.b16 %v5650
  %v6087 = vunpack.c.l.b16 %v5651
  %v6088 = vunpack.c.h.b16 %v5651
  %v6089 = vunpack.c.l.b16 %v5652
  %v6090 = vunpack.c.h.b16 %v5652
  %v6091 = vunpack.c.l.b16 %v5653
  %v6092 = vunpack.c.h.b16 %v5653
  %v6093 = vunpack.c.l.b16 %v5654
  %v6094 = vunpack.c.h.b16 %v5654
  %v6095 = vpack.c.b16 %v6083, %v6079
  %v6096 = vpack.c.b16 %v6084, %v6080
  %v6097 = vpack.c.b16 %v6085, %v6081
  %v6098 = vpack.c.b16 %v6086, %v6082
  %v6099 = vpack.c.b16 %v6091, %v6087
  %v6100 = vpack.c.b16 %v6092, %v6088
  %v6101 = vpack.c.b16 %v6093, %v6089
  %v6102 = vpack.c.b16 %v6094, %v6090
  %v6119 = vunpack.c.l.b16 %v5655
  %v6120 = vunpack.c.h.b16 %v5655
  %v6121 = vunpack.c.l.b16 %v5656
  %v6122 = vunpack.c.h.b16 %v5656
  %v6123 = vunpack.c.l.b16 %v5657
  %v6124 = vunpack.c.h.b16 %v5657
  %v6125 = vunpack.c.l.b16 %v5658
  %v6126 = vunpack.c.h.b16 %v5658
  %v6127 = vunpack.c.l.b16 %v5659
  %v6128 = vunpack.c.h.b16 %v5659
  %v6129 = vunpack.c.l.b16 %v5660
  %v6130 = vunpack.c.h.b16 %v5660
  %v6131 = vunpack.c.l.b16 %v5661
  %v6132 = vunpack.c.h.b16 %v5661
  %v6133 = vunpack.c.l.b16 %v5662
  %v6134 = vunpack.c.h.b16 %v5662
  %v6135 = vpack.c.b16 %v6123, %v6119
  %v6136 = vpack.c.b16 %v6124, %v6120
  %v6137 = vpack.c.b16 %v6125, %v6121
  %v6138 = vpack.c.b16 %v6126, %v6122
  %v6139 = vpack.c.b16 %v6131, %v6127
  %v6140 = vpack.c.b16 %v6132, %v6128
  %v6141 = vpack.c.b16 %v6133, %v6129
  %v6142 = vpack.c.b16 %v6134, %v6130
  %v6159 = vunpack.c.l.b16 %v5727
  %v6160 = vunpack.c.h.b16 %v5727
  %v6161 = vunpack.c.l.b16 %v5728
  %v6162 = vunpack.c.h.b16 %v5728
  %v6163 = vunpack.c.l.b16 %v5729
  %v6164 = vunpack.c.h.b16 %v5729
  %v6165 = vunpack.c.l.b16 %v5730
  %v6166 = vunpack.c.h.b16 %v5730
  %v6167 = vunpack.c.l.b16 %v5731
  %v6168 = vunpack.c.h.b16 %v5731
  %v6169 = vunpack.c.l.b16 %v5732
  %v6170 = vunpack.c.h.b16 %v5732
  %v6171 = vunpack.c.l.b16 %v5733
  %v6172 = vunpack.c.h.b16 %v5733
  %v6173 = vunpack.c.l.b16 %v5734
  %v6174 = vunpack.c.h.b16 %v5734
  %v6175 = vpack.c.b16 %v6163, %v6159
  %v6176 = vpack.c.b16 %v6164, %v6160
  %v6177 = vpack.c.b16 %v6165, %v6161
  %v6178 = vpack.c.b16 %v6166, %v6162
  %v6179 = vpack.c.b16 %v6171, %v6167
  %v6180 = vpack.c.b16 %v6172, %v6168
  %v6181 = vpack.c.b16 %v6173, %v6169
  %v6182 = vpack.c.b16 %v6174, %v6170
  %v6199 = vunpack.c.l.b16 %v5799
  %v6200 = vunpack.c.h.b16 %v5799
  %v6201 = vunpack.c.l.b16 %v5800
  %v6202 = vunpack.c.h.b16 %v5800
  %v6203 = vunpack.c.l.b16 %v5801
  %v6204 = vunpack.c.h.b16 %v5801
  %v6205 = vunpack.c.l.b16 %v5802
  %v6206 = vunpack.c.h.b16 %v5802
  %v6207 = vunpack.c.l.b16 %v5803
  %v6208 = vunpack.c.h.b16 %v5803
  %v6209 = vunpack.c.l.b16 %v5804
  %v6210 = vunpack.c.h.b16 %v5804
  %v6211 = vunpack.c.l.b16 %v5805
  %v6212 = vunpack.c.h.b16 %v5805
  %v6213 = vunpack.c.l.b16 %v5806
  %v6214 = vunpack.c.h.b16 %v5806
  %v6215 = vpack.c.b16 %v6203, %v6199
  %v6216 = vpack.c.b16 %v6204, %v6200
  %v6217 = vpack.c.b16 %v6205, %v6201
  %v6218 = vpack.c.b16 %v6206, %v6202
  %v6219 = vpack.c.b16 %v6211, %v6207
  %v6220 = vpack.c.b16 %v6212, %v6208
  %v6221 = vpack.c.b16 %v6213, %v6209
  %v6222 = vpack.c.b16 %v6214, %v6210
  %v6239 = vunpack.c.l.b16 %v5871
  %v6240 = vunpack.c.h.b16 %v5871
  %v6241 = vunpack.c.l.b16 %v5872
  %v6242 = vunpack.c.h.b16 %v5872
  %v6243 = vunpack.c.l.b16 %v5873
  %v6244 = vunpack.c.h.b16 %v5873
  %v6245 = vunpack.c.l.b16 %v5874
  %v6246 = vunpack.c.h.b16 %v5874
  %v6247 = vunpack.c.l.b16 %v5875
  %v6248 = vunpack.c.h.b16 %v5875
  %v6249 = vunpack.c.l.b16 %v5876
  %v6250 = vunpack.c.h.b16 %v5876
  %v6251 = vunpack.c.l.b16 %v5877
  %v6252 = vunpack.c.h.b16 %v5877
  %v6253 = vunpack.c.l.b16 %v5878
  %v6254 = vunpack.c.h.b16 %v5878
  %v6255 = vpack.c.b16 %v6243, %v6239
  %v6256 = vpack.c.b16 %v6244, %v6240
  %v6257 = vpack.c.b16 %v6245, %v6241
  %v6258 = vpack.c.b16 %v6246, %v6242
  %v6259 = vpack.c.b16 %v6251, %v6247
  %v6260 = vpack.c.b16 %v6252, %v6248
  %v6261 = vpack.c.b16 %v6253, %v6249
  %v6262 = vpack.c.b16 %v6254, %v6250
  %v6279 = vunpack.c.l.b16 %v5943
  %v6280 = vunpack.c.h.b16 %v5943
  %v6281 = vunpack.c.l.b16 %v5944
  %v6282 = vunpack.c.h.b16 %v5944
  %v6283 = vunpack.c.l.b16 %v5945
  %v6284 = vunpack.c.h.b16 %v5945
  %v6285 = vunpack.c.l.b16 %v5946
  %v6286 = vunpack.c.h.b16 %v5946
  %v6287 = vunpack.c.l.b16 %v5947
  %v6288 = vunpack.c.h.b16 %v5947
  %v6289 = vunpack.c.l.b16 %v5948
  %v6290 = vunpack.c.h.b16 %v5948
  %v6291 = vunpack.c.l.b16 %v5949
  %v6292 = vunpack.c.h.b16 %v5949
  %v6293 = vunpack.c.l.b16 %v5950
  %v6294 = vunpack.c.h.b16 %v5950
  %v6295 = vpack.c.b16 %v6283, %v6279
  %v6296 = vpack.c.b16 %v6284, %v6280
  %v6297 = vpack.c.b16 %v6285, %v6281
  %v6298 = vpack.c.b16 %v6286, %v6282
  %v6299 = vpack.c.b16 %v6291, %v6287
  %v6300 = vpack.c.b16 %v6292, %v6288
  %v6301 = vpack.c.b16 %v6293, %v6289
  %v6302 = vpack.c.b16 %v6294, %v6290
  %v6319 = vunpack.c.l.b16 %v5359
  %v6320 = vunpack.c.h.b16 %v5359
  %v6321 = vunpack.c.l.b16 %v5360
  %v6322 = vunpack.c.l.b16 %v5361
  %v6323 = vunpack.c.h.b16 %v5361
  %v6324 = vunpack.c.l.b16 %v5362
  %v6325 = vunpack.c.l.b16 %v5363
  %v6326 = vunpack.c.h.b16 %v5363
  %v6327 = vunpack.c.l.b16 %v5364
  %v6328 = vunpack.c.l.b16 %v5365
  %v6329 = vunpack.c.h.b16 %v5365
  %v6330 = vunpack.c.l.b16 %v5366
  %v6331 = vpack.c.b16 %v6322, %v6319
  %v6332 = vpack.c.b16 %v6323, %v6320
  %v6333 = vpack.c.b16 %v6324, %v6321
  %v6334 = vpack.c.b16 %v6328, %v6325
  %v6335 = vpack.c.b16 %v6329, %v6326
  %v6336 = vpack.c.b16 %v6330, %v6327
  %v6342 = vsel %vm1995, %v6333, 0
  %v6345 = vsel %vm1995, %v6336, 0
  %6347 = vmatpush.bf16.msra.mxu0 %v6099
  %6348 = vmatpush.bf16.msra.mxu0 %v6095
  %6349 = vmatpush.bf16.msra.mxu0 %v6059
  %6350 = vmatpush.bf16.msra.mxu0 %v6055
  %6351 = vmatpush.bf16.msra.mxu0 %v6019
  %6352 = vmatpush.bf16.msra.mxu0 %v6015
  %6353 = vmatpush.bf16.msra.mxu0 %v5979
  %6354 = vmatpush.bf16.msra.mxu0 %v5975
  %6355 = vmatmul.bf16.gmra.mxu0 %v6331
  %v6356 = vpop.f32.mrf.mxu0
  %v6357 = vadd.f32 0.0, %v6356
  %v6358 = vpop.f32.mrf.mxu0
  %v6359 = vadd.f32 0.0, %v6358
  %6360 = vmatmul.bf16.gmra.mxu0 %v6334
  %v6361 = vpop.f32.mrf.mxu0
  %v6362 = vadd.f32 0.0, %v6361
  %v6363 = vpop.f32.mrf.mxu0
  %v6364 = vadd.f32 0.0, %v6363
  %6365 = vdwg.mxu0
  %6366 = vmatpush.bf16.msra.mxu0 %v6259
  %6367 = vmatpush.bf16.msra.mxu0 %v6255
  %6368 = vmatpush.bf16.msra.mxu0 %v6219
  %6369 = vmatpush.bf16.msra.mxu0 %v6215
  %6370 = vmatpush.bf16.msra.mxu0 %v6179
  %6371 = vmatpush.bf16.msra.mxu0 %v6175
  %6372 = vmatpush.bf16.msra.mxu0 %v6139
  %6373 = vmatpush.bf16.msra.mxu0 %v6135
  %6374 = vmatmul.bf16.gmra.mxu0 %v6332
  %v6375 = vpop.f32.mrf.mxu0
  %v6376 = vadd.f32 %v6357, %v6375
  %v6377 = vpop.f32.mrf.mxu0
  %v6378 = vadd.f32 %v6359, %v6377
  %6379 = vmatmul.bf16.gmra.mxu0 %v6335
  %v6380 = vpop.f32.mrf.mxu0
  %v6381 = vadd.f32 %v6362, %v6380
  %v6382 = vpop.f32.mrf.mxu0
  %v6383 = vadd.f32 %v6364, %v6382
  %6384 = vdwg.mxu0
  %6385 = vmatpush.bf16.msra.mxu0 0
  %6386 = vmatpush.bf16.msra.mxu0 0
  %6387 = vmatpush.bf16.msra.mxu0 0
  %6388 = vmatpush.bf16.msra.mxu0 0
  %6389 = vmatpush.bf16.msra.mxu0 0
  %6390 = vmatpush.bf16.msra.mxu0 0
  %6391 = vmatpush.bf16.msra.mxu0 %v6299
  %6392 = vmatpush.bf16.msra.mxu0 %v6295
  %6393 = vmatmul.bf16.gmra.mxu0 %v6342
  %v6394 = vpop.f32.mrf.mxu0
  %v6395 = vadd.f32 %v6376, %v6394
  %v6396 = vpop.f32.mrf.mxu0
  %v6397 = vadd.f32 %v6378, %v6396
  %6398 = vmatmul.bf16.gmra.mxu0 %v6345
  %v6399 = vpop.f32.mrf.mxu0
  %v6400 = vadd.f32 %v6381, %v6399
  %v6401 = vpop.f32.mrf.mxu0
  %v6402 = vadd.f32 %v6383, %v6401
  %6403 = vdwg.mxu0
  %6404 = vmatpush.bf16.msra.mxu0 %v6100
  %6405 = vmatpush.bf16.msra.mxu0 %v6096
  %6406 = vmatpush.bf16.msra.mxu0 %v6060
  %6407 = vmatpush.bf16.msra.mxu0 %v6056
  %6408 = vmatpush.bf16.msra.mxu0 %v6020
  %6409 = vmatpush.bf16.msra.mxu0 %v6016
  %6410 = vmatpush.bf16.msra.mxu0 %v5980
  %6411 = vmatpush.bf16.msra.mxu0 %v5976
  %6412 = vmatmul.bf16.gmra.mxu0 %v6331
  %v6413 = vpop.f32.mrf.mxu0
  %v6414 = vadd.f32 0.0, %v6413
  %v6415 = vpop.f32.mrf.mxu0
  %v6416 = vadd.f32 0.0, %v6415
  %6417 = vmatmul.bf16.gmra.mxu0 %v6334
  %v6418 = vpop.f32.mrf.mxu0
  %v6419 = vadd.f32 0.0, %v6418
  %v6420 = vpop.f32.mrf.mxu0
  %v6421 = vadd.f32 0.0, %v6420
  %6422 = vdwg.mxu0
  %6423 = vmatpush.bf16.msra.mxu0 %v6260
  %6424 = vmatpush.bf16.msra.mxu0 %v6256
  %6425 = vmatpush.bf16.msra.mxu0 %v6220
  %6426 = vmatpush.bf16.msra.mxu0 %v6216
  %6427 = vmatpush.bf16.msra.mxu0 %v6180
  %6428 = vmatpush.bf16.msra.mxu0 %v6176
  %6429 = vmatpush.bf16.msra.mxu0 %v6140
  %6430 = vmatpush.bf16.msra.mxu0 %v6136
  %6431 = vmatmul.bf16.gmra.mxu0 %v6332
  %v6432 = vpop.f32.mrf.mxu0
  %v6433 = vadd.f32 %v6414, %v6432
  %v6434 = vpop.f32.mrf.mxu0
  %v6435 = vadd.f32 %v6416, %v6434
  %6436 = vmatmul.bf16.gmra.mxu0 %v6335
  %v6437 = vpop.f32.mrf.mxu0
  %v6438 = vadd.f32 %v6419, %v6437
  %v6439 = vpop.f32.mrf.mxu0
  %v6440 = vadd.f32 %v6421, %v6439
  %6441 = vdwg.mxu0
  %6442 = vmatpush.bf16.msra.mxu0 0
  %6443 = vmatpush.bf16.msra.mxu0 0
  %6444 = vmatpush.bf16.msra.mxu0 0
  %6445 = vmatpush.bf16.msra.mxu0 0
  %6446 = vmatpush.bf16.msra.mxu0 0
  %6447 = vmatpush.bf16.msra.mxu0 0
  %6448 = vmatpush.bf16.msra.mxu0 %v6300
  %6449 = vmatpush.bf16.msra.mxu0 %v6296
  %6450 = vmatmul.bf16.gmra.mxu0 %v6342
  %v6451 = vpop.f32.mrf.mxu0
  %v6452 = vadd.f32 %v6433, %v6451
  %v6453 = vpop.f32.mrf.mxu0
  %v6454 = vadd.f32 %v6435, %v6453
  %6455 = vmatmul.bf16.gmra.mxu0 %v6345
  %v6456 = vpop.f32.mrf.mxu0
  %v6457 = vadd.f32 %v6438, %v6456
  %v6458 = vpop.f32.mrf.mxu0
  %v6459 = vadd.f32 %v6440, %v6458
  %6460 = vdwg.mxu0
  %6461 = vmatpush.bf16.msra.mxu0 %v6101
  %6462 = vmatpush.bf16.msra.mxu0 %v6097
  %6463 = vmatpush.bf16.msra.mxu0 %v6061
  %6464 = vmatpush.bf16.msra.mxu0 %v6057
  %6465 = vmatpush.bf16.msra.mxu0 %v6021
  %6466 = vmatpush.bf16.msra.mxu0 %v6017
  %6467 = vmatpush.bf16.msra.mxu0 %v5981
  %6468 = vmatpush.bf16.msra.mxu0 %v5977
  %6469 = vmatmul.bf16.gmra.mxu0 %v6331
  %v6470 = vpop.f32.mrf.mxu0
  %v6471 = vadd.f32 0.0, %v6470
  %v6472 = vpop.f32.mrf.mxu0
  %v6473 = vadd.f32 0.0, %v6472
  %6474 = vmatmul.bf16.gmra.mxu0 %v6334
  %v6475 = vpop.f32.mrf.mxu0
  %v6476 = vadd.f32 0.0, %v6475
  %v6477 = vpop.f32.mrf.mxu0
  %v6478 = vadd.f32 0.0, %v6477
  %6479 = vdwg.mxu0
  %6480 = vmatpush.bf16.msra.mxu0 %v6261
  %6481 = vmatpush.bf16.msra.mxu0 %v6257
  %6482 = vmatpush.bf16.msra.mxu0 %v6221
  %6483 = vmatpush.bf16.msra.mxu0 %v6217
  %6484 = vmatpush.bf16.msra.mxu0 %v6181
  %6485 = vmatpush.bf16.msra.mxu0 %v6177
  %6486 = vmatpush.bf16.msra.mxu0 %v6141
  %6487 = vmatpush.bf16.msra.mxu0 %v6137
  %6488 = vmatmul.bf16.gmra.mxu0 %v6332
  %v6489 = vpop.f32.mrf.mxu0
  %v6490 = vadd.f32 %v6471, %v6489
  %v6491 = vpop.f32.mrf.mxu0
  %v6492 = vadd.f32 %v6473, %v6491
  %6493 = vmatmul.bf16.gmra.mxu0 %v6335
  %v6494 = vpop.f32.mrf.mxu0
  %v6495 = vadd.f32 %v6476, %v6494
  %v6496 = vpop.f32.mrf.mxu0
  %v6497 = vadd.f32 %v6478, %v6496
  %6498 = vdwg.mxu0
  %6499 = vmatpush.bf16.msra.mxu0 0
  %6500 = vmatpush.bf16.msra.mxu0 0
  %6501 = vmatpush.bf16.msra.mxu0 0
  %6502 = vmatpush.bf16.msra.mxu0 0
  %6503 = vmatpush.bf16.msra.mxu0 0
  %6504 = vmatpush.bf16.msra.mxu0 0
  %6505 = vmatpush.bf16.msra.mxu0 %v6301
  %6506 = vmatpush.bf16.msra.mxu0 %v6297
  %6507 = vmatmul.bf16.gmra.mxu0 %v6342
  %v6508 = vpop.f32.mrf.mxu0
  %v6509 = vadd.f32 %v6490, %v6508
  %v6510 = vpop.f32.mrf.mxu0
  %v6511 = vadd.f32 %v6492, %v6510
  %6512 = vmatmul.bf16.gmra.mxu0 %v6345
  %v6513 = vpop.f32.mrf.mxu0
  %v6514 = vadd.f32 %v6495, %v6513
  %v6515 = vpop.f32.mrf.mxu0
  %v6516 = vadd.f32 %v6497, %v6515
  %6517 = vdwg.mxu0
  %6518 = vmatpush.bf16.msra.mxu0 %v6102
  %6519 = vmatpush.bf16.msra.mxu0 %v6098
  %6520 = vmatpush.bf16.msra.mxu0 %v6062
  %6521 = vmatpush.bf16.msra.mxu0 %v6058
  %6522 = vmatpush.bf16.msra.mxu0 %v6022
  %6523 = vmatpush.bf16.msra.mxu0 %v6018
  %6524 = vmatpush.bf16.msra.mxu0 %v5982
  %6525 = vmatpush.bf16.msra.mxu0 %v5978
  %6526 = vmatmul.bf16.gmra.mxu0 %v6331
  %v6527 = vpop.f32.mrf.mxu0
  %v6528 = vadd.f32 0.0, %v6527
  %v6529 = vpop.f32.mrf.mxu0
  %v6530 = vadd.f32 0.0, %v6529
  %6531 = vmatmul.bf16.gmra.mxu0 %v6334
  %v6532 = vpop.f32.mrf.mxu0
  %v6533 = vadd.f32 0.0, %v6532
  %v6534 = vpop.f32.mrf.mxu0
  %v6535 = vadd.f32 0.0, %v6534
  %6536 = vdwg.mxu0
  %6537 = vmatpush.bf16.msra.mxu0 %v6262
  %6538 = vmatpush.bf16.msra.mxu0 %v6258
  %6539 = vmatpush.bf16.msra.mxu0 %v6222
  %6540 = vmatpush.bf16.msra.mxu0 %v6218
  %6541 = vmatpush.bf16.msra.mxu0 %v6182
  %6542 = vmatpush.bf16.msra.mxu0 %v6178
  %6543 = vmatpush.bf16.msra.mxu0 %v6142
  %6544 = vmatpush.bf16.msra.mxu0 %v6138
  %6545 = vmatmul.bf16.gmra.mxu0 %v6332
  %v6546 = vpop.f32.mrf.mxu0
  %v6547 = vadd.f32 %v6528, %v6546
  %v6548 = vpop.f32.mrf.mxu0
  %v6549 = vadd.f32 %v6530, %v6548
  %6550 = vmatmul.bf16.gmra.mxu0 %v6335
  %v6551 = vpop.f32.mrf.mxu0
  %v6552 = vadd.f32 %v6533, %v6551
  %v6553 = vpop.f32.mrf.mxu0
  %v6554 = vadd.f32 %v6535, %v6553
  %6555 = vdwg.mxu0
  %6556 = vmatpush.bf16.msra.mxu0 0
  %6557 = vmatpush.bf16.msra.mxu0 0
  %6558 = vmatpush.bf16.msra.mxu0 0
  %6559 = vmatpush.bf16.msra.mxu0 0
  %6560 = vmatpush.bf16.msra.mxu0 0
  %6561 = vmatpush.bf16.msra.mxu0 0
  %6562 = vmatpush.bf16.msra.mxu0 %v6302
  %6563 = vmatpush.bf16.msra.mxu0 %v6298
  %6564 = vmatmul.bf16.gmra.mxu0 %v6342
  %v6565 = vpop.f32.mrf.mxu0
  %v6566 = vadd.f32 %v6547, %v6565
  %v6567 = vpop.f32.mrf.mxu0
  %v6568 = vadd.f32 %v6549, %v6567
  %6569 = vmatmul.bf16.gmra.mxu0 %v6345
  %v6570 = vpop.f32.mrf.mxu0
  %v6571 = vadd.f32 %v6552, %v6570
  %v6572 = vpop.f32.mrf.mxu0
  %v6573 = vadd.f32 %v6554, %v6572
  %6574 = vdwg.mxu0
  %v6575 = vadd.f32 %v6395, %v6452
  %v6576 = vadd.f32 %v6575, %v6509
  %v6577 = vadd.f32 %v6576, %v6566
  %6578 = vadd.xlane.f32.xlu0 %v6577
  %v6579 = vpop.xlane.xlu0 %6578
  %v6580 = vadd.f32 %v6397, %v6454
  %v6581 = vadd.f32 %v6580, %v6511
  %v6582 = vadd.f32 %v6581, %v6568
  %6583 = vadd.xlane.f32.xlu0 %v6582
  %v6584 = vpop.xlane.xlu0 %6583
  %v6585 = vadd.f32 %v6400, %v6457
  %v6586 = vadd.f32 %v6585, %v6514
  %v6587 = vadd.f32 %v6586, %v6571
  %6588 = vadd.xlane.f32.xlu0 %v6587
  %v6589 = vpop.xlane.xlu0 %6588
  %v6590 = vadd.f32 %v6402, %v6459
  %v6591 = vadd.f32 %v6590, %v6516
  %v6592 = vadd.f32 %v6591, %v6573
  %6593 = vadd.xlane.f32.xlu0 %v6592
  %v6594 = vpop.xlane.xlu0 %6593
  %v6595 = vmul.f32 %v6579, %v808
  %v6596 = vmul.f32 %v6584, %v808
  %v6597 = vmul.f32 %v6589, %v808
  %v6598 = vmul.f32 %v6594, %v808
  %v6599 = vsub.f32 %v6395, %v6595
  %v6600 = vsub.f32 %v6452, %v6595
  %v6601 = vsub.f32 %v6509, %v6595
  %v6602 = vsub.f32 %v6566, %v6595
  %v6603 = vsub.f32 %v6397, %v6596
  %v6604 = vsub.f32 %v6454, %v6596
  %v6605 = vsub.f32 %v6511, %v6596
  %v6606 = vsub.f32 %v6568, %v6596
  %v6607 = vsub.f32 %v6400, %v6597
  %v6608 = vsub.f32 %v6457, %v6597
  %v6609 = vsub.f32 %v6514, %v6597
  %v6610 = vsub.f32 %v6571, %v6597
  %v6611 = vsub.f32 %v6402, %v6598
  %v6612 = vsub.f32 %v6459, %v6598
  %v6613 = vsub.f32 %v6516, %v6598
  %v6614 = vsub.f32 %v6573, %v6598
  %v6615 = vmul.f32 %v6599, %v6599
  %v6616 = vmul.f32 %v6600, %v6600
  %v6617 = vmul.f32 %v6601, %v6601
  %v6618 = vmul.f32 %v6602, %v6602
  %v6619 = vmul.f32 %v6603, %v6603
  %v6620 = vmul.f32 %v6604, %v6604
  %v6621 = vmul.f32 %v6605, %v6605
  %v6622 = vmul.f32 %v6606, %v6606
  %v6623 = vmul.f32 %v6607, %v6607
  %v6624 = vmul.f32 %v6608, %v6608
  %v6625 = vmul.f32 %v6609, %v6609
  %v6626 = vmul.f32 %v6610, %v6610
  %v6627 = vmul.f32 %v6611, %v6611
  %v6628 = vmul.f32 %v6612, %v6612
  %v6629 = vmul.f32 %v6613, %v6613
  %v6630 = vmul.f32 %v6614, %v6614
  %v6631 = vadd.f32 %v6615, %v6616
  %v6632 = vadd.f32 %v6631, %v6617
  %v6633 = vadd.f32 %v6632, %v6618
  %6634 = vadd.xlane.f32.xlu0 %v6633
  %v6635 = vpop.xlane.xlu0 %6634
  %v6636 = vadd.f32 %v6619, %v6620
  %v6637 = vadd.f32 %v6636, %v6621
  %v6638 = vadd.f32 %v6637, %v6622
  %6639 = vadd.xlane.f32.xlu0 %v6638
  %v6640 = vpop.xlane.xlu0 %6639
  %v6641 = vadd.f32 %v6623, %v6624
  %v6642 = vadd.f32 %v6641, %v6625
  %v6643 = vadd.f32 %v6642, %v6626
  %6644 = vadd.xlane.f32.xlu0 %v6643
  %v6645 = vpop.xlane.xlu0 %6644
  %v6646 = vadd.f32 %v6627, %v6628
  %v6647 = vadd.f32 %v6646, %v6629
  %v6648 = vadd.f32 %v6647, %v6630
  %6649 = vadd.xlane.f32.xlu0 %v6648
  %v6650 = vpop.xlane.xlu0 %6649
  %v6651 = vmul.f32 %v6635, %v808
  %v6652 = vmul.f32 %v6640, %v808
  %v6653 = vmul.f32 %v6645, %v808
  %v6654 = vmul.f32 %v6650, %v808
  %s6655 = scalar_lea.vmem %s4, 128
  %v6656 = vld [vmem:[%s6655] sm:$0xff]
  %v6657 = vld [vmem:[%s6655 + $0x8] sm:$0xff]
  %v6658 = vld [vmem:[%s6655 + $0x10] sm:$0xff]
  %v6659 = vld [vmem:[%s6655 + $0x18] sm:$0xff]
  %v6660 = vadd.f32 %v6651, 1e-05
  %v6661 = vadd.f32 %v6652, 1e-05
  %v6662 = vadd.f32 %v6653, 1e-05
  %v6663 = vadd.f32 %v6654, 1e-05
  %v6664 = vrsqrt.pop %v6660
  %v6665 = vmul.f32 %v6664, %v6660
  %v6666 = vmul.f32 %v6665, %v6664
  %v6667 = vmul.f32 0.5, %v6666
  %v6668 = vsub.f32 1.5, %v6667
  %v6669 = vmul.f32 %v6664, %v6668
  %vm6670 = vweird.f32 %v6660
  %vm6671 = vweird.f32 %v6664
  %vm6672 = vmor %vm6670, %vm6671
  %v6673 = vsel %vm6672, %v6664, %v6669
  %v6674 = vrsqrt.pop %v6661
  %v6675 = vmul.f32 %v6674, %v6661
  %v6676 = vmul.f32 %v6675, %v6674
  %v6677 = vmul.f32 0.5, %v6676
  %v6678 = vsub.f32 1.5, %v6677
  %v6679 = vmul.f32 %v6674, %v6678
  %vm6680 = vweird.f32 %v6661
  %vm6681 = vweird.f32 %v6674
  %vm6682 = vmor %vm6680, %vm6681
  %v6683 = vsel %vm6682, %v6674, %v6679
  %v6684 = vrsqrt.pop %v6662
  %v6685 = vmul.f32 %v6684, %v6662
  %v6686 = vmul.f32 %v6685, %v6684
  %v6687 = vmul.f32 0.5, %v6686
  %v6688 = vsub.f32 1.5, %v6687
  %v6689 = vmul.f32 %v6684, %v6688
  %vm6690 = vweird.f32 %v6662
  %vm6691 = vweird.f32 %v6684
  %vm6692 = vmor %vm6690, %vm6691
  %v6693 = vsel %vm6692, %v6684, %v6689
  %v6694 = vrsqrt.pop %v6663
  %v6695 = vmul.f32 %v6694, %v6663
  %v6696 = vmul.f32 %v6695, %v6694
  %v6697 = vmul.f32 0.5, %v6696
  %v6698 = vsub.f32 1.5, %v6697
  %v6699 = vmul.f32 %v6694, %v6698
  %vm6700 = vweird.f32 %v6663
  %vm6701 = vweird.f32 %v6694
  %vm6702 = vmor %vm6700, %vm6701
  %v6703 = vsel %vm6702, %v6694, %v6699
  %v6704 = vmul.f32 %v6656, %v6673
  %v6705 = vmul.f32 %v6657, %v6683
  %v6706 = vmul.f32 %v6658, %v6693
  %v6707 = vmul.f32 %v6659, %v6703
  %6709 = vset.pattern.permute.xlu0 0
  %6710 = vperm.xlu0 %6709, %v6704
  %v6711 = vpop.permute.xlu0 %6710
  %6714 = vset.pattern.permute.xlu0 0
  %6715 = vperm.xlu0 %6714, %v6705
  %v6716 = vpop.permute.xlu0 %6715
  %6719 = vset.pattern.permute.xlu0 0
  %6720 = vperm.xlu0 %6719, %v6706
  %v6721 = vpop.permute.xlu0 %6720
  %6724 = vset.pattern.permute.xlu0 0
  %6725 = vperm.xlu0 %6724, %v6707
  %v6726 = vpop.permute.xlu0 %6725
  %v6728 = vmul.f32 %v6599, %v6711
  %v6729 = vmul.f32 %v6600, %v6711
  %v6730 = vmul.f32 %v6601, %v6711
  %v6731 = vmul.f32 %v6602, %v6711
  %v6732 = vmul.f32 %v6603, %v6716
  %v6733 = vmul.f32 %v6604, %v6716
  %v6734 = vmul.f32 %v6605, %v6716
  %v6735 = vmul.f32 %v6606, %v6716
  %v6736 = vmul.f32 %v6607, %v6721
  %v6737 = vmul.f32 %v6608, %v6721
  %v6738 = vmul.f32 %v6609, %v6721
  %v6739 = vmul.f32 %v6610, %v6721
  %v6740 = vmul.f32 %v6611, %v6726
  %v6741 = vmul.f32 %v6612, %v6726
  %v6742 = vmul.f32 %v6613, %v6726
  %v6743 = vmul.f32 %v6614, %v6726
  %s6744 = scalar_lea.vmem %s5, 128
  %v6745 = vld [vmem:[%s6744] sm:$0xff]
  %v6746 = vld [vmem:[%s6744 + $0x8] sm:$0xff]
  %v6747 = vld [vmem:[%s6744 + $0x10] sm:$0xff]
  %v6748 = vld [vmem:[%s6744 + $0x18] sm:$0xff]
  %6750 = vset.pattern.permute.xlu0 0
  %6751 = vperm.xlu0 %6750, %v6745
  %v6752 = vpop.permute.xlu0 %6751
  %6755 = vset.pattern.permute.xlu0 0
  %6756 = vperm.xlu0 %6755, %v6746
  %v6757 = vpop.permute.xlu0 %6756
  %6760 = vset.pattern.permute.xlu0 0
  %6761 = vperm.xlu0 %6760, %v6747
  %v6762 = vpop.permute.xlu0 %6761
  %6765 = vset.pattern.permute.xlu0 0
  %6766 = vperm.xlu0 %6765, %v6748
  %v6767 = vpop.permute.xlu0 %6766
  %v6769 = vadd.f32 %v6728, %v6752
  %v6770 = vadd.f32 %v6729, %v6752
  %v6771 = vadd.f32 %v6730, %v6752
  %v6772 = vadd.f32 %v6731, %v6752
  %v6773 = vadd.f32 %v6732, %v6757
  %v6774 = vadd.f32 %v6733, %v6757
  %v6775 = vadd.f32 %v6734, %v6757
  %v6776 = vadd.f32 %v6735, %v6757
  %v6777 = vadd.f32 %v6736, %v6762
  %v6778 = vadd.f32 %v6737, %v6762
  %v6779 = vadd.f32 %v6738, %v6762
  %v6780 = vadd.f32 %v6739, %v6762
  %v6781 = vadd.f32 %v6740, %v6767
  %v6782 = vadd.f32 %v6741, %v6767
  %v6783 = vadd.f32 %v6742, %v6767
  %v6784 = vadd.f32 %v6743, %v6767
  %v6785 = vadd.f32 %v6769, %v3899
  %v6786 = vadd.f32 %v6770, %v3900
  %v6787 = vadd.f32 %v6771, %v3901
  %v6788 = vadd.f32 %v6772, %v3902
  %v6789 = vadd.f32 %v6773, %v3903
  %v6790 = vadd.f32 %v6774, %v3904
  %v6791 = vadd.f32 %v6775, %v3905
  %v6792 = vadd.f32 %v6776, %v3906
  %v6793 = vadd.f32 %v6777, %v3907
  %v6794 = vadd.f32 %v6778, %v3908
  %v6795 = vadd.f32 %v6779, %v3909
  %v6796 = vadd.f32 %v6780, %v3910
  %v6797 = vadd.f32 %v6781, %v3911
  %v6798 = vadd.f32 %v6782, %v3912
  %v6799 = vadd.f32 %v6783, %v3913
  %v6800 = vadd.f32 %v6784, %v3914
  %v6801 = vmax.f32 %v6785, 0.0
  %v6802 = vmax.f32 %v6786, 0.0
  %v6803 = vmax.f32 %v6787, 0.0
  %v6804 = vmax.f32 %v6788, 0.0
  %v6805 = vmax.f32 %v6789, 0.0
  %v6806 = vmax.f32 %v6790, 0.0
  %v6807 = vmax.f32 %v6791, 0.0
  %v6808 = vmax.f32 %v6792, 0.0
  %v6809 = vmax.f32 %v6793, 0.0
  %v6810 = vmax.f32 %v6794, 0.0
  %v6811 = vmax.f32 %v6795, 0.0
  %v6812 = vmax.f32 %v6796, 0.0
  %v6813 = vmax.f32 %v6797, 0.0
  %v6814 = vmax.f32 %v6798, 0.0
  %v6815 = vmax.f32 %v6799, 0.0
  %v6816 = vmax.f32 %v6800, 0.0
  %s6817 = scalar_lea.vmem %s3, 192
  %v6818 = vld [vmem:[%s6817] sm:$0xff]
  %v6819 = vld [vmem:[%s6817 + $0x8] sm:$0xf]
  %v6820 = vld [vmem:[%s6817 + $0xc] sm:$0xff]
  %v6821 = vld [vmem:[%s6817 + $0x14] sm:$0xf]
  %v6822 = vld [vmem:[%s6817 + $0x18] sm:$0xff]
  %v6823 = vld [vmem:[%s6817 + $0x20] sm:$0xf]
  %v6824 = vld [vmem:[%s6817 + $0x24] sm:$0xff]
  %v6825 = vld [vmem:[%s6817 + $0x2c] sm:$0xf]
  %6826 = vrot.lane.b32.xlu0 %v6801, 17
  %v6827 = vpop.permute.xlu0 %6826
  %6828 = vrot.lane.b32.xlu0 %v6805, 17
  %v6829 = vpop.permute.xlu0 %6828
  %6830 = vrot.lane.b32.xlu0 %v6809, 17
  %v6831 = vpop.permute.xlu0 %6830
  %6832 = vrot.lane.b32.xlu0 %v6813, 17
  %v6833 = vpop.permute.xlu0 %6832
  %6834 = vrot.lane.b32.xlu0 %v6802, 17
  %v6835 = vpop.permute.xlu0 %6834
  %6836 = vrot.lane.b32.xlu0 %v6806, 17
  %v6837 = vpop.permute.xlu0 %6836
  %6838 = vrot.lane.b32.xlu0 %v6810, 17
  %v6839 = vpop.permute.xlu0 %6838
  %6840 = vrot.lane.b32.xlu0 %v6814, 17
  %v6841 = vpop.permute.xlu0 %6840
  %6842 = vrot.lane.b32.xlu0 %v6803, 17
  %v6843 = vpop.permute.xlu0 %6842
  %6844 = vrot.lane.b32.xlu0 %v6807, 17
  %v6845 = vpop.permute.xlu0 %6844
  %6846 = vrot.lane.b32.xlu0 %v6811, 17
  %v6847 = vpop.permute.xlu0 %6846
  %6848 = vrot.lane.b32.xlu0 %v6815, 17
  %v6849 = vpop.permute.xlu0 %6848
  %6850 = vrot.lane.b32.xlu0 %v6804, 17
  %v6851 = vpop.permute.xlu0 %6850
  %6852 = vrot.lane.b32.xlu0 %v6808, 17
  %v6853 = vpop.permute.xlu0 %6852
  %6854 = vrot.lane.b32.xlu0 %v6812, 17
  %v6855 = vpop.permute.xlu0 %6854
  %6856 = vrot.lane.b32.xlu0 %v6816, 17
  %v6857 = vpop.permute.xlu0 %6856
  %v6858 = vsel %vm69, %v6843, %v6851
  %v6859 = vsel %vm69, %v6845, %v6853
  %v6860 = vsel %vm69, %v6847, %v6855
  %v6861 = vsel %vm69, %v6849, %v6857
  %v6862 = vsel %vm69, %v6835, %v6843
  %v6863 = vsel %vm69, %v6837, %v6845
  %v6864 = vsel %vm69, %v6839, %v6847
  %v6865 = vsel %vm69, %v6841, %v6849
  %v6866 = vsel %vm69, %v6827, %v6835
  %v6867 = vsel %vm69, %v6829, %v6837
  %v6868 = vsel %vm69, %v6831, %v6839
  %v6869 = vsel %vm69, %v6833, %v6841
  %v6870 = vsel %vm69, %v6851, %v6827
  %v6871 = vsel %vm69, %v6853, %v6829
  %v6872 = vsel %vm69, %v6855, %v6831
  %v6873 = vsel %vm69, %v6857, %v6833
  %v6874 = vmul.f32 %v6870, %v79
  %v6875 = vmul.f32 %v6866, %v80
  %v6876 = vmul.f32 %v6862, %v81
  %v6877 = vmul.f32 %v6858, %v82
  %v6878 = vmul.f32 %v6871, %v79
  %v6879 = vmul.f32 %v6867, %v80
  %v6880 = vmul.f32 %v6863, %v81
  %v6881 = vmul.f32 %v6859, %v82
  %v6882 = vmul.f32 %v6872, %v79
  %v6883 = vmul.f32 %v6868, %v80
  %v6884 = vmul.f32 %v6864, %v81
  %v6885 = vmul.f32 %v6860, %v82
  %v6886 = vmul.f32 %v6873, %v79
  %v6887 = vmul.f32 %v6869, %v80
  %v6888 = vmul.f32 %v6865, %v81
  %v6889 = vmul.f32 %v6861, %v82
  %v6890 = vpack.c.bf16 %v6875, %v6874
  %v6891 = vpack.c.bf16 %v6877, %v6876
  %v6892 = vpack.c.bf16 %v6879, %v6878
  %v6893 = vpack.c.bf16 %v6881, %v6880
  %v6894 = vpack.c.bf16 %v6883, %v6882
  %v6895 = vpack.c.bf16 %v6885, %v6884
  %v6896 = vpack.c.bf16 %v6887, %v6886
  %v6897 = vpack.c.bf16 %v6889, %v6888
  %6898 = vrot.lane.b32.xlu0 %v6801, 16
  %v6899 = vpop.permute.xlu0 %6898
  %6900 = vrot.lane.b32.xlu0 %v6805, 16
  %v6901 = vpop.permute.xlu0 %6900
  %6902 = vrot.lane.b32.xlu0 %v6809, 16
  %v6903 = vpop.permute.xlu0 %6902
  %6904 = vrot.lane.b32.xlu0 %v6813, 16
  %v6905 = vpop.permute.xlu0 %6904
  %6906 = vrot.lane.b32.xlu0 %v6802, 16
  %v6907 = vpop.permute.xlu0 %6906
  %6908 = vrot.lane.b32.xlu0 %v6806, 16
  %v6909 = vpop.permute.xlu0 %6908
  %6910 = vrot.lane.b32.xlu0 %v6810, 16
  %v6911 = vpop.permute.xlu0 %6910
  %6912 = vrot.lane.b32.xlu0 %v6814, 16
  %v6913 = vpop.permute.xlu0 %6912
  %6914 = vrot.lane.b32.xlu0 %v6803, 16
  %v6915 = vpop.permute.xlu0 %6914
  %6916 = vrot.lane.b32.xlu0 %v6807, 16
  %v6917 = vpop.permute.xlu0 %6916
  %6918 = vrot.lane.b32.xlu0 %v6811, 16
  %v6919 = vpop.permute.xlu0 %6918
  %6920 = vrot.lane.b32.xlu0 %v6815, 16
  %v6921 = vpop.permute.xlu0 %6920
  %6922 = vrot.lane.b32.xlu0 %v6804, 16
  %v6923 = vpop.permute.xlu0 %6922
  %6924 = vrot.lane.b32.xlu0 %v6808, 16
  %v6925 = vpop.permute.xlu0 %6924
  %6926 = vrot.lane.b32.xlu0 %v6812, 16
  %v6927 = vpop.permute.xlu0 %6926
  %6928 = vrot.lane.b32.xlu0 %v6816, 16
  %v6929 = vpop.permute.xlu0 %6928
  %v6930 = vsel %vm115, %v6915, %v6923
  %v6931 = vsel %vm115, %v6917, %v6925
  %v6932 = vsel %vm115, %v6919, %v6927
  %v6933 = vsel %vm115, %v6921, %v6929
  %v6934 = vsel %vm115, %v6907, %v6915
  %v6935 = vsel %vm115, %v6909, %v6917
  %v6936 = vsel %vm115, %v6911, %v6919
  %v6937 = vsel %vm115, %v6913, %v6921
  %v6938 = vsel %vm115, %v6899, %v6907
  %v6939 = vsel %vm115, %v6901, %v6909
  %v6940 = vsel %vm115, %v6903, %v6911
  %v6941 = vsel %vm115, %v6905, %v6913
  %v6942 = vsel %vm115, %v6923, %v6899
  %v6943 = vsel %vm115, %v6925, %v6901
  %v6944 = vsel %vm115, %v6927, %v6903
  %v6945 = vsel %vm115, %v6929, %v6905
  %v6946 = vmul.f32 %v6942, %v125
  %v6947 = vmul.f32 %v6938, %v126
  %v6948 = vmul.f32 %v6934, %v127
  %v6949 = vmul.f32 %v6930, %v128
  %v6950 = vmul.f32 %v6943, %v125
  %v6951 = vmul.f32 %v6939, %v126
  %v6952 = vmul.f32 %v6935, %v127
  %v6953 = vmul.f32 %v6931, %v128
  %v6954 = vmul.f32 %v6944, %v125
  %v6955 = vmul.f32 %v6940, %v126
  %v6956 = vmul.f32 %v6936, %v127
  %v6957 = vmul.f32 %v6932, %v128
  %v6958 = vmul.f32 %v6945, %v125
  %v6959 = vmul.f32 %v6941, %v126
  %v6960 = vmul.f32 %v6937, %v127
  %v6961 = vmul.f32 %v6933, %v128
  %v6962 = vpack.c.bf16 %v6947, %v6946
  %v6963 = vpack.c.bf16 %v6949, %v6948
  %v6964 = vpack.c.bf16 %v6951, %v6950
  %v6965 = vpack.c.bf16 %v6953, %v6952
  %v6966 = vpack.c.bf16 %v6955, %v6954
  %v6967 = vpack.c.bf16 %v6957, %v6956
  %v6968 = vpack.c.bf16 %v6959, %v6958
  %v6969 = vpack.c.bf16 %v6961, %v6960
  %6970 = vrot.lane.b32.xlu0 %v6801, 15
  %v6971 = vpop.permute.xlu0 %6970
  %6972 = vrot.lane.b32.xlu0 %v6805, 15
  %v6973 = vpop.permute.xlu0 %6972
  %6974 = vrot.lane.b32.xlu0 %v6809, 15
  %v6975 = vpop.permute.xlu0 %6974
  %6976 = vrot.lane.b32.xlu0 %v6813, 15
  %v6977 = vpop.permute.xlu0 %6976
  %6978 = vrot.lane.b32.xlu0 %v6802, 15
  %v6979 = vpop.permute.xlu0 %6978
  %6980 = vrot.lane.b32.xlu0 %v6806, 15
  %v6981 = vpop.permute.xlu0 %6980
  %6982 = vrot.lane.b32.xlu0 %v6810, 15
  %v6983 = vpop.permute.xlu0 %6982
  %6984 = vrot.lane.b32.xlu0 %v6814, 15
  %v6985 = vpop.permute.xlu0 %6984
  %6986 = vrot.lane.b32.xlu0 %v6803, 15
  %v6987 = vpop.permute.xlu0 %6986
  %6988 = vrot.lane.b32.xlu0 %v6807, 15
  %v6989 = vpop.permute.xlu0 %6988
  %6990 = vrot.lane.b32.xlu0 %v6811, 15
  %v6991 = vpop.permute.xlu0 %6990
  %6992 = vrot.lane.b32.xlu0 %v6815, 15
  %v6993 = vpop.permute.xlu0 %6992
  %6994 = vrot.lane.b32.xlu0 %v6804, 15
  %v6995 = vpop.permute.xlu0 %6994
  %6996 = vrot.lane.b32.xlu0 %v6808, 15
  %v6997 = vpop.permute.xlu0 %6996
  %6998 = vrot.lane.b32.xlu0 %v6812, 15
  %v6999 = vpop.permute.xlu0 %6998
  %7000 = vrot.lane.b32.xlu0 %v6816, 15
  %v7001 = vpop.permute.xlu0 %7000
  %v7002 = vsel %vm161, %v6987, %v6995
  %v7003 = vsel %vm161, %v6989, %v6997
  %v7004 = vsel %vm161, %v6991, %v6999
  %v7005 = vsel %vm161, %v6993, %v7001
  %v7006 = vsel %vm161, %v6979, %v6987
  %v7007 = vsel %vm161, %v6981, %v6989
  %v7008 = vsel %vm161, %v6983, %v6991
  %v7009 = vsel %vm161, %v6985, %v6993
  %v7010 = vsel %vm161, %v6971, %v6979
  %v7011 = vsel %vm161, %v6973, %v6981
  %v7012 = vsel %vm161, %v6975, %v6983
  %v7013 = vsel %vm161, %v6977, %v6985
  %v7014 = vsel %vm161, %v6995, %v6971
  %v7015 = vsel %vm161, %v6997, %v6973
  %v7016 = vsel %vm161, %v6999, %v6975
  %v7017 = vsel %vm161, %v7001, %v6977
  %v7018 = vmul.f32 %v7014, %v171
  %v7019 = vmul.f32 %v7010, %v172
  %v7020 = vmul.f32 %v7006, %v173
  %v7021 = vmul.f32 %v7002, %v174
  %v7022 = vmul.f32 %v7015, %v171
  %v7023 = vmul.f32 %v7011, %v172
  %v7024 = vmul.f32 %v7007, %v173
  %v7025 = vmul.f32 %v7003, %v174
  %v7026 = vmul.f32 %v7016, %v171
  %v7027 = vmul.f32 %v7012, %v172
  %v7028 = vmul.f32 %v7008, %v173
  %v7029 = vmul.f32 %v7004, %v174
  %v7030 = vmul.f32 %v7017, %v171
  %v7031 = vmul.f32 %v7013, %v172
  %v7032 = vmul.f32 %v7009, %v173
  %v7033 = vmul.f32 %v7005, %v174
  %v7034 = vpack.c.bf16 %v7019, %v7018
  %v7035 = vpack.c.bf16 %v7021, %v7020
  %v7036 = vpack.c.bf16 %v7023, %v7022
  %v7037 = vpack.c.bf16 %v7025, %v7024
  %v7038 = vpack.c.bf16 %v7027, %v7026
  %v7039 = vpack.c.bf16 %v7029, %v7028
  %v7040 = vpack.c.bf16 %v7031, %v7030
  %v7041 = vpack.c.bf16 %v7033, %v7032
  %7042 = vrot.lane.b32.xlu0 %v6801, 1
  %v7043 = vpop.permute.xlu0 %7042
  %7044 = vrot.lane.b32.xlu0 %v6805, 1
  %v7045 = vpop.permute.xlu0 %7044
  %7046 = vrot.lane.b32.xlu0 %v6809, 1
  %v7047 = vpop.permute.xlu0 %7046
  %7048 = vrot.lane.b32.xlu0 %v6813, 1
  %v7049 = vpop.permute.xlu0 %7048
  %7050 = vrot.lane.b32.xlu0 %v6802, 1
  %v7051 = vpop.permute.xlu0 %7050
  %7052 = vrot.lane.b32.xlu0 %v6806, 1
  %v7053 = vpop.permute.xlu0 %7052
  %7054 = vrot.lane.b32.xlu0 %v6810, 1
  %v7055 = vpop.permute.xlu0 %7054
  %7056 = vrot.lane.b32.xlu0 %v6814, 1
  %v7057 = vpop.permute.xlu0 %7056
  %7058 = vrot.lane.b32.xlu0 %v6803, 1
  %v7059 = vpop.permute.xlu0 %7058
  %7060 = vrot.lane.b32.xlu0 %v6807, 1
  %v7061 = vpop.permute.xlu0 %7060
  %7062 = vrot.lane.b32.xlu0 %v6811, 1
  %v7063 = vpop.permute.xlu0 %7062
  %7064 = vrot.lane.b32.xlu0 %v6815, 1
  %v7065 = vpop.permute.xlu0 %7064
  %7066 = vrot.lane.b32.xlu0 %v6804, 1
  %v7067 = vpop.permute.xlu0 %7066
  %7068 = vrot.lane.b32.xlu0 %v6808, 1
  %v7069 = vpop.permute.xlu0 %7068
  %7070 = vrot.lane.b32.xlu0 %v6812, 1
  %v7071 = vpop.permute.xlu0 %7070
  %7072 = vrot.lane.b32.xlu0 %v6816, 1
  %v7073 = vpop.permute.xlu0 %7072
  %v7074 = vsel %vm207, %v7059, %v7067
  %v7075 = vsel %vm207, %v7061, %v7069
  %v7076 = vsel %vm207, %v7063, %v7071
  %v7077 = vsel %vm207, %v7065, %v7073
  %v7078 = vsel %vm207, %v7051, %v7059
  %v7079 = vsel %vm207, %v7053, %v7061
  %v7080 = vsel %vm207, %v7055, %v7063
  %v7081 = vsel %vm207, %v7057, %v7065
  %v7082 = vsel %vm207, %v7043, %v7051
  %v7083 = vsel %vm207, %v7045, %v7053
  %v7084 = vsel %vm207, %v7047, %v7055
  %v7085 = vsel %vm207, %v7049, %v7057
  %v7086 = vsel %vm207, %v7067, %v7043
  %v7087 = vsel %vm207, %v7069, %v7045
  %v7088 = vsel %vm207, %v7071, %v7047
  %v7089 = vsel %vm207, %v7073, %v7049
  %v7090 = vmul.f32 %v7086, %v217
  %v7091 = vmul.f32 %v7082, %v218
  %v7092 = vmul.f32 %v7078, %v219
  %v7093 = vmul.f32 %v7074, %v220
  %v7094 = vmul.f32 %v7087, %v217
  %v7095 = vmul.f32 %v7083, %v218
  %v7096 = vmul.f32 %v7079, %v219
  %v7097 = vmul.f32 %v7075, %v220
  %v7098 = vmul.f32 %v7088, %v217
  %v7099 = vmul.f32 %v7084, %v218
  %v7100 = vmul.f32 %v7080, %v219
  %v7101 = vmul.f32 %v7076, %v220
  %v7102 = vmul.f32 %v7089, %v217
  %v7103 = vmul.f32 %v7085, %v218
  %v7104 = vmul.f32 %v7081, %v219
  %v7105 = vmul.f32 %v7077, %v220
  %v7106 = vpack.c.bf16 %v7091, %v7090
  %v7107 = vpack.c.bf16 %v7093, %v7092
  %v7108 = vpack.c.bf16 %v7095, %v7094
  %v7109 = vpack.c.bf16 %v7097, %v7096
  %v7110 = vpack.c.bf16 %v7099, %v7098
  %v7111 = vpack.c.bf16 %v7101, %v7100
  %v7112 = vpack.c.bf16 %v7103, %v7102
  %v7113 = vpack.c.bf16 %v7105, %v7104
  %v7114 = vpack.c.bf16 %v6802, %v6801
  %v7115 = vpack.c.bf16 %v6804, %v6803
  %v7116 = vpack.c.bf16 %v6806, %v6805
  %v7117 = vpack.c.bf16 %v6808, %v6807
  %v7118 = vpack.c.bf16 %v6810, %v6809
  %v7119 = vpack.c.bf16 %v6812, %v6811
  %v7120 = vpack.c.bf16 %v6814, %v6813
  %v7121 = vpack.c.bf16 %v6816, %v6815
  %7122 = vrot.lane.b32.xlu0 %v6801, 127
  %v7123 = vpop.permute.xlu0 %7122
  %7124 = vrot.lane.b32.xlu0 %v6805, 127
  %v7125 = vpop.permute.xlu0 %7124
  %7126 = vrot.lane.b32.xlu0 %v6809, 127
  %v7127 = vpop.permute.xlu0 %7126
  %7128 = vrot.lane.b32.xlu0 %v6813, 127
  %v7129 = vpop.permute.xlu0 %7128
  %7130 = vrot.lane.b32.xlu0 %v6802, 127
  %v7131 = vpop.permute.xlu0 %7130
  %7132 = vrot.lane.b32.xlu0 %v6806, 127
  %v7133 = vpop.permute.xlu0 %7132
  %7134 = vrot.lane.b32.xlu0 %v6810, 127
  %v7135 = vpop.permute.xlu0 %7134
  %7136 = vrot.lane.b32.xlu0 %v6814, 127
  %v7137 = vpop.permute.xlu0 %7136
  %7138 = vrot.lane.b32.xlu0 %v6803, 127
  %v7139 = vpop.permute.xlu0 %7138
  %7140 = vrot.lane.b32.xlu0 %v6807, 127
  %v7141 = vpop.permute.xlu0 %7140
  %7142 = vrot.lane.b32.xlu0 %v6811, 127
  %v7143 = vpop.permute.xlu0 %7142
  %7144 = vrot.lane.b32.xlu0 %v6815, 127
  %v7145 = vpop.permute.xlu0 %7144
  %7146 = vrot.lane.b32.xlu0 %v6804, 127
  %v7147 = vpop.permute.xlu0 %7146
  %7148 = vrot.lane.b32.xlu0 %v6808, 127
  %v7149 = vpop.permute.xlu0 %7148
  %7150 = vrot.lane.b32.xlu0 %v6812, 127
  %v7151 = vpop.permute.xlu0 %7150
  %7152 = vrot.lane.b32.xlu0 %v6816, 127
  %v7153 = vpop.permute.xlu0 %7152
  %v7154 = vsel %vm257, %v7139, %v7147
  %v7155 = vsel %vm257, %v7141, %v7149
  %v7156 = vsel %vm257, %v7143, %v7151
  %v7157 = vsel %vm257, %v7145, %v7153
  %v7158 = vsel %vm257, %v7131, %v7139
  %v7159 = vsel %vm257, %v7133, %v7141
  %v7160 = vsel %vm257, %v7135, %v7143
  %v7161 = vsel %vm257, %v7137, %v7145
  %v7162 = vsel %vm257, %v7123, %v7131
  %v7163 = vsel %vm257, %v7125, %v7133
  %v7164 = vsel %vm257, %v7127, %v7135
  %v7165 = vsel %vm257, %v7129, %v7137
  %v7166 = vsel %vm257, %v7147, %v7123
  %v7167 = vsel %vm257, %v7149, %v7125
  %v7168 = vsel %vm257, %v7151, %v7127
  %v7169 = vsel %vm257, %v7153, %v7129
  %v7170 = vmul.f32 %v7162, %v267
  %v7171 = vmul.f32 %v7158, %v268
  %v7172 = vmul.f32 %v7154, %v269
  %v7173 = vmul.f32 %v7166, %v270
  %v7174 = vmul.f32 %v7163, %v267
  %v7175 = vmul.f32 %v7159, %v268
  %v7176 = vmul.f32 %v7155, %v269
  %v7177 = vmul.f32 %v7167, %v270
  %v7178 = vmul.f32 %v7164, %v267
  %v7179 = vmul.f32 %v7160, %v268
  %v7180 = vmul.f32 %v7156, %v269
  %v7181 = vmul.f32 %v7168, %v270
  %v7182 = vmul.f32 %v7165, %v267
  %v7183 = vmul.f32 %v7161, %v268
  %v7184 = vmul.f32 %v7157, %v269
  %v7185 = vmul.f32 %v7169, %v270
  %v7186 = vpack.c.bf16 %v7171, %v7170
  %v7187 = vpack.c.bf16 %v7173, %v7172
  %v7188 = vpack.c.bf16 %v7175, %v7174
  %v7189 = vpack.c.bf16 %v7177, %v7176
  %v7190 = vpack.c.bf16 %v7179, %v7178
  %v7191 = vpack.c.bf16 %v7181, %v7180
  %v7192 = vpack.c.bf16 %v7183, %v7182
  %v7193 = vpack.c.bf16 %v7185, %v7184
  %7194 = vrot.lane.b32.xlu0 %v6801, 113
  %v7195 = vpop.permute.xlu0 %7194
  %7196 = vrot.lane.b32.xlu0 %v6805, 113
  %v7197 = vpop.permute.xlu0 %7196
  %7198 = vrot.lane.b32.xlu0 %v6809, 113
  %v7199 = vpop.permute.xlu0 %7198
  %7200 = vrot.lane.b32.xlu0 %v6813, 113
  %v7201 = vpop.permute.xlu0 %7200
  %7202 = vrot.lane.b32.xlu0 %v6802, 113
  %v7203 = vpop.permute.xlu0 %7202
  %7204 = vrot.lane.b32.xlu0 %v6806, 113
  %v7205 = vpop.permute.xlu0 %7204
  %7206 = vrot.lane.b32.xlu0 %v6810, 113
  %v7207 = vpop.permute.xlu0 %7206
  %7208 = vrot.lane.b32.xlu0 %v6814, 113
  %v7209 = vpop.permute.xlu0 %7208
  %7210 = vrot.lane.b32.xlu0 %v6803, 113
  %v7211 = vpop.permute.xlu0 %7210
  %7212 = vrot.lane.b32.xlu0 %v6807, 113
  %v7213 = vpop.permute.xlu0 %7212
  %7214 = vrot.lane.b32.xlu0 %v6811, 113
  %v7215 = vpop.permute.xlu0 %7214
  %7216 = vrot.lane.b32.xlu0 %v6815, 113
  %v7217 = vpop.permute.xlu0 %7216
  %7218 = vrot.lane.b32.xlu0 %v6804, 113
  %v7219 = vpop.permute.xlu0 %7218
  %7220 = vrot.lane.b32.xlu0 %v6808, 113
  %v7221 = vpop.permute.xlu0 %7220
  %7222 = vrot.lane.b32.xlu0 %v6812, 113
  %v7223 = vpop.permute.xlu0 %7222
  %7224 = vrot.lane.b32.xlu0 %v6816, 113
  %v7225 = vpop.permute.xlu0 %7224
  %v7226 = vsel %vm303, %v7211, %v7219
  %v7227 = vsel %vm303, %v7213, %v7221
  %v7228 = vsel %vm303, %v7215, %v7223
  %v7229 = vsel %vm303, %v7217, %v7225
  %v7230 = vsel %vm303, %v7203, %v7211
  %v7231 = vsel %vm303, %v7205, %v7213
  %v7232 = vsel %vm303, %v7207, %v7215
  %v7233 = vsel %vm303, %v7209, %v7217
  %v7234 = vsel %vm303, %v7195, %v7203
  %v7235 = vsel %vm303, %v7197, %v7205
  %v7236 = vsel %vm303, %v7199, %v7207
  %v7237 = vsel %vm303, %v7201, %v7209
  %v7238 = vsel %vm303, %v7219, %v7195
  %v7239 = vsel %vm303, %v7221, %v7197
  %v7240 = vsel %vm303, %v7223, %v7199
  %v7241 = vsel %vm303, %v7225, %v7201
  %v7242 = vmul.f32 %v7234, %v313
  %v7243 = vmul.f32 %v7230, %v314
  %v7244 = vmul.f32 %v7226, %v315
  %v7245 = vmul.f32 %v7238, %v316
  %v7246 = vmul.f32 %v7235, %v313
  %v7247 = vmul.f32 %v7231, %v314
  %v7248 = vmul.f32 %v7227, %v315
  %v7249 = vmul.f32 %v7239, %v316
  %v7250 = vmul.f32 %v7236, %v313
  %v7251 = vmul.f32 %v7232, %v314
  %v7252 = vmul.f32 %v7228, %v315
  %v7253 = vmul.f32 %v7240, %v316
  %v7254 = vmul.f32 %v7237, %v313
  %v7255 = vmul.f32 %v7233, %v314
  %v7256 = vmul.f32 %v7229, %v315
  %v7257 = vmul.f32 %v7241, %v316
  %v7258 = vpack.c.bf16 %v7243, %v7242
  %v7259 = vpack.c.bf16 %v7245, %v7244
  %v7260 = vpack.c.bf16 %v7247, %v7246
  %v7261 = vpack.c.bf16 %v7249, %v7248
  %v7262 = vpack.c.bf16 %v7251, %v7250
  %v7263 = vpack.c.bf16 %v7253, %v7252
  %v7264 = vpack.c.bf16 %v7255, %v7254
  %v7265 = vpack.c.bf16 %v7257, %v7256
  %7266 = vrot.lane.b32.xlu0 %v6801, 112
  %v7267 = vpop.permute.xlu0 %7266
  %7268 = vrot.lane.b32.xlu0 %v6805, 112
  %v7269 = vpop.permute.xlu0 %7268
  %7270 = vrot.lane.b32.xlu0 %v6809, 112
  %v7271 = vpop.permute.xlu0 %7270
  %7272 = vrot.lane.b32.xlu0 %v6813, 112
  %v7273 = vpop.permute.xlu0 %7272
  %7274 = vrot.lane.b32.xlu0 %v6802, 112
  %v7275 = vpop.permute.xlu0 %7274
  %7276 = vrot.lane.b32.xlu0 %v6806, 112
  %v7277 = vpop.permute.xlu0 %7276
  %7278 = vrot.lane.b32.xlu0 %v6810, 112
  %v7279 = vpop.permute.xlu0 %7278
  %7280 = vrot.lane.b32.xlu0 %v6814, 112
  %v7281 = vpop.permute.xlu0 %7280
  %7282 = vrot.lane.b32.xlu0 %v6803, 112
  %v7283 = vpop.permute.xlu0 %7282
  %7284 = vrot.lane.b32.xlu0 %v6807, 112
  %v7285 = vpop.permute.xlu0 %7284
  %7286 = vrot.lane.b32.xlu0 %v6811, 112
  %v7287 = vpop.permute.xlu0 %7286
  %7288 = vrot.lane.b32.xlu0 %v6815, 112
  %v7289 = vpop.permute.xlu0 %7288
  %7290 = vrot.lane.b32.xlu0 %v6804, 112
  %v7291 = vpop.permute.xlu0 %7290
  %7292 = vrot.lane.b32.xlu0 %v6808, 112
  %v7293 = vpop.permute.xlu0 %7292
  %7294 = vrot.lane.b32.xlu0 %v6812, 112
  %v7295 = vpop.permute.xlu0 %7294
  %7296 = vrot.lane.b32.xlu0 %v6816, 112
  %v7297 = vpop.permute.xlu0 %7296
  %v7298 = vsel %vm349, %v7283, %v7291
  %v7299 = vsel %vm349, %v7285, %v7293
  %v7300 = vsel %vm349, %v7287, %v7295
  %v7301 = vsel %vm349, %v7289, %v7297
  %v7302 = vsel %vm349, %v7275, %v7283
  %v7303 = vsel %vm349, %v7277, %v7285
  %v7304 = vsel %vm349, %v7279, %v7287
  %v7305 = vsel %vm349, %v7281, %v7289
  %v7306 = vsel %vm349, %v7267, %v7275
  %v7307 = vsel %vm349, %v7269, %v7277
  %v7308 = vsel %vm349, %v7271, %v7279
  %v7309 = vsel %vm349, %v7273, %v7281
  %v7310 = vsel %vm349, %v7291, %v7267
  %v7311 = vsel %vm349, %v7293, %v7269
  %v7312 = vsel %vm349, %v7295, %v7271
  %v7313 = vsel %vm349, %v7297, %v7273
  %v7314 = vmul.f32 %v7306, %v359
  %v7315 = vmul.f32 %v7302, %v360
  %v7316 = vmul.f32 %v7298, %v361
  %v7317 = vmul.f32 %v7310, %v362
  %v7318 = vmul.f32 %v7307, %v359
  %v7319 = vmul.f32 %v7303, %v360
  %v7320 = vmul.f32 %v7299, %v361
  %v7321 = vmul.f32 %v7311, %v362
  %v7322 = vmul.f32 %v7308, %v359
  %v7323 = vmul.f32 %v7304, %v360
  %v7324 = vmul.f32 %v7300, %v361
  %v7325 = vmul.f32 %v7312, %v362
  %v7326 = vmul.f32 %v7309, %v359
  %v7327 = vmul.f32 %v7305, %v360
  %v7328 = vmul.f32 %v7301, %v361
  %v7329 = vmul.f32 %v7313, %v362
  %v7330 = vpack.c.bf16 %v7315, %v7314
  %v7331 = vpack.c.bf16 %v7317, %v7316
  %v7332 = vpack.c.bf16 %v7319, %v7318
  %v7333 = vpack.c.bf16 %v7321, %v7320
  %v7334 = vpack.c.bf16 %v7323, %v7322
  %v7335 = vpack.c.bf16 %v7325, %v7324
  %v7336 = vpack.c.bf16 %v7327, %v7326
  %v7337 = vpack.c.bf16 %v7329, %v7328
  %7338 = vrot.lane.b32.xlu0 %v6801, 111
  %v7339 = vpop.permute.xlu0 %7338
  %7340 = vrot.lane.b32.xlu0 %v6805, 111
  %v7341 = vpop.permute.xlu0 %7340
  %7342 = vrot.lane.b32.xlu0 %v6809, 111
  %v7343 = vpop.permute.xlu0 %7342
  %7344 = vrot.lane.b32.xlu0 %v6813, 111
  %v7345 = vpop.permute.xlu0 %7344
  %7346 = vrot.lane.b32.xlu0 %v6802, 111
  %v7347 = vpop.permute.xlu0 %7346
  %7348 = vrot.lane.b32.xlu0 %v6806, 111
  %v7349 = vpop.permute.xlu0 %7348
  %7350 = vrot.lane.b32.xlu0 %v6810, 111
  %v7351 = vpop.permute.xlu0 %7350
  %7352 = vrot.lane.b32.xlu0 %v6814, 111
  %v7353 = vpop.permute.xlu0 %7352
  %7354 = vrot.lane.b32.xlu0 %v6803, 111
  %v7355 = vpop.permute.xlu0 %7354
  %7356 = vrot.lane.b32.xlu0 %v6807, 111
  %v7357 = vpop.permute.xlu0 %7356
  %7358 = vrot.lane.b32.xlu0 %v6811, 111
  %v7359 = vpop.permute.xlu0 %7358
  %7360 = vrot.lane.b32.xlu0 %v6815, 111
  %v7361 = vpop.permute.xlu0 %7360
  %7362 = vrot.lane.b32.xlu0 %v6804, 111
  %v7363 = vpop.permute.xlu0 %7362
  %7364 = vrot.lane.b32.xlu0 %v6808, 111
  %v7365 = vpop.permute.xlu0 %7364
  %7366 = vrot.lane.b32.xlu0 %v6812, 111
  %v7367 = vpop.permute.xlu0 %7366
  %7368 = vrot.lane.b32.xlu0 %v6816, 111
  %v7369 = vpop.permute.xlu0 %7368
  %v7370 = vsel %vm395, %v7355, %v7363
  %v7371 = vsel %vm395, %v7357, %v7365
  %v7372 = vsel %vm395, %v7359, %v7367
  %v7373 = vsel %vm395, %v7361, %v7369
  %v7374 = vsel %vm395, %v7347, %v7355
  %v7375 = vsel %vm395, %v7349, %v7357
  %v7376 = vsel %vm395, %v7351, %v7359
  %v7377 = vsel %vm395, %v7353, %v7361
  %v7378 = vsel %vm395, %v7339, %v7347
  %v7379 = vsel %vm395, %v7341, %v7349
  %v7380 = vsel %vm395, %v7343, %v7351
  %v7381 = vsel %vm395, %v7345, %v7353
  %v7382 = vsel %vm395, %v7363, %v7339
  %v7383 = vsel %vm395, %v7365, %v7341
  %v7384 = vsel %vm395, %v7367, %v7343
  %v7385 = vsel %vm395, %v7369, %v7345
  %v7386 = vmul.f32 %v7378, %v405
  %v7387 = vmul.f32 %v7374, %v406
  %v7388 = vmul.f32 %v7370, %v407
  %v7389 = vmul.f32 %v7382, %v408
  %v7390 = vmul.f32 %v7379, %v405
  %v7391 = vmul.f32 %v7375, %v406
  %v7392 = vmul.f32 %v7371, %v407
  %v7393 = vmul.f32 %v7383, %v408
  %v7394 = vmul.f32 %v7380, %v405
  %v7395 = vmul.f32 %v7376, %v406
  %v7396 = vmul.f32 %v7372, %v407
  %v7397 = vmul.f32 %v7384, %v408
  %v7398 = vmul.f32 %v7381, %v405
  %v7399 = vmul.f32 %v7377, %v406
  %v7400 = vmul.f32 %v7373, %v407
  %v7401 = vmul.f32 %v7385, %v408
  %v7402 = vpack.c.bf16 %v7387, %v7386
  %v7403 = vpack.c.bf16 %v7389, %v7388
  %v7404 = vpack.c.bf16 %v7391, %v7390
  %v7405 = vpack.c.bf16 %v7393, %v7392
  %v7406 = vpack.c.bf16 %v7395, %v7394
  %v7407 = vpack.c.bf16 %v7397, %v7396
  %v7408 = vpack.c.bf16 %v7399, %v7398
  %v7409 = vpack.c.bf16 %v7401, %v7400
  %v7418 = vunpack.c.l.b16 %v6890
  %v7419 = vunpack.c.h.b16 %v6890
  %v7420 = vunpack.c.l.b16 %v6891
  %v7421 = vunpack.c.h.b16 %v6891
  %v7422 = vunpack.c.l.b16 %v6892
  %v7423 = vunpack.c.h.b16 %v6892
  %v7424 = vunpack.c.l.b16 %v6893
  %v7425 = vunpack.c.h.b16 %v6893
  %v7426 = vunpack.c.l.b16 %v6894
  %v7427 = vunpack.c.h.b16 %v6894
  %v7428 = vunpack.c.l.b16 %v6895
  %v7429 = vunpack.c.h.b16 %v6895
  %v7430 = vunpack.c.l.b16 %v6896
  %v7431 = vunpack.c.h.b16 %v6896
  %v7432 = vunpack.c.l.b16 %v6897
  %v7433 = vunpack.c.h.b16 %v6897
  %v7434 = vpack.c.b16 %v7422, %v7418
  %v7435 = vpack.c.b16 %v7423, %v7419
  %v7436 = vpack.c.b16 %v7424, %v7420
  %v7437 = vpack.c.b16 %v7425, %v7421
  %v7438 = vpack.c.b16 %v7430, %v7426
  %v7439 = vpack.c.b16 %v7431, %v7427
  %v7440 = vpack.c.b16 %v7432, %v7428
  %v7441 = vpack.c.b16 %v7433, %v7429
  %v7458 = vunpack.c.l.b16 %v6962
  %v7459 = vunpack.c.h.b16 %v6962
  %v7460 = vunpack.c.l.b16 %v6963
  %v7461 = vunpack.c.h.b16 %v6963
  %v7462 = vunpack.c.l.b16 %v6964
  %v7463 = vunpack.c.h.b16 %v6964
  %v7464 = vunpack.c.l.b16 %v6965
  %v7465 = vunpack.c.h.b16 %v6965
  %v7466 = vunpack.c.l.b16 %v6966
  %v7467 = vunpack.c.h.b16 %v6966
  %v7468 = vunpack.c.l.b16 %v6967
  %v7469 = vunpack.c.h.b16 %v6967
  %v7470 = vunpack.c.l.b16 %v6968
  %v7471 = vunpack.c.h.b16 %v6968
  %v7472 = vunpack.c.l.b16 %v6969
  %v7473 = vunpack.c.h.b16 %v6969
  %v7474 = vpack.c.b16 %v7462, %v7458
  %v7475 = vpack.c.b16 %v7463, %v7459
  %v7476 = vpack.c.b16 %v7464, %v7460
  %v7477 = vpack.c.b16 %v7465, %v7461
  %v7478 = vpack.c.b16 %v7470, %v7466
  %v7479 = vpack.c.b16 %v7471, %v7467
  %v7480 = vpack.c.b16 %v7472, %v7468
  %v7481 = vpack.c.b16 %v7473, %v7469
  %v7498 = vunpack.c.l.b16 %v7034
  %v7499 = vunpack.c.h.b16 %v7034
  %v7500 = vunpack.c.l.b16 %v7035
  %v7501 = vunpack.c.h.b16 %v7035
  %v7502 = vunpack.c.l.b16 %v7036
  %v7503 = vunpack.c.h.b16 %v7036
  %v7504 = vunpack.c.l.b16 %v7037
  %v7505 = vunpack.c.h.b16 %v7037
  %v7506 = vunpack.c.l.b16 %v7038
  %v7507 = vunpack.c.h.b16 %v7038
  %v7508 = vunpack.c.l.b16 %v7039
  %v7509 = vunpack.c.h.b16 %v7039
  %v7510 = vunpack.c.l.b16 %v7040
  %v7511 = vunpack.c.h.b16 %v7040
  %v7512 = vunpack.c.l.b16 %v7041
  %v7513 = vunpack.c.h.b16 %v7041
  %v7514 = vpack.c.b16 %v7502, %v7498
  %v7515 = vpack.c.b16 %v7503, %v7499
  %v7516 = vpack.c.b16 %v7504, %v7500
  %v7517 = vpack.c.b16 %v7505, %v7501
  %v7518 = vpack.c.b16 %v7510, %v7506
  %v7519 = vpack.c.b16 %v7511, %v7507
  %v7520 = vpack.c.b16 %v7512, %v7508
  %v7521 = vpack.c.b16 %v7513, %v7509
  %v7538 = vunpack.c.l.b16 %v7106
  %v7539 = vunpack.c.h.b16 %v7106
  %v7540 = vunpack.c.l.b16 %v7107
  %v7541 = vunpack.c.h.b16 %v7107
  %v7542 = vunpack.c.l.b16 %v7108
  %v7543 = vunpack.c.h.b16 %v7108
  %v7544 = vunpack.c.l.b16 %v7109
  %v7545 = vunpack.c.h.b16 %v7109
  %v7546 = vunpack.c.l.b16 %v7110
  %v7547 = vunpack.c.h.b16 %v7110
  %v7548 = vunpack.c.l.b16 %v7111
  %v7549 = vunpack.c.h.b16 %v7111
  %v7550 = vunpack.c.l.b16 %v7112
  %v7551 = vunpack.c.h.b16 %v7112
  %v7552 = vunpack.c.l.b16 %v7113
  %v7553 = vunpack.c.h.b16 %v7113
  %v7554 = vpack.c.b16 %v7542, %v7538
  %v7555 = vpack.c.b16 %v7543, %v7539
  %v7556 = vpack.c.b16 %v7544, %v7540
  %v7557 = vpack.c.b16 %v7545, %v7541
  %v7558 = vpack.c.b16 %v7550, %v7546
  %v7559 = vpack.c.b16 %v7551, %v7547
  %v7560 = vpack.c.b16 %v7552, %v7548
  %v7561 = vpack.c.b16 %v7553, %v7549
  %v7578 = vunpack.c.l.b16 %v7114
  %v7579 = vunpack.c.h.b16 %v7114
  %v7580 = vunpack.c.l.b16 %v7115
  %v7581 = vunpack.c.h.b16 %v7115
  %v7582 = vunpack.c.l.b16 %v7116
  %v7583 = vunpack.c.h.b16 %v7116
  %v7584 = vunpack.c.l.b16 %v7117
  %v7585 = vunpack.c.h.b16 %v7117
  %v7586 = vunpack.c.l.b16 %v7118
  %v7587 = vunpack.c.h.b16 %v7118
  %v7588 = vunpack.c.l.b16 %v7119
  %v7589 = vunpack.c.h.b16 %v7119
  %v7590 = vunpack.c.l.b16 %v7120
  %v7591 = vunpack.c.h.b16 %v7120
  %v7592 = vunpack.c.l.b16 %v7121
  %v7593 = vunpack.c.h.b16 %v7121
  %v7594 = vpack.c.b16 %v7582, %v7578
  %v7595 = vpack.c.b16 %v7583, %v7579
  %v7596 = vpack.c.b16 %v7584, %v7580
  %v7597 = vpack.c.b16 %v7585, %v7581
  %v7598 = vpack.c.b16 %v7590, %v7586
  %v7599 = vpack.c.b16 %v7591, %v7587
  %v7600 = vpack.c.b16 %v7592, %v7588
  %v7601 = vpack.c.b16 %v7593, %v7589
  %v7618 = vunpack.c.l.b16 %v7186
  %v7619 = vunpack.c.h.b16 %v7186
  %v7620 = vunpack.c.l.b16 %v7187
  %v7621 = vunpack.c.h.b16 %v7187
  %v7622 = vunpack.c.l.b16 %v7188
  %v7623 = vunpack.c.h.b16 %v7188
  %v7624 = vunpack.c.l.b16 %v7189
  %v7625 = vunpack.c.h.b16 %v7189
  %v7626 = vunpack.c.l.b16 %v7190
  %v7627 = vunpack.c.h.b16 %v7190
  %v7628 = vunpack.c.l.b16 %v7191
  %v7629 = vunpack.c.h.b16 %v7191
  %v7630 = vunpack.c.l.b16 %v7192
  %v7631 = vunpack.c.h.b16 %v7192
  %v7632 = vunpack.c.l.b16 %v7193
  %v7633 = vunpack.c.h.b16 %v7193
  %v7634 = vpack.c.b16 %v7622, %v7618
  %v7635 = vpack.c.b16 %v7623, %v7619
  %v7636 = vpack.c.b16 %v7624, %v7620
  %v7637 = vpack.c.b16 %v7625, %v7621
  %v7638 = vpack.c.b16 %v7630, %v7626
  %v7639 = vpack.c.b16 %v7631, %v7627
  %v7640 = vpack.c.b16 %v7632, %v7628
  %v7641 = vpack.c.b16 %v7633, %v7629
  %v7658 = vunpack.c.l.b16 %v7258
  %v7659 = vunpack.c.h.b16 %v7258
  %v7660 = vunpack.c.l.b16 %v7259
  %v7661 = vunpack.c.h.b16 %v7259
  %v7662 = vunpack.c.l.b16 %v7260
  %v7663 = vunpack.c.h.b16 %v7260
  %v7664 = vunpack.c.l.b16 %v7261
  %v7665 = vunpack.c.h.b16 %v7261
  %v7666 = vunpack.c.l.b16 %v7262
  %v7667 = vunpack.c.h.b16 %v7262
  %v7668 = vunpack.c.l.b16 %v7263
  %v7669 = vunpack.c.h.b16 %v7263
  %v7670 = vunpack.c.l.b16 %v7264
  %v7671 = vunpack.c.h.b16 %v7264
  %v7672 = vunpack.c.l.b16 %v7265
  %v7673 = vunpack.c.h.b16 %v7265
  %v7674 = vpack.c.b16 %v7662, %v7658
  %v7675 = vpack.c.b16 %v7663, %v7659
  %v7676 = vpack.c.b16 %v7664, %v7660
  %v7677 = vpack.c.b16 %v7665, %v7661
  %v7678 = vpack.c.b16 %v7670, %v7666
  %v7679 = vpack.c.b16 %v7671, %v7667
  %v7680 = vpack.c.b16 %v7672, %v7668
  %v7681 = vpack.c.b16 %v7673, %v7669
  %v7698 = vunpack.c.l.b16 %v7330
  %v7699 = vunpack.c.h.b16 %v7330
  %v7700 = vunpack.c.l.b16 %v7331
  %v7701 = vunpack.c.h.b16 %v7331
  %v7702 = vunpack.c.l.b16 %v7332
  %v7703 = vunpack.c.h.b16 %v7332
  %v7704 = vunpack.c.l.b16 %v7333
  %v7705 = vunpack.c.h.b16 %v7333
  %v7706 = vunpack.c.l.b16 %v7334
  %v7707 = vunpack.c.h.b16 %v7334
  %v7708 = vunpack.c.l.b16 %v7335
  %v7709 = vunpack.c.h.b16 %v7335
  %v7710 = vunpack.c.l.b16 %v7336
  %v7711 = vunpack.c.h.b16 %v7336
  %v7712 = vunpack.c.l.b16 %v7337
  %v7713 = vunpack.c.h.b16 %v7337
  %v7714 = vpack.c.b16 %v7702, %v7698
  %v7715 = vpack.c.b16 %v7703, %v7699
  %v7716 = vpack.c.b16 %v7704, %v7700
  %v7717 = vpack.c.b16 %v7705, %v7701
  %v7718 = vpack.c.b16 %v7710, %v7706
  %v7719 = vpack.c.b16 %v7711, %v7707
  %v7720 = vpack.c.b16 %v7712, %v7708
  %v7721 = vpack.c.b16 %v7713, %v7709
  %v7738 = vunpack.c.l.b16 %v7402
  %v7739 = vunpack.c.h.b16 %v7402
  %v7740 = vunpack.c.l.b16 %v7403
  %v7741 = vunpack.c.h.b16 %v7403
  %v7742 = vunpack.c.l.b16 %v7404
  %v7743 = vunpack.c.h.b16 %v7404
  %v7744 = vunpack.c.l.b16 %v7405
  %v7745 = vunpack.c.h.b16 %v7405
  %v7746 = vunpack.c.l.b16 %v7406
  %v7747 = vunpack.c.h.b16 %v7406
  %v7748 = vunpack.c.l.b16 %v7407
  %v7749 = vunpack.c.h.b16 %v7407
  %v7750 = vunpack.c.l.b16 %v7408
  %v7751 = vunpack.c.h.b16 %v7408
  %v7752 = vunpack.c.l.b16 %v7409
  %v7753 = vunpack.c.h.b16 %v7409
  %v7754 = vpack.c.b16 %v7742, %v7738
  %v7755 = vpack.c.b16 %v7743, %v7739
  %v7756 = vpack.c.b16 %v7744, %v7740
  %v7757 = vpack.c.b16 %v7745, %v7741
  %v7758 = vpack.c.b16 %v7750, %v7746
  %v7759 = vpack.c.b16 %v7751, %v7747
  %v7760 = vpack.c.b16 %v7752, %v7748
  %v7761 = vpack.c.b16 %v7753, %v7749
  %v7778 = vunpack.c.l.b16 %v6818
  %v7779 = vunpack.c.h.b16 %v6818
  %v7780 = vunpack.c.l.b16 %v6819
  %v7781 = vunpack.c.l.b16 %v6820
  %v7782 = vunpack.c.h.b16 %v6820
  %v7783 = vunpack.c.l.b16 %v6821
  %v7784 = vunpack.c.l.b16 %v6822
  %v7785 = vunpack.c.h.b16 %v6822
  %v7786 = vunpack.c.l.b16 %v6823
  %v7787 = vunpack.c.l.b16 %v6824
  %v7788 = vunpack.c.h.b16 %v6824
  %v7789 = vunpack.c.l.b16 %v6825
  %v7790 = vpack.c.b16 %v7781, %v7778
  %v7791 = vpack.c.b16 %v7782, %v7779
  %v7792 = vpack.c.b16 %v7783, %v7780
  %v7793 = vpack.c.b16 %v7787, %v7784
  %v7794 = vpack.c.b16 %v7788, %v7785
  %v7795 = vpack.c.b16 %v7789, %v7786
  %v7801 = vsel %vm1995, %v7792, 0
  %v7804 = vsel %vm1995, %v7795, 0
  %7806 = vmatpush.bf16.msra.mxu0 %v7558
  %7807 = vmatpush.bf16.msra.mxu0 %v7554
  %7808 = vmatpush.bf16.msra.mxu0 %v7518
  %7809 = vmatpush.bf16.msra.mxu0 %v7514
  %7810 = vmatpush.bf16.msra.mxu0 %v7478
  %7811 = vmatpush.bf16.msra.mxu0 %v7474
  %7812 = vmatpush.bf16.msra.mxu0 %v7438
  %7813 = vmatpush.bf16.msra.mxu0 %v7434
  %7814 = vmatmul.bf16.gmra.mxu0 %v7790
  %v7815 = vpop.f32.mrf.mxu0
  %v7816 = vadd.f32 0.0, %v7815
  %v7817 = vpop.f32.mrf.mxu0
  %v7818 = vadd.f32 0.0, %v7817
  %7819 = vmatmul.bf16.gmra.mxu0 %v7793
  %v7820 = vpop.f32.mrf.mxu0
  %v7821 = vadd.f32 0.0, %v7820
  %v7822 = vpop.f32.mrf.mxu0
  %v7823 = vadd.f32 0.0, %v7822
  %7824 = vdwg.mxu0
  %7825 = vmatpush.bf16.msra.mxu0 %v7718
  %7826 = vmatpush.bf16.msra.mxu0 %v7714
  %7827 = vmatpush.bf16.msra.mxu0 %v7678
  %7828 = vmatpush.bf16.msra.mxu0 %v7674
  %7829 = vmatpush.bf16.msra.mxu0 %v7638
  %7830 = vmatpush.bf16.msra.mxu0 %v7634
  %7831 = vmatpush.bf16.msra.mxu0 %v7598
  %7832 = vmatpush.bf16.msra.mxu0 %v7594
  %7833 = vmatmul.bf16.gmra.mxu0 %v7791
  %v7834 = vpop.f32.mrf.mxu0
  %v7835 = vadd.f32 %v7816, %v7834
  %v7836 = vpop.f32.mrf.mxu0
  %v7837 = vadd.f32 %v7818, %v7836
  %7838 = vmatmul.bf16.gmra.mxu0 %v7794
  %v7839 = vpop.f32.mrf.mxu0
  %v7840 = vadd.f32 %v7821, %v7839
  %v7841 = vpop.f32.mrf.mxu0
  %v7842 = vadd.f32 %v7823, %v7841
  %7843 = vdwg.mxu0
  %7844 = vmatpush.bf16.msra.mxu0 0
  %7845 = vmatpush.bf16.msra.mxu0 0
  %7846 = vmatpush.bf16.msra.mxu0 0
  %7847 = vmatpush.bf16.msra.mxu0 0
  %7848 = vmatpush.bf16.msra.mxu0 0
  %7849 = vmatpush.bf16.msra.mxu0 0
  %7850 = vmatpush.bf16.msra.mxu0 %v7758
  %7851 = vmatpush.bf16.msra.mxu0 %v7754
  %7852 = vmatmul.bf16.gmra.mxu0 %v7801
  %v7853 = vpop.f32.mrf.mxu0
  %v7854 = vadd.f32 %v7835, %v7853
  %v7855 = vpop.f32.mrf.mxu0
  %v7856 = vadd.f32 %v7837, %v7855
  %7857 = vmatmul.bf16.gmra.mxu0 %v7804
  %v7858 = vpop.f32.mrf.mxu0
  %v7859 = vadd.f32 %v7840, %v7858
  %v7860 = vpop.f32.mrf.mxu0
  %v7861 = vadd.f32 %v7842, %v7860
  %7862 = vdwg.mxu0
  %7863 = vmatpush.bf16.msra.mxu0 %v7559
  %7864 = vmatpush.bf16.msra.mxu0 %v7555
  %7865 = vmatpush.bf16.msra.mxu0 %v7519
  %7866 = vmatpush.bf16.msra.mxu0 %v7515
  %7867 = vmatpush.bf16.msra.mxu0 %v7479
  %7868 = vmatpush.bf16.msra.mxu0 %v7475
  %7869 = vmatpush.bf16.msra.mxu0 %v7439
  %7870 = vmatpush.bf16.msra.mxu0 %v7435
  %7871 = vmatmul.bf16.gmra.mxu0 %v7790
  %v7872 = vpop.f32.mrf.mxu0
  %v7873 = vadd.f32 0.0, %v7872
  %v7874 = vpop.f32.mrf.mxu0
  %v7875 = vadd.f32 0.0, %v7874
  %7876 = vmatmul.bf16.gmra.mxu0 %v7793
  %v7877 = vpop.f32.mrf.mxu0
  %v7878 = vadd.f32 0.0, %v7877
  %v7879 = vpop.f32.mrf.mxu0
  %v7880 = vadd.f32 0.0, %v7879
  %7881 = vdwg.mxu0
  %7882 = vmatpush.bf16.msra.mxu0 %v7719
  %7883 = vmatpush.bf16.msra.mxu0 %v7715
  %7884 = vmatpush.bf16.msra.mxu0 %v7679
  %7885 = vmatpush.bf16.msra.mxu0 %v7675
  %7886 = vmatpush.bf16.msra.mxu0 %v7639
  %7887 = vmatpush.bf16.msra.mxu0 %v7635
  %7888 = vmatpush.bf16.msra.mxu0 %v7599
  %7889 = vmatpush.bf16.msra.mxu0 %v7595
  %7890 = vmatmul.bf16.gmra.mxu0 %v7791
  %v7891 = vpop.f32.mrf.mxu0
  %v7892 = vadd.f32 %v7873, %v7891
  %v7893 = vpop.f32.mrf.mxu0
  %v7894 = vadd.f32 %v7875, %v7893
  %7895 = vmatmul.bf16.gmra.mxu0 %v7794
  %v7896 = vpop.f32.mrf.mxu0
  %v7897 = vadd.f32 %v7878, %v7896
  %v7898 = vpop.f32.mrf.mxu0
  %v7899 = vadd.f32 %v7880, %v7898
  %7900 = vdwg.mxu0
  %7901 = vmatpush.bf16.msra.mxu0 0
  %7902 = vmatpush.bf16.msra.mxu0 0
  %7903 = vmatpush.bf16.msra.mxu0 0
  %7904 = vmatpush.bf16.msra.mxu0 0
  %7905 = vmatpush.bf16.msra.mxu0 0
  %7906 = vmatpush.bf16.msra.mxu0 0
  %7907 = vmatpush.bf16.msra.mxu0 %v7759
  %7908 = vmatpush.bf16.msra.mxu0 %v7755
  %7909 = vmatmul.bf16.gmra.mxu0 %v7801
  %v7910 = vpop.f32.mrf.mxu0
  %v7911 = vadd.f32 %v7892, %v7910
  %v7912 = vpop.f32.mrf.mxu0
  %v7913 = vadd.f32 %v7894, %v7912
  %7914 = vmatmul.bf16.gmra.mxu0 %v7804
  %v7915 = vpop.f32.mrf.mxu0
  %v7916 = vadd.f32 %v7897, %v7915
  %v7917 = vpop.f32.mrf.mxu0
  %v7918 = vadd.f32 %v7899, %v7917
  %7919 = vdwg.mxu0
  %7920 = vmatpush.bf16.msra.mxu0 %v7560
  %7921 = vmatpush.bf16.msra.mxu0 %v7556
  %7922 = vmatpush.bf16.msra.mxu0 %v7520
  %7923 = vmatpush.bf16.msra.mxu0 %v7516
  %7924 = vmatpush.bf16.msra.mxu0 %v7480
  %7925 = vmatpush.bf16.msra.mxu0 %v7476
  %7926 = vmatpush.bf16.msra.mxu0 %v7440
  %7927 = vmatpush.bf16.msra.mxu0 %v7436
  %7928 = vmatmul.bf16.gmra.mxu0 %v7790
  %v7929 = vpop.f32.mrf.mxu0
  %v7930 = vadd.f32 0.0, %v7929
  %v7931 = vpop.f32.mrf.mxu0
  %v7932 = vadd.f32 0.0, %v7931
  %7933 = vmatmul.bf16.gmra.mxu0 %v7793
  %v7934 = vpop.f32.mrf.mxu0
  %v7935 = vadd.f32 0.0, %v7934
  %v7936 = vpop.f32.mrf.mxu0
  %v7937 = vadd.f32 0.0, %v7936
  %7938 = vdwg.mxu0
  %7939 = vmatpush.bf16.msra.mxu0 %v7720
  %7940 = vmatpush.bf16.msra.mxu0 %v7716
  %7941 = vmatpush.bf16.msra.mxu0 %v7680
  %7942 = vmatpush.bf16.msra.mxu0 %v7676
  %7943 = vmatpush.bf16.msra.mxu0 %v7640
  %7944 = vmatpush.bf16.msra.mxu0 %v7636
  %7945 = vmatpush.bf16.msra.mxu0 %v7600
  %7946 = vmatpush.bf16.msra.mxu0 %v7596
  %7947 = vmatmul.bf16.gmra.mxu0 %v7791
  %v7948 = vpop.f32.mrf.mxu0
  %v7949 = vadd.f32 %v7930, %v7948
  %v7950 = vpop.f32.mrf.mxu0
  %v7951 = vadd.f32 %v7932, %v7950
  %7952 = vmatmul.bf16.gmra.mxu0 %v7794
  %v7953 = vpop.f32.mrf.mxu0
  %v7954 = vadd.f32 %v7935, %v7953
  %v7955 = vpop.f32.mrf.mxu0
  %v7956 = vadd.f32 %v7937, %v7955
  %7957 = vdwg.mxu0
  %7958 = vmatpush.bf16.msra.mxu0 0
  %7959 = vmatpush.bf16.msra.mxu0 0
  %7960 = vmatpush.bf16.msra.mxu0 0
  %7961 = vmatpush.bf16.msra.mxu0 0
  %7962 = vmatpush.bf16.msra.mxu0 0
  %7963 = vmatpush.bf16.msra.mxu0 0
  %7964 = vmatpush.bf16.msra.mxu0 %v7760
  %7965 = vmatpush.bf16.msra.mxu0 %v7756
  %7966 = vmatmul.bf16.gmra.mxu0 %v7801
  %v7967 = vpop.f32.mrf.mxu0
  %v7968 = vadd.f32 %v7949, %v7967
  %v7969 = vpop.f32.mrf.mxu0
  %v7970 = vadd.f32 %v7951, %v7969
  %7971 = vmatmul.bf16.gmra.mxu0 %v7804
  %v7972 = vpop.f32.mrf.mxu0
  %v7973 = vadd.f32 %v7954, %v7972
  %v7974 = vpop.f32.mrf.mxu0
  %v7975 = vadd.f32 %v7956, %v7974
  %7976 = vdwg.mxu0
  %7977 = vmatpush.bf16.msra.mxu0 %v7561
  %7978 = vmatpush.bf16.msra.mxu0 %v7557
  %7979 = vmatpush.bf16.msra.mxu0 %v7521
  %7980 = vmatpush.bf16.msra.mxu0 %v7517
  %7981 = vmatpush.bf16.msra.mxu0 %v7481
  %7982 = vmatpush.bf16.msra.mxu0 %v7477
  %7983 = vmatpush.bf16.msra.mxu0 %v7441
  %7984 = vmatpush.bf16.msra.mxu0 %v7437
  %7985 = vmatmul.bf16.gmra.mxu0 %v7790
  %v7986 = vpop.f32.mrf.mxu0
  %v7987 = vadd.f32 0.0, %v7986
  %v7988 = vpop.f32.mrf.mxu0
  %v7989 = vadd.f32 0.0, %v7988
  %7990 = vmatmul.bf16.gmra.mxu0 %v7793
  %v7991 = vpop.f32.mrf.mxu0
  %v7992 = vadd.f32 0.0, %v7991
  %v7993 = vpop.f32.mrf.mxu0
  %v7994 = vadd.f32 0.0, %v7993
  %7995 = vdwg.mxu0
  %7996 = vmatpush.bf16.msra.mxu0 %v7721
  %7997 = vmatpush.bf16.msra.mxu0 %v7717
  %7998 = vmatpush.bf16.msra.mxu0 %v7681
  %7999 = vmatpush.bf16.msra.mxu0 %v7677
  %8000 = vmatpush.bf16.msra.mxu0 %v7641
  %8001 = vmatpush.bf16.msra.mxu0 %v7637
  %8002 = vmatpush.bf16.msra.mxu0 %v7601
  %8003 = vmatpush.bf16.msra.mxu0 %v7597
  %8004 = vmatmul.bf16.gmra.mxu0 %v7791
  %v8005 = vpop.f32.mrf.mxu0
  %v8006 = vadd.f32 %v7987, %v8005
  %v8007 = vpop.f32.mrf.mxu0
  %v8008 = vadd.f32 %v7989, %v8007
  %8009 = vmatmul.bf16.gmra.mxu0 %v7794
  %v8010 = vpop.f32.mrf.mxu0
  %v8011 = vadd.f32 %v7992, %v8010
  %v8012 = vpop.f32.mrf.mxu0
  %v8013 = vadd.f32 %v7994, %v8012
  %8014 = vdwg.mxu0
  %8015 = vmatpush.bf16.msra.mxu0 0
  %8016 = vmatpush.bf16.msra.mxu0 0
  %8017 = vmatpush.bf16.msra.mxu0 0
  %8018 = vmatpush.bf16.msra.mxu0 0
  %8019 = vmatpush.bf16.msra.mxu0 0
  %8020 = vmatpush.bf16.msra.mxu0 0
  %8021 = vmatpush.bf16.msra.mxu0 %v7761
  %8022 = vmatpush.bf16.msra.mxu0 %v7757
  %8023 = vmatmul.bf16.gmra.mxu0 %v7801
  %v8024 = vpop.f32.mrf.mxu0
  %v8025 = vadd.f32 %v8006, %v8024
  %v8026 = vpop.f32.mrf.mxu0
  %v8027 = vadd.f32 %v8008, %v8026
  %8028 = vmatmul.bf16.gmra.mxu0 %v7804
  %v8029 = vpop.f32.mrf.mxu0
  %v8030 = vadd.f32 %v8011, %v8029
  %v8031 = vpop.f32.mrf.mxu0
  %v8032 = vadd.f32 %v8013, %v8031
  %8033 = vdwg.mxu0
  %v8034 = vadd.f32 %v7854, %v7911
  %v8035 = vadd.f32 %v8034, %v7968
  %v8036 = vadd.f32 %v8035, %v8025
  %8037 = vadd.xlane.f32.xlu0 %v8036
  %v8038 = vpop.xlane.xlu0 %8037
  %v8039 = vadd.f32 %v7856, %v7913
  %v8040 = vadd.f32 %v8039, %v7970
  %v8041 = vadd.f32 %v8040, %v8027
  %8042 = vadd.xlane.f32.xlu0 %v8041
  %v8043 = vpop.xlane.xlu0 %8042
  %v8044 = vadd.f32 %v7859, %v7916
  %v8045 = vadd.f32 %v8044, %v7973
  %v8046 = vadd.f32 %v8045, %v8030
  %8047 = vadd.xlane.f32.xlu0 %v8046
  %v8048 = vpop.xlane.xlu0 %8047
  %v8049 = vadd.f32 %v7861, %v7918
  %v8050 = vadd.f32 %v8049, %v7975
  %v8051 = vadd.f32 %v8050, %v8032
  %8052 = vadd.xlane.f32.xlu0 %v8051
  %v8053 = vpop.xlane.xlu0 %8052
  %v8054 = vmul.f32 %v8038, %v808
  %v8055 = vmul.f32 %v8043, %v808
  %v8056 = vmul.f32 %v8048, %v808
  %v8057 = vmul.f32 %v8053, %v808
  %v8058 = vsub.f32 %v7854, %v8054
  %v8059 = vsub.f32 %v7911, %v8054
  %v8060 = vsub.f32 %v7968, %v8054
  %v8061 = vsub.f32 %v8025, %v8054
  %v8062 = vsub.f32 %v7856, %v8055
  %v8063 = vsub.f32 %v7913, %v8055
  %v8064 = vsub.f32 %v7970, %v8055
  %v8065 = vsub.f32 %v8027, %v8055
  %v8066 = vsub.f32 %v7859, %v8056
  %v8067 = vsub.f32 %v7916, %v8056
  %v8068 = vsub.f32 %v7973, %v8056
  %v8069 = vsub.f32 %v8030, %v8056
  %v8070 = vsub.f32 %v7861, %v8057
  %v8071 = vsub.f32 %v7918, %v8057
  %v8072 = vsub.f32 %v7975, %v8057
  %v8073 = vsub.f32 %v8032, %v8057
  %v8074 = vmul.f32 %v8058, %v8058
  %v8075 = vmul.f32 %v8059, %v8059
  %v8076 = vmul.f32 %v8060, %v8060
  %v8077 = vmul.f32 %v8061, %v8061
  %v8078 = vmul.f32 %v8062, %v8062
  %v8079 = vmul.f32 %v8063, %v8063
  %v8080 = vmul.f32 %v8064, %v8064
  %v8081 = vmul.f32 %v8065, %v8065
  %v8082 = vmul.f32 %v8066, %v8066
  %v8083 = vmul.f32 %v8067, %v8067
  %v8084 = vmul.f32 %v8068, %v8068
  %v8085 = vmul.f32 %v8069, %v8069
  %v8086 = vmul.f32 %v8070, %v8070
  %v8087 = vmul.f32 %v8071, %v8071
  %v8088 = vmul.f32 %v8072, %v8072
  %v8089 = vmul.f32 %v8073, %v8073
  %v8090 = vadd.f32 %v8074, %v8075
  %v8091 = vadd.f32 %v8090, %v8076
  %v8092 = vadd.f32 %v8091, %v8077
  %8093 = vadd.xlane.f32.xlu0 %v8092
  %v8094 = vpop.xlane.xlu0 %8093
  %v8095 = vadd.f32 %v8078, %v8079
  %v8096 = vadd.f32 %v8095, %v8080
  %v8097 = vadd.f32 %v8096, %v8081
  %8098 = vadd.xlane.f32.xlu0 %v8097
  %v8099 = vpop.xlane.xlu0 %8098
  %v8100 = vadd.f32 %v8082, %v8083
  %v8101 = vadd.f32 %v8100, %v8084
  %v8102 = vadd.f32 %v8101, %v8085
  %8103 = vadd.xlane.f32.xlu0 %v8102
  %v8104 = vpop.xlane.xlu0 %8103
  %v8105 = vadd.f32 %v8086, %v8087
  %v8106 = vadd.f32 %v8105, %v8088
  %v8107 = vadd.f32 %v8106, %v8089
  %8108 = vadd.xlane.f32.xlu0 %v8107
  %v8109 = vpop.xlane.xlu0 %8108
  %v8110 = vmul.f32 %v8094, %v808
  %v8111 = vmul.f32 %v8099, %v808
  %v8112 = vmul.f32 %v8104, %v808
  %v8113 = vmul.f32 %v8109, %v808
  %s8114 = scalar_lea.vmem %s4, 160
  %v8115 = vld [vmem:[%s8114] sm:$0xff]
  %v8116 = vld [vmem:[%s8114 + $0x8] sm:$0xff]
  %v8117 = vld [vmem:[%s8114 + $0x10] sm:$0xff]
  %v8118 = vld [vmem:[%s8114 + $0x18] sm:$0xff]
  %v8119 = vadd.f32 %v8110, 1e-05
  %v8120 = vadd.f32 %v8111, 1e-05
  %v8121 = vadd.f32 %v8112, 1e-05
  %v8122 = vadd.f32 %v8113, 1e-05
  %v8123 = vrsqrt.pop %v8119
  %v8124 = vmul.f32 %v8123, %v8119
  %v8125 = vmul.f32 %v8124, %v8123
  %v8126 = vmul.f32 0.5, %v8125
  %v8127 = vsub.f32 1.5, %v8126
  %v8128 = vmul.f32 %v8123, %v8127
  %vm8129 = vweird.f32 %v8119
  %vm8130 = vweird.f32 %v8123
  %vm8131 = vmor %vm8129, %vm8130
  %v8132 = vsel %vm8131, %v8123, %v8128
  %v8133 = vrsqrt.pop %v8120
  %v8134 = vmul.f32 %v8133, %v8120
  %v8135 = vmul.f32 %v8134, %v8133
  %v8136 = vmul.f32 0.5, %v8135
  %v8137 = vsub.f32 1.5, %v8136
  %v8138 = vmul.f32 %v8133, %v8137
  %vm8139 = vweird.f32 %v8120
  %vm8140 = vweird.f32 %v8133
  %vm8141 = vmor %vm8139, %vm8140
  %v8142 = vsel %vm8141, %v8133, %v8138
  %v8143 = vrsqrt.pop %v8121
  %v8144 = vmul.f32 %v8143, %v8121
  %v8145 = vmul.f32 %v8144, %v8143
  %v8146 = vmul.f32 0.5, %v8145
  %v8147 = vsub.f32 1.5, %v8146
  %v8148 = vmul.f32 %v8143, %v8147
  %vm8149 = vweird.f32 %v8121
  %vm8150 = vweird.f32 %v8143
  %vm8151 = vmor %vm8149, %vm8150
  %v8152 = vsel %vm8151, %v8143, %v8148
  %v8153 = vrsqrt.pop %v8122
  %v8154 = vmul.f32 %v8153, %v8122
  %v8155 = vmul.f32 %v8154, %v8153
  %v8156 = vmul.f32 0.5, %v8155
  %v8157 = vsub.f32 1.5, %v8156
  %v8158 = vmul.f32 %v8153, %v8157
  %vm8159 = vweird.f32 %v8122
  %vm8160 = vweird.f32 %v8153
  %vm8161 = vmor %vm8159, %vm8160
  %v8162 = vsel %vm8161, %v8153, %v8158
  %v8163 = vmul.f32 %v8115, %v8132
  %v8164 = vmul.f32 %v8116, %v8142
  %v8165 = vmul.f32 %v8117, %v8152
  %v8166 = vmul.f32 %v8118, %v8162
  %8168 = vset.pattern.permute.xlu0 0
  %8169 = vperm.xlu0 %8168, %v8163
  %v8170 = vpop.permute.xlu0 %8169
  %8173 = vset.pattern.permute.xlu0 0
  %8174 = vperm.xlu0 %8173, %v8164
  %v8175 = vpop.permute.xlu0 %8174
  %8178 = vset.pattern.permute.xlu0 0
  %8179 = vperm.xlu0 %8178, %v8165
  %v8180 = vpop.permute.xlu0 %8179
  %8183 = vset.pattern.permute.xlu0 0
  %8184 = vperm.xlu0 %8183, %v8166
  %v8185 = vpop.permute.xlu0 %8184
  %v8187 = vmul.f32 %v8058, %v8170
  %v8188 = vmul.f32 %v8059, %v8170
  %v8189 = vmul.f32 %v8060, %v8170
  %v8190 = vmul.f32 %v8061, %v8170
  %v8191 = vmul.f32 %v8062, %v8175
  %v8192 = vmul.f32 %v8063, %v8175
  %v8193 = vmul.f32 %v8064, %v8175
  %v8194 = vmul.f32 %v8065, %v8175
  %v8195 = vmul.f32 %v8066, %v8180
  %v8196 = vmul.f32 %v8067, %v8180
  %v8197 = vmul.f32 %v8068, %v8180
  %v8198 = vmul.f32 %v8069, %v8180
  %v8199 = vmul.f32 %v8070, %v8185
  %v8200 = vmul.f32 %v8071, %v8185
  %v8201 = vmul.f32 %v8072, %v8185
  %v8202 = vmul.f32 %v8073, %v8185
  %s8203 = scalar_lea.vmem %s5, 160
  %v8204 = vld [vmem:[%s8203] sm:$0xff]
  %v8205 = vld [vmem:[%s8203 + $0x8] sm:$0xff]
  %v8206 = vld [vmem:[%s8203 + $0x10] sm:$0xff]
  %v8207 = vld [vmem:[%s8203 + $0x18] sm:$0xff]
  %8209 = vset.pattern.permute.xlu0 0
  %8210 = vperm.xlu0 %8209, %v8204
  %v8211 = vpop.permute.xlu0 %8210
  %8214 = vset.pattern.permute.xlu0 0
  %8215 = vperm.xlu0 %8214, %v8205
  %v8216 = vpop.permute.xlu0 %8215
  %8219 = vset.pattern.permute.xlu0 0
  %8220 = vperm.xlu0 %8219, %v8206
  %v8221 = vpop.permute.xlu0 %8220
  %8224 = vset.pattern.permute.xlu0 0
  %8225 = vperm.xlu0 %8224, %v8207
  %v8226 = vpop.permute.xlu0 %8225
  %v8228 = vadd.f32 %v8187, %v8211
  %v8229 = vadd.f32 %v8188, %v8211
  %v8230 = vadd.f32 %v8189, %v8211
  %v8231 = vadd.f32 %v8190, %v8211
  %v8232 = vadd.f32 %v8191, %v8216
  %v8233 = vadd.f32 %v8192, %v8216
  %v8234 = vadd.f32 %v8193, %v8216
  %v8235 = vadd.f32 %v8194, %v8216
  %v8236 = vadd.f32 %v8195, %v8221
  %v8237 = vadd.f32 %v8196, %v8221
  %v8238 = vadd.f32 %v8197, %v8221
  %v8239 = vadd.f32 %v8198, %v8221
  %v8240 = vadd.f32 %v8199, %v8226
  %v8241 = vadd.f32 %v8200, %v8226
  %v8242 = vadd.f32 %v8201, %v8226
  %v8243 = vadd.f32 %v8202, %v8226
  %v8244 = vmax.f32 %v8228, 0.0
  %v8245 = vmax.f32 %v8229, 0.0
  %v8246 = vmax.f32 %v8230, 0.0
  %v8247 = vmax.f32 %v8231, 0.0
  %v8248 = vmax.f32 %v8232, 0.0
  %v8249 = vmax.f32 %v8233, 0.0
  %v8250 = vmax.f32 %v8234, 0.0
  %v8251 = vmax.f32 %v8235, 0.0
  %v8252 = vmax.f32 %v8236, 0.0
  %v8253 = vmax.f32 %v8237, 0.0
  %v8254 = vmax.f32 %v8238, 0.0
  %v8255 = vmax.f32 %v8239, 0.0
  %v8256 = vmax.f32 %v8240, 0.0
  %v8257 = vmax.f32 %v8241, 0.0
  %v8258 = vmax.f32 %v8242, 0.0
  %v8259 = vmax.f32 %v8243, 0.0
  %s8260 = scalar_lea.vmem %s3, 240
  %v8261 = vld [vmem:[%s8260] sm:$0xff]
  %v8262 = vld [vmem:[%s8260 + $0x8] sm:$0xf]
  %v8263 = vld [vmem:[%s8260 + $0xc] sm:$0xff]
  %v8264 = vld [vmem:[%s8260 + $0x14] sm:$0xf]
  %v8265 = vld [vmem:[%s8260 + $0x18] sm:$0xff]
  %v8266 = vld [vmem:[%s8260 + $0x20] sm:$0xf]
  %v8267 = vld [vmem:[%s8260 + $0x24] sm:$0xff]
  %v8268 = vld [vmem:[%s8260 + $0x2c] sm:$0xf]
  %8269 = vrot.lane.b32.xlu0 %v8244, 17
  %v8270 = vpop.permute.xlu0 %8269
  %8271 = vrot.lane.b32.xlu0 %v8248, 17
  %v8272 = vpop.permute.xlu0 %8271
  %8273 = vrot.lane.b32.xlu0 %v8252, 17
  %v8274 = vpop.permute.xlu0 %8273
  %8275 = vrot.lane.b32.xlu0 %v8256, 17
  %v8276 = vpop.permute.xlu0 %8275
  %8277 = vrot.lane.b32.xlu0 %v8245, 17
  %v8278 = vpop.permute.xlu0 %8277
  %8279 = vrot.lane.b32.xlu0 %v8249, 17
  %v8280 = vpop.permute.xlu0 %8279
  %8281 = vrot.lane.b32.xlu0 %v8253, 17
  %v8282 = vpop.permute.xlu0 %8281
  %8283 = vrot.lane.b32.xlu0 %v8257, 17
  %v8284 = vpop.permute.xlu0 %8283
  %8285 = vrot.lane.b32.xlu0 %v8246, 17
  %v8286 = vpop.permute.xlu0 %8285
  %8287 = vrot.lane.b32.xlu0 %v8250, 17
  %v8288 = vpop.permute.xlu0 %8287
  %8289 = vrot.lane.b32.xlu0 %v8254, 17
  %v8290 = vpop.permute.xlu0 %8289
  %8291 = vrot.lane.b32.xlu0 %v8258, 17
  %v8292 = vpop.permute.xlu0 %8291
  %8293 = vrot.lane.b32.xlu0 %v8247, 17
  %v8294 = vpop.permute.xlu0 %8293
  %8295 = vrot.lane.b32.xlu0 %v8251, 17
  %v8296 = vpop.permute.xlu0 %8295
  %8297 = vrot.lane.b32.xlu0 %v8255, 17
  %v8298 = vpop.permute.xlu0 %8297
  %8299 = vrot.lane.b32.xlu0 %v8259, 17
  %v8300 = vpop.permute.xlu0 %8299
  %v8301 = vsel %vm69, %v8286, %v8294
  %v8302 = vsel %vm69, %v8288, %v8296
  %v8303 = vsel %vm69, %v8290, %v8298
  %v8304 = vsel %vm69, %v8292, %v8300
  %v8305 = vsel %vm69, %v8278, %v8286
  %v8306 = vsel %vm69, %v8280, %v8288
  %v8307 = vsel %vm69, %v8282, %v8290
  %v8308 = vsel %vm69, %v8284, %v8292
  %v8309 = vsel %vm69, %v8270, %v8278
  %v8310 = vsel %vm69, %v8272, %v8280
  %v8311 = vsel %vm69, %v8274, %v8282
  %v8312 = vsel %vm69, %v8276, %v8284
  %v8313 = vsel %vm69, %v8294, %v8270
  %v8314 = vsel %vm69, %v8296, %v8272
  %v8315 = vsel %vm69, %v8298, %v8274
  %v8316 = vsel %vm69, %v8300, %v8276
  %v8317 = vmul.f32 %v8313, %v79
  %v8318 = vmul.f32 %v8309, %v80
  %v8319 = vmul.f32 %v8305, %v81
  %v8320 = vmul.f32 %v8301, %v82
  %v8321 = vmul.f32 %v8314, %v79
  %v8322 = vmul.f32 %v8310, %v80
  %v8323 = vmul.f32 %v8306, %v81
  %v8324 = vmul.f32 %v8302, %v82
  %v8325 = vmul.f32 %v8315, %v79
  %v8326 = vmul.f32 %v8311, %v80
  %v8327 = vmul.f32 %v8307, %v81
  %v8328 = vmul.f32 %v8303, %v82
  %v8329 = vmul.f32 %v8316, %v79
  %v8330 = vmul.f32 %v8312, %v80
  %v8331 = vmul.f32 %v8308, %v81
  %v8332 = vmul.f32 %v8304, %v82
  %v8333 = vpack.c.bf16 %v8318, %v8317
  %v8334 = vpack.c.bf16 %v8320, %v8319
  %v8335 = vpack.c.bf16 %v8322, %v8321
  %v8336 = vpack.c.bf16 %v8324, %v8323
  %v8337 = vpack.c.bf16 %v8326, %v8325
  %v8338 = vpack.c.bf16 %v8328, %v8327
  %v8339 = vpack.c.bf16 %v8330, %v8329
  %v8340 = vpack.c.bf16 %v8332, %v8331
  %8341 = vrot.lane.b32.xlu0 %v8244, 16
  %v8342 = vpop.permute.xlu0 %8341
  %8343 = vrot.lane.b32.xlu0 %v8248, 16
  %v8344 = vpop.permute.xlu0 %8343
  %8345 = vrot.lane.b32.xlu0 %v8252, 16
  %v8346 = vpop.permute.xlu0 %8345
  %8347 = vrot.lane.b32.xlu0 %v8256, 16
  %v8348 = vpop.permute.xlu0 %8347
  %8349 = vrot.lane.b32.xlu0 %v8245, 16
  %v8350 = vpop.permute.xlu0 %8349
  %8351 = vrot.lane.b32.xlu0 %v8249, 16
  %v8352 = vpop.permute.xlu0 %8351
  %8353 = vrot.lane.b32.xlu0 %v8253, 16
  %v8354 = vpop.permute.xlu0 %8353
  %8355 = vrot.lane.b32.xlu0 %v8257, 16
  %v8356 = vpop.permute.xlu0 %8355
  %8357 = vrot.lane.b32.xlu0 %v8246, 16
  %v8358 = vpop.permute.xlu0 %8357
  %8359 = vrot.lane.b32.xlu0 %v8250, 16
  %v8360 = vpop.permute.xlu0 %8359
  %8361 = vrot.lane.b32.xlu0 %v8254, 16
  %v8362 = vpop.permute.xlu0 %8361
  %8363 = vrot.lane.b32.xlu0 %v8258, 16
  %v8364 = vpop.permute.xlu0 %8363
  %8365 = vrot.lane.b32.xlu0 %v8247, 16
  %v8366 = vpop.permute.xlu0 %8365
  %8367 = vrot.lane.b32.xlu0 %v8251, 16
  %v8368 = vpop.permute.xlu0 %8367
  %8369 = vrot.lane.b32.xlu0 %v8255, 16
  %v8370 = vpop.permute.xlu0 %8369
  %8371 = vrot.lane.b32.xlu0 %v8259, 16
  %v8372 = vpop.permute.xlu0 %8371
  %v8373 = vsel %vm115, %v8358, %v8366
  %v8374 = vsel %vm115, %v8360, %v8368
  %v8375 = vsel %vm115, %v8362, %v8370
  %v8376 = vsel %vm115, %v8364, %v8372
  %v8377 = vsel %vm115, %v8350, %v8358
  %v8378 = vsel %vm115, %v8352, %v8360
  %v8379 = vsel %vm115, %v8354, %v8362
  %v8380 = vsel %vm115, %v8356, %v8364
  %v8381 = vsel %vm115, %v8342, %v8350
  %v8382 = vsel %vm115, %v8344, %v8352
  %v8383 = vsel %vm115, %v8346, %v8354
  %v8384 = vsel %vm115, %v8348, %v8356
  %v8385 = vsel %vm115, %v8366, %v8342
  %v8386 = vsel %vm115, %v8368, %v8344
  %v8387 = vsel %vm115, %v8370, %v8346
  %v8388 = vsel %vm115, %v8372, %v8348
  %v8389 = vmul.f32 %v8385, %v125
  %v8390 = vmul.f32 %v8381, %v126
  %v8391 = vmul.f32 %v8377, %v127
  %v8392 = vmul.f32 %v8373, %v128
  %v8393 = vmul.f32 %v8386, %v125
  %v8394 = vmul.f32 %v8382, %v126
  %v8395 = vmul.f32 %v8378, %v127
  %v8396 = vmul.f32 %v8374, %v128
  %v8397 = vmul.f32 %v8387, %v125
  %v8398 = vmul.f32 %v8383, %v126
  %v8399 = vmul.f32 %v8379, %v127
  %v8400 = vmul.f32 %v8375, %v128
  %v8401 = vmul.f32 %v8388, %v125
  %v8402 = vmul.f32 %v8384, %v126
  %v8403 = vmul.f32 %v8380, %v127
  %v8404 = vmul.f32 %v8376, %v128
  %v8405 = vpack.c.bf16 %v8390, %v8389
  %v8406 = vpack.c.bf16 %v8392, %v8391
  %v8407 = vpack.c.bf16 %v8394, %v8393
  %v8408 = vpack.c.bf16 %v8396, %v8395
  %v8409 = vpack.c.bf16 %v8398, %v8397
  %v8410 = vpack.c.bf16 %v8400, %v8399
  %v8411 = vpack.c.bf16 %v8402, %v8401
  %v8412 = vpack.c.bf16 %v8404, %v8403
  %8413 = vrot.lane.b32.xlu0 %v8244, 15
  %v8414 = vpop.permute.xlu0 %8413
  %8415 = vrot.lane.b32.xlu0 %v8248, 15
  %v8416 = vpop.permute.xlu0 %8415
  %8417 = vrot.lane.b32.xlu0 %v8252, 15
  %v8418 = vpop.permute.xlu0 %8417
  %8419 = vrot.lane.b32.xlu0 %v8256, 15
  %v8420 = vpop.permute.xlu0 %8419
  %8421 = vrot.lane.b32.xlu0 %v8245, 15
  %v8422 = vpop.permute.xlu0 %8421
  %8423 = vrot.lane.b32.xlu0 %v8249, 15
  %v8424 = vpop.permute.xlu0 %8423
  %8425 = vrot.lane.b32.xlu0 %v8253, 15
  %v8426 = vpop.permute.xlu0 %8425
  %8427 = vrot.lane.b32.xlu0 %v8257, 15
  %v8428 = vpop.permute.xlu0 %8427
  %8429 = vrot.lane.b32.xlu0 %v8246, 15
  %v8430 = vpop.permute.xlu0 %8429
  %8431 = vrot.lane.b32.xlu0 %v8250, 15
  %v8432 = vpop.permute.xlu0 %8431
  %8433 = vrot.lane.b32.xlu0 %v8254, 15
  %v8434 = vpop.permute.xlu0 %8433
  %8435 = vrot.lane.b32.xlu0 %v8258, 15
  %v8436 = vpop.permute.xlu0 %8435
  %8437 = vrot.lane.b32.xlu0 %v8247, 15
  %v8438 = vpop.permute.xlu0 %8437
  %8439 = vrot.lane.b32.xlu0 %v8251, 15
  %v8440 = vpop.permute.xlu0 %8439
  %8441 = vrot.lane.b32.xlu0 %v8255, 15
  %v8442 = vpop.permute.xlu0 %8441
  %8443 = vrot.lane.b32.xlu0 %v8259, 15
  %v8444 = vpop.permute.xlu0 %8443
  %v8445 = vsel %vm161, %v8430, %v8438
  %v8446 = vsel %vm161, %v8432, %v8440
  %v8447 = vsel %vm161, %v8434, %v8442
  %v8448 = vsel %vm161, %v8436, %v8444
  %v8449 = vsel %vm161, %v8422, %v8430
  %v8450 = vsel %vm161, %v8424, %v8432
  %v8451 = vsel %vm161, %v8426, %v8434
  %v8452 = vsel %vm161, %v8428, %v8436
  %v8453 = vsel %vm161, %v8414, %v8422
  %v8454 = vsel %vm161, %v8416, %v8424
  %v8455 = vsel %vm161, %v8418, %v8426
  %v8456 = vsel %vm161, %v8420, %v8428
  %v8457 = vsel %vm161, %v8438, %v8414
  %v8458 = vsel %vm161, %v8440, %v8416
  %v8459 = vsel %vm161, %v8442, %v8418
  %v8460 = vsel %vm161, %v8444, %v8420
  %v8461 = vmul.f32 %v8457, %v171
  %v8462 = vmul.f32 %v8453, %v172
  %v8463 = vmul.f32 %v8449, %v173
  %v8464 = vmul.f32 %v8445, %v174
  %v8465 = vmul.f32 %v8458, %v171
  %v8466 = vmul.f32 %v8454, %v172
  %v8467 = vmul.f32 %v8450, %v173
  %v8468 = vmul.f32 %v8446, %v174
  %v8469 = vmul.f32 %v8459, %v171
  %v8470 = vmul.f32 %v8455, %v172
  %v8471 = vmul.f32 %v8451, %v173
  %v8472 = vmul.f32 %v8447, %v174
  %v8473 = vmul.f32 %v8460, %v171
  %v8474 = vmul.f32 %v8456, %v172
  %v8475 = vmul.f32 %v8452, %v173
  %v8476 = vmul.f32 %v8448, %v174
  %v8477 = vpack.c.bf16 %v8462, %v8461
  %v8478 = vpack.c.bf16 %v8464, %v8463
  %v8479 = vpack.c.bf16 %v8466, %v8465
  %v8480 = vpack.c.bf16 %v8468, %v8467
  %v8481 = vpack.c.bf16 %v8470, %v8469
  %v8482 = vpack.c.bf16 %v8472, %v8471
  %v8483 = vpack.c.bf16 %v8474, %v8473
  %v8484 = vpack.c.bf16 %v8476, %v8475
  %8485 = vrot.lane.b32.xlu0 %v8244, 1
  %v8486 = vpop.permute.xlu0 %8485
  %8487 = vrot.lane.b32.xlu0 %v8248, 1
  %v8488 = vpop.permute.xlu0 %8487
  %8489 = vrot.lane.b32.xlu0 %v8252, 1
  %v8490 = vpop.permute.xlu0 %8489
  %8491 = vrot.lane.b32.xlu0 %v8256, 1
  %v8492 = vpop.permute.xlu0 %8491
  %8493 = vrot.lane.b32.xlu0 %v8245, 1
  %v8494 = vpop.permute.xlu0 %8493
  %8495 = vrot.lane.b32.xlu0 %v8249, 1
  %v8496 = vpop.permute.xlu0 %8495
  %8497 = vrot.lane.b32.xlu0 %v8253, 1
  %v8498 = vpop.permute.xlu0 %8497
  %8499 = vrot.lane.b32.xlu0 %v8257, 1
  %v8500 = vpop.permute.xlu0 %8499
  %8501 = vrot.lane.b32.xlu0 %v8246, 1
  %v8502 = vpop.permute.xlu0 %8501
  %8503 = vrot.lane.b32.xlu0 %v8250, 1
  %v8504 = vpop.permute.xlu0 %8503
  %8505 = vrot.lane.b32.xlu0 %v8254, 1
  %v8506 = vpop.permute.xlu0 %8505
  %8507 = vrot.lane.b32.xlu0 %v8258, 1
  %v8508 = vpop.permute.xlu0 %8507
  %8509 = vrot.lane.b32.xlu0 %v8247, 1
  %v8510 = vpop.permute.xlu0 %8509
  %8511 = vrot.lane.b32.xlu0 %v8251, 1
  %v8512 = vpop.permute.xlu0 %8511
  %8513 = vrot.lane.b32.xlu0 %v8255, 1
  %v8514 = vpop.permute.xlu0 %8513
  %8515 = vrot.lane.b32.xlu0 %v8259, 1
  %v8516 = vpop.permute.xlu0 %8515
  %v8517 = vsel %vm207, %v8502, %v8510
  %v8518 = vsel %vm207, %v8504, %v8512
  %v8519 = vsel %vm207, %v8506, %v8514
  %v8520 = vsel %vm207, %v8508, %v8516
  %v8521 = vsel %vm207, %v8494, %v8502
  %v8522 = vsel %vm207, %v8496, %v8504
  %v8523 = vsel %vm207, %v8498, %v8506
  %v8524 = vsel %vm207, %v8500, %v8508
  %v8525 = vsel %vm207, %v8486, %v8494
  %v8526 = vsel %vm207, %v8488, %v8496
  %v8527 = vsel %vm207, %v8490, %v8498
  %v8528 = vsel %vm207, %v8492, %v8500
  %v8529 = vsel %vm207, %v8510, %v8486
  %v8530 = vsel %vm207, %v8512, %v8488
  %v8531 = vsel %vm207, %v8514, %v8490
  %v8532 = vsel %vm207, %v8516, %v8492
  %v8533 = vmul.f32 %v8529, %v217
  %v8534 = vmul.f32 %v8525, %v218
  %v8535 = vmul.f32 %v8521, %v219
  %v8536 = vmul.f32 %v8517, %v220
  %v8537 = vmul.f32 %v8530, %v217
  %v8538 = vmul.f32 %v8526, %v218
  %v8539 = vmul.f32 %v8522, %v219
  %v8540 = vmul.f32 %v8518, %v220
  %v8541 = vmul.f32 %v8531, %v217
  %v8542 = vmul.f32 %v8527, %v218
  %v8543 = vmul.f32 %v8523, %v219
  %v8544 = vmul.f32 %v8519, %v220
  %v8545 = vmul.f32 %v8532, %v217
  %v8546 = vmul.f32 %v8528, %v218
  %v8547 = vmul.f32 %v8524, %v219
  %v8548 = vmul.f32 %v8520, %v220
  %v8549 = vpack.c.bf16 %v8534, %v8533
  %v8550 = vpack.c.bf16 %v8536, %v8535
  %v8551 = vpack.c.bf16 %v8538, %v8537
  %v8552 = vpack.c.bf16 %v8540, %v8539
  %v8553 = vpack.c.bf16 %v8542, %v8541
  %v8554 = vpack.c.bf16 %v8544, %v8543
  %v8555 = vpack.c.bf16 %v8546, %v8545
  %v8556 = vpack.c.bf16 %v8548, %v8547
  %v8557 = vpack.c.bf16 %v8245, %v8244
  %v8558 = vpack.c.bf16 %v8247, %v8246
  %v8559 = vpack.c.bf16 %v8249, %v8248
  %v8560 = vpack.c.bf16 %v8251, %v8250
  %v8561 = vpack.c.bf16 %v8253, %v8252
  %v8562 = vpack.c.bf16 %v8255, %v8254
  %v8563 = vpack.c.bf16 %v8257, %v8256
  %v8564 = vpack.c.bf16 %v8259, %v8258
  %8565 = vrot.lane.b32.xlu0 %v8244, 127
  %v8566 = vpop.permute.xlu0 %8565
  %8567 = vrot.lane.b32.xlu0 %v8248, 127
  %v8568 = vpop.permute.xlu0 %8567
  %8569 = vrot.lane.b32.xlu0 %v8252, 127
  %v8570 = vpop.permute.xlu0 %8569
  %8571 = vrot.lane.b32.xlu0 %v8256, 127
  %v8572 = vpop.permute.xlu0 %8571
  %8573 = vrot.lane.b32.xlu0 %v8245, 127
  %v8574 = vpop.permute.xlu0 %8573
  %8575 = vrot.lane.b32.xlu0 %v8249, 127
  %v8576 = vpop.permute.xlu0 %8575
  %8577 = vrot.lane.b32.xlu0 %v8253, 127
  %v8578 = vpop.permute.xlu0 %8577
  %8579 = vrot.lane.b32.xlu0 %v8257, 127
  %v8580 = vpop.permute.xlu0 %8579
  %8581 = vrot.lane.b32.xlu0 %v8246, 127
  %v8582 = vpop.permute.xlu0 %8581
  %8583 = vrot.lane.b32.xlu0 %v8250, 127
  %v8584 = vpop.permute.xlu0 %8583
  %8585 = vrot.lane.b32.xlu0 %v8254, 127
  %v8586 = vpop.permute.xlu0 %8585
  %8587 = vrot.lane.b32.xlu0 %v8258, 127
  %v8588 = vpop.permute.xlu0 %8587
  %8589 = vrot.lane.b32.xlu0 %v8247, 127
  %v8590 = vpop.permute.xlu0 %8589
  %8591 = vrot.lane.b32.xlu0 %v8251, 127
  %v8592 = vpop.permute.xlu0 %8591
  %8593 = vrot.lane.b32.xlu0 %v8255, 127
  %v8594 = vpop.permute.xlu0 %8593
  %8595 = vrot.lane.b32.xlu0 %v8259, 127
  %v8596 = vpop.permute.xlu0 %8595
  %v8597 = vsel %vm257, %v8582, %v8590
  %v8598 = vsel %vm257, %v8584, %v8592
  %v8599 = vsel %vm257, %v8586, %v8594
  %v8600 = vsel %vm257, %v8588, %v8596
  %v8601 = vsel %vm257, %v8574, %v8582
  %v8602 = vsel %vm257, %v8576, %v8584
  %v8603 = vsel %vm257, %v8578, %v8586
  %v8604 = vsel %vm257, %v8580, %v8588
  %v8605 = vsel %vm257, %v8566, %v8574
  %v8606 = vsel %vm257, %v8568, %v8576
  %v8607 = vsel %vm257, %v8570, %v8578
  %v8608 = vsel %vm257, %v8572, %v8580
  %v8609 = vsel %vm257, %v8590, %v8566
  %v8610 = vsel %vm257, %v8592, %v8568
  %v8611 = vsel %vm257, %v8594, %v8570
  %v8612 = vsel %vm257, %v8596, %v8572
  %v8613 = vmul.f32 %v8605, %v267
  %v8614 = vmul.f32 %v8601, %v268
  %v8615 = vmul.f32 %v8597, %v269
  %v8616 = vmul.f32 %v8609, %v270
  %v8617 = vmul.f32 %v8606, %v267
  %v8618 = vmul.f32 %v8602, %v268
  %v8619 = vmul.f32 %v8598, %v269
  %v8620 = vmul.f32 %v8610, %v270
  %v8621 = vmul.f32 %v8607, %v267
  %v8622 = vmul.f32 %v8603, %v268
  %v8623 = vmul.f32 %v8599, %v269
  %v8624 = vmul.f32 %v8611, %v270
  %v8625 = vmul.f32 %v8608, %v267
  %v8626 = vmul.f32 %v8604, %v268
  %v8627 = vmul.f32 %v8600, %v269
  %v8628 = vmul.f32 %v8612, %v270
  %v8629 = vpack.c.bf16 %v8614, %v8613
  %v8630 = vpack.c.bf16 %v8616, %v8615
  %v8631 = vpack.c.bf16 %v8618, %v8617
  %v8632 = vpack.c.bf16 %v8620, %v8619
  %v8633 = vpack.c.bf16 %v8622, %v8621
  %v8634 = vpack.c.bf16 %v8624, %v8623
  %v8635 = vpack.c.bf16 %v8626, %v8625
  %v8636 = vpack.c.bf16 %v8628, %v8627
  %8637 = vrot.lane.b32.xlu0 %v8244, 113
  %v8638 = vpop.permute.xlu0 %8637
  %8639 = vrot.lane.b32.xlu0 %v8248, 113
  %v8640 = vpop.permute.xlu0 %8639
  %8641 = vrot.lane.b32.xlu0 %v8252, 113
  %v8642 = vpop.permute.xlu0 %8641
  %8643 = vrot.lane.b32.xlu0 %v8256, 113
  %v8644 = vpop.permute.xlu0 %8643
  %8645 = vrot.lane.b32.xlu0 %v8245, 113
  %v8646 = vpop.permute.xlu0 %8645
  %8647 = vrot.lane.b32.xlu0 %v8249, 113
  %v8648 = vpop.permute.xlu0 %8647
  %8649 = vrot.lane.b32.xlu0 %v8253, 113
  %v8650 = vpop.permute.xlu0 %8649
  %8651 = vrot.lane.b32.xlu0 %v8257, 113
  %v8652 = vpop.permute.xlu0 %8651
  %8653 = vrot.lane.b32.xlu0 %v8246, 113
  %v8654 = vpop.permute.xlu0 %8653
  %8655 = vrot.lane.b32.xlu0 %v8250, 113
  %v8656 = vpop.permute.xlu0 %8655
  %8657 = vrot.lane.b32.xlu0 %v8254, 113
  %v8658 = vpop.permute.xlu0 %8657
  %8659 = vrot.lane.b32.xlu0 %v8258, 113
  %v8660 = vpop.permute.xlu0 %8659
  %8661 = vrot.lane.b32.xlu0 %v8247, 113
  %v8662 = vpop.permute.xlu0 %8661
  %8663 = vrot.lane.b32.xlu0 %v8251, 113
  %v8664 = vpop.permute.xlu0 %8663
  %8665 = vrot.lane.b32.xlu0 %v8255, 113
  %v8666 = vpop.permute.xlu0 %8665
  %8667 = vrot.lane.b32.xlu0 %v8259, 113
  %v8668 = vpop.permute.xlu0 %8667
  %v8669 = vsel %vm303, %v8654, %v8662
  %v8670 = vsel %vm303, %v8656, %v8664
  %v8671 = vsel %vm303, %v8658, %v8666
  %v8672 = vsel %vm303, %v8660, %v8668
  %v8673 = vsel %vm303, %v8646, %v8654
  %v8674 = vsel %vm303, %v8648, %v8656
  %v8675 = vsel %vm303, %v8650, %v8658
  %v8676 = vsel %vm303, %v8652, %v8660
  %v8677 = vsel %vm303, %v8638, %v8646
  %v8678 = vsel %vm303, %v8640, %v8648
  %v8679 = vsel %vm303, %v8642, %v8650
  %v8680 = vsel %vm303, %v8644, %v8652
  %v8681 = vsel %vm303, %v8662, %v8638
  %v8682 = vsel %vm303, %v8664, %v8640
  %v8683 = vsel %vm303, %v8666, %v8642
  %v8684 = vsel %vm303, %v8668, %v8644
  %v8685 = vmul.f32 %v8677, %v313
  %v8686 = vmul.f32 %v8673, %v314
  %v8687 = vmul.f32 %v8669, %v315
  %v8688 = vmul.f32 %v8681, %v316
  %v8689 = vmul.f32 %v8678, %v313
  %v8690 = vmul.f32 %v8674, %v314
  %v8691 = vmul.f32 %v8670, %v315
  %v8692 = vmul.f32 %v8682, %v316
  %v8693 = vmul.f32 %v8679, %v313
  %v8694 = vmul.f32 %v8675, %v314
  %v8695 = vmul.f32 %v8671, %v315
  %v8696 = vmul.f32 %v8683, %v316
  %v8697 = vmul.f32 %v8680, %v313
  %v8698 = vmul.f32 %v8676, %v314
  %v8699 = vmul.f32 %v8672, %v315
  %v8700 = vmul.f32 %v8684, %v316
  %v8701 = vpack.c.bf16 %v8686, %v8685
  %v8702 = vpack.c.bf16 %v8688, %v8687
  %v8703 = vpack.c.bf16 %v8690, %v8689
  %v8704 = vpack.c.bf16 %v8692, %v8691
  %v8705 = vpack.c.bf16 %v8694, %v8693
  %v8706 = vpack.c.bf16 %v8696, %v8695
  %v8707 = vpack.c.bf16 %v8698, %v8697
  %v8708 = vpack.c.bf16 %v8700, %v8699
  %8709 = vrot.lane.b32.xlu0 %v8244, 112
  %v8710 = vpop.permute.xlu0 %8709
  %8711 = vrot.lane.b32.xlu0 %v8248, 112
  %v8712 = vpop.permute.xlu0 %8711
  %8713 = vrot.lane.b32.xlu0 %v8252, 112
  %v8714 = vpop.permute.xlu0 %8713
  %8715 = vrot.lane.b32.xlu0 %v8256, 112
  %v8716 = vpop.permute.xlu0 %8715
  %8717 = vrot.lane.b32.xlu0 %v8245, 112
  %v8718 = vpop.permute.xlu0 %8717
  %8719 = vrot.lane.b32.xlu0 %v8249, 112
  %v8720 = vpop.permute.xlu0 %8719
  %8721 = vrot.lane.b32.xlu0 %v8253, 112
  %v8722 = vpop.permute.xlu0 %8721
  %8723 = vrot.lane.b32.xlu0 %v8257, 112
  %v8724 = vpop.permute.xlu0 %8723
  %8725 = vrot.lane.b32.xlu0 %v8246, 112
  %v8726 = vpop.permute.xlu0 %8725
  %8727 = vrot.lane.b32.xlu0 %v8250, 112
  %v8728 = vpop.permute.xlu0 %8727
  %8729 = vrot.lane.b32.xlu0 %v8254, 112
  %v8730 = vpop.permute.xlu0 %8729
  %8731 = vrot.lane.b32.xlu0 %v8258, 112
  %v8732 = vpop.permute.xlu0 %8731
  %8733 = vrot.lane.b32.xlu0 %v8247, 112
  %v8734 = vpop.permute.xlu0 %8733
  %8735 = vrot.lane.b32.xlu0 %v8251, 112
  %v8736 = vpop.permute.xlu0 %8735
  %8737 = vrot.lane.b32.xlu0 %v8255, 112
  %v8738 = vpop.permute.xlu0 %8737
  %8739 = vrot.lane.b32.xlu0 %v8259, 112
  %v8740 = vpop.permute.xlu0 %8739
  %v8741 = vsel %vm349, %v8726, %v8734
  %v8742 = vsel %vm349, %v8728, %v8736
  %v8743 = vsel %vm349, %v8730, %v8738
  %v8744 = vsel %vm349, %v8732, %v8740
  %v8745 = vsel %vm349, %v8718, %v8726
  %v8746 = vsel %vm349, %v8720, %v8728
  %v8747 = vsel %vm349, %v8722, %v8730
  %v8748 = vsel %vm349, %v8724, %v8732
  %v8749 = vsel %vm349, %v8710, %v8718
  %v8750 = vsel %vm349, %v8712, %v8720
  %v8751 = vsel %vm349, %v8714, %v8722
  %v8752 = vsel %vm349, %v8716, %v8724
  %v8753 = vsel %vm349, %v8734, %v8710
  %v8754 = vsel %vm349, %v8736, %v8712
  %v8755 = vsel %vm349, %v8738, %v8714
  %v8756 = vsel %vm349, %v8740, %v8716
  %v8757 = vmul.f32 %v8749, %v359
  %v8758 = vmul.f32 %v8745, %v360
  %v8759 = vmul.f32 %v8741, %v361
  %v8760 = vmul.f32 %v8753, %v362
  %v8761 = vmul.f32 %v8750, %v359
  %v8762 = vmul.f32 %v8746, %v360
  %v8763 = vmul.f32 %v8742, %v361
  %v8764 = vmul.f32 %v8754, %v362
  %v8765 = vmul.f32 %v8751, %v359
  %v8766 = vmul.f32 %v8747, %v360
  %v8767 = vmul.f32 %v8743, %v361
  %v8768 = vmul.f32 %v8755, %v362
  %v8769 = vmul.f32 %v8752, %v359
  %v8770 = vmul.f32 %v8748, %v360
  %v8771 = vmul.f32 %v8744, %v361
  %v8772 = vmul.f32 %v8756, %v362
  %v8773 = vpack.c.bf16 %v8758, %v8757
  %v8774 = vpack.c.bf16 %v8760, %v8759
  %v8775 = vpack.c.bf16 %v8762, %v8761
  %v8776 = vpack.c.bf16 %v8764, %v8763
  %v8777 = vpack.c.bf16 %v8766, %v8765
  %v8778 = vpack.c.bf16 %v8768, %v8767
  %v8779 = vpack.c.bf16 %v8770, %v8769
  %v8780 = vpack.c.bf16 %v8772, %v8771
  %8781 = vrot.lane.b32.xlu0 %v8244, 111
  %v8782 = vpop.permute.xlu0 %8781
  %8783 = vrot.lane.b32.xlu0 %v8248, 111
  %v8784 = vpop.permute.xlu0 %8783
  %8785 = vrot.lane.b32.xlu0 %v8252, 111
  %v8786 = vpop.permute.xlu0 %8785
  %8787 = vrot.lane.b32.xlu0 %v8256, 111
  %v8788 = vpop.permute.xlu0 %8787
  %8789 = vrot.lane.b32.xlu0 %v8245, 111
  %v8790 = vpop.permute.xlu0 %8789
  %8791 = vrot.lane.b32.xlu0 %v8249, 111
  %v8792 = vpop.permute.xlu0 %8791
  %8793 = vrot.lane.b32.xlu0 %v8253, 111
  %v8794 = vpop.permute.xlu0 %8793
  %8795 = vrot.lane.b32.xlu0 %v8257, 111
  %v8796 = vpop.permute.xlu0 %8795
  %8797 = vrot.lane.b32.xlu0 %v8246, 111
  %v8798 = vpop.permute.xlu0 %8797
  %8799 = vrot.lane.b32.xlu0 %v8250, 111
  %v8800 = vpop.permute.xlu0 %8799
  %8801 = vrot.lane.b32.xlu0 %v8254, 111
  %v8802 = vpop.permute.xlu0 %8801
  %8803 = vrot.lane.b32.xlu0 %v8258, 111
  %v8804 = vpop.permute.xlu0 %8803
  %8805 = vrot.lane.b32.xlu0 %v8247, 111
  %v8806 = vpop.permute.xlu0 %8805
  %8807 = vrot.lane.b32.xlu0 %v8251, 111
  %v8808 = vpop.permute.xlu0 %8807
  %8809 = vrot.lane.b32.xlu0 %v8255, 111
  %v8810 = vpop.permute.xlu0 %8809
  %8811 = vrot.lane.b32.xlu0 %v8259, 111
  %v8812 = vpop.permute.xlu0 %8811
  %v8813 = vsel %vm395, %v8798, %v8806
  %v8814 = vsel %vm395, %v8800, %v8808
  %v8815 = vsel %vm395, %v8802, %v8810
  %v8816 = vsel %vm395, %v8804, %v8812
  %v8817 = vsel %vm395, %v8790, %v8798
  %v8818 = vsel %vm395, %v8792, %v8800
  %v8819 = vsel %vm395, %v8794, %v8802
  %v8820 = vsel %vm395, %v8796, %v8804
  %v8821 = vsel %vm395, %v8782, %v8790
  %v8822 = vsel %vm395, %v8784, %v8792
  %v8823 = vsel %vm395, %v8786, %v8794
  %v8824 = vsel %vm395, %v8788, %v8796
  %v8825 = vsel %vm395, %v8806, %v8782
  %v8826 = vsel %vm395, %v8808, %v8784
  %v8827 = vsel %vm395, %v8810, %v8786
  %v8828 = vsel %vm395, %v8812, %v8788
  %v8829 = vmul.f32 %v8821, %v405
  %v8830 = vmul.f32 %v8817, %v406
  %v8831 = vmul.f32 %v8813, %v407
  %v8832 = vmul.f32 %v8825, %v408
  %v8833 = vmul.f32 %v8822, %v405
  %v8834 = vmul.f32 %v8818, %v406
  %v8835 = vmul.f32 %v8814, %v407
  %v8836 = vmul.f32 %v8826, %v408
  %v8837 = vmul.f32 %v8823, %v405
  %v8838 = vmul.f32 %v8819, %v406
  %v8839 = vmul.f32 %v8815, %v407
  %v8840 = vmul.f32 %v8827, %v408
  %v8841 = vmul.f32 %v8824, %v405
  %v8842 = vmul.f32 %v8820, %v406
  %v8843 = vmul.f32 %v8816, %v407
  %v8844 = vmul.f32 %v8828, %v408
  %v8845 = vpack.c.bf16 %v8830, %v8829
  %v8846 = vpack.c.bf16 %v8832, %v8831
  %v8847 = vpack.c.bf16 %v8834, %v8833
  %v8848 = vpack.c.bf16 %v8836, %v8835
  %v8849 = vpack.c.bf16 %v8838, %v8837
  %v8850 = vpack.c.bf16 %v8840, %v8839
  %v8851 = vpack.c.bf16 %v8842, %v8841
  %v8852 = vpack.c.bf16 %v8844, %v8843
  %v8861 = vunpack.c.l.b16 %v8333
  %v8862 = vunpack.c.h.b16 %v8333
  %v8863 = vunpack.c.l.b16 %v8334
  %v8864 = vunpack.c.h.b16 %v8334
  %v8865 = vunpack.c.l.b16 %v8335
  %v8866 = vunpack.c.h.b16 %v8335
  %v8867 = vunpack.c.l.b16 %v8336
  %v8868 = vunpack.c.h.b16 %v8336
  %v8869 = vunpack.c.l.b16 %v8337
  %v8870 = vunpack.c.h.b16 %v8337
  %v8871 = vunpack.c.l.b16 %v8338
  %v8872 = vunpack.c.h.b16 %v8338
  %v8873 = vunpack.c.l.b16 %v8339
  %v8874 = vunpack.c.h.b16 %v8339
  %v8875 = vunpack.c.l.b16 %v8340
  %v8876 = vunpack.c.h.b16 %v8340
  %v8877 = vpack.c.b16 %v8865, %v8861
  %v8878 = vpack.c.b16 %v8866, %v8862
  %v8879 = vpack.c.b16 %v8867, %v8863
  %v8880 = vpack.c.b16 %v8868, %v8864
  %v8881 = vpack.c.b16 %v8873, %v8869
  %v8882 = vpack.c.b16 %v8874, %v8870
  %v8883 = vpack.c.b16 %v8875, %v8871
  %v8884 = vpack.c.b16 %v8876, %v8872
  %v8901 = vunpack.c.l.b16 %v8405
  %v8902 = vunpack.c.h.b16 %v8405
  %v8903 = vunpack.c.l.b16 %v8406
  %v8904 = vunpack.c.h.b16 %v8406
  %v8905 = vunpack.c.l.b16 %v8407
  %v8906 = vunpack.c.h.b16 %v8407
  %v8907 = vunpack.c.l.b16 %v8408
  %v8908 = vunpack.c.h.b16 %v8408
  %v8909 = vunpack.c.l.b16 %v8409
  %v8910 = vunpack.c.h.b16 %v8409
  %v8911 = vunpack.c.l.b16 %v8410
  %v8912 = vunpack.c.h.b16 %v8410
  %v8913 = vunpack.c.l.b16 %v8411
  %v8914 = vunpack.c.h.b16 %v8411
  %v8915 = vunpack.c.l.b16 %v8412
  %v8916 = vunpack.c.h.b16 %v8412
  %v8917 = vpack.c.b16 %v8905, %v8901
  %v8918 = vpack.c.b16 %v8906, %v8902
  %v8919 = vpack.c.b16 %v8907, %v8903
  %v8920 = vpack.c.b16 %v8908, %v8904
  %v8921 = vpack.c.b16 %v8913, %v8909
  %v8922 = vpack.c.b16 %v8914, %v8910
  %v8923 = vpack.c.b16 %v8915, %v8911
  %v8924 = vpack.c.b16 %v8916, %v8912
  %v8941 = vunpack.c.l.b16 %v8477
  %v8942 = vunpack.c.h.b16 %v8477
  %v8943 = vunpack.c.l.b16 %v8478
  %v8944 = vunpack.c.h.b16 %v8478
  %v8945 = vunpack.c.l.b16 %v8479
  %v8946 = vunpack.c.h.b16 %v8479
  %v8947 = vunpack.c.l.b16 %v8480
  %v8948 = vunpack.c.h.b16 %v8480
  %v8949 = vunpack.c.l.b16 %v8481
  %v8950 = vunpack.c.h.b16 %v8481
  %v8951 = vunpack.c.l.b16 %v8482
  %v8952 = vunpack.c.h.b16 %v8482
  %v8953 = vunpack.c.l.b16 %v8483
  %v8954 = vunpack.c.h.b16 %v8483
  %v8955 = vunpack.c.l.b16 %v8484
  %v8956 = vunpack.c.h.b16 %v8484
  %v8957 = vpack.c.b16 %v8945, %v8941
  %v8958 = vpack.c.b16 %v8946, %v8942
  %v8959 = vpack.c.b16 %v8947, %v8943
  %v8960 = vpack.c.b16 %v8948, %v8944
  %v8961 = vpack.c.b16 %v8953, %v8949
  %v8962 = vpack.c.b16 %v8954, %v8950
  %v8963 = vpack.c.b16 %v8955, %v8951
  %v8964 = vpack.c.b16 %v8956, %v8952
  %v8981 = vunpack.c.l.b16 %v8549
  %v8982 = vunpack.c.h.b16 %v8549
  %v8983 = vunpack.c.l.b16 %v8550
  %v8984 = vunpack.c.h.b16 %v8550
  %v8985 = vunpack.c.l.b16 %v8551
  %v8986 = vunpack.c.h.b16 %v8551
  %v8987 = vunpack.c.l.b16 %v8552
  %v8988 = vunpack.c.h.b16 %v8552
  %v8989 = vunpack.c.l.b16 %v8553
  %v8990 = vunpack.c.h.b16 %v8553
  %v8991 = vunpack.c.l.b16 %v8554
  %v8992 = vunpack.c.h.b16 %v8554
  %v8993 = vunpack.c.l.b16 %v8555
  %v8994 = vunpack.c.h.b16 %v8555
  %v8995 = vunpack.c.l.b16 %v8556
  %v8996 = vunpack.c.h.b16 %v8556
  %v8997 = vpack.c.b16 %v8985, %v8981
  %v8998 = vpack.c.b16 %v8986, %v8982
  %v8999 = vpack.c.b16 %v8987, %v8983
  %v9000 = vpack.c.b16 %v8988, %v8984
  %v9001 = vpack.c.b16 %v8993, %v8989
  %v9002 = vpack.c.b16 %v8994, %v8990
  %v9003 = vpack.c.b16 %v8995, %v8991
  %v9004 = vpack.c.b16 %v8996, %v8992
  %v9021 = vunpack.c.l.b16 %v8557
  %v9022 = vunpack.c.h.b16 %v8557
  %v9023 = vunpack.c.l.b16 %v8558
  %v9024 = vunpack.c.h.b16 %v8558
  %v9025 = vunpack.c.l.b16 %v8559
  %v9026 = vunpack.c.h.b16 %v8559
  %v9027 = vunpack.c.l.b16 %v8560
  %v9028 = vunpack.c.h.b16 %v8560
  %v9029 = vunpack.c.l.b16 %v8561
  %v9030 = vunpack.c.h.b16 %v8561
  %v9031 = vunpack.c.l.b16 %v8562
  %v9032 = vunpack.c.h.b16 %v8562
  %v9033 = vunpack.c.l.b16 %v8563
  %v9034 = vunpack.c.h.b16 %v8563
  %v9035 = vunpack.c.l.b16 %v8564
  %v9036 = vunpack.c.h.b16 %v8564
  %v9037 = vpack.c.b16 %v9025, %v9021
  %v9038 = vpack.c.b16 %v9026, %v9022
  %v9039 = vpack.c.b16 %v9027, %v9023
  %v9040 = vpack.c.b16 %v9028, %v9024
  %v9041 = vpack.c.b16 %v9033, %v9029
  %v9042 = vpack.c.b16 %v9034, %v9030
  %v9043 = vpack.c.b16 %v9035, %v9031
  %v9044 = vpack.c.b16 %v9036, %v9032
  %v9061 = vunpack.c.l.b16 %v8629
  %v9062 = vunpack.c.h.b16 %v8629
  %v9063 = vunpack.c.l.b16 %v8630
  %v9064 = vunpack.c.h.b16 %v8630
  %v9065 = vunpack.c.l.b16 %v8631
  %v9066 = vunpack.c.h.b16 %v8631
  %v9067 = vunpack.c.l.b16 %v8632
  %v9068 = vunpack.c.h.b16 %v8632
  %v9069 = vunpack.c.l.b16 %v8633
  %v9070 = vunpack.c.h.b16 %v8633
  %v9071 = vunpack.c.l.b16 %v8634
  %v9072 = vunpack.c.h.b16 %v8634
  %v9073 = vunpack.c.l.b16 %v8635
  %v9074 = vunpack.c.h.b16 %v8635
  %v9075 = vunpack.c.l.b16 %v8636
  %v9076 = vunpack.c.h.b16 %v8636
  %v9077 = vpack.c.b16 %v9065, %v9061
  %v9078 = vpack.c.b16 %v9066, %v9062
  %v9079 = vpack.c.b16 %v9067, %v9063
  %v9080 = vpack.c.b16 %v9068, %v9064
  %v9081 = vpack.c.b16 %v9073, %v9069
  %v9082 = vpack.c.b16 %v9074, %v9070
  %v9083 = vpack.c.b16 %v9075, %v9071
  %v9084 = vpack.c.b16 %v9076, %v9072
  %v9101 = vunpack.c.l.b16 %v8701
  %v9102 = vunpack.c.h.b16 %v8701
  %v9103 = vunpack.c.l.b16 %v8702
  %v9104 = vunpack.c.h.b16 %v8702
  %v9105 = vunpack.c.l.b16 %v8703
  %v9106 = vunpack.c.h.b16 %v8703
  %v9107 = vunpack.c.l.b16 %v8704
  %v9108 = vunpack.c.h.b16 %v8704
  %v9109 = vunpack.c.l.b16 %v8705
  %v9110 = vunpack.c.h.b16 %v8705
  %v9111 = vunpack.c.l.b16 %v8706
  %v9112 = vunpack.c.h.b16 %v8706
  %v9113 = vunpack.c.l.b16 %v8707
  %v9114 = vunpack.c.h.b16 %v8707
  %v9115 = vunpack.c.l.b16 %v8708
  %v9116 = vunpack.c.h.b16 %v8708
  %v9117 = vpack.c.b16 %v9105, %v9101
  %v9118 = vpack.c.b16 %v9106, %v9102
  %v9119 = vpack.c.b16 %v9107, %v9103
  %v9120 = vpack.c.b16 %v9108, %v9104
  %v9121 = vpack.c.b16 %v9113, %v9109
  %v9122 = vpack.c.b16 %v9114, %v9110
  %v9123 = vpack.c.b16 %v9115, %v9111
  %v9124 = vpack.c.b16 %v9116, %v9112
  %v9141 = vunpack.c.l.b16 %v8773
  %v9142 = vunpack.c.h.b16 %v8773
  %v9143 = vunpack.c.l.b16 %v8774
  %v9144 = vunpack.c.h.b16 %v8774
  %v9145 = vunpack.c.l.b16 %v8775
  %v9146 = vunpack.c.h.b16 %v8775
  %v9147 = vunpack.c.l.b16 %v8776
  %v9148 = vunpack.c.h.b16 %v8776
  %v9149 = vunpack.c.l.b16 %v8777
  %v9150 = vunpack.c.h.b16 %v8777
  %v9151 = vunpack.c.l.b16 %v8778
  %v9152 = vunpack.c.h.b16 %v8778
  %v9153 = vunpack.c.l.b16 %v8779
  %v9154 = vunpack.c.h.b16 %v8779
  %v9155 = vunpack.c.l.b16 %v8780
  %v9156 = vunpack.c.h.b16 %v8780
  %v9157 = vpack.c.b16 %v9145, %v9141
  %v9158 = vpack.c.b16 %v9146, %v9142
  %v9159 = vpack.c.b16 %v9147, %v9143
  %v9160 = vpack.c.b16 %v9148, %v9144
  %v9161 = vpack.c.b16 %v9153, %v9149
  %v9162 = vpack.c.b16 %v9154, %v9150
  %v9163 = vpack.c.b16 %v9155, %v9151
  %v9164 = vpack.c.b16 %v9156, %v9152
  %v9181 = vunpack.c.l.b16 %v8845
  %v9182 = vunpack.c.h.b16 %v8845
  %v9183 = vunpack.c.l.b16 %v8846
  %v9184 = vunpack.c.h.b16 %v8846
  %v9185 = vunpack.c.l.b16 %v8847
  %v9186 = vunpack.c.h.b16 %v8847
  %v9187 = vunpack.c.l.b16 %v8848
  %v9188 = vunpack.c.h.b16 %v8848
  %v9189 = vunpack.c.l.b16 %v8849
  %v9190 = vunpack.c.h.b16 %v8849
  %v9191 = vunpack.c.l.b16 %v8850
  %v9192 = vunpack.c.h.b16 %v8850
  %v9193 = vunpack.c.l.b16 %v8851
  %v9194 = vunpack.c.h.b16 %v8851
  %v9195 = vunpack.c.l.b16 %v8852
  %v9196 = vunpack.c.h.b16 %v8852
  %v9197 = vpack.c.b16 %v9185, %v9181
  %v9198 = vpack.c.b16 %v9186, %v9182
  %v9199 = vpack.c.b16 %v9187, %v9183
  %v9200 = vpack.c.b16 %v9188, %v9184
  %v9201 = vpack.c.b16 %v9193, %v9189
  %v9202 = vpack.c.b16 %v9194, %v9190
  %v9203 = vpack.c.b16 %v9195, %v9191
  %v9204 = vpack.c.b16 %v9196, %v9192
  %v9221 = vunpack.c.l.b16 %v8261
  %v9222 = vunpack.c.h.b16 %v8261
  %v9223 = vunpack.c.l.b16 %v8262
  %v9224 = vunpack.c.l.b16 %v8263
  %v9225 = vunpack.c.h.b16 %v8263
  %v9226 = vunpack.c.l.b16 %v8264
  %v9227 = vunpack.c.l.b16 %v8265
  %v9228 = vunpack.c.h.b16 %v8265
  %v9229 = vunpack.c.l.b16 %v8266
  %v9230 = vunpack.c.l.b16 %v8267
  %v9231 = vunpack.c.h.b16 %v8267
  %v9232 = vunpack.c.l.b16 %v8268
  %v9233 = vpack.c.b16 %v9224, %v9221
  %v9234 = vpack.c.b16 %v9225, %v9222
  %v9235 = vpack.c.b16 %v9226, %v9223
  %v9236 = vpack.c.b16 %v9230, %v9227
  %v9237 = vpack.c.b16 %v9231, %v9228
  %v9238 = vpack.c.b16 %v9232, %v9229
  %v9244 = vsel %vm1995, %v9235, 0
  %v9247 = vsel %vm1995, %v9238, 0
  %9249 = vmatpush.bf16.msra.mxu0 %v9001
  %9250 = vmatpush.bf16.msra.mxu0 %v8997
  %9251 = vmatpush.bf16.msra.mxu0 %v8961
  %9252 = vmatpush.bf16.msra.mxu0 %v8957
  %9253 = vmatpush.bf16.msra.mxu0 %v8921
  %9254 = vmatpush.bf16.msra.mxu0 %v8917
  %9255 = vmatpush.bf16.msra.mxu0 %v8881
  %9256 = vmatpush.bf16.msra.mxu0 %v8877
  %9257 = vmatmul.bf16.gmra.mxu0 %v9233
  %v9258 = vpop.f32.mrf.mxu0
  %v9259 = vadd.f32 0.0, %v9258
  %v9260 = vpop.f32.mrf.mxu0
  %v9261 = vadd.f32 0.0, %v9260
  %9262 = vmatmul.bf16.gmra.mxu0 %v9236
  %v9263 = vpop.f32.mrf.mxu0
  %v9264 = vadd.f32 0.0, %v9263
  %v9265 = vpop.f32.mrf.mxu0
  %v9266 = vadd.f32 0.0, %v9265
  %9267 = vdwg.mxu0
  %9268 = vmatpush.bf16.msra.mxu0 %v9161
  %9269 = vmatpush.bf16.msra.mxu0 %v9157
  %9270 = vmatpush.bf16.msra.mxu0 %v9121
  %9271 = vmatpush.bf16.msra.mxu0 %v9117
  %9272 = vmatpush.bf16.msra.mxu0 %v9081
  %9273 = vmatpush.bf16.msra.mxu0 %v9077
  %9274 = vmatpush.bf16.msra.mxu0 %v9041
  %9275 = vmatpush.bf16.msra.mxu0 %v9037
  %9276 = vmatmul.bf16.gmra.mxu0 %v9234
  %v9277 = vpop.f32.mrf.mxu0
  %v9278 = vadd.f32 %v9259, %v9277
  %v9279 = vpop.f32.mrf.mxu0
  %v9280 = vadd.f32 %v9261, %v9279
  %9281 = vmatmul.bf16.gmra.mxu0 %v9237
  %v9282 = vpop.f32.mrf.mxu0
  %v9283 = vadd.f32 %v9264, %v9282
  %v9284 = vpop.f32.mrf.mxu0
  %v9285 = vadd.f32 %v9266, %v9284
  %9286 = vdwg.mxu0
  %9287 = vmatpush.bf16.msra.mxu0 0
  %9288 = vmatpush.bf16.msra.mxu0 0
  %9289 = vmatpush.bf16.msra.mxu0 0
  %9290 = vmatpush.bf16.msra.mxu0 0
  %9291 = vmatpush.bf16.msra.mxu0 0
  %9292 = vmatpush.bf16.msra.mxu0 0
  %9293 = vmatpush.bf16.msra.mxu0 %v9201
  %9294 = vmatpush.bf16.msra.mxu0 %v9197
  %9295 = vmatmul.bf16.gmra.mxu0 %v9244
  %v9296 = vpop.f32.mrf.mxu0
  %v9297 = vadd.f32 %v9278, %v9296
  %v9298 = vpop.f32.mrf.mxu0
  %v9299 = vadd.f32 %v9280, %v9298
  %9300 = vmatmul.bf16.gmra.mxu0 %v9247
  %v9301 = vpop.f32.mrf.mxu0
  %v9302 = vadd.f32 %v9283, %v9301
  %v9303 = vpop.f32.mrf.mxu0
  %v9304 = vadd.f32 %v9285, %v9303
  %9305 = vdwg.mxu0
  %9306 = vmatpush.bf16.msra.mxu0 %v9002
  %9307 = vmatpush.bf16.msra.mxu0 %v8998
  %9308 = vmatpush.bf16.msra.mxu0 %v8962
  %9309 = vmatpush.bf16.msra.mxu0 %v8958
  %9310 = vmatpush.bf16.msra.mxu0 %v8922
  %9311 = vmatpush.bf16.msra.mxu0 %v8918
  %9312 = vmatpush.bf16.msra.mxu0 %v8882
  %9313 = vmatpush.bf16.msra.mxu0 %v8878
  %9314 = vmatmul.bf16.gmra.mxu0 %v9233
  %v9315 = vpop.f32.mrf.mxu0
  %v9316 = vadd.f32 0.0, %v9315
  %v9317 = vpop.f32.mrf.mxu0
  %v9318 = vadd.f32 0.0, %v9317
  %9319 = vmatmul.bf16.gmra.mxu0 %v9236
  %v9320 = vpop.f32.mrf.mxu0
  %v9321 = vadd.f32 0.0, %v9320
  %v9322 = vpop.f32.mrf.mxu0
  %v9323 = vadd.f32 0.0, %v9322
  %9324 = vdwg.mxu0
  %9325 = vmatpush.bf16.msra.mxu0 %v9162
  %9326 = vmatpush.bf16.msra.mxu0 %v9158
  %9327 = vmatpush.bf16.msra.mxu0 %v9122
  %9328 = vmatpush.bf16.msra.mxu0 %v9118
  %9329 = vmatpush.bf16.msra.mxu0 %v9082
  %9330 = vmatpush.bf16.msra.mxu0 %v9078
  %9331 = vmatpush.bf16.msra.mxu0 %v9042
  %9332 = vmatpush.bf16.msra.mxu0 %v9038
  %9333 = vmatmul.bf16.gmra.mxu0 %v9234
  %v9334 = vpop.f32.mrf.mxu0
  %v9335 = vadd.f32 %v9316, %v9334
  %v9336 = vpop.f32.mrf.mxu0
  %v9337 = vadd.f32 %v9318, %v9336
  %9338 = vmatmul.bf16.gmra.mxu0 %v9237
  %v9339 = vpop.f32.mrf.mxu0
  %v9340 = vadd.f32 %v9321, %v9339
  %v9341 = vpop.f32.mrf.mxu0
  %v9342 = vadd.f32 %v9323, %v9341
  %9343 = vdwg.mxu0
  %9344 = vmatpush.bf16.msra.mxu0 0
  %9345 = vmatpush.bf16.msra.mxu0 0
  %9346 = vmatpush.bf16.msra.mxu0 0
  %9347 = vmatpush.bf16.msra.mxu0 0
  %9348 = vmatpush.bf16.msra.mxu0 0
  %9349 = vmatpush.bf16.msra.mxu0 0
  %9350 = vmatpush.bf16.msra.mxu0 %v9202
  %9351 = vmatpush.bf16.msra.mxu0 %v9198
  %9352 = vmatmul.bf16.gmra.mxu0 %v9244
  %v9353 = vpop.f32.mrf.mxu0
  %v9354 = vadd.f32 %v9335, %v9353
  %v9355 = vpop.f32.mrf.mxu0
  %v9356 = vadd.f32 %v9337, %v9355
  %9357 = vmatmul.bf16.gmra.mxu0 %v9247
  %v9358 = vpop.f32.mrf.mxu0
  %v9359 = vadd.f32 %v9340, %v9358
  %v9360 = vpop.f32.mrf.mxu0
  %v9361 = vadd.f32 %v9342, %v9360
  %9362 = vdwg.mxu0
  %9363 = vmatpush.bf16.msra.mxu0 %v9003
  %9364 = vmatpush.bf16.msra.mxu0 %v8999
  %9365 = vmatpush.bf16.msra.mxu0 %v8963
  %9366 = vmatpush.bf16.msra.mxu0 %v8959
  %9367 = vmatpush.bf16.msra.mxu0 %v8923
  %9368 = vmatpush.bf16.msra.mxu0 %v8919
  %9369 = vmatpush.bf16.msra.mxu0 %v8883
  %9370 = vmatpush.bf16.msra.mxu0 %v8879
  %9371 = vmatmul.bf16.gmra.mxu0 %v9233
  %v9372 = vpop.f32.mrf.mxu0
  %v9373 = vadd.f32 0.0, %v9372
  %v9374 = vpop.f32.mrf.mxu0
  %v9375 = vadd.f32 0.0, %v9374
  %9376 = vmatmul.bf16.gmra.mxu0 %v9236
  %v9377 = vpop.f32.mrf.mxu0
  %v9378 = vadd.f32 0.0, %v9377
  %v9379 = vpop.f32.mrf.mxu0
  %v9380 = vadd.f32 0.0, %v9379
  %9381 = vdwg.mxu0
  %9382 = vmatpush.bf16.msra.mxu0 %v9163
  %9383 = vmatpush.bf16.msra.mxu0 %v9159
  %9384 = vmatpush.bf16.msra.mxu0 %v9123
  %9385 = vmatpush.bf16.msra.mxu0 %v9119
  %9386 = vmatpush.bf16.msra.mxu0 %v9083
  %9387 = vmatpush.bf16.msra.mxu0 %v9079
  %9388 = vmatpush.bf16.msra.mxu0 %v9043
  %9389 = vmatpush.bf16.msra.mxu0 %v9039
  %9390 = vmatmul.bf16.gmra.mxu0 %v9234
  %v9391 = vpop.f32.mrf.mxu0
  %v9392 = vadd.f32 %v9373, %v9391
  %v9393 = vpop.f32.mrf.mxu0
  %v9394 = vadd.f32 %v9375, %v9393
  %9395 = vmatmul.bf16.gmra.mxu0 %v9237
  %v9396 = vpop.f32.mrf.mxu0
  %v9397 = vadd.f32 %v9378, %v9396
  %v9398 = vpop.f32.mrf.mxu0
  %v9399 = vadd.f32 %v9380, %v9398
  %9400 = vdwg.mxu0
  %9401 = vmatpush.bf16.msra.mxu0 0
  %9402 = vmatpush.bf16.msra.mxu0 0
  %9403 = vmatpush.bf16.msra.mxu0 0
  %9404 = vmatpush.bf16.msra.mxu0 0
  %9405 = vmatpush.bf16.msra.mxu0 0
  %9406 = vmatpush.bf16.msra.mxu0 0
  %9407 = vmatpush.bf16.msra.mxu0 %v9203
  %9408 = vmatpush.bf16.msra.mxu0 %v9199
  %9409 = vmatmul.bf16.gmra.mxu0 %v9244
  %v9410 = vpop.f32.mrf.mxu0
  %v9411 = vadd.f32 %v9392, %v9410
  %v9412 = vpop.f32.mrf.mxu0
  %v9413 = vadd.f32 %v9394, %v9412
  %9414 = vmatmul.bf16.gmra.mxu0 %v9247
  %v9415 = vpop.f32.mrf.mxu0
  %v9416 = vadd.f32 %v9397, %v9415
  %v9417 = vpop.f32.mrf.mxu0
  %v9418 = vadd.f32 %v9399, %v9417
  %9419 = vdwg.mxu0
  %9420 = vmatpush.bf16.msra.mxu0 %v9004
  %9421 = vmatpush.bf16.msra.mxu0 %v9000
  %9422 = vmatpush.bf16.msra.mxu0 %v8964
  %9423 = vmatpush.bf16.msra.mxu0 %v8960
  %9424 = vmatpush.bf16.msra.mxu0 %v8924
  %9425 = vmatpush.bf16.msra.mxu0 %v8920
  %9426 = vmatpush.bf16.msra.mxu0 %v8884
  %9427 = vmatpush.bf16.msra.mxu0 %v8880
  %9428 = vmatmul.bf16.gmra.mxu0 %v9233
  %v9429 = vpop.f32.mrf.mxu0
  %v9430 = vadd.f32 0.0, %v9429
  %v9431 = vpop.f32.mrf.mxu0
  %v9432 = vadd.f32 0.0, %v9431
  %9433 = vmatmul.bf16.gmra.mxu0 %v9236
  %v9434 = vpop.f32.mrf.mxu0
  %v9435 = vadd.f32 0.0, %v9434
  %v9436 = vpop.f32.mrf.mxu0
  %v9437 = vadd.f32 0.0, %v9436
  %9438 = vdwg.mxu0
  %9439 = vmatpush.bf16.msra.mxu0 %v9164
  %9440 = vmatpush.bf16.msra.mxu0 %v9160
  %9441 = vmatpush.bf16.msra.mxu0 %v9124
  %9442 = vmatpush.bf16.msra.mxu0 %v9120
  %9443 = vmatpush.bf16.msra.mxu0 %v9084
  %9444 = vmatpush.bf16.msra.mxu0 %v9080
  %9445 = vmatpush.bf16.msra.mxu0 %v9044
  %9446 = vmatpush.bf16.msra.mxu0 %v9040
  %9447 = vmatmul.bf16.gmra.mxu0 %v9234
  %v9448 = vpop.f32.mrf.mxu0
  %v9449 = vadd.f32 %v9430, %v9448
  %v9450 = vpop.f32.mrf.mxu0
  %v9451 = vadd.f32 %v9432, %v9450
  %9452 = vmatmul.bf16.gmra.mxu0 %v9237
  %v9453 = vpop.f32.mrf.mxu0
  %v9454 = vadd.f32 %v9435, %v9453
  %v9455 = vpop.f32.mrf.mxu0
  %v9456 = vadd.f32 %v9437, %v9455
  %9457 = vdwg.mxu0
  %9458 = vmatpush.bf16.msra.mxu0 0
  %9459 = vmatpush.bf16.msra.mxu0 0
  %9460 = vmatpush.bf16.msra.mxu0 0
  %9461 = vmatpush.bf16.msra.mxu0 0
  %9462 = vmatpush.bf16.msra.mxu0 0
  %9463 = vmatpush.bf16.msra.mxu0 0
  %9464 = vmatpush.bf16.msra.mxu0 %v9204
  %9465 = vmatpush.bf16.msra.mxu0 %v9200
  %9466 = vmatmul.bf16.gmra.mxu0 %v9244
  %v9467 = vpop.f32.mrf.mxu0
  %v9468 = vadd.f32 %v9449, %v9467
  %v9469 = vpop.f32.mrf.mxu0
  %v9470 = vadd.f32 %v9451, %v9469
  %9471 = vmatmul.bf16.gmra.mxu0 %v9247
  %v9472 = vpop.f32.mrf.mxu0
  %v9473 = vadd.f32 %v9454, %v9472
  %v9474 = vpop.f32.mrf.mxu0
  %v9475 = vadd.f32 %v9456, %v9474
  %9476 = vdwg.mxu0
  %v9477 = vadd.f32 %v9297, %v9354
  %v9478 = vadd.f32 %v9477, %v9411
  %v9479 = vadd.f32 %v9478, %v9468
  %9480 = vadd.xlane.f32.xlu0 %v9479
  %v9481 = vpop.xlane.xlu0 %9480
  %v9482 = vadd.f32 %v9299, %v9356
  %v9483 = vadd.f32 %v9482, %v9413
  %v9484 = vadd.f32 %v9483, %v9470
  %9485 = vadd.xlane.f32.xlu0 %v9484
  %v9486 = vpop.xlane.xlu0 %9485
  %v9487 = vadd.f32 %v9302, %v9359
  %v9488 = vadd.f32 %v9487, %v9416
  %v9489 = vadd.f32 %v9488, %v9473
  %9490 = vadd.xlane.f32.xlu0 %v9489
  %v9491 = vpop.xlane.xlu0 %9490
  %v9492 = vadd.f32 %v9304, %v9361
  %v9493 = vadd.f32 %v9492, %v9418
  %v9494 = vadd.f32 %v9493, %v9475
  %9495 = vadd.xlane.f32.xlu0 %v9494
  %v9496 = vpop.xlane.xlu0 %9495
  %v9497 = vmul.f32 %v9481, %v808
  %v9498 = vmul.f32 %v9486, %v808
  %v9499 = vmul.f32 %v9491, %v808
  %v9500 = vmul.f32 %v9496, %v808
  %v9501 = vsub.f32 %v9297, %v9497
  %v9502 = vsub.f32 %v9354, %v9497
  %v9503 = vsub.f32 %v9411, %v9497
  %v9504 = vsub.f32 %v9468, %v9497
  %v9505 = vsub.f32 %v9299, %v9498
  %v9506 = vsub.f32 %v9356, %v9498
  %v9507 = vsub.f32 %v9413, %v9498
  %v9508 = vsub.f32 %v9470, %v9498
  %v9509 = vsub.f32 %v9302, %v9499
  %v9510 = vsub.f32 %v9359, %v9499
  %v9511 = vsub.f32 %v9416, %v9499
  %v9512 = vsub.f32 %v9473, %v9499
  %v9513 = vsub.f32 %v9304, %v9500
  %v9514 = vsub.f32 %v9361, %v9500
  %v9515 = vsub.f32 %v9418, %v9500
  %v9516 = vsub.f32 %v9475, %v9500
  %v9517 = vmul.f32 %v9501, %v9501
  %v9518 = vmul.f32 %v9502, %v9502
  %v9519 = vmul.f32 %v9503, %v9503
  %v9520 = vmul.f32 %v9504, %v9504
  %v9521 = vmul.f32 %v9505, %v9505
  %v9522 = vmul.f32 %v9506, %v9506
  %v9523 = vmul.f32 %v9507, %v9507
  %v9524 = vmul.f32 %v9508, %v9508
  %v9525 = vmul.f32 %v9509, %v9509
  %v9526 = vmul.f32 %v9510, %v9510
  %v9527 = vmul.f32 %v9511, %v9511
  %v9528 = vmul.f32 %v9512, %v9512
  %v9529 = vmul.f32 %v9513, %v9513
  %v9530 = vmul.f32 %v9514, %v9514
  %v9531 = vmul.f32 %v9515, %v9515
  %v9532 = vmul.f32 %v9516, %v9516
  %v9533 = vadd.f32 %v9517, %v9518
  %v9534 = vadd.f32 %v9533, %v9519
  %v9535 = vadd.f32 %v9534, %v9520
  %9536 = vadd.xlane.f32.xlu0 %v9535
  %v9537 = vpop.xlane.xlu0 %9536
  %v9538 = vadd.f32 %v9521, %v9522
  %v9539 = vadd.f32 %v9538, %v9523
  %v9540 = vadd.f32 %v9539, %v9524
  %9541 = vadd.xlane.f32.xlu0 %v9540
  %v9542 = vpop.xlane.xlu0 %9541
  %v9543 = vadd.f32 %v9525, %v9526
  %v9544 = vadd.f32 %v9543, %v9527
  %v9545 = vadd.f32 %v9544, %v9528
  %9546 = vadd.xlane.f32.xlu0 %v9545
  %v9547 = vpop.xlane.xlu0 %9546
  %v9548 = vadd.f32 %v9529, %v9530
  %v9549 = vadd.f32 %v9548, %v9531
  %v9550 = vadd.f32 %v9549, %v9532
  %9551 = vadd.xlane.f32.xlu0 %v9550
  %v9552 = vpop.xlane.xlu0 %9551
  %v9553 = vmul.f32 %v9537, %v808
  %v9554 = vmul.f32 %v9542, %v808
  %v9555 = vmul.f32 %v9547, %v808
  %v9556 = vmul.f32 %v9552, %v808
  %s9557 = scalar_lea.vmem %s4, 192
  %v9558 = vld [vmem:[%s9557] sm:$0xff]
  %v9559 = vld [vmem:[%s9557 + $0x8] sm:$0xff]
  %v9560 = vld [vmem:[%s9557 + $0x10] sm:$0xff]
  %v9561 = vld [vmem:[%s9557 + $0x18] sm:$0xff]
  %v9562 = vadd.f32 %v9553, 1e-05
  %v9563 = vadd.f32 %v9554, 1e-05
  %v9564 = vadd.f32 %v9555, 1e-05
  %v9565 = vadd.f32 %v9556, 1e-05
  %v9566 = vrsqrt.pop %v9562
  %v9567 = vmul.f32 %v9566, %v9562
  %v9568 = vmul.f32 %v9567, %v9566
  %v9569 = vmul.f32 0.5, %v9568
  %v9570 = vsub.f32 1.5, %v9569
  %v9571 = vmul.f32 %v9566, %v9570
  %vm9572 = vweird.f32 %v9562
  %vm9573 = vweird.f32 %v9566
  %vm9574 = vmor %vm9572, %vm9573
  %v9575 = vsel %vm9574, %v9566, %v9571
  %v9576 = vrsqrt.pop %v9563
  %v9577 = vmul.f32 %v9576, %v9563
  %v9578 = vmul.f32 %v9577, %v9576
  %v9579 = vmul.f32 0.5, %v9578
  %v9580 = vsub.f32 1.5, %v9579
  %v9581 = vmul.f32 %v9576, %v9580
  %vm9582 = vweird.f32 %v9563
  %vm9583 = vweird.f32 %v9576
  %vm9584 = vmor %vm9582, %vm9583
  %v9585 = vsel %vm9584, %v9576, %v9581
  %v9586 = vrsqrt.pop %v9564
  %v9587 = vmul.f32 %v9586, %v9564
  %v9588 = vmul.f32 %v9587, %v9586
  %v9589 = vmul.f32 0.5, %v9588
  %v9590 = vsub.f32 1.5, %v9589
  %v9591 = vmul.f32 %v9586, %v9590
  %vm9592 = vweird.f32 %v9564
  %vm9593 = vweird.f32 %v9586
  %vm9594 = vmor %vm9592, %vm9593
  %v9595 = vsel %vm9594, %v9586, %v9591
  %v9596 = vrsqrt.pop %v9565
  %v9597 = vmul.f32 %v9596, %v9565
  %v9598 = vmul.f32 %v9597, %v9596
  %v9599 = vmul.f32 0.5, %v9598
  %v9600 = vsub.f32 1.5, %v9599
  %v9601 = vmul.f32 %v9596, %v9600
  %vm9602 = vweird.f32 %v9565
  %vm9603 = vweird.f32 %v9596
  %vm9604 = vmor %vm9602, %vm9603
  %v9605 = vsel %vm9604, %v9596, %v9601
  %v9606 = vmul.f32 %v9558, %v9575
  %v9607 = vmul.f32 %v9559, %v9585
  %v9608 = vmul.f32 %v9560, %v9595
  %v9609 = vmul.f32 %v9561, %v9605
  %9611 = vset.pattern.permute.xlu0 0
  %9612 = vperm.xlu0 %9611, %v9606
  %v9613 = vpop.permute.xlu0 %9612
  %9616 = vset.pattern.permute.xlu0 0
  %9617 = vperm.xlu0 %9616, %v9607
  %v9618 = vpop.permute.xlu0 %9617
  %9621 = vset.pattern.permute.xlu0 0
  %9622 = vperm.xlu0 %9621, %v9608
  %v9623 = vpop.permute.xlu0 %9622
  %9626 = vset.pattern.permute.xlu0 0
  %9627 = vperm.xlu0 %9626, %v9609
  %v9628 = vpop.permute.xlu0 %9627
  %v9630 = vmul.f32 %v9501, %v9613
  %v9631 = vmul.f32 %v9502, %v9613
  %v9632 = vmul.f32 %v9503, %v9613
  %v9633 = vmul.f32 %v9504, %v9613
  %v9634 = vmul.f32 %v9505, %v9618
  %v9635 = vmul.f32 %v9506, %v9618
  %v9636 = vmul.f32 %v9507, %v9618
  %v9637 = vmul.f32 %v9508, %v9618
  %v9638 = vmul.f32 %v9509, %v9623
  %v9639 = vmul.f32 %v9510, %v9623
  %v9640 = vmul.f32 %v9511, %v9623
  %v9641 = vmul.f32 %v9512, %v9623
  %v9642 = vmul.f32 %v9513, %v9628
  %v9643 = vmul.f32 %v9514, %v9628
  %v9644 = vmul.f32 %v9515, %v9628
  %v9645 = vmul.f32 %v9516, %v9628
  %s9646 = scalar_lea.vmem %s5, 192
  %v9647 = vld [vmem:[%s9646] sm:$0xff]
  %v9648 = vld [vmem:[%s9646 + $0x8] sm:$0xff]
  %v9649 = vld [vmem:[%s9646 + $0x10] sm:$0xff]
  %v9650 = vld [vmem:[%s9646 + $0x18] sm:$0xff]
  %9652 = vset.pattern.permute.xlu0 0
  %9653 = vperm.xlu0 %9652, %v9647
  %v9654 = vpop.permute.xlu0 %9653
  %9657 = vset.pattern.permute.xlu0 0
  %9658 = vperm.xlu0 %9657, %v9648
  %v9659 = vpop.permute.xlu0 %9658
  %9662 = vset.pattern.permute.xlu0 0
  %9663 = vperm.xlu0 %9662, %v9649
  %v9664 = vpop.permute.xlu0 %9663
  %9667 = vset.pattern.permute.xlu0 0
  %9668 = vperm.xlu0 %9667, %v9650
  %v9669 = vpop.permute.xlu0 %9668
  %v9671 = vadd.f32 %v9630, %v9654
  %v9672 = vadd.f32 %v9631, %v9654
  %v9673 = vadd.f32 %v9632, %v9654
  %v9674 = vadd.f32 %v9633, %v9654
  %v9675 = vadd.f32 %v9634, %v9659
  %v9676 = vadd.f32 %v9635, %v9659
  %v9677 = vadd.f32 %v9636, %v9659
  %v9678 = vadd.f32 %v9637, %v9659
  %v9679 = vadd.f32 %v9638, %v9664
  %v9680 = vadd.f32 %v9639, %v9664
  %v9681 = vadd.f32 %v9640, %v9664
  %v9682 = vadd.f32 %v9641, %v9664
  %v9683 = vadd.f32 %v9642, %v9669
  %v9684 = vadd.f32 %v9643, %v9669
  %v9685 = vadd.f32 %v9644, %v9669
  %v9686 = vadd.f32 %v9645, %v9669
  %v9687 = vadd.f32 %v9671, %v6801
  %v9688 = vadd.f32 %v9672, %v6802
  %v9689 = vadd.f32 %v9673, %v6803
  %v9690 = vadd.f32 %v9674, %v6804
  %v9691 = vadd.f32 %v9675, %v6805
  %v9692 = vadd.f32 %v9676, %v6806
  %v9693 = vadd.f32 %v9677, %v6807
  %v9694 = vadd.f32 %v9678, %v6808
  %v9695 = vadd.f32 %v9679, %v6809
  %v9696 = vadd.f32 %v9680, %v6810
  %v9697 = vadd.f32 %v9681, %v6811
  %v9698 = vadd.f32 %v9682, %v6812
  %v9699 = vadd.f32 %v9683, %v6813
  %v9700 = vadd.f32 %v9684, %v6814
  %v9701 = vadd.f32 %v9685, %v6815
  %v9702 = vadd.f32 %v9686, %v6816
  %v9703 = vmax.f32 %v9687, 0.0
  %v9704 = vmax.f32 %v9688, 0.0
  %v9705 = vmax.f32 %v9689, 0.0
  %v9706 = vmax.f32 %v9690, 0.0
  %v9707 = vmax.f32 %v9691, 0.0
  %v9708 = vmax.f32 %v9692, 0.0
  %v9709 = vmax.f32 %v9693, 0.0
  %v9710 = vmax.f32 %v9694, 0.0
  %v9711 = vmax.f32 %v9695, 0.0
  %v9712 = vmax.f32 %v9696, 0.0
  %v9713 = vmax.f32 %v9697, 0.0
  %v9714 = vmax.f32 %v9698, 0.0
  %v9715 = vmax.f32 %v9699, 0.0
  %v9716 = vmax.f32 %v9700, 0.0
  %v9717 = vmax.f32 %v9701, 0.0
  %v9718 = vmax.f32 %v9702, 0.0
  %9719 = vst [vmem:[%s6] sm:$0xff] %v9703
  %9720 = vst [vmem:[%s6 + $0x8] sm:$0xff] %v9704
  %9721 = vst [vmem:[%s6 + $0x10] sm:$0xff] %v9705
  %9722 = vst [vmem:[%s6 + $0x18] sm:$0xff] %v9706
  %9723 = vst [vmem:[%s6 + $0x20] sm:$0xff] %v9707
  %9724 = vst [vmem:[%s6 + $0x28] sm:$0xff] %v9708
  %9725 = vst [vmem:[%s6 + $0x30] sm:$0xff] %v9709
  %9726 = vst [vmem:[%s6 + $0x38] sm:$0xff] %v9710
  %9727 = vst [vmem:[%s6 + $0x40] sm:$0xff] %v9711
  %9728 = vst [vmem:[%s6 + $0x48] sm:$0xff] %v9712
  %9729 = vst [vmem:[%s6 + $0x50] sm:$0xff] %v9713
  %9730 = vst [vmem:[%s6 + $0x58] sm:$0xff] %v9714
  %9731 = vst [vmem:[%s6 + $0x60] sm:$0xff] %v9715
  %9732 = vst [vmem:[%s6 + $0x68] sm:$0xff] %v9716
  %9733 = vst [vmem:[%s6 + $0x70] sm:$0xff] %v9717
  %9734 = vst [vmem:[%s6 + $0x78] sm:$0xff] %v9718
  // Predicated region
  $region26: #{mini_resnet_forward.1} parent=0 // pred_check
    _
  $region27: #{mini_resnet_forward.1} parent=0 // pred_check_branch
    %9736 = sbr.rel (0) target = $region29
  $region28: #{mini_resnet_forward.1} parent=0 // pred_region
    _
  $region29: #{mini_resnet_forward.1} parent=0 // pred_fallthru
    _
  // Predicated region
  $region30: #{mini_resnet_forward.1} parent=0 // pred_check
    _
  $region31: #{mini_resnet_forward.1} parent=0 // pred_check_branch
    %9738 = sbr.rel (0) target = $region33
  $region32: #{mini_resnet_forward.1} parent=0 // pred_region
    _
  $region33: #{mini_resnet_forward.1} parent=0 // pred_fallthru
    _

</llo_original>
